<compile_context>
chip_gen: v5e
topology: v5e:2x2
jax: 0.10.0
libtpu: 0.0.40
codegen_flags: <defaults>
</compile_context>

<pallas_src>
import functools
import math

import jax
import jax.numpy as jnp
from jax.experimental import pallas as pl
from jax.experimental.pallas import tpu as pltpu


def _sigmoid(x):
    # plain exp + divide: guaranteed to lower on Mosaic (EUP exp, VPU divide)
    return 1.0 / (1.0 + jnp.exp(-x))


# --------------------------------- kernel ------------------------------------

def bilstm_kernel(x_ref,        # (1, T*Bt, D)  bf16, rows ordered (t, b_local)
                  len_ref,      # (Bt, 1)       f32  valid lengths of this batch tile
                  w_ih_ref,     # (D, 8H)       bf16 [W_ih_fwd^T | W_ih_bwd^T]
                  b_ref,        # (1, 8H)       f32  [b_ih_f + b_hh_f | b_ih_b + b_hh_b]
                  w_hh_f_ref,   # (H, 4H)       f32  W_hh_fwd^T
                  w_hh_b_ref,   # (H, 4H)       f32  W_hh_bwd^T
                  out_f_ref,    # (T, Bt, H)    f32  forward hidden states
                  out_b_ref,    # (T, Bt, H)    f32  backward hidden states
                  gates_ref):   # (T*Bt, 8H)    f32  scratch: precomputed input gates (f|b)
    T, Bt, H = out_f_ref.shape
    H4 = 4 * H

    # ---- (1) hoisted input projection: ONE bf16 MXU matmul, both directions, all t ----
    gates_ref[...] = (
        jnp.dot(x_ref[0], w_ih_ref[...], preferred_element_type=jnp.float32) + b_ref[...]
    )

    lens = len_ref[...]                    # (Bt, 1) f32, hoisted out of the recurrence
    w_hh_f = w_hh_f_ref[...]               # recurrent weights hoisted out of the loop
    w_hh_b = w_hh_b_ref[...]
    h0 = jnp.zeros((Bt, H), jnp.float32)

    def cell(g_t, h_prev, c_prev, w_hh, m):
        gates = g_t + jnp.dot(h_prev, w_hh, preferred_element_type=jnp.float32)
        # PyTorch gate order within the 4H block: i, f, g(cell), o
        i_g = _sigmoid(gates[:, 0 * H:1 * H])
        f_g = _sigmoid(gates[:, 1 * H:2 * H])
        c_g = jnp.tanh(gates[:, 2 * H:3 * H])
        o_g = _sigmoid(gates[:, 3 * H:4 * H])
        c_new = f_g * c_prev + i_g * c_g
        h_new = o_g * jnp.tanh(c_new)
        c = m * c_new + (1.0 - m) * c_prev         # freeze state at padded steps
        h = m * h_new + (1.0 - m) * h_prev
        return h, c, m * h_new                     # padded outputs are exactly zero

    # ---- (2) fused forward + backward recurrence over one time loop ----
    # fwd processes t = j, bwd processes t = T-1-j.  Packed semantics for the backward
    # direction fall out of the mask: (h_b, c_b) stay zero until t < len_i, which is
    # exactly each sequence's own last valid step t = len_i - 1.
    def body(j, carry):
        h_f, c_f, h_b, c_b = carry
        t_b = T - 1 - j
        if isinstance(j, int):                       # unrolled path: everything static
            row_f, row_b = j * Bt, t_b * Bt
            tf_f, tf_b = jnp.float32(j), jnp.float32(t_b)
        else:                                        # fori_loop path: dynamic indices
            row_f = pl.multiple_of(j * Bt, Bt)
            row_b = pl.multiple_of(t_b * Bt, Bt)
            tf_f, tf_b = j.astype(jnp.float32), t_b.astype(jnp.float32)
        m_f = (lens > tf_f).astype(jnp.float32)      # (Bt, 1)
        m_b = (lens > tf_b).astype(jnp.float32)
        g_f = gates_ref[pl.ds(row_f, Bt), 0:H4]      # (Bt, 4H), lane-aligned column split
        g_b = gates_ref[pl.ds(row_b, Bt), H4:2 * H4]
        h_f, c_f, y_f = cell(g_f, h_f, c_f, w_hh_f, m_f)
        h_b, c_b, y_b = cell(g_b, h_b, c_b, w_hh_b, m_b)
        out_f_ref[j] = y_f
        out_b_ref[t_b] = y_b
        return (h_f, c_f, h_b, c_b)

    carry = (h0, h0, h0, h0)
    if T <= 64:
        # fully unrolled: static slices / stores, maximal LLO scheduling visibility
        for j in range(T):
            carry = body(j, carry)
    else:
        jax.lax.fori_loop(0, T, body, carry)


# ------------------------------ host wrapper ----------------------------------

def bilstm_embedding_forward(x, x_len, params, *, block_b=8):
    """Forward of BiLSTMEmbedding.  x: (B, T, D) f32, x_len: (B,) int -> (B, T, 2H) f32."""
    B, T, D = x.shape
    H = params["w_hh_f_t"].shape[0]
    Bt = block_b
    nb = (B + Bt - 1) // Bt
    Bp = nb * Bt

    if Bp != B:  # pad batch so it tiles evenly; padded rows get length 0 -> all-zero output
        x = jnp.pad(x, ((0, Bp - B), (0, 0), (0, 0)))
        x_len = jnp.pad(x_len, (0, Bp - B))

    # Time-major scramble so each grid step sees a contiguous (T*Bt, D) slab whose rows are
    # ordered (t, b_local): per-time-step gate reads in the recurrence are contiguous and the
    # hoisted projection is a plain 2-D (T*Bt, D) x (D, 8H) MXU op (no in-kernel reshape).
    x_sc = jnp.transpose(x, (1, 0, 2)).reshape(T, nb, Bt, D)
    x_sc = jnp.transpose(x_sc, (1, 0, 2, 3)).reshape(nb, T * Bt, D)
    x_sc = x_sc.astype(jnp.bfloat16)          # bf16 MXU fast path (and half the input DMA bytes)

    len_col = x_len.astype(jnp.float32).reshape(Bp, 1)

    out_f, out_b = pl.pallas_call(
        bilstm_kernel,
        grid=(nb,),
        in_specs=[
            pl.BlockSpec((1, T * Bt, D), lambda i: (i, 0, 0)),   # per-batch-tile input slab
            pl.BlockSpec((Bt, 1), lambda i: (i, 0)),             # per-batch-tile lengths
            pl.BlockSpec((D, 8 * H), lambda i: (0, 0)),          # fused, pre-transposed W_ih
            pl.BlockSpec((1, 8 * H), lambda i: (0, 0)),          # fused biases
            pl.BlockSpec((H, 4 * H), lambda i: (0, 0)),          # W_hh fwd (pre-transposed)
            pl.BlockSpec((H, 4 * H), lambda i: (0, 0)),          # W_hh bwd (pre-transposed)
        ],
        out_specs=(
            pl.BlockSpec((T, Bt, H), lambda i: (0, i, 0)),
            pl.BlockSpec((T, Bt, H), lambda i: (0, i, 0)),
        ),
        out_shape=(
            jax.ShapeDtypeStruct((T, Bp, H), jnp.float32),
            jax.ShapeDtypeStruct((T, Bp, H), jnp.float32),
        ),
        scratch_shapes=[
            pltpu.VMEM((T * Bt, 8 * H), jnp.float32),            # fused input-gate slab (f|b)
        ],
        compiler_params=pltpu.CompilerParams(
            dimension_semantics=("parallel",),       # independent batch tiles (v7x megacore)
            vmem_limit_bytes=32 * 1024 * 1024,
        ),
    )(x_sc, len_col, params["w_ih_cat"], params["b_cat"],
      params["w_hh_f_t"], params["w_hh_b_t"])

    out = jnp.concatenate([out_f, out_b], axis=-1)    # (T, Bp, 2H)
    out = jnp.transpose(out, (1, 0, 2))[:B]           # (B, T, 2H); padded steps are exactly 0
    # TODO(synk): pad_packed_sequence trims the time axis to max(x_len); that needs a dynamic
    # output shape, so we return the full T with zero padding (identical content).
    return out


# ---------------------------- parameter setup ----------------------------------

def init_bilstm_params(key, input_dim, output_dim):
    """Create PyTorch-layout nn.LSTM weights, then pre-transpose/fuse them for the kernel."""
    assert output_dim % 2 == 0
    H = output_dim // 2
    bound = 1.0 / math.sqrt(H)
    ks = jax.random.split(key, 8)
    u = lambda k, s: jax.random.uniform(k, s, jnp.float32, -bound, bound)

    raw = {  # identical shapes / gate order (i, f, g, o) to nn.LSTM parameters
        "weight_ih_l0": u(ks[0], (4 * H, input_dim)),
        "weight_hh_l0": u(ks[1], (4 * H, H)),
        "bias_ih_l0": u(ks[2], (4 * H,)),
        "bias_hh_l0": u(ks[3], (4 * H,)),
        "weight_ih_l0_reverse": u(ks[4], (4 * H, input_dim)),
        "weight_hh_l0_reverse": u(ks[5], (4 * H, H)),
        "bias_ih_l0_reverse": u(ks[6], (4 * H,)),
        "bias_hh_l0_reverse": u(ks[7], (4 * H,)),
    }
    packed = {
        # pre-transposed + direction-fused on the host so the kernel never transposes weights
        "w_ih_cat": jnp.concatenate(
            [raw["weight_ih_l0"].T, raw["weight_ih_l0_reverse"].T], axis=1
        ).astype(jnp.bfloat16),                                                     # (D, 8H)
        "b_cat": jnp.concatenate(
            [raw["bias_ih_l0"] + raw["bias_hh_l0"],
             raw["bias_ih_l0_reverse"] + raw["bias_hh_l0_reverse"]])[None, :],      # (1, 8H)
        "w_hh_f_t": raw["weight_hh_l0"].T,                                          # (H, 4H)
        "w_hh_b_t": raw["weight_hh_l0_reverse"].T,                                  # (H, 4H)
    }
    return raw, packed


# ------------------------- pure-JAX packed-BiLSTM reference --------------------

def _ref_direction(x, x_len, w_ih, w_hh, b_ih, b_hh, reverse):
    B, T, _ = x.shape
    H = w_hh.shape[1]
    h = jnp.zeros((B, H), jnp.float32)
    c = jnp.zeros((B, H), jnp.float32)
    ys = [None] * T
    order = range(T - 1, -1, -1) if reverse else range(T)
    for t in order:
        m = (x_len > t).astype(jnp.float32)[:, None]
        g = x[:, t] @ w_ih.T + b_ih + b_hh + h @ w_hh.T
        i = _sigmoid(g[:, :H])
        f = _sigmoid(g[:, H:2 * H])
        cg = jnp.tanh(g[:, 2 * H:3 * H])
        o = _sigmoid(g[:, 3 * H:])
        c_new = f * c + i * cg
        h_new = o * jnp.tanh(c_new)
        c = m * c_new + (1.0 - m) * c
        h = m * h_new + (1.0 - m) * h
        ys[t] = m * h_new
    return jnp.stack(ys, axis=1)   # (B, T, H)


def bilstm_reference(x, x_len, raw):
    fwd = _ref_direction(x, x_len, raw["weight_ih_l0"], raw["weight_hh_l0"],
                         raw["bias_ih_l0"], raw["bias_hh_l0"], reverse=False)
    bwd = _ref_direction(x, x_len, raw["weight_ih_l0_reverse"], raw["weight_hh_l0_reverse"],
                         raw["bias_ih_l0_reverse"], raw["bias_hh_l0_reverse"], reverse=True)
    return jnp.concatenate([fwd, bwd], axis=-1)


# ----------------------------------- main ---------------------------------------

if __name__ == "__main__":
    B, T = 16, 16
    input_dim, output_dim = 32, 64    # per-direction hidden H = 32 -> gate width 4H = 128 lanes

    key = jax.random.PRNGKey(0)
    kx, kp = jax.random.split(key)
    x = jax.random.normal(kx, (B, T, input_dim), jnp.float32)
    # non-padded lengths; max length == T so the output time axis matches pad_packed_sequence
    x_len = jnp.array([16, 11, 7, 16, 3, 9, 16, 12, 5, 16, 14, 8, 10, 16, 6, 13],
                      dtype=jnp.int32)

    raw, packed = init_bilstm_params(kp, input_dim, output_dim)

    fwd = jax.jit(functools.partial(bilstm_embedding_forward, block_b=8))
    out = fwd(x, x_len, packed)
    jax.block_until_ready(out)

    assert out.shape == (B, T, output_dim)
    assert bool(jnp.all(jnp.isfinite(out)))
    # padded time steps must be exactly zero (pad_packed_sequence semantics)
    assert bool(jnp.all(out[1, 11:] == 0.0))
    assert bool(jnp.all(out[4, 3:] == 0.0))
    # loose numeric check vs a pure-JAX packed-BiLSTM reference (kernel uses bf16 input proj)
    ref = bilstm_reference(x, x_len, raw)
    assert float(jnp.max(jnp.abs(out - ref))) < 5e-2

    print("KERNEL_OK")
</pallas_src>

<mosaic_0001>
module attributes {stable_mosaic.version = 11 : i64} {
  func.func @bilstm_kernel(%arg0: i32, %arg1: memref<1x128x32xbf16, #tpu.memory_space<vmem>>, %arg2: memref<8x1xf32, #tpu.memory_space<vmem>>, %arg3: memref<32x256xbf16, #tpu.memory_space<vmem>>, %arg4: memref<1x256xf32, #tpu.memory_space<vmem>>, %arg5: memref<32x128xf32, #tpu.memory_space<vmem>>, %arg6: memref<32x128xf32, #tpu.memory_space<vmem>>, %arg7: memref<16x8x32xf32, #tpu.memory_space<vmem>>, %arg8: memref<16x8x32xf32, #tpu.memory_space<vmem>>, %arg9: memref<128x256xf32, #tpu.memory_space<vmem>>) attributes {dimension_semantics = [#tpu.dimension_semantics<parallel>], iteration_bounds = array<i64: 2>, scalar_prefetch = 0 : i64, scratch_operands = 1 : i64, tpu.core_type = #tpu.core_type<tc>, window_params = [{transform_indices = @transform_0, window_bounds = array<i64: 1, 128, 32>}, {transform_indices = @transform_1, window_bounds = array<i64: 8, 1>}, {pipeline_mode = #tpu.pipeline_mode<synchronous>, transform_indices = @transform_2, window_bounds = array<i64: 32, 256>}, {pipeline_mode = #tpu.pipeline_mode<synchronous>, transform_indices = @transform_3, window_bounds = array<i64: 1, 256>}, {pipeline_mode = #tpu.pipeline_mode<synchronous>, transform_indices = @transform_4, window_bounds = array<i64: 32, 128>}, {pipeline_mode = #tpu.pipeline_mode<synchronous>, transform_indices = @transform_5, window_bounds = array<i64: 32, 128>}, {transform_indices = @transform_6, window_bounds = array<i64: 16, 8, 32>}, {transform_indices = @transform_7, window_bounds = array<i64: 16, 8, 32>}]} {
    %c0 = arith.constant 0 : index
    %c0_0 = arith.constant 0 : index
    %c0_1 = arith.constant 0 : index
    %0 = vector.load %arg1[%c0, %c0_0, %c0_1] : memref<1x128x32xbf16, #tpu.memory_space<vmem>>, vector<1x128x32xbf16>
    %1 = vector.shape_cast %0 : vector<1x128x32xbf16> to vector<128x32xbf16>
    %c0_2 = arith.constant 0 : index
    %c0_3 = arith.constant 0 : index
    %2 = vector.load %arg3[%c0_2, %c0_3] : memref<32x256xbf16, #tpu.memory_space<vmem>>, vector<32x256xbf16>
    %cst = arith.constant dense<0.000000e+00> : vector<128x256xf32>
    %3 = tpu.matmul %1, %2, %cst {dimension_numbers = #tpu.dot_dimension_numbers<[1], [0], [0], [1], [0, 0, 1, 1], [], []>} : vector<128x32xbf16>, vector<32x256xbf16>, vector<128x256xf32> -> vector<128x256xf32>
    %c0_4 = arith.constant 0 : index
    %c0_5 = arith.constant 0 : index
    %4 = vector.load %arg4[%c0_4, %c0_5] : memref<1x256xf32, #tpu.memory_space<vmem>>, vector<1x256xf32>
    %5 = vector.broadcast %4 : vector<1x256xf32> to vector<128x256xf32>
    %6 = arith.addf %3, %5 : vector<128x256xf32>
    %c0_6 = arith.constant 0 : index
    %c0_7 = arith.constant 0 : index
    %7 = vector.load %arg9[%c0_6, %c0_7] : memref<128x256xf32, #tpu.memory_space<vmem>>, vector<128x256xf32>
    tpu.vector_store %arg9[%c0_6, %c0_7], %6 {strides = array<i32>} : memref<128x256xf32, #tpu.memory_space<vmem>>, vector<128x256xf32>,
    %c0_8 = arith.constant 0 : index
    %c0_9 = arith.constant 0 : index
    %8 = vector.load %arg2[%c0_8, %c0_9] : memref<8x1xf32, #tpu.memory_space<vmem>>, vector<8x1xf32>
    %c0_10 = arith.constant 0 : index
    %c0_11 = arith.constant 0 : index
    %9 = vector.load %arg5[%c0_10, %c0_11] : memref<32x128xf32, #tpu.memory_space<vmem>>, vector<32x128xf32>
    %c0_12 = arith.constant 0 : index
    %c0_13 = arith.constant 0 : index
    %10 = vector.load %arg6[%c0_12, %c0_13] : memref<32x128xf32, #tpu.memory_space<vmem>>, vector<32x128xf32>
    %cst_14 = arith.constant 0.000000e+00 : f32
    %11 = vector.broadcast %cst_14 : f32 to vector<8x32xf32>
    %cst_15 = arith.constant 0.000000e+00 : f32
    %12 = vector.broadcast %cst_15 : f32 to vector<8x1xf32>
    %13 = arith.cmpf ogt, %8, %12 : vector<8x1xf32>
    %14 = arith.extui %13 : vector<8x1xi1> to vector<8x1xi32>
    %15 = arith.sitofp %14 : vector<8x1xi32> to vector<8x1xf32>
    %cst_16 = arith.constant 1.500000e+01 : f32
    %16 = vector.broadcast %cst_16 : f32 to vector<8x1xf32>
    %17 = arith.cmpf ogt, %8, %16 : vector<8x1xf32>
    %18 = arith.extui %17 : vector<8x1xi1> to vector<8x1xi32>
    %19 = arith.sitofp %18 : vector<8x1xi32> to vector<8x1xf32>
    %c0_17 = arith.constant 0 : index
    %c0_18 = arith.constant 0 : index
    %20 = vector.load %arg9[%c0_17, %c0_18] : memref<128x256xf32, #tpu.memory_space<vmem>>, vector<8x128xf32>
    %c120 = arith.constant 120 : index
    %c128 = arith.constant 128 : index
    %21 = vector.load %arg9[%c120, %c128] : memref<128x256xf32, #tpu.memory_space<vmem>>, vector<8x128xf32>
    %cst_19 = arith.constant dense<0.000000e+00> : vector<8x128xf32>
    %22 = tpu.matmul %11, %9, %cst_19 {dimension_numbers = #tpu.dot_dimension_numbers<[1], [0], [0], [1], [0, 0, 1, 1], [], []>} : vector<8x32xf32>, vector<32x128xf32>, vector<8x128xf32> -> vector<8x128xf32>
    %23 = arith.addf %20, %22 : vector<8x128xf32>
    %24 = vector.extract_strided_slice %23 {offsets = [0, 0], sizes = [8, 32], strides = [1, 1]} : vector<8x128xf32> to vector<8x32xf32>
    %cst_20 = arith.constant 0.000000e+00 : f32
    %25 = vector.broadcast %cst_20 : f32 to vector<8x32xf32>
    %26 = arith.subf %25, %24 : vector<8x32xf32>
    %27 = math.exp %26 : vector<8x32xf32>
    %cst_21 = arith.constant 1.000000e+00 : f32
    %28 = vector.broadcast %cst_21 : f32 to vector<8x32xf32>
    %29 = arith.addf %28, %27 : vector<8x32xf32>
    %cst_22 = arith.constant 1.000000e+00 : f32
    %30 = vector.broadcast %cst_22 : f32 to vector<8x32xf32>
    %31 = arith.divf %30, %29 : vector<8x32xf32>
    %32 = vector.extract_strided_slice %23 {offsets = [0, 32], sizes = [8, 32], strides = [1, 1]} : vector<8x128xf32> to vector<8x32xf32>
    %cst_23 = arith.constant 0.000000e+00 : f32
    %33 = vector.broadcast %cst_23 : f32 to vector<8x32xf32>
    %34 = arith.subf %33, %32 : vector<8x32xf32>
    %35 = math.exp %34 : vector<8x32xf32>
    %cst_24 = arith.constant 1.000000e+00 : f32
    %36 = vector.broadcast %cst_24 : f32 to vector<8x32xf32>
    %37 = arith.addf %36, %35 : vector<8x32xf32>
    %cst_25 = arith.constant 1.000000e+00 : f32
    %38 = vector.broadcast %cst_25 : f32 to vector<8x32xf32>
    %39 = arith.divf %38, %37 : vector<8x32xf32>
    %40 = vector.extract_strided_slice %23 {offsets = [0, 64], sizes = [8, 32], strides = [1, 1]} : vector<8x128xf32> to vector<8x32xf32>
    %41 = math.tanh %40 : vector<8x32xf32>
    %42 = vector.extract_strided_slice %23 {offsets = [0, 96], sizes = [8, 32], strides = [1, 1]} : vector<8x128xf32> to vector<8x32xf32>
    %cst_26 = arith.constant 0.000000e+00 : f32
    %43 = vector.broadcast %cst_26 : f32 to vector<8x32xf32>
    %44 = arith.subf %43, %42 : vector<8x32xf32>
    %45 = math.exp %44 : vector<8x32xf32>
    %cst_27 = arith.constant 1.000000e+00 : f32
    %46 = vector.broadcast %cst_27 : f32 to vector<8x32xf32>
    %47 = arith.addf %46, %45 : vector<8x32xf32>
    %cst_28 = arith.constant 1.000000e+00 : f32
    %48 = vector.broadcast %cst_28 : f32 to vector<8x32xf32>
    %49 = arith.divf %48, %47 : vector<8x32xf32>
    %50 = arith.mulf %39, %11 : vector<8x32xf32>
    %51 = arith.mulf %31, %41 : vector<8x32xf32>
    %52 = arith.addf %50, %51 : vector<8x32xf32>
    %53 = math.tanh %52 : vector<8x32xf32>
    %54 = arith.mulf %49, %53 : vector<8x32xf32>
    %55 = vector.broadcast %15 : vector<8x1xf32> to vector<8x32xf32>
    %56 = arith.mulf %55, %52 : vector<8x32xf32>
    %cst_29 = arith.constant 1.000000e+00 : f32
    %57 = vector.broadcast %cst_29 : f32 to vector<8x1xf32>
    %58 = arith.subf %57, %15 : vector<8x1xf32>
    %59 = vector.broadcast %58 : vector<8x1xf32> to vector<8x32xf32>
    %60 = arith.mulf %59, %11 : vector<8x32xf32>
    %61 = arith.addf %56, %60 : vector<8x32xf32>
    %62 = vector.broadcast %15 : vector<8x1xf32> to vector<8x32xf32>
    %63 = arith.mulf %62, %54 : vector<8x32xf32>
    %cst_30 = arith.constant 1.000000e+00 : f32
    %64 = vector.broadcast %cst_30 : f32 to vector<8x1xf32>
    %65 = arith.subf %64, %15 : vector<8x1xf32>
    %66 = vector.broadcast %65 : vector<8x1xf32> to vector<8x32xf32>
    %67 = arith.mulf %66, %11 : vector<8x32xf32>
    %68 = arith.addf %63, %67 : vector<8x32xf32>
    %69 = vector.broadcast %15 : vector<8x1xf32> to vector<8x32xf32>
    %70 = arith.mulf %69, %54 : vector<8x32xf32>
    %cst_31 = arith.constant dense<0.000000e+00> : vector<8x128xf32>
    %71 = tpu.matmul %11, %10, %cst_31 {dimension_numbers = #tpu.dot_dimension_numbers<[1], [0], [0], [1], [0, 0, 1, 1], [], []>} : vector<8x32xf32>, vector<32x128xf32>, vector<8x128xf32> -> vector<8x128xf32>
    %72 = arith.addf %21, %71 : vector<8x128xf32>
    %73 = vector.extract_strided_slice %72 {offsets = [0, 0], sizes = [8, 32], strides = [1, 1]} : vector<8x128xf32> to vector<8x32xf32>
    %cst_32 = arith.constant 0.000000e+00 : f32
    %74 = vector.broadcast %cst_32 : f32 to vector<8x32xf32>
    %75 = arith.subf %74, %73 : vector<8x32xf32>
    %76 = math.exp %75 : vector<8x32xf32>
    %cst_33 = arith.constant 1.000000e+00 : f32
    %77 = vector.broadcast %cst_33 : f32 to vector<8x32xf32>
    %78 = arith.addf %77, %76 : vector<8x32xf32>
    %cst_34 = arith.constant 1.000000e+00 : f32
    %79 = vector.broadcast %cst_34 : f32 to vector<8x32xf32>
    %80 = arith.divf %79, %78 : vector<8x32xf32>
    %81 = vector.extract_strided_slice %72 {offsets = [0, 32], sizes = [8, 32], strides = [1, 1]} : vector<8x128xf32> to vector<8x32xf32>
    %cst_35 = arith.constant 0.000000e+00 : f32
    %82 = vector.broadcast %cst_35 : f32 to vector<8x32xf32>
    %83 = arith.subf %82, %81 : vector<8x32xf32>
    %84 = math.exp %83 : vector<8x32xf32>
    %cst_36 = arith.constant 1.000000e+00 : f32
    %85 = vector.broadcast %cst_36 : f32 to vector<8x32xf32>
    %86 = arith.addf %85, %84 : vector<8x32xf32>
    %cst_37 = arith.constant 1.000000e+00 : f32
    %87 = vector.broadcast %cst_37 : f32 to vector<8x32xf32>
    %88 = arith.divf %87, %86 : vector<8x32xf32>
    %89 = vector.extract_strided_slice %72 {offsets = [0, 64], sizes = [8, 32], strides = [1, 1]} : vector<8x128xf32> to vector<8x32xf32>
    %90 = math.tanh %89 : vector<8x32xf32>
    %91 = vector.extract_strided_slice %72 {offsets = [0, 96], sizes = [8, 32], strides = [1, 1]} : vector<8x128xf32> to vector<8x32xf32>
    %cst_38 = arith.constant 0.000000e+00 : f32
    %92 = vector.broadcast %cst_38 : f32 to vector<8x32xf32>
    %93 = arith.subf %92, %91 : vector<8x32xf32>
    %94 = math.exp %93 : vector<8x32xf32>
    %cst_39 = arith.constant 1.000000e+00 : f32
    %95 = vector.broadcast %cst_39 : f32 to vector<8x32xf32>
    %96 = arith.addf %95, %94 : vector<8x32xf32>
    %cst_40 = arith.constant 1.000000e+00 : f32
    %97 = vector.broadcast %cst_40 : f32 to vector<8x32xf32>
    %98 = arith.divf %97, %96 : vector<8x32xf32>
    %99 = arith.mulf %88, %11 : vector<8x32xf32>
    %100 = arith.mulf %80, %90 : vector<8x32xf32>
    %101 = arith.addf %99, %100 : vector<8x32xf32>
    %102 = math.tanh %101 : vector<8x32xf32>
    %103 = arith.mulf %98, %102 : vector<8x32xf32>
    %104 = vector.broadcast %19 : vector<8x1xf32> to vector<8x32xf32>
    %105 = arith.mulf %104, %101 : vector<8x32xf32>
    %cst_41 = arith.constant 1.000000e+00 : f32
    %106 = vector.broadcast %cst_41 : f32 to vector<8x1xf32>
    %107 = arith.subf %106, %19 : vector<8x1xf32>
    %108 = vector.broadcast %107 : vector<8x1xf32> to vector<8x32xf32>
    %109 = arith.mulf %108, %11 : vector<8x32xf32>
    %110 = arith.addf %105, %109 : vector<8x32xf32>
    %111 = vector.broadcast %19 : vector<8x1xf32> to vector<8x32xf32>
    %112 = arith.mulf %111, %103 : vector<8x32xf32>
    %cst_42 = arith.constant 1.000000e+00 : f32
    %113 = vector.broadcast %cst_42 : f32 to vector<8x1xf32>
    %114 = arith.subf %113, %19 : vector<8x1xf32>
    %115 = vector.broadcast %114 : vector<8x1xf32> to vector<8x32xf32>
    %116 = arith.mulf %115, %11 : vector<8x32xf32>
    %117 = arith.addf %112, %116 : vector<8x32xf32>
    %118 = vector.broadcast %19 : vector<8x1xf32> to vector<8x32xf32>
    %119 = arith.mulf %118, %103 : vector<8x32xf32>
    %c0_43 = arith.constant 0 : index
    %c0_44 = arith.constant 0 : index
    %c0_45 = arith.constant 0 : index
    %120 = vector.load %arg7[%c0_43, %c0_44, %c0_45] : memref<16x8x32xf32, #tpu.memory_space<vmem>>, vector<1x8x32xf32>
    %121 = vector.shape_cast %120 : vector<1x8x32xf32> to vector<8x32xf32>
    %122 = vector.shape_cast %70 : vector<8x32xf32> to vector<1x8x32xf32>
    tpu.vector_store %arg7[%c0_43, %c0_44, %c0_45], %122 {strides = array<i32>} : memref<16x8x32xf32, #tpu.memory_space<vmem>>, vector<1x8x32xf32>,
    %c15 = arith.constant 15 : index
    %c0_46 = arith.constant 0 : index
    %c0_47 = arith.constant 0 : index
    %123 = vector.load %arg8[%c15, %c0_46, %c0_47] : memref<16x8x32xf32, #tpu.memory_space<vmem>>, vector<1x8x32xf32>
    %124 = vector.shape_cast %123 : vector<1x8x32xf32> to vector<8x32xf32>
    %125 = vector.shape_cast %119 : vector<8x32xf32> to vector<1x8x32xf32>
    tpu.vector_store %arg8[%c15, %c0_46, %c0_47], %125 {strides = array<i32>} : memref<16x8x32xf32, #tpu.memory_space<vmem>>, vector<1x8x32xf32>,
    %cst_48 = arith.constant 1.000000e+00 : f32
    %126 = vector.broadcast %cst_48 : f32 to vector<8x1xf32>
    %127 = arith.cmpf ogt, %8, %126 : vector<8x1xf32>
    %128 = arith.extui %127 : vector<8x1xi1> to vector<8x1xi32>
    %129 = arith.sitofp %128 : vector<8x1xi32> to vector<8x1xf32>
    %cst_49 = arith.constant 1.400000e+01 : f32
    %130 = vector.broadcast %cst_49 : f32 to vector<8x1xf32>
    %131 = arith.cmpf ogt, %8, %130 : vector<8x1xf32>
    %132 = arith.extui %131 : vector<8x1xi1> to vector<8x1xi32>
    %133 = arith.sitofp %132 : vector<8x1xi32> to vector<8x1xf32>
    %c8 = arith.constant 8 : index
    %c0_50 = arith.constant 0 : index
    %134 = vector.load %arg9[%c8, %c0_50] : memref<128x256xf32, #tpu.memory_space<vmem>>, vector<8x128xf32>
    %c112 = arith.constant 112 : index
    %c128_51 = arith.constant 128 : index
    %135 = vector.load %arg9[%c112, %c128_51] : memref<128x256xf32, #tpu.memory_space<vmem>>, vector<8x128xf32>
    %cst_52 = arith.constant dense<0.000000e+00> : vector<8x128xf32>
    %136 = tpu.matmul %68, %9, %cst_52 {dimension_numbers = #tpu.dot_dimension_numbers<[1], [0], [0], [1], [0, 0, 1, 1], [], []>} : vector<8x32xf32>, vector<32x128xf32>, vector<8x128xf32> -> vector<8x128xf32>
    %137 = arith.addf %134, %136 : vector<8x128xf32>
    %138 = vector.extract_strided_slice %137 {offsets = [0, 0], sizes = [8, 32], strides = [1, 1]} : vector<8x128xf32> to vector<8x32xf32>
    %cst_53 = arith.constant 0.000000e+00 : f32
    %139 = vector.broadcast %cst_53 : f32 to vector<8x32xf32>
    %140 = arith.subf %139, %138 : vector<8x32xf32>
    %141 = math.exp %140 : vector<8x32xf32>
    %cst_54 = arith.constant 1.000000e+00 : f32
    %142 = vector.broadcast %cst_54 : f32 to vector<8x32xf32>
    %143 = arith.addf %142, %141 : vector<8x32xf32>
    %cst_55 = arith.constant 1.000000e+00 : f32
    %144 = vector.broadcast %cst_55 : f32 to vector<8x32xf32>
    %145 = arith.divf %144, %143 : vector<8x32xf32>
    %146 = vector.extract_strided_slice %137 {offsets = [0, 32], sizes = [8, 32], strides = [1, 1]} : vector<8x128xf32> to vector<8x32xf32>
    %cst_56 = arith.constant 0.000000e+00 : f32
    %147 = vector.broadcast %cst_56 : f32 to vector<8x32xf32>
    %148 = arith.subf %147, %146 : vector<8x32xf32>
    %149 = math.exp %148 : vector<8x32xf32>
    %cst_57 = arith.constant 1.000000e+00 : f32
    %150 = vector.broadcast %cst_57 : f32 to vector<8x32xf32>
    %151 = arith.addf %150, %149 : vector<8x32xf32>
    %cst_58 = arith.constant 1.000000e+00 : f32
    %152 = vector.broadcast %cst_58 : f32 to vector<8x32xf32>
    %153 = arith.divf %152, %151 : vector<8x32xf32>
    %154 = vector.extract_strided_slice %137 {offsets = [0, 64], sizes = [8, 32], strides = [1, 1]} : vector<8x128xf32> to vector<8x32xf32>
    %155 = math.tanh %154 : vector<8x32xf32>
    %156 = vector.extract_strided_slice %137 {offsets = [0, 96], sizes = [8, 32], strides = [1, 1]} : vector<8x128xf32> to vector<8x32xf32>
    %cst_59 = arith.constant 0.000000e+00 : f32
    %157 = vector.broadcast %cst_59 : f32 to vector<8x32xf32>
    %158 = arith.subf %157, %156 : vector<8x32xf32>
    %159 = math.exp %158 : vector<8x32xf32>
    %cst_60 = arith.constant 1.000000e+00 : f32
    %160 = vector.broadcast %cst_60 : f32 to vector<8x32xf32>
    %161 = arith.addf %160, %159 : vector<8x32xf32>
    %cst_61 = arith.constant 1.000000e+00 : f32
    %162 = vector.broadcast %cst_61 : f32 to vector<8x32xf32>
    %163 = arith.divf %162, %161 : vector<8x32xf32>
    %164 = arith.mulf %153, %61 : vector<8x32xf32>
    %165 = arith.mulf %145, %155 : vector<8x32xf32>
    %166 = arith.addf %164, %165 : vector<8x32xf32>
    %167 = math.tanh %166 : vector<8x32xf32>
    %168 = arith.mulf %163, %167 : vector<8x32xf32>
    %169 = vector.broadcast %129 : vector<8x1xf32> to vector<8x32xf32>
    %170 = arith.mulf %169, %166 : vector<8x32xf32>
    %cst_62 = arith.constant 1.000000e+00 : f32
    %171 = vector.broadcast %cst_62 : f32 to vector<8x1xf32>
    %172 = arith.subf %171, %129 : vector<8x1xf32>
    %173 = vector.broadcast %172 : vector<8x1xf32> to vector<8x32xf32>
    %174 = arith.mulf %173, %61 : vector<8x32xf32>
    %175 = arith.addf %170, %174 : vector<8x32xf32>
    %176 = vector.broadcast %129 : vector<8x1xf32> to vector<8x32xf32>
    %177 = arith.mulf %176, %168 : vector<8x32xf32>
    %cst_63 = arith.constant 1.000000e+00 : f32
    %178 = vector.broadcast %cst_63 : f32 to vector<8x1xf32>
    %179 = arith.subf %178, %129 : vector<8x1xf32>
    %180 = vector.broadcast %179 : vector<8x1xf32> to vector<8x32xf32>
    %181 = arith.mulf %180, %68 : vector<8x32xf32>
    %182 = arith.addf %177, %181 : vector<8x32xf32>
    %183 = vector.broadcast %129 : vector<8x1xf32> to vector<8x32xf32>
    %184 = arith.mulf %183, %168 : vector<8x32xf32>
    %cst_64 = arith.constant dense<0.000000e+00> : vector<8x128xf32>
    %185 = tpu.matmul %117, %10, %cst_64 {dimension_numbers = #tpu.dot_dimension_numbers<[1], [0], [0], [1], [0, 0, 1, 1], [], []>} : vector<8x32xf32>, vector<32x128xf32>, vector<8x128xf32> -> vector<8x128xf32>
    %186 = arith.addf %135, %185 : vector<8x128xf32>
    %187 = vector.extract_strided_slice %186 {offsets = [0, 0], sizes = [8, 32], strides = [1, 1]} : vector<8x128xf32> to vector<8x32xf32>
    %cst_65 = arith.constant 0.000000e+00 : f32
    %188 = vector.broadcast %cst_65 : f32 to vector<8x32xf32>
    %189 = arith.subf %188, %187 : vector<8x32xf32>
    %190 = math.exp %189 : vector<8x32xf32>
    %cst_66 = arith.constant 1.000000e+00 : f32
    %191 = vector.broadcast %cst_66 : f32 to vector<8x32xf32>
    %192 = arith.addf %191, %190 : vector<8x32xf32>
    %cst_67 = arith.constant 1.000000e+00 : f32
    %193 = vector.broadcast %cst_67 : f32 to vector<8x32xf32>
    %194 = arith.divf %193, %192 : vector<8x32xf32>
    %195 = vector.extract_strided_slice %186 {offsets = [0, 32], sizes = [8, 32], strides = [1, 1]} : vector<8x128xf32> to vector<8x32xf32>
    %cst_68 = arith.constant 0.000000e+00 : f32
    %196 = vector.broadcast %cst_68 : f32 to vector<8x32xf32>
    %197 = arith.subf %196, %195 : vector<8x32xf32>
    %198 = math.exp %197 : vector<8x32xf32>
    %cst_69 = arith.constant 1.000000e+00 : f32
    %199 = vector.broadcast %cst_69 : f32 to vector<8x32xf32>
    %200 = arith.addf %199, %198 : vector<8x32xf32>
    %cst_70 = arith.constant 1.000000e+00 : f32
    %201 = vector.broadcast %cst_70 : f32 to vector<8x32xf32>
    %202 = arith.divf %201, %200 : vector<8x32xf32>
    %203 = vector.extract_strided_slice %186 {offsets = [0, 64], sizes = [8, 32], strides = [1, 1]} : vector<8x128xf32> to vector<8x32xf32>
    %204 = math.tanh %203 : vector<8x32xf32>
    %205 = vector.extract_strided_slice %186 {offsets = [0, 96], sizes = [8, 32], strides = [1, 1]} : vector<8x128xf32> to vector<8x32xf32>
    %cst_71 = arith.constant 0.000000e+00 : f32
    %206 = vector.broadcast %cst_71 : f32 to vector<8x32xf32>
    %207 = arith.subf %206, %205 : vector<8x32xf32>
    %208 = math.exp %207 : vector<8x32xf32>
    %cst_72 = arith.constant 1.000000e+00 : f32
    %209 = vector.broadcast %cst_72 : f32 to vector<8x32xf32>
    %210 = arith.addf %209, %208 : vector<8x32xf32>
    %cst_73 = arith.constant 1.000000e+00 : f32
    %211 = vector.broadcast %cst_73 : f32 to vector<8x32xf32>
    %212 = arith.divf %211, %210 : vector<8x32xf32>
    %213 = arith.mulf %202, %110 : vector<8x32xf32>
    %214 = arith.mulf %194, %204 : vector<8x32xf32>
    %215 = arith.addf %213, %214 : vector<8x32xf32>
    %216 = math.tanh %215 : vector<8x32xf32>
    %217 = arith.mulf %212, %216 : vector<8x32xf32>
    %218 = vector.broadcast %133 : vector<8x1xf32> to vector<8x32xf32>
    %219 = arith.mulf %218, %215 : vector<8x32xf32>
    %cst_74 = arith.constant 1.000000e+00 : f32
    %220 = vector.broadcast %cst_74 : f32 to vector<8x1xf32>
    %221 = arith.subf %220, %133 : vector<8x1xf32>
    %222 = vector.broadcast %221 : vector<8x1xf32> to vector<8x32xf32>
    %223 = arith.mulf %222, %110 : vector<8x32xf32>
    %224 = arith.addf %219, %223 : vector<8x32xf32>
    %225 = vector.broadcast %133 : vector<8x1xf32> to vector<8x32xf32>
    %226 = arith.mulf %225, %217 : vector<8x32xf32>
    %cst_75 = arith.constant 1.000000e+00 : f32
    %227 = vector.broadcast %cst_75 : f32 to vector<8x1xf32>
    %228 = arith.subf %227, %133 : vector<8x1xf32>
    %229 = vector.broadcast %228 : vector<8x1xf32> to vector<8x32xf32>
    %230 = arith.mulf %229, %117 : vector<8x32xf32>
    %231 = arith.addf %226, %230 : vector<8x32xf32>
    %232 = vector.broadcast %133 : vector<8x1xf32> to vector<8x32xf32>
    %233 = arith.mulf %232, %217 : vector<8x32xf32>
    %c1 = arith.constant 1 : index
    %c0_76 = arith.constant 0 : index
    %c0_77 = arith.constant 0 : index
    %234 = vector.load %arg7[%c1, %c0_76, %c0_77] : memref<16x8x32xf32, #tpu.memory_space<vmem>>, vector<1x8x32xf32>
    %235 = vector.shape_cast %234 : vector<1x8x32xf32> to vector<8x32xf32>
    %236 = vector.shape_cast %184 : vector<8x32xf32> to vector<1x8x32xf32>
    tpu.vector_store %arg7[%c1, %c0_76, %c0_77], %236 {strides = array<i32>} : memref<16x8x32xf32, #tpu.memory_space<vmem>>, vector<1x8x32xf32>,
    %c14 = arith.constant 14 : index
    %c0_78 = arith.constant 0 : index
    %c0_79 = arith.constant 0 : index
    %237 = vector.load %arg8[%c14, %c0_78, %c0_79] : memref<16x8x32xf32, #tpu.memory_space<vmem>>, vector<1x8x32xf32>
    %238 = vector.shape_cast %237 : vector<1x8x32xf32> to vector<8x32xf32>
    %239 = vector.shape_cast %233 : vector<8x32xf32> to vector<1x8x32xf32>
    tpu.vector_store %arg8[%c14, %c0_78, %c0_79], %239 {strides = array<i32>} : memref<16x8x32xf32, #tpu.memory_space<vmem>>, vector<1x8x32xf32>,
    %cst_80 = arith.constant 2.000000e+00 : f32
    %240 = vector.broadcast %cst_80 : f32 to vector<8x1xf32>
    %241 = arith.cmpf ogt, %8, %240 : vector<8x1xf32>
    %242 = arith.extui %241 : vector<8x1xi1> to vector<8x1xi32>
    %243 = arith.sitofp %242 : vector<8x1xi32> to vector<8x1xf32>
    %cst_81 = arith.constant 1.300000e+01 : f32
    %244 = vector.broadcast %cst_81 : f32 to vector<8x1xf32>
    %245 = arith.cmpf ogt, %8, %244 : vector<8x1xf32>
    %246 = arith.extui %245 : vector<8x1xi1> to vector<8x1xi32>
    %247 = arith.sitofp %246 : vector<8x1xi32> to vector<8x1xf32>
    %c16 = arith.constant 16 : index
    %c0_82 = arith.constant 0 : index
    %248 = vector.load %arg9[%c16, %c0_82] : memref<128x256xf32, #tpu.memory_space<vmem>>, vector<8x128xf32>
    %c104 = arith.constant 104 : index
    %c128_83 = arith.constant 128 : index
    %249 = vector.load %arg9[%c104, %c128_83] : memref<128x256xf32, #tpu.memory_space<vmem>>, vector<8x128xf32>
    %cst_84 = arith.constant dense<0.000000e+00> : vector<8x128xf32>
    %250 = tpu.matmul %182, %9, %cst_84 {dimension_numbers = #tpu.dot_dimension_numbers<[1], [0], [0], [1], [0, 0, 1, 1], [], []>} : vector<8x32xf32>, vector<32x128xf32>, vector<8x128xf32> -> vector<8x128xf32>
    %251 = arith.addf %248, %250 : vector<8x128xf32>
    %252 = vector.extract_strided_slice %251 {offsets = [0, 0], sizes = [8, 32], strides = [1, 1]} : vector<8x128xf32> to vector<8x32xf32>
    %cst_85 = arith.constant 0.000000e+00 : f32
    %253 = vector.broadcast %cst_85 : f32 to vector<8x32xf32>
    %254 = arith.subf %253, %252 : vector<8x32xf32>
    %255 = math.exp %254 : vector<8x32xf32>
    %cst_86 = arith.constant 1.000000e+00 : f32
    %256 = vector.broadcast %cst_86 : f32 to vector<8x32xf32>
    %257 = arith.addf %256, %255 : vector<8x32xf32>
    %cst_87 = arith.constant 1.000000e+00 : f32
    %258 = vector.broadcast %cst_87 : f32 to vector<8x32xf32>
    %259 = arith.divf %258, %257 : vector<8x32xf32>
    %260 = vector.extract_strided_slice %251 {offsets = [0, 32], sizes = [8, 32], strides = [1, 1]} : vector<8x128xf32> to vector<8x32xf32>
    %cst_88 = arith.constant 0.000000e+00 : f32
    %261 = vector.broadcast %cst_88 : f32 to vector<8x32xf32>
    %262 = arith.subf %261, %260 : vector<8x32xf32>
    %263 = math.exp %262 : vector<8x32xf32>
    %cst_89 = arith.constant 1.000000e+00 : f32
    %264 = vector.broadcast %cst_89 : f32 to vector<8x32xf32>
    %265 = arith.addf %264, %263 : vector<8x32xf32>
    %cst_90 = arith.constant 1.000000e+00 : f32
    %266 = vector.broadcast %cst_90 : f32 to vector<8x32xf32>
    %267 = arith.divf %266, %265 : vector<8x32xf32>
    %268 = vector.extract_strided_slice %251 {offsets = [0, 64], sizes = [8, 32], strides = [1, 1]} : vector<8x128xf32> to vector<8x32xf32>
    %269 = math.tanh %268 : vector<8x32xf32>
    %270 = vector.extract_strided_slice %251 {offsets = [0, 96], sizes = [8, 32], strides = [1, 1]} : vector<8x128xf32> to vector<8x32xf32>
    %cst_91 = arith.constant 0.000000e+00 : f32
    %271 = vector.broadcast %cst_91 : f32 to vector<8x32xf32>
    %272 = arith.subf %271, %270 : vector<8x32xf32>
    %273 = math.exp %272 : vector<8x32xf32>
    %cst_92 = arith.constant 1.000000e+00 : f32
    %274 = vector.broadcast %cst_92 : f32 to vector<8x32xf32>
    %275 = arith.addf %274, %273 : vector<8x32xf32>
    %cst_93 = arith.constant 1.000000e+00 : f32
    %276 = vector.broadcast %cst_93 : f32 to vector<8x32xf32>
    %277 = arith.divf %276, %275 : vector<8x32xf32>
    %278 = arith.mulf %267, %175 : vector<8x32xf32>
    %279 = arith.mulf %259, %269 : vector<8x32xf32>
    %280 = arith.addf %278, %279 : vector<8x32xf32>
    %281 = math.tanh %280 : vector<8x32xf32>
    %282 = arith.mulf %277, %281 : vector<8x32xf32>
    %283 = vector.broadcast %243 : vector<8x1xf32> to vector<8x32xf32>
    %284 = arith.mulf %283, %280 : vector<8x32xf32>
    %cst_94 = arith.constant 1.000000e+00 : f32
    %285 = vector.broadcast %cst_94 : f32 to vector<8x1xf32>
    %286 = arith.subf %285, %243 : vector<8x1xf32>
    %287 = vector.broadcast %286 : vector<8x1xf32> to vector<8x32xf32>
    %288 = arith.mulf %287, %175 : vector<8x32xf32>
    %289 = arith.addf %284, %288 : vector<8x32xf32>
    %290 = vector.broadcast %243 : vector<8x1xf32> to vector<8x32xf32>
    %291 = arith.mulf %290, %282 : vector<8x32xf32>
    %cst_95 = arith.constant 1.000000e+00 : f32
    %292 = vector.broadcast %cst_95 : f32 to vector<8x1xf32>
    %293 = arith.subf %292, %243 : vector<8x1xf32>
    %294 = vector.broadcast %293 : vector<8x1xf32> to vector<8x32xf32>
    %295 = arith.mulf %294, %182 : vector<8x32xf32>
    %296 = arith.addf %291, %295 : vector<8x32xf32>
    %297 = vector.broadcast %243 : vector<8x1xf32> to vector<8x32xf32>
    %298 = arith.mulf %297, %282 : vector<8x32xf32>
    %cst_96 = arith.constant dense<0.000000e+00> : vector<8x128xf32>
    %299 = tpu.matmul %231, %10, %cst_96 {dimension_numbers = #tpu.dot_dimension_numbers<[1], [0], [0], [1], [0, 0, 1, 1], [], []>} : vector<8x32xf32>, vector<32x128xf32>, vector<8x128xf32> -> vector<8x128xf32>
    %300 = arith.addf %249, %299 : vector<8x128xf32>
    %301 = vector.extract_strided_slice %300 {offsets = [0, 0], sizes = [8, 32], strides = [1, 1]} : vector<8x128xf32> to vector<8x32xf32>
    %cst_97 = arith.constant 0.000000e+00 : f32
    %302 = vector.broadcast %cst_97 : f32 to vector<8x32xf32>
    %303 = arith.subf %302, %301 : vector<8x32xf32>
    %304 = math.exp %303 : vector<8x32xf32>
    %cst_98 = arith.constant 1.000000e+00 : f32
    %305 = vector.broadcast %cst_98 : f32 to vector<8x32xf32>
    %306 = arith.addf %305, %304 : vector<8x32xf32>
    %cst_99 = arith.constant 1.000000e+00 : f32
    %307 = vector.broadcast %cst_99 : f32 to vector<8x32xf32>
    %308 = arith.divf %307, %306 : vector<8x32xf32>
    %309 = vector.extract_strided_slice %300 {offsets = [0, 32], sizes = [8, 32], strides = [1, 1]} : vector<8x128xf32> to vector<8x32xf32>
    %cst_100 = arith.constant 0.000000e+00 : f32
    %310 = vector.broadcast %cst_100 : f32 to vector<8x32xf32>
    %311 = arith.subf %310, %309 : vector<8x32xf32>
    %312 = math.exp %311 : vector<8x32xf32>
    %cst_101 = arith.constant 1.000000e+00 : f32
    %313 = vector.broadcast %cst_101 : f32 to vector<8x32xf32>
    %314 = arith.addf %313, %312 : vector<8x32xf32>
    %cst_102 = arith.constant 1.000000e+00 : f32
    %315 = vector.broadcast %cst_102 : f32 to vector<8x32xf32>
    %316 = arith.divf %315, %314 : vector<8x32xf32>
    %317 = vector.extract_strided_slice %300 {offsets = [0, 64], sizes = [8, 32], strides = [1, 1]} : vector<8x128xf32> to vector<8x32xf32>
    %318 = math.tanh %317 : vector<8x32xf32>
    %319 = vector.extract_strided_slice %300 {offsets = [0, 96], sizes = [8, 32], strides = [1, 1]} : vector<8x128xf32> to vector<8x32xf32>
    %cst_103 = arith.constant 0.000000e+00 : f32
    %320 = vector.broadcast %cst_103 : f32 to vector<8x32xf32>
    %321 = arith.subf %320, %319 : vector<8x32xf32>
    %322 = math.exp %321 : vector<8x32xf32>
    %cst_104 = arith.constant 1.000000e+00 : f32
    %323 = vector.broadcast %cst_104 : f32 to vector<8x32xf32>
    %324 = arith.addf %323, %322 : vector<8x32xf32>
    %cst_105 = arith.constant 1.000000e+00 : f32
    %325 = vector.broadcast %cst_105 : f32 to vector<8x32xf32>
    %326 = arith.divf %325, %324 : vector<8x32xf32>
    %327 = arith.mulf %316, %224 : vector<8x32xf32>
    %328 = arith.mulf %308, %318 : vector<8x32xf32>
    %329 = arith.addf %327, %328 : vector<8x32xf32>
    %330 = math.tanh %329 : vector<8x32xf32>
    %331 = arith.mulf %326, %330 : vector<8x32xf32>
    %332 = vector.broadcast %247 : vector<8x1xf32> to vector<8x32xf32>
    %333 = arith.mulf %332, %329 : vector<8x32xf32>
    %cst_106 = arith.constant 1.000000e+00 : f32
    %334 = vector.broadcast %cst_106 : f32 to vector<8x1xf32>
    %335 = arith.subf %334, %247 : vector<8x1xf32>
    %336 = vector.broadcast %335 : vector<8x1xf32> to vector<8x32xf32>
    %337 = arith.mulf %336, %224 : vector<8x32xf32>
    %338 = arith.addf %333, %337 : vector<8x32xf32>
    %339 = vector.broadcast %247 : vector<8x1xf32> to vector<8x32xf32>
    %340 = arith.mulf %339, %331 : vector<8x32xf32>
    %cst_107 = arith.constant 1.000000e+00 : f32
    %341 = vector.broadcast %cst_107 : f32 to vector<8x1xf32>
    %342 = arith.subf %341, %247 : vector<8x1xf32>
    %343 = vector.broadcast %342 : vector<8x1xf32> to vector<8x32xf32>
    %344 = arith.mulf %343, %231 : vector<8x32xf32>
    %345 = arith.addf %340, %344 : vector<8x32xf32>
    %346 = vector.broadcast %247 : vector<8x1xf32> to vector<8x32xf32>
    %347 = arith.mulf %346, %331 : vector<8x32xf32>
    %c2 = arith.constant 2 : index
    %c0_108 = arith.constant 0 : index
    %c0_109 = arith.constant 0 : index
    %348 = vector.load %arg7[%c2, %c0_108, %c0_109] : memref<16x8x32xf32, #tpu.memory_space<vmem>>, vector<1x8x32xf32>
    %349 = vector.shape_cast %348 : vector<1x8x32xf32> to vector<8x32xf32>
    %350 = vector.shape_cast %298 : vector<8x32xf32> to vector<1x8x32xf32>
    tpu.vector_store %arg7[%c2, %c0_108, %c0_109], %350 {strides = array<i32>} : memref<16x8x32xf32, #tpu.memory_space<vmem>>, vector<1x8x32xf32>,
    %c13 = arith.constant 13 : index
    %c0_110 = arith.constant 0 : index
    %c0_111 = arith.constant 0 : index
    %351 = vector.load %arg8[%c13, %c0_110, %c0_111] : memref<16x8x32xf32, #tpu.memory_space<vmem>>, vector<1x8x32xf32>
    %352 = vector.shape_cast %351 : vector<1x8x32xf32> to vector<8x32xf32>
    %353 = vector.shape_cast %347 : vector<8x32xf32> to vector<1x8x32xf32>
    tpu.vector_store %arg8[%c13, %c0_110, %c0_111], %353 {strides = array<i32>} : memref<16x8x32xf32, #tpu.memory_space<vmem>>, vector<1x8x32xf32>,
    %cst_112 = arith.constant 3.000000e+00 : f32
    %354 = vector.broadcast %cst_112 : f32 to vector<8x1xf32>
    %355 = arith.cmpf ogt, %8, %354 : vector<8x1xf32>
    %356 = arith.extui %355 : vector<8x1xi1> to vector<8x1xi32>
    %357 = arith.sitofp %356 : vector<8x1xi32> to vector<8x1xf32>
    %cst_113 = arith.constant 1.200000e+01 : f32
    %358 = vector.broadcast %cst_113 : f32 to vector<8x1xf32>
    %359 = arith.cmpf ogt, %8, %358 : vector<8x1xf32>
    %360 = arith.extui %359 : vector<8x1xi1> to vector<8x1xi32>
    %361 = arith.sitofp %360 : vector<8x1xi32> to vector<8x1xf32>
    %c24 = arith.constant 24 : index
    %c0_114 = arith.constant 0 : index
    %362 = vector.load %arg9[%c24, %c0_114] : memref<128x256xf32, #tpu.memory_space<vmem>>, vector<8x128xf32>
    %c96 = arith.constant 96 : index
    %c128_115 = arith.constant 128 : index
    %363 = vector.load %arg9[%c96, %c128_115] : memref<128x256xf32, #tpu.memory_space<vmem>>, vector<8x128xf32>
    %cst_116 = arith.constant dense<0.000000e+00> : vector<8x128xf32>
    %364 = tpu.matmul %296, %9, %cst_116 {dimension_numbers = #tpu.dot_dimension_numbers<[1], [0], [0], [1], [0, 0, 1, 1], [], []>} : vector<8x32xf32>, vector<32x128xf32>, vector<8x128xf32> -> vector<8x128xf32>
    %365 = arith.addf %362, %364 : vector<8x128xf32>
    %366 = vector.extract_strided_slice %365 {offsets = [0, 0], sizes = [8, 32], strides = [1, 1]} : vector<8x128xf32> to vector<8x32xf32>
    %cst_117 = arith.constant 0.000000e+00 : f32
    %367 = vector.broadcast %cst_117 : f32 to vector<8x32xf32>
    %368 = arith.subf %367, %366 : vector<8x32xf32>
    %369 = math.exp %368 : vector<8x32xf32>
    %cst_118 = arith.constant 1.000000e+00 : f32
    %370 = vector.broadcast %cst_118 : f32 to vector<8x32xf32>
    %371 = arith.addf %370, %369 : vector<8x32xf32>
    %cst_119 = arith.constant 1.000000e+00 : f32
    %372 = vector.broadcast %cst_119 : f32 to vector<8x32xf32>
    %373 = arith.divf %372, %371 : vector<8x32xf32>
    %374 = vector.extract_strided_slice %365 {offsets = [0, 32], sizes = [8, 32], strides = [1, 1]} : vector<8x128xf32> to vector<8x32xf32>
    %cst_120 = arith.constant 0.000000e+00 : f32
    %375 = vector.broadcast %cst_120 : f32 to vector<8x32xf32>
    %376 = arith.subf %375, %374 : vector<8x32xf32>
    %377 = math.exp %376 : vector<8x32xf32>
    %cst_121 = arith.constant 1.000000e+00 : f32
    %378 = vector.broadcast %cst_121 : f32 to vector<8x32xf32>
    %379 = arith.addf %378, %377 : vector<8x32xf32>
    %cst_122 = arith.constant 1.000000e+00 : f32
    %380 = vector.broadcast %cst_122 : f32 to vector<8x32xf32>
    %381 = arith.divf %380, %379 : vector<8x32xf32>
    %382 = vector.extract_strided_slice %365 {offsets = [0, 64], sizes = [8, 32], strides = [1, 1]} : vector<8x128xf32> to vector<8x32xf32>
    %383 = math.tanh %382 : vector<8x32xf32>
    %384 = vector.extract_strided_slice %365 {offsets = [0, 96], sizes = [8, 32], strides = [1, 1]} : vector<8x128xf32> to vector<8x32xf32>
    %cst_123 = arith.constant 0.000000e+00 : f32
    %385 = vector.broadcast %cst_123 : f32 to vector<8x32xf32>
    %386 = arith.subf %385, %384 : vector<8x32xf32>
    %387 = math.exp %386 : vector<8x32xf32>
    %cst_124 = arith.constant 1.000000e+00 : f32
    %388 = vector.broadcast %cst_124 : f32 to vector<8x32xf32>
    %389 = arith.addf %388, %387 : vector<8x32xf32>
    %cst_125 = arith.constant 1.000000e+00 : f32
    %390 = vector.broadcast %cst_125 : f32 to vector<8x32xf32>
    %391 = arith.divf %390, %389 : vector<8x32xf32>
    %392 = arith.mulf %381, %289 : vector<8x32xf32>
    %393 = arith.mulf %373, %383 : vector<8x32xf32>
    %394 = arith.addf %392, %393 : vector<8x32xf32>
    %395 = math.tanh %394 : vector<8x32xf32>
    %396 = arith.mulf %391, %395 : vector<8x32xf32>
    %397 = vector.broadcast %357 : vector<8x1xf32> to vector<8x32xf32>
    %398 = arith.mulf %397, %394 : vector<8x32xf32>
    %cst_126 = arith.constant 1.000000e+00 : f32
    %399 = vector.broadcast %cst_126 : f32 to vector<8x1xf32>
    %400 = arith.subf %399, %357 : vector<8x1xf32>
    %401 = vector.broadcast %400 : vector<8x1xf32> to vector<8x32xf32>
    %402 = arith.mulf %401, %289 : vector<8x32xf32>
    %403 = arith.addf %398, %402 : vector<8x32xf32>
    %404 = vector.broadcast %357 : vector<8x1xf32> to vector<8x32xf32>
    %405 = arith.mulf %404, %396 : vector<8x32xf32>
    %cst_127 = arith.constant 1.000000e+00 : f32
    %406 = vector.broadcast %cst_127 : f32 to vector<8x1xf32>
    %407 = arith.subf %406, %357 : vector<8x1xf32>
    %408 = vector.broadcast %407 : vector<8x1xf32> to vector<8x32xf32>
    %409 = arith.mulf %408, %296 : vector<8x32xf32>
    %410 = arith.addf %405, %409 : vector<8x32xf32>
    %411 = vector.broadcast %357 : vector<8x1xf32> to vector<8x32xf32>
    %412 = arith.mulf %411, %396 : vector<8x32xf32>
    %cst_128 = arith.constant dense<0.000000e+00> : vector<8x128xf32>
    %413 = tpu.matmul %345, %10, %cst_128 {dimension_numbers = #tpu.dot_dimension_numbers<[1], [0], [0], [1], [0, 0, 1, 1], [], []>} : vector<8x32xf32>, vector<32x128xf32>, vector<8x128xf32> -> vector<8x128xf32>
    %414 = arith.addf %363, %413 : vector<8x128xf32>
    %415 = vector.extract_strided_slice %414 {offsets = [0, 0], sizes = [8, 32], strides = [1, 1]} : vector<8x128xf32> to vector<8x32xf32>
    %cst_129 = arith.constant 0.000000e+00 : f32
    %416 = vector.broadcast %cst_129 : f32 to vector<8x32xf32>
    %417 = arith.subf %416, %415 : vector<8x32xf32>
    %418 = math.exp %417 : vector<8x32xf32>
    %cst_130 = arith.constant 1.000000e+00 : f32
    %419 = vector.broadcast %cst_130 : f32 to vector<8x32xf32>
    %420 = arith.addf %419, %418 : vector<8x32xf32>
    %cst_131 = arith.constant 1.000000e+00 : f32
    %421 = vector.broadcast %cst_131 : f32 to vector<8x32xf32>
    %422 = arith.divf %421, %420 : vector<8x32xf32>
    %423 = vector.extract_strided_slice %414 {offsets = [0, 32], sizes = [8, 32], strides = [1, 1]} : vector<8x128xf32> to vector<8x32xf32>
    %cst_132 = arith.constant 0.000000e+00 : f32
    %424 = vector.broadcast %cst_132 : f32 to vector<8x32xf32>
    %425 = arith.subf %424, %423 : vector<8x32xf32>
    %426 = math.exp %425 : vector<8x32xf32>
    %cst_133 = arith.constant 1.000000e+00 : f32
    %427 = vector.broadcast %cst_133 : f32 to vector<8x32xf32>
    %428 = arith.addf %427, %426 : vector<8x32xf32>
    %cst_134 = arith.constant 1.000000e+00 : f32
    %429 = vector.broadcast %cst_134 : f32 to vector<8x32xf32>
    %430 = arith.divf %429, %428 : vector<8x32xf32>
    %431 = vector.extract_strided_slice %414 {offsets = [0, 64], sizes = [8, 32], strides = [1, 1]} : vector<8x128xf32> to vector<8x32xf32>
    %432 = math.tanh %431 : vector<8x32xf32>
    %433 = vector.extract_strided_slice %414 {offsets = [0, 96], sizes = [8, 32], strides = [1, 1]} : vector<8x128xf32> to vector<8x32xf32>
    %cst_135 = arith.constant 0.000000e+00 : f32
    %434 = vector.broadcast %cst_135 : f32 to vector<8x32xf32>
    %435 = arith.subf %434, %433 : vector<8x32xf32>
    %436 = math.exp %435 : vector<8x32xf32>
    %cst_136 = arith.constant 1.000000e+00 : f32
    %437 = vector.broadcast %cst_136 : f32 to vector<8x32xf32>
    %438 = arith.addf %437, %436 : vector<8x32xf32>
    %cst_137 = arith.constant 1.000000e+00 : f32
    %439 = vector.broadcast %cst_137 : f32 to vector<8x32xf32>
    %440 = arith.divf %439, %438 : vector<8x32xf32>
    %441 = arith.mulf %430, %338 : vector<8x32xf32>
    %442 = arith.mulf %422, %432 : vector<8x32xf32>
    %443 = arith.addf %441, %442 : vector<8x32xf32>
    %444 = math.tanh %443 : vector<8x32xf32>
    %445 = arith.mulf %440, %444 : vector<8x32xf32>
    %446 = vector.broadcast %361 : vector<8x1xf32> to vector<8x32xf32>
    %447 = arith.mulf %446, %443 : vector<8x32xf32>
    %cst_138 = arith.constant 1.000000e+00 : f32
    %448 = vector.broadcast %cst_138 : f32 to vector<8x1xf32>
    %449 = arith.subf %448, %361 : vector<8x1xf32>
    %450 = vector.broadcast %449 : vector<8x1xf32> to vector<8x32xf32>
    %451 = arith.mulf %450, %338 : vector<8x32xf32>
    %452 = arith.addf %447, %451 : vector<8x32xf32>
    %453 = vector.broadcast %361 : vector<8x1xf32> to vector<8x32xf32>
    %454 = arith.mulf %453, %445 : vector<8x32xf32>
    %cst_139 = arith.constant 1.000000e+00 : f32
    %455 = vector.broadcast %cst_139 : f32 to vector<8x1xf32>
    %456 = arith.subf %455, %361 : vector<8x1xf32>
    %457 = vector.broadcast %456 : vector<8x1xf32> to vector<8x32xf32>
    %458 = arith.mulf %457, %345 : vector<8x32xf32>
    %459 = arith.addf %454, %458 : vector<8x32xf32>
    %460 = vector.broadcast %361 : vector<8x1xf32> to vector<8x32xf32>
    %461 = arith.mulf %460, %445 : vector<8x32xf32>
    %c3 = arith.constant 3 : index
    %c0_140 = arith.constant 0 : index
    %c0_141 = arith.constant 0 : index
    %462 = vector.load %arg7[%c3, %c0_140, %c0_141] : memref<16x8x32xf32, #tpu.memory_space<vmem>>, vector<1x8x32xf32>
    %463 = vector.shape_cast %462 : vector<1x8x32xf32> to vector<8x32xf32>
    %464 = vector.shape_cast %412 : vector<8x32xf32> to vector<1x8x32xf32>
    tpu.vector_store %arg7[%c3, %c0_140, %c0_141], %464 {strides = array<i32>} : memref<16x8x32xf32, #tpu.memory_space<vmem>>, vector<1x8x32xf32>,
    %c12 = arith.constant 12 : index
    %c0_142 = arith.constant 0 : index
    %c0_143 = arith.constant 0 : index
    %465 = vector.load %arg8[%c12, %c0_142, %c0_143] : memref<16x8x32xf32, #tpu.memory_space<vmem>>, vector<1x8x32xf32>
    %466 = vector.shape_cast %465 : vector<1x8x32xf32> to vector<8x32xf32>
    %467 = vector.shape_cast %461 : vector<8x32xf32> to vector<1x8x32xf32>
    tpu.vector_store %arg8[%c12, %c0_142, %c0_143], %467 {strides = array<i32>} : memref<16x8x32xf32, #tpu.memory_space<vmem>>, vector<1x8x32xf32>,
    %cst_144 = arith.constant 4.000000e+00 : f32
    %468 = vector.broadcast %cst_144 : f32 to vector<8x1xf32>
    %469 = arith.cmpf ogt, %8, %468 : vector<8x1xf32>
    %470 = arith.extui %469 : vector<8x1xi1> to vector<8x1xi32>
    %471 = arith.sitofp %470 : vector<8x1xi32> to vector<8x1xf32>
    %cst_145 = arith.constant 1.100000e+01 : f32
    %472 = vector.broadcast %cst_145 : f32 to vector<8x1xf32>
    %473 = arith.cmpf ogt, %8, %472 : vector<8x1xf32>
    %474 = arith.extui %473 : vector<8x1xi1> to vector<8x1xi32>
    %475 = arith.sitofp %474 : vector<8x1xi32> to vector<8x1xf32>
    %c32 = arith.constant 32 : index
    %c0_146 = arith.constant 0 : index
    %476 = vector.load %arg9[%c32, %c0_146] : memref<128x256xf32, #tpu.memory_space<vmem>>, vector<8x128xf32>
    %c88 = arith.constant 88 : index
    %c128_147 = arith.constant 128 : index
    %477 = vector.load %arg9[%c88, %c128_147] : memref<128x256xf32, #tpu.memory_space<vmem>>, vector<8x128xf32>
    %cst_148 = arith.constant dense<0.000000e+00> : vector<8x128xf32>
    %478 = tpu.matmul %410, %9, %cst_148 {dimension_numbers = #tpu.dot_dimension_numbers<[1], [0], [0], [1], [0, 0, 1, 1], [], []>} : vector<8x32xf32>, vector<32x128xf32>, vector<8x128xf32> -> vector<8x128xf32>
    %479 = arith.addf %476, %478 : vector<8x128xf32>
    %480 = vector.extract_strided_slice %479 {offsets = [0, 0], sizes = [8, 32], strides = [1, 1]} : vector<8x128xf32> to vector<8x32xf32>
    %cst_149 = arith.constant 0.000000e+00 : f32
    %481 = vector.broadcast %cst_149 : f32 to vector<8x32xf32>
    %482 = arith.subf %481, %480 : vector<8x32xf32>
    %483 = math.exp %482 : vector<8x32xf32>
    %cst_150 = arith.constant 1.000000e+00 : f32
    %484 = vector.broadcast %cst_150 : f32 to vector<8x32xf32>
    %485 = arith.addf %484, %483 : vector<8x32xf32>
    %cst_151 = arith.constant 1.000000e+00 : f32
    %486 = vector.broadcast %cst_151 : f32 to vector<8x32xf32>
    %487 = arith.divf %486, %485 : vector<8x32xf32>
    %488 = vector.extract_strided_slice %479 {offsets = [0, 32], sizes = [8, 32], strides = [1, 1]} : vector<8x128xf32> to vector<8x32xf32>
    %cst_152 = arith.constant 0.000000e+00 : f32
    %489 = vector.broadcast %cst_152 : f32 to vector<8x32xf32>
    %490 = arith.subf %489, %488 : vector<8x32xf32>
    %491 = math.exp %490 : vector<8x32xf32>
    %cst_153 = arith.constant 1.000000e+00 : f32
    %492 = vector.broadcast %cst_153 : f32 to vector<8x32xf32>
    %493 = arith.addf %492, %491 : vector<8x32xf32>
    %cst_154 = arith.constant 1.000000e+00 : f32
    %494 = vector.broadcast %cst_154 : f32 to vector<8x32xf32>
    %495 = arith.divf %494, %493 : vector<8x32xf32>
    %496 = vector.extract_strided_slice %479 {offsets = [0, 64], sizes = [8, 32], strides = [1, 1]} : vector<8x128xf32> to vector<8x32xf32>
    %497 = math.tanh %496 : vector<8x32xf32>
    %498 = vector.extract_strided_slice %479 {offsets = [0, 96], sizes = [8, 32], strides = [1, 1]} : vector<8x128xf32> to vector<8x32xf32>
    %cst_155 = arith.constant 0.000000e+00 : f32
    %499 = vector.broadcast %cst_155 : f32 to vector<8x32xf32>
    %500 = arith.subf %499, %498 : vector<8x32xf32>
    %501 = math.exp %500 : vector<8x32xf32>
    %cst_156 = arith.constant 1.000000e+00 : f32
    %502 = vector.broadcast %cst_156 : f32 to vector<8x32xf32>
    %503 = arith.addf %502, %501 : vector<8x32xf32>
    %cst_157 = arith.constant 1.000000e+00 : f32
    %504 = vector.broadcast %cst_157 : f32 to vector<8x32xf32>
    %505 = arith.divf %504, %503 : vector<8x32xf32>
    %506 = arith.mulf %495, %403 : vector<8x32xf32>
    %507 = arith.mulf %487, %497 : vector<8x32xf32>
    %508 = arith.addf %506, %507 : vector<8x32xf32>
    %509 = math.tanh %508 : vector<8x32xf32>
    %510 = arith.mulf %505, %509 : vector<8x32xf32>
    %511 = vector.broadcast %471 : vector<8x1xf32> to vector<8x32xf32>
    %512 = arith.mulf %511, %508 : vector<8x32xf32>
    %cst_158 = arith.constant 1.000000e+00 : f32
    %513 = vector.broadcast %cst_158 : f32 to vector<8x1xf32>
    %514 = arith.subf %513, %471 : vector<8x1xf32>
    %515 = vector.broadcast %514 : vector<8x1xf32> to vector<8x32xf32>
    %516 = arith.mulf %515, %403 : vector<8x32xf32>
    %517 = arith.addf %512, %516 : vector<8x32xf32>
    %518 = vector.broadcast %471 : vector<8x1xf32> to vector<8x32xf32>
    %519 = arith.mulf %518, %510 : vector<8x32xf32>
    %cst_159 = arith.constant 1.000000e+00 : f32
    %520 = vector.broadcast %cst_159 : f32 to vector<8x1xf32>
    %521 = arith.subf %520, %471 : vector<8x1xf32>
    %522 = vector.broadcast %521 : vector<8x1xf32> to vector<8x32xf32>
    %523 = arith.mulf %522, %410 : vector<8x32xf32>
    %524 = arith.addf %519, %523 : vector<8x32xf32>
    %525 = vector.broadcast %471 : vector<8x1xf32> to vector<8x32xf32>
    %526 = arith.mulf %525, %510 : vector<8x32xf32>
    %cst_160 = arith.constant dense<0.000000e+00> : vector<8x128xf32>
    %527 = tpu.matmul %459, %10, %cst_160 {dimension_numbers = #tpu.dot_dimension_numbers<[1], [0], [0], [1], [0, 0, 1, 1], [], []>} : vector<8x32xf32>, vector<32x128xf32>, vector<8x128xf32> -> vector<8x128xf32>
    %528 = arith.addf %477, %527 : vector<8x128xf32>
    %529 = vector.extract_strided_slice %528 {offsets = [0, 0], sizes = [8, 32], strides = [1, 1]} : vector<8x128xf32> to vector<8x32xf32>
    %cst_161 = arith.constant 0.000000e+00 : f32
    %530 = vector.broadcast %cst_161 : f32 to vector<8x32xf32>
    %531 = arith.subf %530, %529 : vector<8x32xf32>
    %532 = math.exp %531 : vector<8x32xf32>
    %cst_162 = arith.constant 1.000000e+00 : f32
    %533 = vector.broadcast %cst_162 : f32 to vector<8x32xf32>
    %534 = arith.addf %533, %532 : vector<8x32xf32>
    %cst_163 = arith.constant 1.000000e+00 : f32
    %535 = vector.broadcast %cst_163 : f32 to vector<8x32xf32>
    %536 = arith.divf %535, %534 : vector<8x32xf32>
    %537 = vector.extract_strided_slice %528 {offsets = [0, 32], sizes = [8, 32], strides = [1, 1]} : vector<8x128xf32> to vector<8x32xf32>
    %cst_164 = arith.constant 0.000000e+00 : f32
    %538 = vector.broadcast %cst_164 : f32 to vector<8x32xf32>
    %539 = arith.subf %538, %537 : vector<8x32xf32>
    %540 = math.exp %539 : vector<8x32xf32>
    %cst_165 = arith.constant 1.000000e+00 : f32
    %541 = vector.broadcast %cst_165 : f32 to vector<8x32xf32>
    %542 = arith.addf %541, %540 : vector<8x32xf32>
    %cst_166 = arith.constant 1.000000e+00 : f32
    %543 = vector.broadcast %cst_166 : f32 to vector<8x32xf32>
    %544 = arith.divf %543, %542 : vector<8x32xf32>
    %545 = vector.extract_strided_slice %528 {offsets = [0, 64], sizes = [8, 32], strides = [1, 1]} : vector<8x128xf32> to vector<8x32xf32>
    %546 = math.tanh %545 : vector<8x32xf32>
    %547 = vector.extract_strided_slice %528 {offsets = [0, 96], sizes = [8, 32], strides = [1, 1]} : vector<8x128xf32> to vector<8x32xf32>
    %cst_167 = arith.constant 0.000000e+00 : f32
    %548 = vector.broadcast %cst_167 : f32 to vector<8x32xf32>
    %549 = arith.subf %548, %547 : vector<8x32xf32>
    %550 = math.exp %549 : vector<8x32xf32>
    %cst_168 = arith.constant 1.000000e+00 : f32
    %551 = vector.broadcast %cst_168 : f32 to vector<8x32xf32>
    %552 = arith.addf %551, %550 : vector<8x32xf32>
    %cst_169 = arith.constant 1.000000e+00 : f32
    %553 = vector.broadcast %cst_169 : f32 to vector<8x32xf32>
    %554 = arith.divf %553, %552 : vector<8x32xf32>
    %555 = arith.mulf %544, %452 : vector<8x32xf32>
    %556 = arith.mulf %536, %546 : vector<8x32xf32>
    %557 = arith.addf %555, %556 : vector<8x32xf32>
    %558 = math.tanh %557 : vector<8x32xf32>
    %559 = arith.mulf %554, %558 : vector<8x32xf32>
    %560 = vector.broadcast %475 : vector<8x1xf32> to vector<8x32xf32>
    %561 = arith.mulf %560, %557 : vector<8x32xf32>
    %cst_170 = arith.constant 1.000000e+00 : f32
    %562 = vector.broadcast %cst_170 : f32 to vector<8x1xf32>
    %563 = arith.subf %562, %475 : vector<8x1xf32>
    %564 = vector.broadcast %563 : vector<8x1xf32> to vector<8x32xf32>
    %565 = arith.mulf %564, %452 : vector<8x32xf32>
    %566 = arith.addf %561, %565 : vector<8x32xf32>
    %567 = vector.broadcast %475 : vector<8x1xf32> to vector<8x32xf32>
    %568 = arith.mulf %567, %559 : vector<8x32xf32>
    %cst_171 = arith.constant 1.000000e+00 : f32
    %569 = vector.broadcast %cst_171 : f32 to vector<8x1xf32>
    %570 = arith.subf %569, %475 : vector<8x1xf32>
    %571 = vector.broadcast %570 : vector<8x1xf32> to vector<8x32xf32>
    %572 = arith.mulf %571, %459 : vector<8x32xf32>
    %573 = arith.addf %568, %572 : vector<8x32xf32>
    %574 = vector.broadcast %475 : vector<8x1xf32> to vector<8x32xf32>
    %575 = arith.mulf %574, %559 : vector<8x32xf32>
    %c4 = arith.constant 4 : index
    %c0_172 = arith.constant 0 : index
    %c0_173 = arith.constant 0 : index
    %576 = vector.load %arg7[%c4, %c0_172, %c0_173] : memref<16x8x32xf32, #tpu.memory_space<vmem>>, vector<1x8x32xf32>
    %577 = vector.shape_cast %576 : vector<1x8x32xf32> to vector<8x32xf32>
    %578 = vector.shape_cast %526 : vector<8x32xf32> to vector<1x8x32xf32>
    tpu.vector_store %arg7[%c4, %c0_172, %c0_173], %578 {strides = array<i32>} : memref<16x8x32xf32, #tpu.memory_space<vmem>>, vector<1x8x32xf32>,
    %c11 = arith.constant 11 : index
    %c0_174 = arith.constant 0 : index
    %c0_175 = arith.constant 0 : index
    %579 = vector.load %arg8[%c11, %c0_174, %c0_175] : memref<16x8x32xf32, #tpu.memory_space<vmem>>, vector<1x8x32xf32>
    %580 = vector.shape_cast %579 : vector<1x8x32xf32> to vector<8x32xf32>
    %581 = vector.shape_cast %575 : vector<8x32xf32> to vector<1x8x32xf32>
    tpu.vector_store %arg8[%c11, %c0_174, %c0_175], %581 {strides = array<i32>} : memref<16x8x32xf32, #tpu.memory_space<vmem>>, vector<1x8x32xf32>,
    %cst_176 = arith.constant 5.000000e+00 : f32
    %582 = vector.broadcast %cst_176 : f32 to vector<8x1xf32>
    %583 = arith.cmpf ogt, %8, %582 : vector<8x1xf32>
    %584 = arith.extui %583 : vector<8x1xi1> to vector<8x1xi32>
    %585 = arith.sitofp %584 : vector<8x1xi32> to vector<8x1xf32>
    %cst_177 = arith.constant 1.000000e+01 : f32
    %586 = vector.broadcast %cst_177 : f32 to vector<8x1xf32>
    %587 = arith.cmpf ogt, %8, %586 : vector<8x1xf32>
    %588 = arith.extui %587 : vector<8x1xi1> to vector<8x1xi32>
    %589 = arith.sitofp %588 : vector<8x1xi32> to vector<8x1xf32>
    %c40 = arith.constant 40 : index
    %c0_178 = arith.constant 0 : index
    %590 = vector.load %arg9[%c40, %c0_178] : memref<128x256xf32, #tpu.memory_space<vmem>>, vector<8x128xf32>
    %c80 = arith.constant 80 : index
    %c128_179 = arith.constant 128 : index
    %591 = vector.load %arg9[%c80, %c128_179] : memref<128x256xf32, #tpu.memory_space<vmem>>, vector<8x128xf32>
    %cst_180 = arith.constant dense<0.000000e+00> : vector<8x128xf32>
    %592 = tpu.matmul %524, %9, %cst_180 {dimension_numbers = #tpu.dot_dimension_numbers<[1], [0], [0], [1], [0, 0, 1, 1], [], []>} : vector<8x32xf32>, vector<32x128xf32>, vector<8x128xf32> -> vector<8x128xf32>
    %593 = arith.addf %590, %592 : vector<8x128xf32>
    %594 = vector.extract_strided_slice %593 {offsets = [0, 0], sizes = [8, 32], strides = [1, 1]} : vector<8x128xf32> to vector<8x32xf32>
    %cst_181 = arith.constant 0.000000e+00 : f32
    %595 = vector.broadcast %cst_181 : f32 to vector<8x32xf32>
    %596 = arith.subf %595, %594 : vector<8x32xf32>
    %597 = math.exp %596 : vector<8x32xf32>
    %cst_182 = arith.constant 1.000000e+00 : f32
    %598 = vector.broadcast %cst_182 : f32 to vector<8x32xf32>
    %599 = arith.addf %598, %597 : vector<8x32xf32>
    %cst_183 = arith.constant 1.000000e+00 : f32
    %600 = vector.broadcast %cst_183 : f32 to vector<8x32xf32>
    %601 = arith.divf %600, %599 : vector<8x32xf32>
    %602 = vector.extract_strided_slice %593 {offsets = [0, 32], sizes = [8, 32], strides = [1, 1]} : vector<8x128xf32> to vector<8x32xf32>
    %cst_184 = arith.constant 0.000000e+00 : f32
    %603 = vector.broadcast %cst_184 : f32 to vector<8x32xf32>
    %604 = arith.subf %603, %602 : vector<8x32xf32>
    %605 = math.exp %604 : vector<8x32xf32>
    %cst_185 = arith.constant 1.000000e+00 : f32
    %606 = vector.broadcast %cst_185 : f32 to vector<8x32xf32>
    %607 = arith.addf %606, %605 : vector<8x32xf32>
    %cst_186 = arith.constant 1.000000e+00 : f32
    %608 = vector.broadcast %cst_186 : f32 to vector<8x32xf32>
    %609 = arith.divf %608, %607 : vector<8x32xf32>
    %610 = vector.extract_strided_slice %593 {offsets = [0, 64], sizes = [8, 32], strides = [1, 1]} : vector<8x128xf32> to vector<8x32xf32>
    %611 = math.tanh %610 : vector<8x32xf32>
    %612 = vector.extract_strided_slice %593 {offsets = [0, 96], sizes = [8, 32], strides = [1, 1]} : vector<8x128xf32> to vector<8x32xf32>
    %cst_187 = arith.constant 0.000000e+00 : f32
    %613 = vector.broadcast %cst_187 : f32 to vector<8x32xf32>
    %614 = arith.subf %613, %612 : vector<8x32xf32>
    %615 = math.exp %614 : vector<8x32xf32>
    %cst_188 = arith.constant 1.000000e+00 : f32
    %616 = vector.broadcast %cst_188 : f32 to vector<8x32xf32>
    %617 = arith.addf %616, %615 : vector<8x32xf32>
    %cst_189 = arith.constant 1.000000e+00 : f32
    %618 = vector.broadcast %cst_189 : f32 to vector<8x32xf32>
    %619 = arith.divf %618, %617 : vector<8x32xf32>
    %620 = arith.mulf %609, %517 : vector<8x32xf32>
    %621 = arith.mulf %601, %611 : vector<8x32xf32>
    %622 = arith.addf %620, %621 : vector<8x32xf32>
    %623 = math.tanh %622 : vector<8x32xf32>
    %624 = arith.mulf %619, %623 : vector<8x32xf32>
    %625 = vector.broadcast %585 : vector<8x1xf32> to vector<8x32xf32>
    %626 = arith.mulf %625, %622 : vector<8x32xf32>
    %cst_190 = arith.constant 1.000000e+00 : f32
    %627 = vector.broadcast %cst_190 : f32 to vector<8x1xf32>
    %628 = arith.subf %627, %585 : vector<8x1xf32>
    %629 = vector.broadcast %628 : vector<8x1xf32> to vector<8x32xf32>
    %630 = arith.mulf %629, %517 : vector<8x32xf32>
    %631 = arith.addf %626, %630 : vector<8x32xf32>
    %632 = vector.broadcast %585 : vector<8x1xf32> to vector<8x32xf32>
    %633 = arith.mulf %632, %624 : vector<8x32xf32>
    %cst_191 = arith.constant 1.000000e+00 : f32
    %634 = vector.broadcast %cst_191 : f32 to vector<8x1xf32>
    %635 = arith.subf %634, %585 : vector<8x1xf32>
    %636 = vector.broadcast %635 : vector<8x1xf32> to vector<8x32xf32>
    %637 = arith.mulf %636, %524 : vector<8x32xf32>
    %638 = arith.addf %633, %637 : vector<8x32xf32>
    %639 = vector.broadcast %585 : vector<8x1xf32> to vector<8x32xf32>
    %640 = arith.mulf %639, %624 : vector<8x32xf32>
    %cst_192 = arith.constant dense<0.000000e+00> : vector<8x128xf32>
    %641 = tpu.matmul %573, %10, %cst_192 {dimension_numbers = #tpu.dot_dimension_numbers<[1], [0], [0], [1], [0, 0, 1, 1], [], []>} : vector<8x32xf32>, vector<32x128xf32>, vector<8x128xf32> -> vector<8x128xf32>
    %642 = arith.addf %591, %641 : vector<8x128xf32>
    %643 = vector.extract_strided_slice %642 {offsets = [0, 0], sizes = [8, 32], strides = [1, 1]} : vector<8x128xf32> to vector<8x32xf32>
    %cst_193 = arith.constant 0.000000e+00 : f32
    %644 = vector.broadcast %cst_193 : f32 to vector<8x32xf32>
    %645 = arith.subf %644, %643 : vector<8x32xf32>
    %646 = math.exp %645 : vector<8x32xf32>
    %cst_194 = arith.constant 1.000000e+00 : f32
    %647 = vector.broadcast %cst_194 : f32 to vector<8x32xf32>
    %648 = arith.addf %647, %646 : vector<8x32xf32>
    %cst_195 = arith.constant 1.000000e+00 : f32
    %649 = vector.broadcast %cst_195 : f32 to vector<8x32xf32>
    %650 = arith.divf %649, %648 : vector<8x32xf32>
    %651 = vector.extract_strided_slice %642 {offsets = [0, 32], sizes = [8, 32], strides = [1, 1]} : vector<8x128xf32> to vector<8x32xf32>
    %cst_196 = arith.constant 0.000000e+00 : f32
    %652 = vector.broadcast %cst_196 : f32 to vector<8x32xf32>
    %653 = arith.subf %652, %651 : vector<8x32xf32>
    %654 = math.exp %653 : vector<8x32xf32>
    %cst_197 = arith.constant 1.000000e+00 : f32
    %655 = vector.broadcast %cst_197 : f32 to vector<8x32xf32>
    %656 = arith.addf %655, %654 : vector<8x32xf32>
    %cst_198 = arith.constant 1.000000e+00 : f32
    %657 = vector.broadcast %cst_198 : f32 to vector<8x32xf32>
    %658 = arith.divf %657, %656 : vector<8x32xf32>
    %659 = vector.extract_strided_slice %642 {offsets = [0, 64], sizes = [8, 32], strides = [1, 1]} : vector<8x128xf32> to vector<8x32xf32>
    %660 = math.tanh %659 : vector<8x32xf32>
    %661 = vector.extract_strided_slice %642 {offsets = [0, 96], sizes = [8, 32], strides = [1, 1]} : vector<8x128xf32> to vector<8x32xf32>
    %cst_199 = arith.constant 0.000000e+00 : f32
    %662 = vector.broadcast %cst_199 : f32 to vector<8x32xf32>
    %663 = arith.subf %662, %661 : vector<8x32xf32>
    %664 = math.exp %663 : vector<8x32xf32>
    %cst_200 = arith.constant 1.000000e+00 : f32
    %665 = vector.broadcast %cst_200 : f32 to vector<8x32xf32>
    %666 = arith.addf %665, %664 : vector<8x32xf32>
    %cst_201 = arith.constant 1.000000e+00 : f32
    %667 = vector.broadcast %cst_201 : f32 to vector<8x32xf32>
    %668 = arith.divf %667, %666 : vector<8x32xf32>
    %669 = arith.mulf %658, %566 : vector<8x32xf32>
    %670 = arith.mulf %650, %660 : vector<8x32xf32>
    %671 = arith.addf %669, %670 : vector<8x32xf32>
    %672 = math.tanh %671 : vector<8x32xf32>
    %673 = arith.mulf %668, %672 : vector<8x32xf32>
    %674 = vector.broadcast %589 : vector<8x1xf32> to vector<8x32xf32>
    %675 = arith.mulf %674, %671 : vector<8x32xf32>
    %cst_202 = arith.constant 1.000000e+00 : f32
    %676 = vector.broadcast %cst_202 : f32 to vector<8x1xf32>
    %677 = arith.subf %676, %589 : vector<8x1xf32>
    %678 = vector.broadcast %677 : vector<8x1xf32> to vector<8x32xf32>
    %679 = arith.mulf %678, %566 : vector<8x32xf32>
    %680 = arith.addf %675, %679 : vector<8x32xf32>
    %681 = vector.broadcast %589 : vector<8x1xf32> to vector<8x32xf32>
    %682 = arith.mulf %681, %673 : vector<8x32xf32>
    %cst_203 = arith.constant 1.000000e+00 : f32
    %683 = vector.broadcast %cst_203 : f32 to vector<8x1xf32>
    %684 = arith.subf %683, %589 : vector<8x1xf32>
    %685 = vector.broadcast %684 : vector<8x1xf32> to vector<8x32xf32>
    %686 = arith.mulf %685, %573 : vector<8x32xf32>
    %687 = arith.addf %682, %686 : vector<8x32xf32>
    %688 = vector.broadcast %589 : vector<8x1xf32> to vector<8x32xf32>
    %689 = arith.mulf %688, %673 : vector<8x32xf32>
    %c5 = arith.constant 5 : index
    %c0_204 = arith.constant 0 : index
    %c0_205 = arith.constant 0 : index
    %690 = vector.load %arg7[%c5, %c0_204, %c0_205] : memref<16x8x32xf32, #tpu.memory_space<vmem>>, vector<1x8x32xf32>
    %691 = vector.shape_cast %690 : vector<1x8x32xf32> to vector<8x32xf32>
    %692 = vector.shape_cast %640 : vector<8x32xf32> to vector<1x8x32xf32>
    tpu.vector_store %arg7[%c5, %c0_204, %c0_205], %692 {strides = array<i32>} : memref<16x8x32xf32, #tpu.memory_space<vmem>>, vector<1x8x32xf32>,
    %c10 = arith.constant 10 : index
    %c0_206 = arith.constant 0 : index
    %c0_207 = arith.constant 0 : index
    %693 = vector.load %arg8[%c10, %c0_206, %c0_207] : memref<16x8x32xf32, #tpu.memory_space<vmem>>, vector<1x8x32xf32>
    %694 = vector.shape_cast %693 : vector<1x8x32xf32> to vector<8x32xf32>
    %695 = vector.shape_cast %689 : vector<8x32xf32> to vector<1x8x32xf32>
    tpu.vector_store %arg8[%c10, %c0_206, %c0_207], %695 {strides = array<i32>} : memref<16x8x32xf32, #tpu.memory_space<vmem>>, vector<1x8x32xf32>,
    %cst_208 = arith.constant 6.000000e+00 : f32
    %696 = vector.broadcast %cst_208 : f32 to vector<8x1xf32>
    %697 = arith.cmpf ogt, %8, %696 : vector<8x1xf32>
    %698 = arith.extui %697 : vector<8x1xi1> to vector<8x1xi32>
    %699 = arith.sitofp %698 : vector<8x1xi32> to vector<8x1xf32>
    %cst_209 = arith.constant 9.000000e+00 : f32
    %700 = vector.broadcast %cst_209 : f32 to vector<8x1xf32>
    %701 = arith.cmpf ogt, %8, %700 : vector<8x1xf32>
    %702 = arith.extui %701 : vector<8x1xi1> to vector<8x1xi32>
    %703 = arith.sitofp %702 : vector<8x1xi32> to vector<8x1xf32>
    %c48 = arith.constant 48 : index
    %c0_210 = arith.constant 0 : index
    %704 = vector.load %arg9[%c48, %c0_210] : memref<128x256xf32, #tpu.memory_space<vmem>>, vector<8x128xf32>
    %c72 = arith.constant 72 : index
    %c128_211 = arith.constant 128 : index
    %705 = vector.load %arg9[%c72, %c128_211] : memref<128x256xf32, #tpu.memory_space<vmem>>, vector<8x128xf32>
    %cst_212 = arith.constant dense<0.000000e+00> : vector<8x128xf32>
    %706 = tpu.matmul %638, %9, %cst_212 {dimension_numbers = #tpu.dot_dimension_numbers<[1], [0], [0], [1], [0, 0, 1, 1], [], []>} : vector<8x32xf32>, vector<32x128xf32>, vector<8x128xf32> -> vector<8x128xf32>
    %707 = arith.addf %704, %706 : vector<8x128xf32>
    %708 = vector.extract_strided_slice %707 {offsets = [0, 0], sizes = [8, 32], strides = [1, 1]} : vector<8x128xf32> to vector<8x32xf32>
    %cst_213 = arith.constant 0.000000e+00 : f32
    %709 = vector.broadcast %cst_213 : f32 to vector<8x32xf32>
    %710 = arith.subf %709, %708 : vector<8x32xf32>
    %711 = math.exp %710 : vector<8x32xf32>
    %cst_214 = arith.constant 1.000000e+00 : f32
    %712 = vector.broadcast %cst_214 : f32 to vector<8x32xf32>
    %713 = arith.addf %712, %711 : vector<8x32xf32>
    %cst_215 = arith.constant 1.000000e+00 : f32
    %714 = vector.broadcast %cst_215 : f32 to vector<8x32xf32>
    %715 = arith.divf %714, %713 : vector<8x32xf32>
    %716 = vector.extract_strided_slice %707 {offsets = [0, 32], sizes = [8, 32], strides = [1, 1]} : vector<8x128xf32> to vector<8x32xf32>
    %cst_216 = arith.constant 0.000000e+00 : f32
    %717 = vector.broadcast %cst_216 : f32 to vector<8x32xf32>
    %718 = arith.subf %717, %716 : vector<8x32xf32>
    %719 = math.exp %718 : vector<8x32xf32>
    %cst_217 = arith.constant 1.000000e+00 : f32
    %720 = vector.broadcast %cst_217 : f32 to vector<8x32xf32>
    %721 = arith.addf %720, %719 : vector<8x32xf32>
    %cst_218 = arith.constant 1.000000e+00 : f32
    %722 = vector.broadcast %cst_218 : f32 to vector<8x32xf32>
    %723 = arith.divf %722, %721 : vector<8x32xf32>
    %724 = vector.extract_strided_slice %707 {offsets = [0, 64], sizes = [8, 32], strides = [1, 1]} : vector<8x128xf32> to vector<8x32xf32>
    %725 = math.tanh %724 : vector<8x32xf32>
    %726 = vector.extract_strided_slice %707 {offsets = [0, 96], sizes = [8, 32], strides = [1, 1]} : vector<8x128xf32> to vector<8x32xf32>
    %cst_219 = arith.constant 0.000000e+00 : f32
    %727 = vector.broadcast %cst_219 : f32 to vector<8x32xf32>
    %728 = arith.subf %727, %726 : vector<8x32xf32>
    %729 = math.exp %728 : vector<8x32xf32>
    %cst_220 = arith.constant 1.000000e+00 : f32
    %730 = vector.broadcast %cst_220 : f32 to vector<8x32xf32>
    %731 = arith.addf %730, %729 : vector<8x32xf32>
    %cst_221 = arith.constant 1.000000e+00 : f32
    %732 = vector.broadcast %cst_221 : f32 to vector<8x32xf32>
    %733 = arith.divf %732, %731 : vector<8x32xf32>
    %734 = arith.mulf %723, %631 : vector<8x32xf32>
    %735 = arith.mulf %715, %725 : vector<8x32xf32>
    %736 = arith.addf %734, %735 : vector<8x32xf32>
    %737 = math.tanh %736 : vector<8x32xf32>
    %738 = arith.mulf %733, %737 : vector<8x32xf32>
    %739 = vector.broadcast %699 : vector<8x1xf32> to vector<8x32xf32>
    %740 = arith.mulf %739, %736 : vector<8x32xf32>
    %cst_222 = arith.constant 1.000000e+00 : f32
    %741 = vector.broadcast %cst_222 : f32 to vector<8x1xf32>
    %742 = arith.subf %741, %699 : vector<8x1xf32>
    %743 = vector.broadcast %742 : vector<8x1xf32> to vector<8x32xf32>
    %744 = arith.mulf %743, %631 : vector<8x32xf32>
    %745 = arith.addf %740, %744 : vector<8x32xf32>
    %746 = vector.broadcast %699 : vector<8x1xf32> to vector<8x32xf32>
    %747 = arith.mulf %746, %738 : vector<8x32xf32>
    %cst_223 = arith.constant 1.000000e+00 : f32
    %748 = vector.broadcast %cst_223 : f32 to vector<8x1xf32>
    %749 = arith.subf %748, %699 : vector<8x1xf32>
    %750 = vector.broadcast %749 : vector<8x1xf32> to vector<8x32xf32>
    %751 = arith.mulf %750, %638 : vector<8x32xf32>
    %752 = arith.addf %747, %751 : vector<8x32xf32>
    %753 = vector.broadcast %699 : vector<8x1xf32> to vector<8x32xf32>
    %754 = arith.mulf %753, %738 : vector<8x32xf32>
    %cst_224 = arith.constant dense<0.000000e+00> : vector<8x128xf32>
    %755 = tpu.matmul %687, %10, %cst_224 {dimension_numbers = #tpu.dot_dimension_numbers<[1], [0], [0], [1], [0, 0, 1, 1], [], []>} : vector<8x32xf32>, vector<32x128xf32>, vector<8x128xf32> -> vector<8x128xf32>
    %756 = arith.addf %705, %755 : vector<8x128xf32>
    %757 = vector.extract_strided_slice %756 {offsets = [0, 0], sizes = [8, 32], strides = [1, 1]} : vector<8x128xf32> to vector<8x32xf32>
    %cst_225 = arith.constant 0.000000e+00 : f32
    %758 = vector.broadcast %cst_225 : f32 to vector<8x32xf32>
    %759 = arith.subf %758, %757 : vector<8x32xf32>
    %760 = math.exp %759 : vector<8x32xf32>
    %cst_226 = arith.constant 1.000000e+00 : f32
    %761 = vector.broadcast %cst_226 : f32 to vector<8x32xf32>
    %762 = arith.addf %761, %760 : vector<8x32xf32>
    %cst_227 = arith.constant 1.000000e+00 : f32
    %763 = vector.broadcast %cst_227 : f32 to vector<8x32xf32>
    %764 = arith.divf %763, %762 : vector<8x32xf32>
    %765 = vector.extract_strided_slice %756 {offsets = [0, 32], sizes = [8, 32], strides = [1, 1]} : vector<8x128xf32> to vector<8x32xf32>
    %cst_228 = arith.constant 0.000000e+00 : f32
    %766 = vector.broadcast %cst_228 : f32 to vector<8x32xf32>
    %767 = arith.subf %766, %765 : vector<8x32xf32>
    %768 = math.exp %767 : vector<8x32xf32>
    %cst_229 = arith.constant 1.000000e+00 : f32
    %769 = vector.broadcast %cst_229 : f32 to vector<8x32xf32>
    %770 = arith.addf %769, %768 : vector<8x32xf32>
    %cst_230 = arith.constant 1.000000e+00 : f32
    %771 = vector.broadcast %cst_230 : f32 to vector<8x32xf32>
    %772 = arith.divf %771, %770 : vector<8x32xf32>
    %773 = vector.extract_strided_slice %756 {offsets = [0, 64], sizes = [8, 32], strides = [1, 1]} : vector<8x128xf32> to vector<8x32xf32>
    %774 = math.tanh %773 : vector<8x32xf32>
    %775 = vector.extract_strided_slice %756 {offsets = [0, 96], sizes = [8, 32], strides = [1, 1]} : vector<8x128xf32> to vector<8x32xf32>
    %cst_231 = arith.constant 0.000000e+00 : f32
    %776 = vector.broadcast %cst_231 : f32 to vector<8x32xf32>
    %777 = arith.subf %776, %775 : vector<8x32xf32>
    %778 = math.exp %777 : vector<8x32xf32>
    %cst_232 = arith.constant 1.000000e+00 : f32
    %779 = vector.broadcast %cst_232 : f32 to vector<8x32xf32>
    %780 = arith.addf %779, %778 : vector<8x32xf32>
    %cst_233 = arith.constant 1.000000e+00 : f32
    %781 = vector.broadcast %cst_233 : f32 to vector<8x32xf32>
    %782 = arith.divf %781, %780 : vector<8x32xf32>
    %783 = arith.mulf %772, %680 : vector<8x32xf32>
    %784 = arith.mulf %764, %774 : vector<8x32xf32>
    %785 = arith.addf %783, %784 : vector<8x32xf32>
    %786 = math.tanh %785 : vector<8x32xf32>
    %787 = arith.mulf %782, %786 : vector<8x32xf32>
    %788 = vector.broadcast %703 : vector<8x1xf32> to vector<8x32xf32>
    %789 = arith.mulf %788, %785 : vector<8x32xf32>
    %cst_234 = arith.constant 1.000000e+00 : f32
    %790 = vector.broadcast %cst_234 : f32 to vector<8x1xf32>
    %791 = arith.subf %790, %703 : vector<8x1xf32>
    %792 = vector.broadcast %791 : vector<8x1xf32> to vector<8x32xf32>
    %793 = arith.mulf %792, %680 : vector<8x32xf32>
    %794 = arith.addf %789, %793 : vector<8x32xf32>
    %795 = vector.broadcast %703 : vector<8x1xf32> to vector<8x32xf32>
    %796 = arith.mulf %795, %787 : vector<8x32xf32>
    %cst_235 = arith.constant 1.000000e+00 : f32
    %797 = vector.broadcast %cst_235 : f32 to vector<8x1xf32>
    %798 = arith.subf %797, %703 : vector<8x1xf32>
    %799 = vector.broadcast %798 : vector<8x1xf32> to vector<8x32xf32>
    %800 = arith.mulf %799, %687 : vector<8x32xf32>
    %801 = arith.addf %796, %800 : vector<8x32xf32>
    %802 = vector.broadcast %703 : vector<8x1xf32> to vector<8x32xf32>
    %803 = arith.mulf %802, %787 : vector<8x32xf32>
    %c6 = arith.constant 6 : index
    %c0_236 = arith.constant 0 : index
    %c0_237 = arith.constant 0 : index
    %804 = vector.load %arg7[%c6, %c0_236, %c0_237] : memref<16x8x32xf32, #tpu.memory_space<vmem>>, vector<1x8x32xf32>
    %805 = vector.shape_cast %804 : vector<1x8x32xf32> to vector<8x32xf32>
    %806 = vector.shape_cast %754 : vector<8x32xf32> to vector<1x8x32xf32>
    tpu.vector_store %arg7[%c6, %c0_236, %c0_237], %806 {strides = array<i32>} : memref<16x8x32xf32, #tpu.memory_space<vmem>>, vector<1x8x32xf32>,
    %c9 = arith.constant 9 : index
    %c0_238 = arith.constant 0 : index
    %c0_239 = arith.constant 0 : index
    %807 = vector.load %arg8[%c9, %c0_238, %c0_239] : memref<16x8x32xf32, #tpu.memory_space<vmem>>, vector<1x8x32xf32>
    %808 = vector.shape_cast %807 : vector<1x8x32xf32> to vector<8x32xf32>
    %809 = vector.shape_cast %803 : vector<8x32xf32> to vector<1x8x32xf32>
    tpu.vector_store %arg8[%c9, %c0_238, %c0_239], %809 {strides = array<i32>} : memref<16x8x32xf32, #tpu.memory_space<vmem>>, vector<1x8x32xf32>,
    %cst_240 = arith.constant 7.000000e+00 : f32
    %810 = vector.broadcast %cst_240 : f32 to vector<8x1xf32>
    %811 = arith.cmpf ogt, %8, %810 : vector<8x1xf32>
    %812 = arith.extui %811 : vector<8x1xi1> to vector<8x1xi32>
    %813 = arith.sitofp %812 : vector<8x1xi32> to vector<8x1xf32>
    %cst_241 = arith.constant 8.000000e+00 : f32
    %814 = vector.broadcast %cst_241 : f32 to vector<8x1xf32>
    %815 = arith.cmpf ogt, %8, %814 : vector<8x1xf32>
    %816 = arith.extui %815 : vector<8x1xi1> to vector<8x1xi32>
    %817 = arith.sitofp %816 : vector<8x1xi32> to vector<8x1xf32>
    %c56 = arith.constant 56 : index
    %c0_242 = arith.constant 0 : index
    %818 = vector.load %arg9[%c56, %c0_242] : memref<128x256xf32, #tpu.memory_space<vmem>>, vector<8x128xf32>
    %c64 = arith.constant 64 : index
    %c128_243 = arith.constant 128 : index
    %819 = vector.load %arg9[%c64, %c128_243] : memref<128x256xf32, #tpu.memory_space<vmem>>, vector<8x128xf32>
    %cst_244 = arith.constant dense<0.000000e+00> : vector<8x128xf32>
    %820 = tpu.matmul %752, %9, %cst_244 {dimension_numbers = #tpu.dot_dimension_numbers<[1], [0], [0], [1], [0, 0, 1, 1], [], []>} : vector<8x32xf32>, vector<32x128xf32>, vector<8x128xf32> -> vector<8x128xf32>
    %821 = arith.addf %818, %820 : vector<8x128xf32>
    %822 = vector.extract_strided_slice %821 {offsets = [0, 0], sizes = [8, 32], strides = [1, 1]} : vector<8x128xf32> to vector<8x32xf32>
    %cst_245 = arith.constant 0.000000e+00 : f32
    %823 = vector.broadcast %cst_245 : f32 to vector<8x32xf32>
    %824 = arith.subf %823, %822 : vector<8x32xf32>
    %825 = math.exp %824 : vector<8x32xf32>
    %cst_246 = arith.constant 1.000000e+00 : f32
    %826 = vector.broadcast %cst_246 : f32 to vector<8x32xf32>
    %827 = arith.addf %826, %825 : vector<8x32xf32>
    %cst_247 = arith.constant 1.000000e+00 : f32
    %828 = vector.broadcast %cst_247 : f32 to vector<8x32xf32>
    %829 = arith.divf %828, %827 : vector<8x32xf32>
    %830 = vector.extract_strided_slice %821 {offsets = [0, 32], sizes = [8, 32], strides = [1, 1]} : vector<8x128xf32> to vector<8x32xf32>
    %cst_248 = arith.constant 0.000000e+00 : f32
    %831 = vector.broadcast %cst_248 : f32 to vector<8x32xf32>
    %832 = arith.subf %831, %830 : vector<8x32xf32>
    %833 = math.exp %832 : vector<8x32xf32>
    %cst_249 = arith.constant 1.000000e+00 : f32
    %834 = vector.broadcast %cst_249 : f32 to vector<8x32xf32>
    %835 = arith.addf %834, %833 : vector<8x32xf32>
    %cst_250 = arith.constant 1.000000e+00 : f32
    %836 = vector.broadcast %cst_250 : f32 to vector<8x32xf32>
    %837 = arith.divf %836, %835 : vector<8x32xf32>
    %838 = vector.extract_strided_slice %821 {offsets = [0, 64], sizes = [8, 32], strides = [1, 1]} : vector<8x128xf32> to vector<8x32xf32>
    %839 = math.tanh %838 : vector<8x32xf32>
    %840 = vector.extract_strided_slice %821 {offsets = [0, 96], sizes = [8, 32], strides = [1, 1]} : vector<8x128xf32> to vector<8x32xf32>
    %cst_251 = arith.constant 0.000000e+00 : f32
    %841 = vector.broadcast %cst_251 : f32 to vector<8x32xf32>
    %842 = arith.subf %841, %840 : vector<8x32xf32>
    %843 = math.exp %842 : vector<8x32xf32>
    %cst_252 = arith.constant 1.000000e+00 : f32
    %844 = vector.broadcast %cst_252 : f32 to vector<8x32xf32>
    %845 = arith.addf %844, %843 : vector<8x32xf32>
    %cst_253 = arith.constant 1.000000e+00 : f32
    %846 = vector.broadcast %cst_253 : f32 to vector<8x32xf32>
    %847 = arith.divf %846, %845 : vector<8x32xf32>
    %848 = arith.mulf %837, %745 : vector<8x32xf32>
    %849 = arith.mulf %829, %839 : vector<8x32xf32>
    %850 = arith.addf %848, %849 : vector<8x32xf32>
    %851 = math.tanh %850 : vector<8x32xf32>
    %852 = arith.mulf %847, %851 : vector<8x32xf32>
    %853 = vector.broadcast %813 : vector<8x1xf32> to vector<8x32xf32>
    %854 = arith.mulf %853, %850 : vector<8x32xf32>
    %cst_254 = arith.constant 1.000000e+00 : f32
    %855 = vector.broadcast %cst_254 : f32 to vector<8x1xf32>
    %856 = arith.subf %855, %813 : vector<8x1xf32>
    %857 = vector.broadcast %856 : vector<8x1xf32> to vector<8x32xf32>
    %858 = arith.mulf %857, %745 : vector<8x32xf32>
    %859 = arith.addf %854, %858 : vector<8x32xf32>
    %860 = vector.broadcast %813 : vector<8x1xf32> to vector<8x32xf32>
    %861 = arith.mulf %860, %852 : vector<8x32xf32>
    %cst_255 = arith.constant 1.000000e+00 : f32
    %862 = vector.broadcast %cst_255 : f32 to vector<8x1xf32>
    %863 = arith.subf %862, %813 : vector<8x1xf32>
    %864 = vector.broadcast %863 : vector<8x1xf32> to vector<8x32xf32>
    %865 = arith.mulf %864, %752 : vector<8x32xf32>
    %866 = arith.addf %861, %865 : vector<8x32xf32>
    %867 = vector.broadcast %813 : vector<8x1xf32> to vector<8x32xf32>
    %868 = arith.mulf %867, %852 : vector<8x32xf32>
    %cst_256 = arith.constant dense<0.000000e+00> : vector<8x128xf32>
    %869 = tpu.matmul %801, %10, %cst_256 {dimension_numbers = #tpu.dot_dimension_numbers<[1], [0], [0], [1], [0, 0, 1, 1], [], []>} : vector<8x32xf32>, vector<32x128xf32>, vector<8x128xf32> -> vector<8x128xf32>
    %870 = arith.addf %819, %869 : vector<8x128xf32>
    %871 = vector.extract_strided_slice %870 {offsets = [0, 0], sizes = [8, 32], strides = [1, 1]} : vector<8x128xf32> to vector<8x32xf32>
    %cst_257 = arith.constant 0.000000e+00 : f32
    %872 = vector.broadcast %cst_257 : f32 to vector<8x32xf32>
    %873 = arith.subf %872, %871 : vector<8x32xf32>
    %874 = math.exp %873 : vector<8x32xf32>
    %cst_258 = arith.constant 1.000000e+00 : f32
    %875 = vector.broadcast %cst_258 : f32 to vector<8x32xf32>
    %876 = arith.addf %875, %874 : vector<8x32xf32>
    %cst_259 = arith.constant 1.000000e+00 : f32
    %877 = vector.broadcast %cst_259 : f32 to vector<8x32xf32>
    %878 = arith.divf %877, %876 : vector<8x32xf32>
    %879 = vector.extract_strided_slice %870 {offsets = [0, 32], sizes = [8, 32], strides = [1, 1]} : vector<8x128xf32> to vector<8x32xf32>
    %cst_260 = arith.constant 0.000000e+00 : f32
    %880 = vector.broadcast %cst_260 : f32 to vector<8x32xf32>
    %881 = arith.subf %880, %879 : vector<8x32xf32>
    %882 = math.exp %881 : vector<8x32xf32>
    %cst_261 = arith.constant 1.000000e+00 : f32
    %883 = vector.broadcast %cst_261 : f32 to vector<8x32xf32>
    %884 = arith.addf %883, %882 : vector<8x32xf32>
    %cst_262 = arith.constant 1.000000e+00 : f32
    %885 = vector.broadcast %cst_262 : f32 to vector<8x32xf32>
    %886 = arith.divf %885, %884 : vector<8x32xf32>
    %887 = vector.extract_strided_slice %870 {offsets = [0, 64], sizes = [8, 32], strides = [1, 1]} : vector<8x128xf32> to vector<8x32xf32>
    %888 = math.tanh %887 : vector<8x32xf32>
    %889 = vector.extract_strided_slice %870 {offsets = [0, 96], sizes = [8, 32], strides = [1, 1]} : vector<8x128xf32> to vector<8x32xf32>
    %cst_263 = arith.constant 0.000000e+00 : f32
    %890 = vector.broadcast %cst_263 : f32 to vector<8x32xf32>
    %891 = arith.subf %890, %889 : vector<8x32xf32>
    %892 = math.exp %891 : vector<8x32xf32>
    %cst_264 = arith.constant 1.000000e+00 : f32
    %893 = vector.broadcast %cst_264 : f32 to vector<8x32xf32>
    %894 = arith.addf %893, %892 : vector<8x32xf32>
    %cst_265 = arith.constant 1.000000e+00 : f32
    %895 = vector.broadcast %cst_265 : f32 to vector<8x32xf32>
    %896 = arith.divf %895, %894 : vector<8x32xf32>
    %897 = arith.mulf %886, %794 : vector<8x32xf32>
    %898 = arith.mulf %878, %888 : vector<8x32xf32>
    %899 = arith.addf %897, %898 : vector<8x32xf32>
    %900 = math.tanh %899 : vector<8x32xf32>
    %901 = arith.mulf %896, %900 : vector<8x32xf32>
    %902 = vector.broadcast %817 : vector<8x1xf32> to vector<8x32xf32>
    %903 = arith.mulf %902, %899 : vector<8x32xf32>
    %cst_266 = arith.constant 1.000000e+00 : f32
    %904 = vector.broadcast %cst_266 : f32 to vector<8x1xf32>
    %905 = arith.subf %904, %817 : vector<8x1xf32>
    %906 = vector.broadcast %905 : vector<8x1xf32> to vector<8x32xf32>
    %907 = arith.mulf %906, %794 : vector<8x32xf32>
    %908 = arith.addf %903, %907 : vector<8x32xf32>
    %909 = vector.broadcast %817 : vector<8x1xf32> to vector<8x32xf32>
    %910 = arith.mulf %909, %901 : vector<8x32xf32>
    %cst_267 = arith.constant 1.000000e+00 : f32
    %911 = vector.broadcast %cst_267 : f32 to vector<8x1xf32>
    %912 = arith.subf %911, %817 : vector<8x1xf32>
    %913 = vector.broadcast %912 : vector<8x1xf32> to vector<8x32xf32>
    %914 = arith.mulf %913, %801 : vector<8x32xf32>
    %915 = arith.addf %910, %914 : vector<8x32xf32>
    %916 = vector.broadcast %817 : vector<8x1xf32> to vector<8x32xf32>
    %917 = arith.mulf %916, %901 : vector<8x32xf32>
    %c7 = arith.constant 7 : index
    %c0_268 = arith.constant 0 : index
    %c0_269 = arith.constant 0 : index
    %918 = vector.load %arg7[%c7, %c0_268, %c0_269] : memref<16x8x32xf32, #tpu.memory_space<vmem>>, vector<1x8x32xf32>
    %919 = vector.shape_cast %918 : vector<1x8x32xf32> to vector<8x32xf32>
    %920 = vector.shape_cast %868 : vector<8x32xf32> to vector<1x8x32xf32>
    tpu.vector_store %arg7[%c7, %c0_268, %c0_269], %920 {strides = array<i32>} : memref<16x8x32xf32, #tpu.memory_space<vmem>>, vector<1x8x32xf32>,
    %c8_270 = arith.constant 8 : index
    %c0_271 = arith.constant 0 : index
    %c0_272 = arith.constant 0 : index
    %921 = vector.load %arg8[%c8_270, %c0_271, %c0_272] : memref<16x8x32xf32, #tpu.memory_space<vmem>>, vector<1x8x32xf32>
    %922 = vector.shape_cast %921 : vector<1x8x32xf32> to vector<8x32xf32>
    %923 = vector.shape_cast %917 : vector<8x32xf32> to vector<1x8x32xf32>
    tpu.vector_store %arg8[%c8_270, %c0_271, %c0_272], %923 {strides = array<i32>} : memref<16x8x32xf32, #tpu.memory_space<vmem>>, vector<1x8x32xf32>,
    %cst_273 = arith.constant 8.000000e+00 : f32
    %924 = vector.broadcast %cst_273 : f32 to vector<8x1xf32>
    %925 = arith.cmpf ogt, %8, %924 : vector<8x1xf32>
    %926 = arith.extui %925 : vector<8x1xi1> to vector<8x1xi32>
    %927 = arith.sitofp %926 : vector<8x1xi32> to vector<8x1xf32>
    %cst_274 = arith.constant 7.000000e+00 : f32
    %928 = vector.broadcast %cst_274 : f32 to vector<8x1xf32>
    %929 = arith.cmpf ogt, %8, %928 : vector<8x1xf32>
    %930 = arith.extui %929 : vector<8x1xi1> to vector<8x1xi32>
    %931 = arith.sitofp %930 : vector<8x1xi32> to vector<8x1xf32>
    %c64_275 = arith.constant 64 : index
    %c0_276 = arith.constant 0 : index
    %932 = vector.load %arg9[%c64_275, %c0_276] : memref<128x256xf32, #tpu.memory_space<vmem>>, vector<8x128xf32>
    %c56_277 = arith.constant 56 : index
    %c128_278 = arith.constant 128 : index
    %933 = vector.load %arg9[%c56_277, %c128_278] : memref<128x256xf32, #tpu.memory_space<vmem>>, vector<8x128xf32>
    %cst_279 = arith.constant dense<0.000000e+00> : vector<8x128xf32>
    %934 = tpu.matmul %866, %9, %cst_279 {dimension_numbers = #tpu.dot_dimension_numbers<[1], [0], [0], [1], [0, 0, 1, 1], [], []>} : vector<8x32xf32>, vector<32x128xf32>, vector<8x128xf32> -> vector<8x128xf32>
    %935 = arith.addf %932, %934 : vector<8x128xf32>
    %936 = vector.extract_strided_slice %935 {offsets = [0, 0], sizes = [8, 32], strides = [1, 1]} : vector<8x128xf32> to vector<8x32xf32>
    %cst_280 = arith.constant 0.000000e+00 : f32
    %937 = vector.broadcast %cst_280 : f32 to vector<8x32xf32>
    %938 = arith.subf %937, %936 : vector<8x32xf32>
    %939 = math.exp %938 : vector<8x32xf32>
    %cst_281 = arith.constant 1.000000e+00 : f32
    %940 = vector.broadcast %cst_281 : f32 to vector<8x32xf32>
    %941 = arith.addf %940, %939 : vector<8x32xf32>
    %cst_282 = arith.constant 1.000000e+00 : f32
    %942 = vector.broadcast %cst_282 : f32 to vector<8x32xf32>
    %943 = arith.divf %942, %941 : vector<8x32xf32>
    %944 = vector.extract_strided_slice %935 {offsets = [0, 32], sizes = [8, 32], strides = [1, 1]} : vector<8x128xf32> to vector<8x32xf32>
    %cst_283 = arith.constant 0.000000e+00 : f32
    %945 = vector.broadcast %cst_283 : f32 to vector<8x32xf32>
    %946 = arith.subf %945, %944 : vector<8x32xf32>
    %947 = math.exp %946 : vector<8x32xf32>
    %cst_284 = arith.constant 1.000000e+00 : f32
    %948 = vector.broadcast %cst_284 : f32 to vector<8x32xf32>
    %949 = arith.addf %948, %947 : vector<8x32xf32>
    %cst_285 = arith.constant 1.000000e+00 : f32
    %950 = vector.broadcast %cst_285 : f32 to vector<8x32xf32>
    %951 = arith.divf %950, %949 : vector<8x32xf32>
    %952 = vector.extract_strided_slice %935 {offsets = [0, 64], sizes = [8, 32], strides = [1, 1]} : vector<8x128xf32> to vector<8x32xf32>
    %953 = math.tanh %952 : vector<8x32xf32>
    %954 = vector.extract_strided_slice %935 {offsets = [0, 96], sizes = [8, 32], strides = [1, 1]} : vector<8x128xf32> to vector<8x32xf32>
    %cst_286 = arith.constant 0.000000e+00 : f32
    %955 = vector.broadcast %cst_286 : f32 to vector<8x32xf32>
    %956 = arith.subf %955, %954 : vector<8x32xf32>
    %957 = math.exp %956 : vector<8x32xf32>
    %cst_287 = arith.constant 1.000000e+00 : f32
    %958 = vector.broadcast %cst_287 : f32 to vector<8x32xf32>
    %959 = arith.addf %958, %957 : vector<8x32xf32>
    %cst_288 = arith.constant 1.000000e+00 : f32
    %960 = vector.broadcast %cst_288 : f32 to vector<8x32xf32>
    %961 = arith.divf %960, %959 : vector<8x32xf32>
    %962 = arith.mulf %951, %859 : vector<8x32xf32>
    %963 = arith.mulf %943, %953 : vector<8x32xf32>
    %964 = arith.addf %962, %963 : vector<8x32xf32>
    %965 = math.tanh %964 : vector<8x32xf32>
    %966 = arith.mulf %961, %965 : vector<8x32xf32>
    %967 = vector.broadcast %927 : vector<8x1xf32> to vector<8x32xf32>
    %968 = arith.mulf %967, %964 : vector<8x32xf32>
    %cst_289 = arith.constant 1.000000e+00 : f32
    %969 = vector.broadcast %cst_289 : f32 to vector<8x1xf32>
    %970 = arith.subf %969, %927 : vector<8x1xf32>
    %971 = vector.broadcast %970 : vector<8x1xf32> to vector<8x32xf32>
    %972 = arith.mulf %971, %859 : vector<8x32xf32>
    %973 = arith.addf %968, %972 : vector<8x32xf32>
    %974 = vector.broadcast %927 : vector<8x1xf32> to vector<8x32xf32>
    %975 = arith.mulf %974, %966 : vector<8x32xf32>
    %cst_290 = arith.constant 1.000000e+00 : f32
    %976 = vector.broadcast %cst_290 : f32 to vector<8x1xf32>
    %977 = arith.subf %976, %927 : vector<8x1xf32>
    %978 = vector.broadcast %977 : vector<8x1xf32> to vector<8x32xf32>
    %979 = arith.mulf %978, %866 : vector<8x32xf32>
    %980 = arith.addf %975, %979 : vector<8x32xf32>
    %981 = vector.broadcast %927 : vector<8x1xf32> to vector<8x32xf32>
    %982 = arith.mulf %981, %966 : vector<8x32xf32>
    %cst_291 = arith.constant dense<0.000000e+00> : vector<8x128xf32>
    %983 = tpu.matmul %915, %10, %cst_291 {dimension_numbers = #tpu.dot_dimension_numbers<[1], [0], [0], [1], [0, 0, 1, 1], [], []>} : vector<8x32xf32>, vector<32x128xf32>, vector<8x128xf32> -> vector<8x128xf32>
    %984 = arith.addf %933, %983 : vector<8x128xf32>
    %985 = vector.extract_strided_slice %984 {offsets = [0, 0], sizes = [8, 32], strides = [1, 1]} : vector<8x128xf32> to vector<8x32xf32>
    %cst_292 = arith.constant 0.000000e+00 : f32
    %986 = vector.broadcast %cst_292 : f32 to vector<8x32xf32>
    %987 = arith.subf %986, %985 : vector<8x32xf32>
    %988 = math.exp %987 : vector<8x32xf32>
    %cst_293 = arith.constant 1.000000e+00 : f32
    %989 = vector.broadcast %cst_293 : f32 to vector<8x32xf32>
    %990 = arith.addf %989, %988 : vector<8x32xf32>
    %cst_294 = arith.constant 1.000000e+00 : f32
    %991 = vector.broadcast %cst_294 : f32 to vector<8x32xf32>
    %992 = arith.divf %991, %990 : vector<8x32xf32>
    %993 = vector.extract_strided_slice %984 {offsets = [0, 32], sizes = [8, 32], strides = [1, 1]} : vector<8x128xf32> to vector<8x32xf32>
    %cst_295 = arith.constant 0.000000e+00 : f32
    %994 = vector.broadcast %cst_295 : f32 to vector<8x32xf32>
    %995 = arith.subf %994, %993 : vector<8x32xf32>
    %996 = math.exp %995 : vector<8x32xf32>
    %cst_296 = arith.constant 1.000000e+00 : f32
    %997 = vector.broadcast %cst_296 : f32 to vector<8x32xf32>
    %998 = arith.addf %997, %996 : vector<8x32xf32>
    %cst_297 = arith.constant 1.000000e+00 : f32
    %999 = vector.broadcast %cst_297 : f32 to vector<8x32xf32>
    %1000 = arith.divf %999, %998 : vector<8x32xf32>
    %1001 = vector.extract_strided_slice %984 {offsets = [0, 64], sizes = [8, 32], strides = [1, 1]} : vector<8x128xf32> to vector<8x32xf32>
    %1002 = math.tanh %1001 : vector<8x32xf32>
    %1003 = vector.extract_strided_slice %984 {offsets = [0, 96], sizes = [8, 32], strides = [1, 1]} : vector<8x128xf32> to vector<8x32xf32>
    %cst_298 = arith.constant 0.000000e+00 : f32
    %1004 = vector.broadcast %cst_298 : f32 to vector<8x32xf32>
    %1005 = arith.subf %1004, %1003 : vector<8x32xf32>
    %1006 = math.exp %1005 : vector<8x32xf32>
    %cst_299 = arith.constant 1.000000e+00 : f32
    %1007 = vector.broadcast %cst_299 : f32 to vector<8x32xf32>
    %1008 = arith.addf %1007, %1006 : vector<8x32xf32>
    %cst_300 = arith.constant 1.000000e+00 : f32
    %1009 = vector.broadcast %cst_300 : f32 to vector<8x32xf32>
    %1010 = arith.divf %1009, %1008 : vector<8x32xf32>
    %1011 = arith.mulf %1000, %908 : vector<8x32xf32>
    %1012 = arith.mulf %992, %1002 : vector<8x32xf32>
    %1013 = arith.addf %1011, %1012 : vector<8x32xf32>
    %1014 = math.tanh %1013 : vector<8x32xf32>
    %1015 = arith.mulf %1010, %1014 : vector<8x32xf32>
    %1016 = vector.broadcast %931 : vector<8x1xf32> to vector<8x32xf32>
    %1017 = arith.mulf %1016, %1013 : vector<8x32xf32>
    %cst_301 = arith.constant 1.000000e+00 : f32
    %1018 = vector.broadcast %cst_301 : f32 to vector<8x1xf32>
    %1019 = arith.subf %1018, %931 : vector<8x1xf32>
    %1020 = vector.broadcast %1019 : vector<8x1xf32> to vector<8x32xf32>
    %1021 = arith.mulf %1020, %908 : vector<8x32xf32>
    %1022 = arith.addf %1017, %1021 : vector<8x32xf32>
    %1023 = vector.broadcast %931 : vector<8x1xf32> to vector<8x32xf32>
    %1024 = arith.mulf %1023, %1015 : vector<8x32xf32>
    %cst_302 = arith.constant 1.000000e+00 : f32
    %1025 = vector.broadcast %cst_302 : f32 to vector<8x1xf32>
    %1026 = arith.subf %1025, %931 : vector<8x1xf32>
    %1027 = vector.broadcast %1026 : vector<8x1xf32> to vector<8x32xf32>
    %1028 = arith.mulf %1027, %915 : vector<8x32xf32>
    %1029 = arith.addf %1024, %1028 : vector<8x32xf32>
    %1030 = vector.broadcast %931 : vector<8x1xf32> to vector<8x32xf32>
    %1031 = arith.mulf %1030, %1015 : vector<8x32xf32>
    %c8_303 = arith.constant 8 : index
    %c0_304 = arith.constant 0 : index
    %c0_305 = arith.constant 0 : index
    %1032 = vector.load %arg7[%c8_303, %c0_304, %c0_305] : memref<16x8x32xf32, #tpu.memory_space<vmem>>, vector<1x8x32xf32>
    %1033 = vector.shape_cast %1032 : vector<1x8x32xf32> to vector<8x32xf32>
    %1034 = vector.shape_cast %982 : vector<8x32xf32> to vector<1x8x32xf32>
    tpu.vector_store %arg7[%c8_303, %c0_304, %c0_305], %1034 {strides = array<i32>} : memref<16x8x32xf32, #tpu.memory_space<vmem>>, vector<1x8x32xf32>,
    %c7_306 = arith.constant 7 : index
    %c0_307 = arith.constant 0 : index
    %c0_308 = arith.constant 0 : index
    %1035 = vector.load %arg8[%c7_306, %c0_307, %c0_308] : memref<16x8x32xf32, #tpu.memory_space<vmem>>, vector<1x8x32xf32>
    %1036 = vector.shape_cast %1035 : vector<1x8x32xf32> to vector<8x32xf32>
    %1037 = vector.shape_cast %1031 : vector<8x32xf32> to vector<1x8x32xf32>
    tpu.vector_store %arg8[%c7_306, %c0_307, %c0_308], %1037 {strides = array<i32>} : memref<16x8x32xf32, #tpu.memory_space<vmem>>, vector<1x8x32xf32>,
    %cst_309 = arith.constant 9.000000e+00 : f32
    %1038 = vector.broadcast %cst_309 : f32 to vector<8x1xf32>
    %1039 = arith.cmpf ogt, %8, %1038 : vector<8x1xf32>
    %1040 = arith.extui %1039 : vector<8x1xi1> to vector<8x1xi32>
    %1041 = arith.sitofp %1040 : vector<8x1xi32> to vector<8x1xf32>
    %cst_310 = arith.constant 6.000000e+00 : f32
    %1042 = vector.broadcast %cst_310 : f32 to vector<8x1xf32>
    %1043 = arith.cmpf ogt, %8, %1042 : vector<8x1xf32>
    %1044 = arith.extui %1043 : vector<8x1xi1> to vector<8x1xi32>
    %1045 = arith.sitofp %1044 : vector<8x1xi32> to vector<8x1xf32>
    %c72_311 = arith.constant 72 : index
    %c0_312 = arith.constant 0 : index
    %1046 = vector.load %arg9[%c72_311, %c0_312] : memref<128x256xf32, #tpu.memory_space<vmem>>, vector<8x128xf32>
    %c48_313 = arith.constant 48 : index
    %c128_314 = arith.constant 128 : index
    %1047 = vector.load %arg9[%c48_313, %c128_314] : memref<128x256xf32, #tpu.memory_space<vmem>>, vector<8x128xf32>
    %cst_315 = arith.constant dense<0.000000e+00> : vector<8x128xf32>
    %1048 = tpu.matmul %980, %9, %cst_315 {dimension_numbers = #tpu.dot_dimension_numbers<[1], [0], [0], [1], [0, 0, 1, 1], [], []>} : vector<8x32xf32>, vector<32x128xf32>, vector<8x128xf32> -> vector<8x128xf32>
    %1049 = arith.addf %1046, %1048 : vector<8x128xf32>
    %1050 = vector.extract_strided_slice %1049 {offsets = [0, 0], sizes = [8, 32], strides = [1, 1]} : vector<8x128xf32> to vector<8x32xf32>
    %cst_316 = arith.constant 0.000000e+00 : f32
    %1051 = vector.broadcast %cst_316 : f32 to vector<8x32xf32>
    %1052 = arith.subf %1051, %1050 : vector<8x32xf32>
    %1053 = math.exp %1052 : vector<8x32xf32>
    %cst_317 = arith.constant 1.000000e+00 : f32
    %1054 = vector.broadcast %cst_317 : f32 to vector<8x32xf32>
    %1055 = arith.addf %1054, %1053 : vector<8x32xf32>
    %cst_318 = arith.constant 1.000000e+00 : f32
    %1056 = vector.broadcast %cst_318 : f32 to vector<8x32xf32>
    %1057 = arith.divf %1056, %1055 : vector<8x32xf32>
    %1058 = vector.extract_strided_slice %1049 {offsets = [0, 32], sizes = [8, 32], strides = [1, 1]} : vector<8x128xf32> to vector<8x32xf32>
    %cst_319 = arith.constant 0.000000e+00 : f32
    %1059 = vector.broadcast %cst_319 : f32 to vector<8x32xf32>
    %1060 = arith.subf %1059, %1058 : vector<8x32xf32>
    %1061 = math.exp %1060 : vector<8x32xf32>
    %cst_320 = arith.constant 1.000000e+00 : f32
    %1062 = vector.broadcast %cst_320 : f32 to vector<8x32xf32>
    %1063 = arith.addf %1062, %1061 : vector<8x32xf32>
    %cst_321 = arith.constant 1.000000e+00 : f32
    %1064 = vector.broadcast %cst_321 : f32 to vector<8x32xf32>
    %1065 = arith.divf %1064, %1063 : vector<8x32xf32>
    %1066 = vector.extract_strided_slice %1049 {offsets = [0, 64], sizes = [8, 32], strides = [1, 1]} : vector<8x128xf32> to vector<8x32xf32>
    %1067 = math.tanh %1066 : vector<8x32xf32>
    %1068 = vector.extract_strided_slice %1049 {offsets = [0, 96], sizes = [8, 32], strides = [1, 1]} : vector<8x128xf32> to vector<8x32xf32>
    %cst_322 = arith.constant 0.000000e+00 : f32
    %1069 = vector.broadcast %cst_322 : f32 to vector<8x32xf32>
    %1070 = arith.subf %1069, %1068 : vector<8x32xf32>
    %1071 = math.exp %1070 : vector<8x32xf32>
    %cst_323 = arith.constant 1.000000e+00 : f32
    %1072 = vector.broadcast %cst_323 : f32 to vector<8x32xf32>
    %1073 = arith.addf %1072, %1071 : vector<8x32xf32>
    %cst_324 = arith.constant 1.000000e+00 : f32
    %1074 = vector.broadcast %cst_324 : f32 to vector<8x32xf32>
    %1075 = arith.divf %1074, %1073 : vector<8x32xf32>
    %1076 = arith.mulf %1065, %973 : vector<8x32xf32>
    %1077 = arith.mulf %1057, %1067 : vector<8x32xf32>
    %1078 = arith.addf %1076, %1077 : vector<8x32xf32>
    %1079 = math.tanh %1078 : vector<8x32xf32>
    %1080 = arith.mulf %1075, %1079 : vector<8x32xf32>
    %1081 = vector.broadcast %1041 : vector<8x1xf32> to vector<8x32xf32>
    %1082 = arith.mulf %1081, %1078 : vector<8x32xf32>
    %cst_325 = arith.constant 1.000000e+00 : f32
    %1083 = vector.broadcast %cst_325 : f32 to vector<8x1xf32>
    %1084 = arith.subf %1083, %1041 : vector<8x1xf32>
    %1085 = vector.broadcast %1084 : vector<8x1xf32> to vector<8x32xf32>
    %1086 = arith.mulf %1085, %973 : vector<8x32xf32>
    %1087 = arith.addf %1082, %1086 : vector<8x32xf32>
    %1088 = vector.broadcast %1041 : vector<8x1xf32> to vector<8x32xf32>
    %1089 = arith.mulf %1088, %1080 : vector<8x32xf32>
    %cst_326 = arith.constant 1.000000e+00 : f32
    %1090 = vector.broadcast %cst_326 : f32 to vector<8x1xf32>
    %1091 = arith.subf %1090, %1041 : vector<8x1xf32>
    %1092 = vector.broadcast %1091 : vector<8x1xf32> to vector<8x32xf32>
    %1093 = arith.mulf %1092, %980 : vector<8x32xf32>
    %1094 = arith.addf %1089, %1093 : vector<8x32xf32>
    %1095 = vector.broadcast %1041 : vector<8x1xf32> to vector<8x32xf32>
    %1096 = arith.mulf %1095, %1080 : vector<8x32xf32>
    %cst_327 = arith.constant dense<0.000000e+00> : vector<8x128xf32>
    %1097 = tpu.matmul %1029, %10, %cst_327 {dimension_numbers = #tpu.dot_dimension_numbers<[1], [0], [0], [1], [0, 0, 1, 1], [], []>} : vector<8x32xf32>, vector<32x128xf32>, vector<8x128xf32> -> vector<8x128xf32>
    %1098 = arith.addf %1047, %1097 : vector<8x128xf32>
    %1099 = vector.extract_strided_slice %1098 {offsets = [0, 0], sizes = [8, 32], strides = [1, 1]} : vector<8x128xf32> to vector<8x32xf32>
    %cst_328 = arith.constant 0.000000e+00 : f32
    %1100 = vector.broadcast %cst_328 : f32 to vector<8x32xf32>
    %1101 = arith.subf %1100, %1099 : vector<8x32xf32>
    %1102 = math.exp %1101 : vector<8x32xf32>
    %cst_329 = arith.constant 1.000000e+00 : f32
    %1103 = vector.broadcast %cst_329 : f32 to vector<8x32xf32>
    %1104 = arith.addf %1103, %1102 : vector<8x32xf32>
    %cst_330 = arith.constant 1.000000e+00 : f32
    %1105 = vector.broadcast %cst_330 : f32 to vector<8x32xf32>
    %1106 = arith.divf %1105, %1104 : vector<8x32xf32>
    %1107 = vector.extract_strided_slice %1098 {offsets = [0, 32], sizes = [8, 32], strides = [1, 1]} : vector<8x128xf32> to vector<8x32xf32>
    %cst_331 = arith.constant 0.000000e+00 : f32
    %1108 = vector.broadcast %cst_331 : f32 to vector<8x32xf32>
    %1109 = arith.subf %1108, %1107 : vector<8x32xf32>
    %1110 = math.exp %1109 : vector<8x32xf32>
    %cst_332 = arith.constant 1.000000e+00 : f32
    %1111 = vector.broadcast %cst_332 : f32 to vector<8x32xf32>
    %1112 = arith.addf %1111, %1110 : vector<8x32xf32>
    %cst_333 = arith.constant 1.000000e+00 : f32
    %1113 = vector.broadcast %cst_333 : f32 to vector<8x32xf32>
    %1114 = arith.divf %1113, %1112 : vector<8x32xf32>
    %1115 = vector.extract_strided_slice %1098 {offsets = [0, 64], sizes = [8, 32], strides = [1, 1]} : vector<8x128xf32> to vector<8x32xf32>
    %1116 = math.tanh %1115 : vector<8x32xf32>
    %1117 = vector.extract_strided_slice %1098 {offsets = [0, 96], sizes = [8, 32], strides = [1, 1]} : vector<8x128xf32> to vector<8x32xf32>
    %cst_334 = arith.constant 0.000000e+00 : f32
    %1118 = vector.broadcast %cst_334 : f32 to vector<8x32xf32>
    %1119 = arith.subf %1118, %1117 : vector<8x32xf32>
    %1120 = math.exp %1119 : vector<8x32xf32>
    %cst_335 = arith.constant 1.000000e+00 : f32
    %1121 = vector.broadcast %cst_335 : f32 to vector<8x32xf32>
    %1122 = arith.addf %1121, %1120 : vector<8x32xf32>
    %cst_336 = arith.constant 1.000000e+00 : f32
    %1123 = vector.broadcast %cst_336 : f32 to vector<8x32xf32>
    %1124 = arith.divf %1123, %1122 : vector<8x32xf32>
    %1125 = arith.mulf %1114, %1022 : vector<8x32xf32>
    %1126 = arith.mulf %1106, %1116 : vector<8x32xf32>
    %1127 = arith.addf %1125, %1126 : vector<8x32xf32>
    %1128 = math.tanh %1127 : vector<8x32xf32>
    %1129 = arith.mulf %1124, %1128 : vector<8x32xf32>
    %1130 = vector.broadcast %1045 : vector<8x1xf32> to vector<8x32xf32>
    %1131 = arith.mulf %1130, %1127 : vector<8x32xf32>
    %cst_337 = arith.constant 1.000000e+00 : f32
    %1132 = vector.broadcast %cst_337 : f32 to vector<8x1xf32>
    %1133 = arith.subf %1132, %1045 : vector<8x1xf32>
    %1134 = vector.broadcast %1133 : vector<8x1xf32> to vector<8x32xf32>
    %1135 = arith.mulf %1134, %1022 : vector<8x32xf32>
    %1136 = arith.addf %1131, %1135 : vector<8x32xf32>
    %1137 = vector.broadcast %1045 : vector<8x1xf32> to vector<8x32xf32>
    %1138 = arith.mulf %1137, %1129 : vector<8x32xf32>
    %cst_338 = arith.constant 1.000000e+00 : f32
    %1139 = vector.broadcast %cst_338 : f32 to vector<8x1xf32>
    %1140 = arith.subf %1139, %1045 : vector<8x1xf32>
    %1141 = vector.broadcast %1140 : vector<8x1xf32> to vector<8x32xf32>
    %1142 = arith.mulf %1141, %1029 : vector<8x32xf32>
    %1143 = arith.addf %1138, %1142 : vector<8x32xf32>
    %1144 = vector.broadcast %1045 : vector<8x1xf32> to vector<8x32xf32>
    %1145 = arith.mulf %1144, %1129 : vector<8x32xf32>
    %c9_339 = arith.constant 9 : index
    %c0_340 = arith.constant 0 : index
    %c0_341 = arith.constant 0 : index
    %1146 = vector.load %arg7[%c9_339, %c0_340, %c0_341] : memref<16x8x32xf32, #tpu.memory_space<vmem>>, vector<1x8x32xf32>
    %1147 = vector.shape_cast %1146 : vector<1x8x32xf32> to vector<8x32xf32>
    %1148 = vector.shape_cast %1096 : vector<8x32xf32> to vector<1x8x32xf32>
    tpu.vector_store %arg7[%c9_339, %c0_340, %c0_341], %1148 {strides = array<i32>} : memref<16x8x32xf32, #tpu.memory_space<vmem>>, vector<1x8x32xf32>,
    %c6_342 = arith.constant 6 : index
    %c0_343 = arith.constant 0 : index
    %c0_344 = arith.constant 0 : index
    %1149 = vector.load %arg8[%c6_342, %c0_343, %c0_344] : memref<16x8x32xf32, #tpu.memory_space<vmem>>, vector<1x8x32xf32>
    %1150 = vector.shape_cast %1149 : vector<1x8x32xf32> to vector<8x32xf32>
    %1151 = vector.shape_cast %1145 : vector<8x32xf32> to vector<1x8x32xf32>
    tpu.vector_store %arg8[%c6_342, %c0_343, %c0_344], %1151 {strides = array<i32>} : memref<16x8x32xf32, #tpu.memory_space<vmem>>, vector<1x8x32xf32>,
    %cst_345 = arith.constant 1.000000e+01 : f32
    %1152 = vector.broadcast %cst_345 : f32 to vector<8x1xf32>
    %1153 = arith.cmpf ogt, %8, %1152 : vector<8x1xf32>
    %1154 = arith.extui %1153 : vector<8x1xi1> to vector<8x1xi32>
    %1155 = arith.sitofp %1154 : vector<8x1xi32> to vector<8x1xf32>
    %cst_346 = arith.constant 5.000000e+00 : f32
    %1156 = vector.broadcast %cst_346 : f32 to vector<8x1xf32>
    %1157 = arith.cmpf ogt, %8, %1156 : vector<8x1xf32>
    %1158 = arith.extui %1157 : vector<8x1xi1> to vector<8x1xi32>
    %1159 = arith.sitofp %1158 : vector<8x1xi32> to vector<8x1xf32>
    %c80_347 = arith.constant 80 : index
    %c0_348 = arith.constant 0 : index
    %1160 = vector.load %arg9[%c80_347, %c0_348] : memref<128x256xf32, #tpu.memory_space<vmem>>, vector<8x128xf32>
    %c40_349 = arith.constant 40 : index
    %c128_350 = arith.constant 128 : index
    %1161 = vector.load %arg9[%c40_349, %c128_350] : memref<128x256xf32, #tpu.memory_space<vmem>>, vector<8x128xf32>
    %cst_351 = arith.constant dense<0.000000e+00> : vector<8x128xf32>
    %1162 = tpu.matmul %1094, %9, %cst_351 {dimension_numbers = #tpu.dot_dimension_numbers<[1], [0], [0], [1], [0, 0, 1, 1], [], []>} : vector<8x32xf32>, vector<32x128xf32>, vector<8x128xf32> -> vector<8x128xf32>
    %1163 = arith.addf %1160, %1162 : vector<8x128xf32>
    %1164 = vector.extract_strided_slice %1163 {offsets = [0, 0], sizes = [8, 32], strides = [1, 1]} : vector<8x128xf32> to vector<8x32xf32>
    %cst_352 = arith.constant 0.000000e+00 : f32
    %1165 = vector.broadcast %cst_352 : f32 to vector<8x32xf32>
    %1166 = arith.subf %1165, %1164 : vector<8x32xf32>
    %1167 = math.exp %1166 : vector<8x32xf32>
    %cst_353 = arith.constant 1.000000e+00 : f32
    %1168 = vector.broadcast %cst_353 : f32 to vector<8x32xf32>
    %1169 = arith.addf %1168, %1167 : vector<8x32xf32>
    %cst_354 = arith.constant 1.000000e+00 : f32
    %1170 = vector.broadcast %cst_354 : f32 to vector<8x32xf32>
    %1171 = arith.divf %1170, %1169 : vector<8x32xf32>
    %1172 = vector.extract_strided_slice %1163 {offsets = [0, 32], sizes = [8, 32], strides = [1, 1]} : vector<8x128xf32> to vector<8x32xf32>
    %cst_355 = arith.constant 0.000000e+00 : f32
    %1173 = vector.broadcast %cst_355 : f32 to vector<8x32xf32>
    %1174 = arith.subf %1173, %1172 : vector<8x32xf32>
    %1175 = math.exp %1174 : vector<8x32xf32>
    %cst_356 = arith.constant 1.000000e+00 : f32
    %1176 = vector.broadcast %cst_356 : f32 to vector<8x32xf32>
    %1177 = arith.addf %1176, %1175 : vector<8x32xf32>
    %cst_357 = arith.constant 1.000000e+00 : f32
    %1178 = vector.broadcast %cst_357 : f32 to vector<8x32xf32>
    %1179 = arith.divf %1178, %1177 : vector<8x32xf32>
    %1180 = vector.extract_strided_slice %1163 {offsets = [0, 64], sizes = [8, 32], strides = [1, 1]} : vector<8x128xf32> to vector<8x32xf32>
    %1181 = math.tanh %1180 : vector<8x32xf32>
    %1182 = vector.extract_strided_slice %1163 {offsets = [0, 96], sizes = [8, 32], strides = [1, 1]} : vector<8x128xf32> to vector<8x32xf32>
    %cst_358 = arith.constant 0.000000e+00 : f32
    %1183 = vector.broadcast %cst_358 : f32 to vector<8x32xf32>
    %1184 = arith.subf %1183, %1182 : vector<8x32xf32>
    %1185 = math.exp %1184 : vector<8x32xf32>
    %cst_359 = arith.constant 1.000000e+00 : f32
    %1186 = vector.broadcast %cst_359 : f32 to vector<8x32xf32>
    %1187 = arith.addf %1186, %1185 : vector<8x32xf32>
    %cst_360 = arith.constant 1.000000e+00 : f32
    %1188 = vector.broadcast %cst_360 : f32 to vector<8x32xf32>
    %1189 = arith.divf %1188, %1187 : vector<8x32xf32>
    %1190 = arith.mulf %1179, %1087 : vector<8x32xf32>
    %1191 = arith.mulf %1171, %1181 : vector<8x32xf32>
    %1192 = arith.addf %1190, %1191 : vector<8x32xf32>
    %1193 = math.tanh %1192 : vector<8x32xf32>
    %1194 = arith.mulf %1189, %1193 : vector<8x32xf32>
    %1195 = vector.broadcast %1155 : vector<8x1xf32> to vector<8x32xf32>
    %1196 = arith.mulf %1195, %1192 : vector<8x32xf32>
    %cst_361 = arith.constant 1.000000e+00 : f32
    %1197 = vector.broadcast %cst_361 : f32 to vector<8x1xf32>
    %1198 = arith.subf %1197, %1155 : vector<8x1xf32>
    %1199 = vector.broadcast %1198 : vector<8x1xf32> to vector<8x32xf32>
    %1200 = arith.mulf %1199, %1087 : vector<8x32xf32>
    %1201 = arith.addf %1196, %1200 : vector<8x32xf32>
    %1202 = vector.broadcast %1155 : vector<8x1xf32> to vector<8x32xf32>
    %1203 = arith.mulf %1202, %1194 : vector<8x32xf32>
    %cst_362 = arith.constant 1.000000e+00 : f32
    %1204 = vector.broadcast %cst_362 : f32 to vector<8x1xf32>
    %1205 = arith.subf %1204, %1155 : vector<8x1xf32>
    %1206 = vector.broadcast %1205 : vector<8x1xf32> to vector<8x32xf32>
    %1207 = arith.mulf %1206, %1094 : vector<8x32xf32>
    %1208 = arith.addf %1203, %1207 : vector<8x32xf32>
    %1209 = vector.broadcast %1155 : vector<8x1xf32> to vector<8x32xf32>
    %1210 = arith.mulf %1209, %1194 : vector<8x32xf32>
    %cst_363 = arith.constant dense<0.000000e+00> : vector<8x128xf32>
    %1211 = tpu.matmul %1143, %10, %cst_363 {dimension_numbers = #tpu.dot_dimension_numbers<[1], [0], [0], [1], [0, 0, 1, 1], [], []>} : vector<8x32xf32>, vector<32x128xf32>, vector<8x128xf32> -> vector<8x128xf32>
    %1212 = arith.addf %1161, %1211 : vector<8x128xf32>
    %1213 = vector.extract_strided_slice %1212 {offsets = [0, 0], sizes = [8, 32], strides = [1, 1]} : vector<8x128xf32> to vector<8x32xf32>
    %cst_364 = arith.constant 0.000000e+00 : f32
    %1214 = vector.broadcast %cst_364 : f32 to vector<8x32xf32>
    %1215 = arith.subf %1214, %1213 : vector<8x32xf32>
    %1216 = math.exp %1215 : vector<8x32xf32>
    %cst_365 = arith.constant 1.000000e+00 : f32
    %1217 = vector.broadcast %cst_365 : f32 to vector<8x32xf32>
    %1218 = arith.addf %1217, %1216 : vector<8x32xf32>
    %cst_366 = arith.constant 1.000000e+00 : f32
    %1219 = vector.broadcast %cst_366 : f32 to vector<8x32xf32>
    %1220 = arith.divf %1219, %1218 : vector<8x32xf32>
    %1221 = vector.extract_strided_slice %1212 {offsets = [0, 32], sizes = [8, 32], strides = [1, 1]} : vector<8x128xf32> to vector<8x32xf32>
    %cst_367 = arith.constant 0.000000e+00 : f32
    %1222 = vector.broadcast %cst_367 : f32 to vector<8x32xf32>
    %1223 = arith.subf %1222, %1221 : vector<8x32xf32>
    %1224 = math.exp %1223 : vector<8x32xf32>
    %cst_368 = arith.constant 1.000000e+00 : f32
    %1225 = vector.broadcast %cst_368 : f32 to vector<8x32xf32>
    %1226 = arith.addf %1225, %1224 : vector<8x32xf32>
    %cst_369 = arith.constant 1.000000e+00 : f32
    %1227 = vector.broadcast %cst_369 : f32 to vector<8x32xf32>
    %1228 = arith.divf %1227, %1226 : vector<8x32xf32>
    %1229 = vector.extract_strided_slice %1212 {offsets = [0, 64], sizes = [8, 32], strides = [1, 1]} : vector<8x128xf32> to vector<8x32xf32>
    %1230 = math.tanh %1229 : vector<8x32xf32>
    %1231 = vector.extract_strided_slice %1212 {offsets = [0, 96], sizes = [8, 32], strides = [1, 1]} : vector<8x128xf32> to vector<8x32xf32>
    %cst_370 = arith.constant 0.000000e+00 : f32
    %1232 = vector.broadcast %cst_370 : f32 to vector<8x32xf32>
    %1233 = arith.subf %1232, %1231 : vector<8x32xf32>
    %1234 = math.exp %1233 : vector<8x32xf32>
    %cst_371 = arith.constant 1.000000e+00 : f32
    %1235 = vector.broadcast %cst_371 : f32 to vector<8x32xf32>
    %1236 = arith.addf %1235, %1234 : vector<8x32xf32>
    %cst_372 = arith.constant 1.000000e+00 : f32
    %1237 = vector.broadcast %cst_372 : f32 to vector<8x32xf32>
    %1238 = arith.divf %1237, %1236 : vector<8x32xf32>
    %1239 = arith.mulf %1228, %1136 : vector<8x32xf32>
    %1240 = arith.mulf %1220, %1230 : vector<8x32xf32>
    %1241 = arith.addf %1239, %1240 : vector<8x32xf32>
    %1242 = math.tanh %1241 : vector<8x32xf32>
    %1243 = arith.mulf %1238, %1242 : vector<8x32xf32>
    %1244 = vector.broadcast %1159 : vector<8x1xf32> to vector<8x32xf32>
    %1245 = arith.mulf %1244, %1241 : vector<8x32xf32>
    %cst_373 = arith.constant 1.000000e+00 : f32
    %1246 = vector.broadcast %cst_373 : f32 to vector<8x1xf32>
    %1247 = arith.subf %1246, %1159 : vector<8x1xf32>
    %1248 = vector.broadcast %1247 : vector<8x1xf32> to vector<8x32xf32>
    %1249 = arith.mulf %1248, %1136 : vector<8x32xf32>
    %1250 = arith.addf %1245, %1249 : vector<8x32xf32>
    %1251 = vector.broadcast %1159 : vector<8x1xf32> to vector<8x32xf32>
    %1252 = arith.mulf %1251, %1243 : vector<8x32xf32>
    %cst_374 = arith.constant 1.000000e+00 : f32
    %1253 = vector.broadcast %cst_374 : f32 to vector<8x1xf32>
    %1254 = arith.subf %1253, %1159 : vector<8x1xf32>
    %1255 = vector.broadcast %1254 : vector<8x1xf32> to vector<8x32xf32>
    %1256 = arith.mulf %1255, %1143 : vector<8x32xf32>
    %1257 = arith.addf %1252, %1256 : vector<8x32xf32>
    %1258 = vector.broadcast %1159 : vector<8x1xf32> to vector<8x32xf32>
    %1259 = arith.mulf %1258, %1243 : vector<8x32xf32>
    %c10_375 = arith.constant 10 : index
    %c0_376 = arith.constant 0 : index
    %c0_377 = arith.constant 0 : index
    %1260 = vector.load %arg7[%c10_375, %c0_376, %c0_377] : memref<16x8x32xf32, #tpu.memory_space<vmem>>, vector<1x8x32xf32>
    %1261 = vector.shape_cast %1260 : vector<1x8x32xf32> to vector<8x32xf32>
    %1262 = vector.shape_cast %1210 : vector<8x32xf32> to vector<1x8x32xf32>
    tpu.vector_store %arg7[%c10_375, %c0_376, %c0_377], %1262 {strides = array<i32>} : memref<16x8x32xf32, #tpu.memory_space<vmem>>, vector<1x8x32xf32>,
    %c5_378 = arith.constant 5 : index
    %c0_379 = arith.constant 0 : index
    %c0_380 = arith.constant 0 : index
    %1263 = vector.load %arg8[%c5_378, %c0_379, %c0_380] : memref<16x8x32xf32, #tpu.memory_space<vmem>>, vector<1x8x32xf32>
    %1264 = vector.shape_cast %1263 : vector<1x8x32xf32> to vector<8x32xf32>
    %1265 = vector.shape_cast %1259 : vector<8x32xf32> to vector<1x8x32xf32>
    tpu.vector_store %arg8[%c5_378, %c0_379, %c0_380], %1265 {strides = array<i32>} : memref<16x8x32xf32, #tpu.memory_space<vmem>>, vector<1x8x32xf32>,
    %cst_381 = arith.constant 1.100000e+01 : f32
    %1266 = vector.broadcast %cst_381 : f32 to vector<8x1xf32>
    %1267 = arith.cmpf ogt, %8, %1266 : vector<8x1xf32>
    %1268 = arith.extui %1267 : vector<8x1xi1> to vector<8x1xi32>
    %1269 = arith.sitofp %1268 : vector<8x1xi32> to vector<8x1xf32>
    %cst_382 = arith.constant 4.000000e+00 : f32
    %1270 = vector.broadcast %cst_382 : f32 to vector<8x1xf32>
    %1271 = arith.cmpf ogt, %8, %1270 : vector<8x1xf32>
    %1272 = arith.extui %1271 : vector<8x1xi1> to vector<8x1xi32>
    %1273 = arith.sitofp %1272 : vector<8x1xi32> to vector<8x1xf32>
    %c88_383 = arith.constant 88 : index
    %c0_384 = arith.constant 0 : index
    %1274 = vector.load %arg9[%c88_383, %c0_384] : memref<128x256xf32, #tpu.memory_space<vmem>>, vector<8x128xf32>
    %c32_385 = arith.constant 32 : index
    %c128_386 = arith.constant 128 : index
    %1275 = vector.load %arg9[%c32_385, %c128_386] : memref<128x256xf32, #tpu.memory_space<vmem>>, vector<8x128xf32>
    %cst_387 = arith.constant dense<0.000000e+00> : vector<8x128xf32>
    %1276 = tpu.matmul %1208, %9, %cst_387 {dimension_numbers = #tpu.dot_dimension_numbers<[1], [0], [0], [1], [0, 0, 1, 1], [], []>} : vector<8x32xf32>, vector<32x128xf32>, vector<8x128xf32> -> vector<8x128xf32>
    %1277 = arith.addf %1274, %1276 : vector<8x128xf32>
    %1278 = vector.extract_strided_slice %1277 {offsets = [0, 0], sizes = [8, 32], strides = [1, 1]} : vector<8x128xf32> to vector<8x32xf32>
    %cst_388 = arith.constant 0.000000e+00 : f32
    %1279 = vector.broadcast %cst_388 : f32 to vector<8x32xf32>
    %1280 = arith.subf %1279, %1278 : vector<8x32xf32>
    %1281 = math.exp %1280 : vector<8x32xf32>
    %cst_389 = arith.constant 1.000000e+00 : f32
    %1282 = vector.broadcast %cst_389 : f32 to vector<8x32xf32>
    %1283 = arith.addf %1282, %1281 : vector<8x32xf32>
    %cst_390 = arith.constant 1.000000e+00 : f32
    %1284 = vector.broadcast %cst_390 : f32 to vector<8x32xf32>
    %1285 = arith.divf %1284, %1283 : vector<8x32xf32>
    %1286 = vector.extract_strided_slice %1277 {offsets = [0, 32], sizes = [8, 32], strides = [1, 1]} : vector<8x128xf32> to vector<8x32xf32>
    %cst_391 = arith.constant 0.000000e+00 : f32
    %1287 = vector.broadcast %cst_391 : f32 to vector<8x32xf32>
    %1288 = arith.subf %1287, %1286 : vector<8x32xf32>
    %1289 = math.exp %1288 : vector<8x32xf32>
    %cst_392 = arith.constant 1.000000e+00 : f32
    %1290 = vector.broadcast %cst_392 : f32 to vector<8x32xf32>
    %1291 = arith.addf %1290, %1289 : vector<8x32xf32>
    %cst_393 = arith.constant 1.000000e+00 : f32
    %1292 = vector.broadcast %cst_393 : f32 to vector<8x32xf32>
    %1293 = arith.divf %1292, %1291 : vector<8x32xf32>
    %1294 = vector.extract_strided_slice %1277 {offsets = [0, 64], sizes = [8, 32], strides = [1, 1]} : vector<8x128xf32> to vector<8x32xf32>
    %1295 = math.tanh %1294 : vector<8x32xf32>
    %1296 = vector.extract_strided_slice %1277 {offsets = [0, 96], sizes = [8, 32], strides = [1, 1]} : vector<8x128xf32> to vector<8x32xf32>
    %cst_394 = arith.constant 0.000000e+00 : f32
    %1297 = vector.broadcast %cst_394 : f32 to vector<8x32xf32>
    %1298 = arith.subf %1297, %1296 : vector<8x32xf32>
    %1299 = math.exp %1298 : vector<8x32xf32>
    %cst_395 = arith.constant 1.000000e+00 : f32
    %1300 = vector.broadcast %cst_395 : f32 to vector<8x32xf32>
    %1301 = arith.addf %1300, %1299 : vector<8x32xf32>
    %cst_396 = arith.constant 1.000000e+00 : f32
    %1302 = vector.broadcast %cst_396 : f32 to vector<8x32xf32>
    %1303 = arith.divf %1302, %1301 : vector<8x32xf32>
    %1304 = arith.mulf %1293, %1201 : vector<8x32xf32>
    %1305 = arith.mulf %1285, %1295 : vector<8x32xf32>
    %1306 = arith.addf %1304, %1305 : vector<8x32xf32>
    %1307 = math.tanh %1306 : vector<8x32xf32>
    %1308 = arith.mulf %1303, %1307 : vector<8x32xf32>
    %1309 = vector.broadcast %1269 : vector<8x1xf32> to vector<8x32xf32>
    %1310 = arith.mulf %1309, %1306 : vector<8x32xf32>
    %cst_397 = arith.constant 1.000000e+00 : f32
    %1311 = vector.broadcast %cst_397 : f32 to vector<8x1xf32>
    %1312 = arith.subf %1311, %1269 : vector<8x1xf32>
    %1313 = vector.broadcast %1312 : vector<8x1xf32> to vector<8x32xf32>
    %1314 = arith.mulf %1313, %1201 : vector<8x32xf32>
    %1315 = arith.addf %1310, %1314 : vector<8x32xf32>
    %1316 = vector.broadcast %1269 : vector<8x1xf32> to vector<8x32xf32>
    %1317 = arith.mulf %1316, %1308 : vector<8x32xf32>
    %cst_398 = arith.constant 1.000000e+00 : f32
    %1318 = vector.broadcast %cst_398 : f32 to vector<8x1xf32>
    %1319 = arith.subf %1318, %1269 : vector<8x1xf32>
    %1320 = vector.broadcast %1319 : vector<8x1xf32> to vector<8x32xf32>
    %1321 = arith.mulf %1320, %1208 : vector<8x32xf32>
    %1322 = arith.addf %1317, %1321 : vector<8x32xf32>
    %1323 = vector.broadcast %1269 : vector<8x1xf32> to vector<8x32xf32>
    %1324 = arith.mulf %1323, %1308 : vector<8x32xf32>
    %cst_399 = arith.constant dense<0.000000e+00> : vector<8x128xf32>
    %1325 = tpu.matmul %1257, %10, %cst_399 {dimension_numbers = #tpu.dot_dimension_numbers<[1], [0], [0], [1], [0, 0, 1, 1], [], []>} : vector<8x32xf32>, vector<32x128xf32>, vector<8x128xf32> -> vector<8x128xf32>
    %1326 = arith.addf %1275, %1325 : vector<8x128xf32>
    %1327 = vector.extract_strided_slice %1326 {offsets = [0, 0], sizes = [8, 32], strides = [1, 1]} : vector<8x128xf32> to vector<8x32xf32>
    %cst_400 = arith.constant 0.000000e+00 : f32
    %1328 = vector.broadcast %cst_400 : f32 to vector<8x32xf32>
    %1329 = arith.subf %1328, %1327 : vector<8x32xf32>
    %1330 = math.exp %1329 : vector<8x32xf32>
    %cst_401 = arith.constant 1.000000e+00 : f32
    %1331 = vector.broadcast %cst_401 : f32 to vector<8x32xf32>
    %1332 = arith.addf %1331, %1330 : vector<8x32xf32>
    %cst_402 = arith.constant 1.000000e+00 : f32
    %1333 = vector.broadcast %cst_402 : f32 to vector<8x32xf32>
    %1334 = arith.divf %1333, %1332 : vector<8x32xf32>
    %1335 = vector.extract_strided_slice %1326 {offsets = [0, 32], sizes = [8, 32], strides = [1, 1]} : vector<8x128xf32> to vector<8x32xf32>
    %cst_403 = arith.constant 0.000000e+00 : f32
    %1336 = vector.broadcast %cst_403 : f32 to vector<8x32xf32>
    %1337 = arith.subf %1336, %1335 : vector<8x32xf32>
    %1338 = math.exp %1337 : vector<8x32xf32>
    %cst_404 = arith.constant 1.000000e+00 : f32
    %1339 = vector.broadcast %cst_404 : f32 to vector<8x32xf32>
    %1340 = arith.addf %1339, %1338 : vector<8x32xf32>
    %cst_405 = arith.constant 1.000000e+00 : f32
    %1341 = vector.broadcast %cst_405 : f32 to vector<8x32xf32>
    %1342 = arith.divf %1341, %1340 : vector<8x32xf32>
    %1343 = vector.extract_strided_slice %1326 {offsets = [0, 64], sizes = [8, 32], strides = [1, 1]} : vector<8x128xf32> to vector<8x32xf32>
    %1344 = math.tanh %1343 : vector<8x32xf32>
    %1345 = vector.extract_strided_slice %1326 {offsets = [0, 96], sizes = [8, 32], strides = [1, 1]} : vector<8x128xf32> to vector<8x32xf32>
    %cst_406 = arith.constant 0.000000e+00 : f32
    %1346 = vector.broadcast %cst_406 : f32 to vector<8x32xf32>
    %1347 = arith.subf %1346, %1345 : vector<8x32xf32>
    %1348 = math.exp %1347 : vector<8x32xf32>
    %cst_407 = arith.constant 1.000000e+00 : f32
    %1349 = vector.broadcast %cst_407 : f32 to vector<8x32xf32>
    %1350 = arith.addf %1349, %1348 : vector<8x32xf32>
    %cst_408 = arith.constant 1.000000e+00 : f32
    %1351 = vector.broadcast %cst_408 : f32 to vector<8x32xf32>
    %1352 = arith.divf %1351, %1350 : vector<8x32xf32>
    %1353 = arith.mulf %1342, %1250 : vector<8x32xf32>
    %1354 = arith.mulf %1334, %1344 : vector<8x32xf32>
    %1355 = arith.addf %1353, %1354 : vector<8x32xf32>
    %1356 = math.tanh %1355 : vector<8x32xf32>
    %1357 = arith.mulf %1352, %1356 : vector<8x32xf32>
    %1358 = vector.broadcast %1273 : vector<8x1xf32> to vector<8x32xf32>
    %1359 = arith.mulf %1358, %1355 : vector<8x32xf32>
    %cst_409 = arith.constant 1.000000e+00 : f32
    %1360 = vector.broadcast %cst_409 : f32 to vector<8x1xf32>
    %1361 = arith.subf %1360, %1273 : vector<8x1xf32>
    %1362 = vector.broadcast %1361 : vector<8x1xf32> to vector<8x32xf32>
    %1363 = arith.mulf %1362, %1250 : vector<8x32xf32>
    %1364 = arith.addf %1359, %1363 : vector<8x32xf32>
    %1365 = vector.broadcast %1273 : vector<8x1xf32> to vector<8x32xf32>
    %1366 = arith.mulf %1365, %1357 : vector<8x32xf32>
    %cst_410 = arith.constant 1.000000e+00 : f32
    %1367 = vector.broadcast %cst_410 : f32 to vector<8x1xf32>
    %1368 = arith.subf %1367, %1273 : vector<8x1xf32>
    %1369 = vector.broadcast %1368 : vector<8x1xf32> to vector<8x32xf32>
    %1370 = arith.mulf %1369, %1257 : vector<8x32xf32>
    %1371 = arith.addf %1366, %1370 : vector<8x32xf32>
    %1372 = vector.broadcast %1273 : vector<8x1xf32> to vector<8x32xf32>
    %1373 = arith.mulf %1372, %1357 : vector<8x32xf32>
    %c11_411 = arith.constant 11 : index
    %c0_412 = arith.constant 0 : index
    %c0_413 = arith.constant 0 : index
    %1374 = vector.load %arg7[%c11_411, %c0_412, %c0_413] : memref<16x8x32xf32, #tpu.memory_space<vmem>>, vector<1x8x32xf32>
    %1375 = vector.shape_cast %1374 : vector<1x8x32xf32> to vector<8x32xf32>
    %1376 = vector.shape_cast %1324 : vector<8x32xf32> to vector<1x8x32xf32>
    tpu.vector_store %arg7[%c11_411, %c0_412, %c0_413], %1376 {strides = array<i32>} : memref<16x8x32xf32, #tpu.memory_space<vmem>>, vector<1x8x32xf32>,
    %c4_414 = arith.constant 4 : index
    %c0_415 = arith.constant 0 : index
    %c0_416 = arith.constant 0 : index
    %1377 = vector.load %arg8[%c4_414, %c0_415, %c0_416] : memref<16x8x32xf32, #tpu.memory_space<vmem>>, vector<1x8x32xf32>
    %1378 = vector.shape_cast %1377 : vector<1x8x32xf32> to vector<8x32xf32>
    %1379 = vector.shape_cast %1373 : vector<8x32xf32> to vector<1x8x32xf32>
    tpu.vector_store %arg8[%c4_414, %c0_415, %c0_416], %1379 {strides = array<i32>} : memref<16x8x32xf32, #tpu.memory_space<vmem>>, vector<1x8x32xf32>,
    %cst_417 = arith.constant 1.200000e+01 : f32
    %1380 = vector.broadcast %cst_417 : f32 to vector<8x1xf32>
    %1381 = arith.cmpf ogt, %8, %1380 : vector<8x1xf32>
    %1382 = arith.extui %1381 : vector<8x1xi1> to vector<8x1xi32>
    %1383 = arith.sitofp %1382 : vector<8x1xi32> to vector<8x1xf32>
    %cst_418 = arith.constant 3.000000e+00 : f32
    %1384 = vector.broadcast %cst_418 : f32 to vector<8x1xf32>
    %1385 = arith.cmpf ogt, %8, %1384 : vector<8x1xf32>
    %1386 = arith.extui %1385 : vector<8x1xi1> to vector<8x1xi32>
    %1387 = arith.sitofp %1386 : vector<8x1xi32> to vector<8x1xf32>
    %c96_419 = arith.constant 96 : index
    %c0_420 = arith.constant 0 : index
    %1388 = vector.load %arg9[%c96_419, %c0_420] : memref<128x256xf32, #tpu.memory_space<vmem>>, vector<8x128xf32>
    %c24_421 = arith.constant 24 : index
    %c128_422 = arith.constant 128 : index
    %1389 = vector.load %arg9[%c24_421, %c128_422] : memref<128x256xf32, #tpu.memory_space<vmem>>, vector<8x128xf32>
    %cst_423 = arith.constant dense<0.000000e+00> : vector<8x128xf32>
    %1390 = tpu.matmul %1322, %9, %cst_423 {dimension_numbers = #tpu.dot_dimension_numbers<[1], [0], [0], [1], [0, 0, 1, 1], [], []>} : vector<8x32xf32>, vector<32x128xf32>, vector<8x128xf32> -> vector<8x128xf32>
    %1391 = arith.addf %1388, %1390 : vector<8x128xf32>
    %1392 = vector.extract_strided_slice %1391 {offsets = [0, 0], sizes = [8, 32], strides = [1, 1]} : vector<8x128xf32> to vector<8x32xf32>
    %cst_424 = arith.constant 0.000000e+00 : f32
    %1393 = vector.broadcast %cst_424 : f32 to vector<8x32xf32>
    %1394 = arith.subf %1393, %1392 : vector<8x32xf32>
    %1395 = math.exp %1394 : vector<8x32xf32>
    %cst_425 = arith.constant 1.000000e+00 : f32
    %1396 = vector.broadcast %cst_425 : f32 to vector<8x32xf32>
    %1397 = arith.addf %1396, %1395 : vector<8x32xf32>
    %cst_426 = arith.constant 1.000000e+00 : f32
    %1398 = vector.broadcast %cst_426 : f32 to vector<8x32xf32>
    %1399 = arith.divf %1398, %1397 : vector<8x32xf32>
    %1400 = vector.extract_strided_slice %1391 {offsets = [0, 32], sizes = [8, 32], strides = [1, 1]} : vector<8x128xf32> to vector<8x32xf32>
    %cst_427 = arith.constant 0.000000e+00 : f32
    %1401 = vector.broadcast %cst_427 : f32 to vector<8x32xf32>
    %1402 = arith.subf %1401, %1400 : vector<8x32xf32>
    %1403 = math.exp %1402 : vector<8x32xf32>
    %cst_428 = arith.constant 1.000000e+00 : f32
    %1404 = vector.broadcast %cst_428 : f32 to vector<8x32xf32>
    %1405 = arith.addf %1404, %1403 : vector<8x32xf32>
    %cst_429 = arith.constant 1.000000e+00 : f32
    %1406 = vector.broadcast %cst_429 : f32 to vector<8x32xf32>
    %1407 = arith.divf %1406, %1405 : vector<8x32xf32>
    %1408 = vector.extract_strided_slice %1391 {offsets = [0, 64], sizes = [8, 32], strides = [1, 1]} : vector<8x128xf32> to vector<8x32xf32>
    %1409 = math.tanh %1408 : vector<8x32xf32>
    %1410 = vector.extract_strided_slice %1391 {offsets = [0, 96], sizes = [8, 32], strides = [1, 1]} : vector<8x128xf32> to vector<8x32xf32>
    %cst_430 = arith.constant 0.000000e+00 : f32
    %1411 = vector.broadcast %cst_430 : f32 to vector<8x32xf32>
    %1412 = arith.subf %1411, %1410 : vector<8x32xf32>
    %1413 = math.exp %1412 : vector<8x32xf32>
    %cst_431 = arith.constant 1.000000e+00 : f32
    %1414 = vector.broadcast %cst_431 : f32 to vector<8x32xf32>
    %1415 = arith.addf %1414, %1413 : vector<8x32xf32>
    %cst_432 = arith.constant 1.000000e+00 : f32
    %1416 = vector.broadcast %cst_432 : f32 to vector<8x32xf32>
    %1417 = arith.divf %1416, %1415 : vector<8x32xf32>
    %1418 = arith.mulf %1407, %1315 : vector<8x32xf32>
    %1419 = arith.mulf %1399, %1409 : vector<8x32xf32>
    %1420 = arith.addf %1418, %1419 : vector<8x32xf32>
    %1421 = math.tanh %1420 : vector<8x32xf32>
    %1422 = arith.mulf %1417, %1421 : vector<8x32xf32>
    %1423 = vector.broadcast %1383 : vector<8x1xf32> to vector<8x32xf32>
    %1424 = arith.mulf %1423, %1420 : vector<8x32xf32>
    %cst_433 = arith.constant 1.000000e+00 : f32
    %1425 = vector.broadcast %cst_433 : f32 to vector<8x1xf32>
    %1426 = arith.subf %1425, %1383 : vector<8x1xf32>
    %1427 = vector.broadcast %1426 : vector<8x1xf32> to vector<8x32xf32>
    %1428 = arith.mulf %1427, %1315 : vector<8x32xf32>
    %1429 = arith.addf %1424, %1428 : vector<8x32xf32>
    %1430 = vector.broadcast %1383 : vector<8x1xf32> to vector<8x32xf32>
    %1431 = arith.mulf %1430, %1422 : vector<8x32xf32>
    %cst_434 = arith.constant 1.000000e+00 : f32
    %1432 = vector.broadcast %cst_434 : f32 to vector<8x1xf32>
    %1433 = arith.subf %1432, %1383 : vector<8x1xf32>
    %1434 = vector.broadcast %1433 : vector<8x1xf32> to vector<8x32xf32>
    %1435 = arith.mulf %1434, %1322 : vector<8x32xf32>
    %1436 = arith.addf %1431, %1435 : vector<8x32xf32>
    %1437 = vector.broadcast %1383 : vector<8x1xf32> to vector<8x32xf32>
    %1438 = arith.mulf %1437, %1422 : vector<8x32xf32>
    %cst_435 = arith.constant dense<0.000000e+00> : vector<8x128xf32>
    %1439 = tpu.matmul %1371, %10, %cst_435 {dimension_numbers = #tpu.dot_dimension_numbers<[1], [0], [0], [1], [0, 0, 1, 1], [], []>} : vector<8x32xf32>, vector<32x128xf32>, vector<8x128xf32> -> vector<8x128xf32>
    %1440 = arith.addf %1389, %1439 : vector<8x128xf32>
    %1441 = vector.extract_strided_slice %1440 {offsets = [0, 0], sizes = [8, 32], strides = [1, 1]} : vector<8x128xf32> to vector<8x32xf32>
    %cst_436 = arith.constant 0.000000e+00 : f32
    %1442 = vector.broadcast %cst_436 : f32 to vector<8x32xf32>
    %1443 = arith.subf %1442, %1441 : vector<8x32xf32>
    %1444 = math.exp %1443 : vector<8x32xf32>
    %cst_437 = arith.constant 1.000000e+00 : f32
    %1445 = vector.broadcast %cst_437 : f32 to vector<8x32xf32>
    %1446 = arith.addf %1445, %1444 : vector<8x32xf32>
    %cst_438 = arith.constant 1.000000e+00 : f32
    %1447 = vector.broadcast %cst_438 : f32 to vector<8x32xf32>
    %1448 = arith.divf %1447, %1446 : vector<8x32xf32>
    %1449 = vector.extract_strided_slice %1440 {offsets = [0, 32], sizes = [8, 32], strides = [1, 1]} : vector<8x128xf32> to vector<8x32xf32>
    %cst_439 = arith.constant 0.000000e+00 : f32
    %1450 = vector.broadcast %cst_439 : f32 to vector<8x32xf32>
    %1451 = arith.subf %1450, %1449 : vector<8x32xf32>
    %1452 = math.exp %1451 : vector<8x32xf32>
    %cst_440 = arith.constant 1.000000e+00 : f32
    %1453 = vector.broadcast %cst_440 : f32 to vector<8x32xf32>
    %1454 = arith.addf %1453, %1452 : vector<8x32xf32>
    %cst_441 = arith.constant 1.000000e+00 : f32
    %1455 = vector.broadcast %cst_441 : f32 to vector<8x32xf32>
    %1456 = arith.divf %1455, %1454 : vector<8x32xf32>
    %1457 = vector.extract_strided_slice %1440 {offsets = [0, 64], sizes = [8, 32], strides = [1, 1]} : vector<8x128xf32> to vector<8x32xf32>
    %1458 = math.tanh %1457 : vector<8x32xf32>
    %1459 = vector.extract_strided_slice %1440 {offsets = [0, 96], sizes = [8, 32], strides = [1, 1]} : vector<8x128xf32> to vector<8x32xf32>
    %cst_442 = arith.constant 0.000000e+00 : f32
    %1460 = vector.broadcast %cst_442 : f32 to vector<8x32xf32>
    %1461 = arith.subf %1460, %1459 : vector<8x32xf32>
    %1462 = math.exp %1461 : vector<8x32xf32>
    %cst_443 = arith.constant 1.000000e+00 : f32
    %1463 = vector.broadcast %cst_443 : f32 to vector<8x32xf32>
    %1464 = arith.addf %1463, %1462 : vector<8x32xf32>
    %cst_444 = arith.constant 1.000000e+00 : f32
    %1465 = vector.broadcast %cst_444 : f32 to vector<8x32xf32>
    %1466 = arith.divf %1465, %1464 : vector<8x32xf32>
    %1467 = arith.mulf %1456, %1364 : vector<8x32xf32>
    %1468 = arith.mulf %1448, %1458 : vector<8x32xf32>
    %1469 = arith.addf %1467, %1468 : vector<8x32xf32>
    %1470 = math.tanh %1469 : vector<8x32xf32>
    %1471 = arith.mulf %1466, %1470 : vector<8x32xf32>
    %1472 = vector.broadcast %1387 : vector<8x1xf32> to vector<8x32xf32>
    %1473 = arith.mulf %1472, %1469 : vector<8x32xf32>
    %cst_445 = arith.constant 1.000000e+00 : f32
    %1474 = vector.broadcast %cst_445 : f32 to vector<8x1xf32>
    %1475 = arith.subf %1474, %1387 : vector<8x1xf32>
    %1476 = vector.broadcast %1475 : vector<8x1xf32> to vector<8x32xf32>
    %1477 = arith.mulf %1476, %1364 : vector<8x32xf32>
    %1478 = arith.addf %1473, %1477 : vector<8x32xf32>
    %1479 = vector.broadcast %1387 : vector<8x1xf32> to vector<8x32xf32>
    %1480 = arith.mulf %1479, %1471 : vector<8x32xf32>
    %cst_446 = arith.constant 1.000000e+00 : f32
    %1481 = vector.broadcast %cst_446 : f32 to vector<8x1xf32>
    %1482 = arith.subf %1481, %1387 : vector<8x1xf32>
    %1483 = vector.broadcast %1482 : vector<8x1xf32> to vector<8x32xf32>
    %1484 = arith.mulf %1483, %1371 : vector<8x32xf32>
    %1485 = arith.addf %1480, %1484 : vector<8x32xf32>
    %1486 = vector.broadcast %1387 : vector<8x1xf32> to vector<8x32xf32>
    %1487 = arith.mulf %1486, %1471 : vector<8x32xf32>
    %c12_447 = arith.constant 12 : index
    %c0_448 = arith.constant 0 : index
    %c0_449 = arith.constant 0 : index
    %1488 = vector.load %arg7[%c12_447, %c0_448, %c0_449] : memref<16x8x32xf32, #tpu.memory_space<vmem>>, vector<1x8x32xf32>
    %1489 = vector.shape_cast %1488 : vector<1x8x32xf32> to vector<8x32xf32>
    %1490 = vector.shape_cast %1438 : vector<8x32xf32> to vector<1x8x32xf32>
    tpu.vector_store %arg7[%c12_447, %c0_448, %c0_449], %1490 {strides = array<i32>} : memref<16x8x32xf32, #tpu.memory_space<vmem>>, vector<1x8x32xf32>,
    %c3_450 = arith.constant 3 : index
    %c0_451 = arith.constant 0 : index
    %c0_452 = arith.constant 0 : index
    %1491 = vector.load %arg8[%c3_450, %c0_451, %c0_452] : memref<16x8x32xf32, #tpu.memory_space<vmem>>, vector<1x8x32xf32>
    %1492 = vector.shape_cast %1491 : vector<1x8x32xf32> to vector<8x32xf32>
    %1493 = vector.shape_cast %1487 : vector<8x32xf32> to vector<1x8x32xf32>
    tpu.vector_store %arg8[%c3_450, %c0_451, %c0_452], %1493 {strides = array<i32>} : memref<16x8x32xf32, #tpu.memory_space<vmem>>, vector<1x8x32xf32>,
    %cst_453 = arith.constant 1.300000e+01 : f32
    %1494 = vector.broadcast %cst_453 : f32 to vector<8x1xf32>
    %1495 = arith.cmpf ogt, %8, %1494 : vector<8x1xf32>
    %1496 = arith.extui %1495 : vector<8x1xi1> to vector<8x1xi32>
    %1497 = arith.sitofp %1496 : vector<8x1xi32> to vector<8x1xf32>
    %cst_454 = arith.constant 2.000000e+00 : f32
    %1498 = vector.broadcast %cst_454 : f32 to vector<8x1xf32>
    %1499 = arith.cmpf ogt, %8, %1498 : vector<8x1xf32>
    %1500 = arith.extui %1499 : vector<8x1xi1> to vector<8x1xi32>
    %1501 = arith.sitofp %1500 : vector<8x1xi32> to vector<8x1xf32>
    %c104_455 = arith.constant 104 : index
    %c0_456 = arith.constant 0 : index
    %1502 = vector.load %arg9[%c104_455, %c0_456] : memref<128x256xf32, #tpu.memory_space<vmem>>, vector<8x128xf32>
    %c16_457 = arith.constant 16 : index
    %c128_458 = arith.constant 128 : index
    %1503 = vector.load %arg9[%c16_457, %c128_458] : memref<128x256xf32, #tpu.memory_space<vmem>>, vector<8x128xf32>
    %cst_459 = arith.constant dense<0.000000e+00> : vector<8x128xf32>
    %1504 = tpu.matmul %1436, %9, %cst_459 {dimension_numbers = #tpu.dot_dimension_numbers<[1], [0], [0], [1], [0, 0, 1, 1], [], []>} : vector<8x32xf32>, vector<32x128xf32>, vector<8x128xf32> -> vector<8x128xf32>
    %1505 = arith.addf %1502, %1504 : vector<8x128xf32>
    %1506 = vector.extract_strided_slice %1505 {offsets = [0, 0], sizes = [8, 32], strides = [1, 1]} : vector<8x128xf32> to vector<8x32xf32>
    %cst_460 = arith.constant 0.000000e+00 : f32
    %1507 = vector.broadcast %cst_460 : f32 to vector<8x32xf32>
    %1508 = arith.subf %1507, %1506 : vector<8x32xf32>
    %1509 = math.exp %1508 : vector<8x32xf32>
    %cst_461 = arith.constant 1.000000e+00 : f32
    %1510 = vector.broadcast %cst_461 : f32 to vector<8x32xf32>
    %1511 = arith.addf %1510, %1509 : vector<8x32xf32>
    %cst_462 = arith.constant 1.000000e+00 : f32
    %1512 = vector.broadcast %cst_462 : f32 to vector<8x32xf32>
    %1513 = arith.divf %1512, %1511 : vector<8x32xf32>
    %1514 = vector.extract_strided_slice %1505 {offsets = [0, 32], sizes = [8, 32], strides = [1, 1]} : vector<8x128xf32> to vector<8x32xf32>
    %cst_463 = arith.constant 0.000000e+00 : f32
    %1515 = vector.broadcast %cst_463 : f32 to vector<8x32xf32>
    %1516 = arith.subf %1515, %1514 : vector<8x32xf32>
    %1517 = math.exp %1516 : vector<8x32xf32>
    %cst_464 = arith.constant 1.000000e+00 : f32
    %1518 = vector.broadcast %cst_464 : f32 to vector<8x32xf32>
    %1519 = arith.addf %1518, %1517 : vector<8x32xf32>
    %cst_465 = arith.constant 1.000000e+00 : f32
    %1520 = vector.broadcast %cst_465 : f32 to vector<8x32xf32>
    %1521 = arith.divf %1520, %1519 : vector<8x32xf32>
    %1522 = vector.extract_strided_slice %1505 {offsets = [0, 64], sizes = [8, 32], strides = [1, 1]} : vector<8x128xf32> to vector<8x32xf32>
    %1523 = math.tanh %1522 : vector<8x32xf32>
    %1524 = vector.extract_strided_slice %1505 {offsets = [0, 96], sizes = [8, 32], strides = [1, 1]} : vector<8x128xf32> to vector<8x32xf32>
    %cst_466 = arith.constant 0.000000e+00 : f32
    %1525 = vector.broadcast %cst_466 : f32 to vector<8x32xf32>
    %1526 = arith.subf %1525, %1524 : vector<8x32xf32>
    %1527 = math.exp %1526 : vector<8x32xf32>
    %cst_467 = arith.constant 1.000000e+00 : f32
    %1528 = vector.broadcast %cst_467 : f32 to vector<8x32xf32>
    %1529 = arith.addf %1528, %1527 : vector<8x32xf32>
    %cst_468 = arith.constant 1.000000e+00 : f32
    %1530 = vector.broadcast %cst_468 : f32 to vector<8x32xf32>
    %1531 = arith.divf %1530, %1529 : vector<8x32xf32>
    %1532 = arith.mulf %1521, %1429 : vector<8x32xf32>
    %1533 = arith.mulf %1513, %1523 : vector<8x32xf32>
    %1534 = arith.addf %1532, %1533 : vector<8x32xf32>
    %1535 = math.tanh %1534 : vector<8x32xf32>
    %1536 = arith.mulf %1531, %1535 : vector<8x32xf32>
    %1537 = vector.broadcast %1497 : vector<8x1xf32> to vector<8x32xf32>
    %1538 = arith.mulf %1537, %1534 : vector<8x32xf32>
    %cst_469 = arith.constant 1.000000e+00 : f32
    %1539 = vector.broadcast %cst_469 : f32 to vector<8x1xf32>
    %1540 = arith.subf %1539, %1497 : vector<8x1xf32>
    %1541 = vector.broadcast %1540 : vector<8x1xf32> to vector<8x32xf32>
    %1542 = arith.mulf %1541, %1429 : vector<8x32xf32>
    %1543 = arith.addf %1538, %1542 : vector<8x32xf32>
    %1544 = vector.broadcast %1497 : vector<8x1xf32> to vector<8x32xf32>
    %1545 = arith.mulf %1544, %1536 : vector<8x32xf32>
    %cst_470 = arith.constant 1.000000e+00 : f32
    %1546 = vector.broadcast %cst_470 : f32 to vector<8x1xf32>
    %1547 = arith.subf %1546, %1497 : vector<8x1xf32>
    %1548 = vector.broadcast %1547 : vector<8x1xf32> to vector<8x32xf32>
    %1549 = arith.mulf %1548, %1436 : vector<8x32xf32>
    %1550 = arith.addf %1545, %1549 : vector<8x32xf32>
    %1551 = vector.broadcast %1497 : vector<8x1xf32> to vector<8x32xf32>
    %1552 = arith.mulf %1551, %1536 : vector<8x32xf32>
    %cst_471 = arith.constant dense<0.000000e+00> : vector<8x128xf32>
    %1553 = tpu.matmul %1485, %10, %cst_471 {dimension_numbers = #tpu.dot_dimension_numbers<[1], [0], [0], [1], [0, 0, 1, 1], [], []>} : vector<8x32xf32>, vector<32x128xf32>, vector<8x128xf32> -> vector<8x128xf32>
    %1554 = arith.addf %1503, %1553 : vector<8x128xf32>
    %1555 = vector.extract_strided_slice %1554 {offsets = [0, 0], sizes = [8, 32], strides = [1, 1]} : vector<8x128xf32> to vector<8x32xf32>
    %cst_472 = arith.constant 0.000000e+00 : f32
    %1556 = vector.broadcast %cst_472 : f32 to vector<8x32xf32>
    %1557 = arith.subf %1556, %1555 : vector<8x32xf32>
    %1558 = math.exp %1557 : vector<8x32xf32>
    %cst_473 = arith.constant 1.000000e+00 : f32
    %1559 = vector.broadcast %cst_473 : f32 to vector<8x32xf32>
    %1560 = arith.addf %1559, %1558 : vector<8x32xf32>
    %cst_474 = arith.constant 1.000000e+00 : f32
    %1561 = vector.broadcast %cst_474 : f32 to vector<8x32xf32>
    %1562 = arith.divf %1561, %1560 : vector<8x32xf32>
    %1563 = vector.extract_strided_slice %1554 {offsets = [0, 32], sizes = [8, 32], strides = [1, 1]} : vector<8x128xf32> to vector<8x32xf32>
    %cst_475 = arith.constant 0.000000e+00 : f32
    %1564 = vector.broadcast %cst_475 : f32 to vector<8x32xf32>
    %1565 = arith.subf %1564, %1563 : vector<8x32xf32>
    %1566 = math.exp %1565 : vector<8x32xf32>
    %cst_476 = arith.constant 1.000000e+00 : f32
    %1567 = vector.broadcast %cst_476 : f32 to vector<8x32xf32>
    %1568 = arith.addf %1567, %1566 : vector<8x32xf32>
    %cst_477 = arith.constant 1.000000e+00 : f32
    %1569 = vector.broadcast %cst_477 : f32 to vector<8x32xf32>
    %1570 = arith.divf %1569, %1568 : vector<8x32xf32>
    %1571 = vector.extract_strided_slice %1554 {offsets = [0, 64], sizes = [8, 32], strides = [1, 1]} : vector<8x128xf32> to vector<8x32xf32>
    %1572 = math.tanh %1571 : vector<8x32xf32>
    %1573 = vector.extract_strided_slice %1554 {offsets = [0, 96], sizes = [8, 32], strides = [1, 1]} : vector<8x128xf32> to vector<8x32xf32>
    %cst_478 = arith.constant 0.000000e+00 : f32
    %1574 = vector.broadcast %cst_478 : f32 to vector<8x32xf32>
    %1575 = arith.subf %1574, %1573 : vector<8x32xf32>
    %1576 = math.exp %1575 : vector<8x32xf32>
    %cst_479 = arith.constant 1.000000e+00 : f32
    %1577 = vector.broadcast %cst_479 : f32 to vector<8x32xf32>
    %1578 = arith.addf %1577, %1576 : vector<8x32xf32>
    %cst_480 = arith.constant 1.000000e+00 : f32
    %1579 = vector.broadcast %cst_480 : f32 to vector<8x32xf32>
    %1580 = arith.divf %1579, %1578 : vector<8x32xf32>
    %1581 = arith.mulf %1570, %1478 : vector<8x32xf32>
    %1582 = arith.mulf %1562, %1572 : vector<8x32xf32>
    %1583 = arith.addf %1581, %1582 : vector<8x32xf32>
    %1584 = math.tanh %1583 : vector<8x32xf32>
    %1585 = arith.mulf %1580, %1584 : vector<8x32xf32>
    %1586 = vector.broadcast %1501 : vector<8x1xf32> to vector<8x32xf32>
    %1587 = arith.mulf %1586, %1583 : vector<8x32xf32>
    %cst_481 = arith.constant 1.000000e+00 : f32
    %1588 = vector.broadcast %cst_481 : f32 to vector<8x1xf32>
    %1589 = arith.subf %1588, %1501 : vector<8x1xf32>
    %1590 = vector.broadcast %1589 : vector<8x1xf32> to vector<8x32xf32>
    %1591 = arith.mulf %1590, %1478 : vector<8x32xf32>
    %1592 = arith.addf %1587, %1591 : vector<8x32xf32>
    %1593 = vector.broadcast %1501 : vector<8x1xf32> to vector<8x32xf32>
    %1594 = arith.mulf %1593, %1585 : vector<8x32xf32>
    %cst_482 = arith.constant 1.000000e+00 : f32
    %1595 = vector.broadcast %cst_482 : f32 to vector<8x1xf32>
    %1596 = arith.subf %1595, %1501 : vector<8x1xf32>
    %1597 = vector.broadcast %1596 : vector<8x1xf32> to vector<8x32xf32>
    %1598 = arith.mulf %1597, %1485 : vector<8x32xf32>
    %1599 = arith.addf %1594, %1598 : vector<8x32xf32>
    %1600 = vector.broadcast %1501 : vector<8x1xf32> to vector<8x32xf32>
    %1601 = arith.mulf %1600, %1585 : vector<8x32xf32>
    %c13_483 = arith.constant 13 : index
    %c0_484 = arith.constant 0 : index
    %c0_485 = arith.constant 0 : index
    %1602 = vector.load %arg7[%c13_483, %c0_484, %c0_485] : memref<16x8x32xf32, #tpu.memory_space<vmem>>, vector<1x8x32xf32>
    %1603 = vector.shape_cast %1602 : vector<1x8x32xf32> to vector<8x32xf32>
    %1604 = vector.shape_cast %1552 : vector<8x32xf32> to vector<1x8x32xf32>
    tpu.vector_store %arg7[%c13_483, %c0_484, %c0_485], %1604 {strides = array<i32>} : memref<16x8x32xf32, #tpu.memory_space<vmem>>, vector<1x8x32xf32>,
    %c2_486 = arith.constant 2 : index
    %c0_487 = arith.constant 0 : index
    %c0_488 = arith.constant 0 : index
    %1605 = vector.load %arg8[%c2_486, %c0_487, %c0_488] : memref<16x8x32xf32, #tpu.memory_space<vmem>>, vector<1x8x32xf32>
    %1606 = vector.shape_cast %1605 : vector<1x8x32xf32> to vector<8x32xf32>
    %1607 = vector.shape_cast %1601 : vector<8x32xf32> to vector<1x8x32xf32>
    tpu.vector_store %arg8[%c2_486, %c0_487, %c0_488], %1607 {strides = array<i32>} : memref<16x8x32xf32, #tpu.memory_space<vmem>>, vector<1x8x32xf32>,
    %cst_489 = arith.constant 1.400000e+01 : f32
    %1608 = vector.broadcast %cst_489 : f32 to vector<8x1xf32>
    %1609 = arith.cmpf ogt, %8, %1608 : vector<8x1xf32>
    %1610 = arith.extui %1609 : vector<8x1xi1> to vector<8x1xi32>
    %1611 = arith.sitofp %1610 : vector<8x1xi32> to vector<8x1xf32>
    %cst_490 = arith.constant 1.000000e+00 : f32
    %1612 = vector.broadcast %cst_490 : f32 to vector<8x1xf32>
    %1613 = arith.cmpf ogt, %8, %1612 : vector<8x1xf32>
    %1614 = arith.extui %1613 : vector<8x1xi1> to vector<8x1xi32>
    %1615 = arith.sitofp %1614 : vector<8x1xi32> to vector<8x1xf32>
    %c112_491 = arith.constant 112 : index
    %c0_492 = arith.constant 0 : index
    %1616 = vector.load %arg9[%c112_491, %c0_492] : memref<128x256xf32, #tpu.memory_space<vmem>>, vector<8x128xf32>
    %c8_493 = arith.constant 8 : index
    %c128_494 = arith.constant 128 : index
    %1617 = vector.load %arg9[%c8_493, %c128_494] : memref<128x256xf32, #tpu.memory_space<vmem>>, vector<8x128xf32>
    %cst_495 = arith.constant dense<0.000000e+00> : vector<8x128xf32>
    %1618 = tpu.matmul %1550, %9, %cst_495 {dimension_numbers = #tpu.dot_dimension_numbers<[1], [0], [0], [1], [0, 0, 1, 1], [], []>} : vector<8x32xf32>, vector<32x128xf32>, vector<8x128xf32> -> vector<8x128xf32>
    %1619 = arith.addf %1616, %1618 : vector<8x128xf32>
    %1620 = vector.extract_strided_slice %1619 {offsets = [0, 0], sizes = [8, 32], strides = [1, 1]} : vector<8x128xf32> to vector<8x32xf32>
    %cst_496 = arith.constant 0.000000e+00 : f32
    %1621 = vector.broadcast %cst_496 : f32 to vector<8x32xf32>
    %1622 = arith.subf %1621, %1620 : vector<8x32xf32>
    %1623 = math.exp %1622 : vector<8x32xf32>
    %cst_497 = arith.constant 1.000000e+00 : f32
    %1624 = vector.broadcast %cst_497 : f32 to vector<8x32xf32>
    %1625 = arith.addf %1624, %1623 : vector<8x32xf32>
    %cst_498 = arith.constant 1.000000e+00 : f32
    %1626 = vector.broadcast %cst_498 : f32 to vector<8x32xf32>
    %1627 = arith.divf %1626, %1625 : vector<8x32xf32>
    %1628 = vector.extract_strided_slice %1619 {offsets = [0, 32], sizes = [8, 32], strides = [1, 1]} : vector<8x128xf32> to vector<8x32xf32>
    %cst_499 = arith.constant 0.000000e+00 : f32
    %1629 = vector.broadcast %cst_499 : f32 to vector<8x32xf32>
    %1630 = arith.subf %1629, %1628 : vector<8x32xf32>
    %1631 = math.exp %1630 : vector<8x32xf32>
    %cst_500 = arith.constant 1.000000e+00 : f32
    %1632 = vector.broadcast %cst_500 : f32 to vector<8x32xf32>
    %1633 = arith.addf %1632, %1631 : vector<8x32xf32>
    %cst_501 = arith.constant 1.000000e+00 : f32
    %1634 = vector.broadcast %cst_501 : f32 to vector<8x32xf32>
    %1635 = arith.divf %1634, %1633 : vector<8x32xf32>
    %1636 = vector.extract_strided_slice %1619 {offsets = [0, 64], sizes = [8, 32], strides = [1, 1]} : vector<8x128xf32> to vector<8x32xf32>
    %1637 = math.tanh %1636 : vector<8x32xf32>
    %1638 = vector.extract_strided_slice %1619 {offsets = [0, 96], sizes = [8, 32], strides = [1, 1]} : vector<8x128xf32> to vector<8x32xf32>
    %cst_502 = arith.constant 0.000000e+00 : f32
    %1639 = vector.broadcast %cst_502 : f32 to vector<8x32xf32>
    %1640 = arith.subf %1639, %1638 : vector<8x32xf32>
    %1641 = math.exp %1640 : vector<8x32xf32>
    %cst_503 = arith.constant 1.000000e+00 : f32
    %1642 = vector.broadcast %cst_503 : f32 to vector<8x32xf32>
    %1643 = arith.addf %1642, %1641 : vector<8x32xf32>
    %cst_504 = arith.constant 1.000000e+00 : f32
    %1644 = vector.broadcast %cst_504 : f32 to vector<8x32xf32>
    %1645 = arith.divf %1644, %1643 : vector<8x32xf32>
    %1646 = arith.mulf %1635, %1543 : vector<8x32xf32>
    %1647 = arith.mulf %1627, %1637 : vector<8x32xf32>
    %1648 = arith.addf %1646, %1647 : vector<8x32xf32>
    %1649 = math.tanh %1648 : vector<8x32xf32>
    %1650 = arith.mulf %1645, %1649 : vector<8x32xf32>
    %1651 = vector.broadcast %1611 : vector<8x1xf32> to vector<8x32xf32>
    %1652 = arith.mulf %1651, %1648 : vector<8x32xf32>
    %cst_505 = arith.constant 1.000000e+00 : f32
    %1653 = vector.broadcast %cst_505 : f32 to vector<8x1xf32>
    %1654 = arith.subf %1653, %1611 : vector<8x1xf32>
    %1655 = vector.broadcast %1654 : vector<8x1xf32> to vector<8x32xf32>
    %1656 = arith.mulf %1655, %1543 : vector<8x32xf32>
    %1657 = arith.addf %1652, %1656 : vector<8x32xf32>
    %1658 = vector.broadcast %1611 : vector<8x1xf32> to vector<8x32xf32>
    %1659 = arith.mulf %1658, %1650 : vector<8x32xf32>
    %cst_506 = arith.constant 1.000000e+00 : f32
    %1660 = vector.broadcast %cst_506 : f32 to vector<8x1xf32>
    %1661 = arith.subf %1660, %1611 : vector<8x1xf32>
    %1662 = vector.broadcast %1661 : vector<8x1xf32> to vector<8x32xf32>
    %1663 = arith.mulf %1662, %1550 : vector<8x32xf32>
    %1664 = arith.addf %1659, %1663 : vector<8x32xf32>
    %1665 = vector.broadcast %1611 : vector<8x1xf32> to vector<8x32xf32>
    %1666 = arith.mulf %1665, %1650 : vector<8x32xf32>
    %cst_507 = arith.constant dense<0.000000e+00> : vector<8x128xf32>
    %1667 = tpu.matmul %1599, %10, %cst_507 {dimension_numbers = #tpu.dot_dimension_numbers<[1], [0], [0], [1], [0, 0, 1, 1], [], []>} : vector<8x32xf32>, vector<32x128xf32>, vector<8x128xf32> -> vector<8x128xf32>
    %1668 = arith.addf %1617, %1667 : vector<8x128xf32>
    %1669 = vector.extract_strided_slice %1668 {offsets = [0, 0], sizes = [8, 32], strides = [1, 1]} : vector<8x128xf32> to vector<8x32xf32>
    %cst_508 = arith.constant 0.000000e+00 : f32
    %1670 = vector.broadcast %cst_508 : f32 to vector<8x32xf32>
    %1671 = arith.subf %1670, %1669 : vector<8x32xf32>
    %1672 = math.exp %1671 : vector<8x32xf32>
    %cst_509 = arith.constant 1.000000e+00 : f32
    %1673 = vector.broadcast %cst_509 : f32 to vector<8x32xf32>
    %1674 = arith.addf %1673, %1672 : vector<8x32xf32>
    %cst_510 = arith.constant 1.000000e+00 : f32
    %1675 = vector.broadcast %cst_510 : f32 to vector<8x32xf32>
    %1676 = arith.divf %1675, %1674 : vector<8x32xf32>
    %1677 = vector.extract_strided_slice %1668 {offsets = [0, 32], sizes = [8, 32], strides = [1, 1]} : vector<8x128xf32> to vector<8x32xf32>
    %cst_511 = arith.constant 0.000000e+00 : f32
    %1678 = vector.broadcast %cst_511 : f32 to vector<8x32xf32>
    %1679 = arith.subf %1678, %1677 : vector<8x32xf32>
    %1680 = math.exp %1679 : vector<8x32xf32>
    %cst_512 = arith.constant 1.000000e+00 : f32
    %1681 = vector.broadcast %cst_512 : f32 to vector<8x32xf32>
    %1682 = arith.addf %1681, %1680 : vector<8x32xf32>
    %cst_513 = arith.constant 1.000000e+00 : f32
    %1683 = vector.broadcast %cst_513 : f32 to vector<8x32xf32>
    %1684 = arith.divf %1683, %1682 : vector<8x32xf32>
    %1685 = vector.extract_strided_slice %1668 {offsets = [0, 64], sizes = [8, 32], strides = [1, 1]} : vector<8x128xf32> to vector<8x32xf32>
    %1686 = math.tanh %1685 : vector<8x32xf32>
    %1687 = vector.extract_strided_slice %1668 {offsets = [0, 96], sizes = [8, 32], strides = [1, 1]} : vector<8x128xf32> to vector<8x32xf32>
    %cst_514 = arith.constant 0.000000e+00 : f32
    %1688 = vector.broadcast %cst_514 : f32 to vector<8x32xf32>
    %1689 = arith.subf %1688, %1687 : vector<8x32xf32>
    %1690 = math.exp %1689 : vector<8x32xf32>
    %cst_515 = arith.constant 1.000000e+00 : f32
    %1691 = vector.broadcast %cst_515 : f32 to vector<8x32xf32>
    %1692 = arith.addf %1691, %1690 : vector<8x32xf32>
    %cst_516 = arith.constant 1.000000e+00 : f32
    %1693 = vector.broadcast %cst_516 : f32 to vector<8x32xf32>
    %1694 = arith.divf %1693, %1692 : vector<8x32xf32>
    %1695 = arith.mulf %1684, %1592 : vector<8x32xf32>
    %1696 = arith.mulf %1676, %1686 : vector<8x32xf32>
    %1697 = arith.addf %1695, %1696 : vector<8x32xf32>
    %1698 = math.tanh %1697 : vector<8x32xf32>
    %1699 = arith.mulf %1694, %1698 : vector<8x32xf32>
    %1700 = vector.broadcast %1615 : vector<8x1xf32> to vector<8x32xf32>
    %1701 = arith.mulf %1700, %1697 : vector<8x32xf32>
    %cst_517 = arith.constant 1.000000e+00 : f32
    %1702 = vector.broadcast %cst_517 : f32 to vector<8x1xf32>
    %1703 = arith.subf %1702, %1615 : vector<8x1xf32>
    %1704 = vector.broadcast %1703 : vector<8x1xf32> to vector<8x32xf32>
    %1705 = arith.mulf %1704, %1592 : vector<8x32xf32>
    %1706 = arith.addf %1701, %1705 : vector<8x32xf32>
    %1707 = vector.broadcast %1615 : vector<8x1xf32> to vector<8x32xf32>
    %1708 = arith.mulf %1707, %1699 : vector<8x32xf32>
    %cst_518 = arith.constant 1.000000e+00 : f32
    %1709 = vector.broadcast %cst_518 : f32 to vector<8x1xf32>
    %1710 = arith.subf %1709, %1615 : vector<8x1xf32>
    %1711 = vector.broadcast %1710 : vector<8x1xf32> to vector<8x32xf32>
    %1712 = arith.mulf %1711, %1599 : vector<8x32xf32>
    %1713 = arith.addf %1708, %1712 : vector<8x32xf32>
    %1714 = vector.broadcast %1615 : vector<8x1xf32> to vector<8x32xf32>
    %1715 = arith.mulf %1714, %1699 : vector<8x32xf32>
    %c14_519 = arith.constant 14 : index
    %c0_520 = arith.constant 0 : index
    %c0_521 = arith.constant 0 : index
    %1716 = vector.load %arg7[%c14_519, %c0_520, %c0_521] : memref<16x8x32xf32, #tpu.memory_space<vmem>>, vector<1x8x32xf32>
    %1717 = vector.shape_cast %1716 : vector<1x8x32xf32> to vector<8x32xf32>
    %1718 = vector.shape_cast %1666 : vector<8x32xf32> to vector<1x8x32xf32>
    tpu.vector_store %arg7[%c14_519, %c0_520, %c0_521], %1718 {strides = array<i32>} : memref<16x8x32xf32, #tpu.memory_space<vmem>>, vector<1x8x32xf32>,
    %c1_522 = arith.constant 1 : index
    %c0_523 = arith.constant 0 : index
    %c0_524 = arith.constant 0 : index
    %1719 = vector.load %arg8[%c1_522, %c0_523, %c0_524] : memref<16x8x32xf32, #tpu.memory_space<vmem>>, vector<1x8x32xf32>
    %1720 = vector.shape_cast %1719 : vector<1x8x32xf32> to vector<8x32xf32>
    %1721 = vector.shape_cast %1715 : vector<8x32xf32> to vector<1x8x32xf32>
    tpu.vector_store %arg8[%c1_522, %c0_523, %c0_524], %1721 {strides = array<i32>} : memref<16x8x32xf32, #tpu.memory_space<vmem>>, vector<1x8x32xf32>,
    %cst_525 = arith.constant 1.500000e+01 : f32
    %1722 = vector.broadcast %cst_525 : f32 to vector<8x1xf32>
    %1723 = arith.cmpf ogt, %8, %1722 : vector<8x1xf32>
    %1724 = arith.extui %1723 : vector<8x1xi1> to vector<8x1xi32>
    %1725 = arith.sitofp %1724 : vector<8x1xi32> to vector<8x1xf32>
    %cst_526 = arith.constant 0.000000e+00 : f32
    %1726 = vector.broadcast %cst_526 : f32 to vector<8x1xf32>
    %1727 = arith.cmpf ogt, %8, %1726 : vector<8x1xf32>
    %1728 = arith.extui %1727 : vector<8x1xi1> to vector<8x1xi32>
    %1729 = arith.sitofp %1728 : vector<8x1xi32> to vector<8x1xf32>
    %c120_527 = arith.constant 120 : index
    %c0_528 = arith.constant 0 : index
    %1730 = vector.load %arg9[%c120_527, %c0_528] : memref<128x256xf32, #tpu.memory_space<vmem>>, vector<8x128xf32>
    %c0_529 = arith.constant 0 : index
    %c128_530 = arith.constant 128 : index
    %1731 = vector.load %arg9[%c0_529, %c128_530] : memref<128x256xf32, #tpu.memory_space<vmem>>, vector<8x128xf32>
    %cst_531 = arith.constant dense<0.000000e+00> : vector<8x128xf32>
    %1732 = tpu.matmul %1664, %9, %cst_531 {dimension_numbers = #tpu.dot_dimension_numbers<[1], [0], [0], [1], [0, 0, 1, 1], [], []>} : vector<8x32xf32>, vector<32x128xf32>, vector<8x128xf32> -> vector<8x128xf32>
    %1733 = arith.addf %1730, %1732 : vector<8x128xf32>
    %1734 = vector.extract_strided_slice %1733 {offsets = [0, 0], sizes = [8, 32], strides = [1, 1]} : vector<8x128xf32> to vector<8x32xf32>
    %cst_532 = arith.constant 0.000000e+00 : f32
    %1735 = vector.broadcast %cst_532 : f32 to vector<8x32xf32>
    %1736 = arith.subf %1735, %1734 : vector<8x32xf32>
    %1737 = math.exp %1736 : vector<8x32xf32>
    %cst_533 = arith.constant 1.000000e+00 : f32
    %1738 = vector.broadcast %cst_533 : f32 to vector<8x32xf32>
    %1739 = arith.addf %1738, %1737 : vector<8x32xf32>
    %cst_534 = arith.constant 1.000000e+00 : f32
    %1740 = vector.broadcast %cst_534 : f32 to vector<8x32xf32>
    %1741 = arith.divf %1740, %1739 : vector<8x32xf32>
    %1742 = vector.extract_strided_slice %1733 {offsets = [0, 32], sizes = [8, 32], strides = [1, 1]} : vector<8x128xf32> to vector<8x32xf32>
    %cst_535 = arith.constant 0.000000e+00 : f32
    %1743 = vector.broadcast %cst_535 : f32 to vector<8x32xf32>
    %1744 = arith.subf %1743, %1742 : vector<8x32xf32>
    %1745 = math.exp %1744 : vector<8x32xf32>
    %cst_536 = arith.constant 1.000000e+00 : f32
    %1746 = vector.broadcast %cst_536 : f32 to vector<8x32xf32>
    %1747 = arith.addf %1746, %1745 : vector<8x32xf32>
    %cst_537 = arith.constant 1.000000e+00 : f32
    %1748 = vector.broadcast %cst_537 : f32 to vector<8x32xf32>
    %1749 = arith.divf %1748, %1747 : vector<8x32xf32>
    %1750 = vector.extract_strided_slice %1733 {offsets = [0, 64], sizes = [8, 32], strides = [1, 1]} : vector<8x128xf32> to vector<8x32xf32>
    %1751 = math.tanh %1750 : vector<8x32xf32>
    %1752 = vector.extract_strided_slice %1733 {offsets = [0, 96], sizes = [8, 32], strides = [1, 1]} : vector<8x128xf32> to vector<8x32xf32>
    %cst_538 = arith.constant 0.000000e+00 : f32
    %1753 = vector.broadcast %cst_538 : f32 to vector<8x32xf32>
    %1754 = arith.subf %1753, %1752 : vector<8x32xf32>
    %1755 = math.exp %1754 : vector<8x32xf32>
    %cst_539 = arith.constant 1.000000e+00 : f32
    %1756 = vector.broadcast %cst_539 : f32 to vector<8x32xf32>
    %1757 = arith.addf %1756, %1755 : vector<8x32xf32>
    %cst_540 = arith.constant 1.000000e+00 : f32
    %1758 = vector.broadcast %cst_540 : f32 to vector<8x32xf32>
    %1759 = arith.divf %1758, %1757 : vector<8x32xf32>
    %1760 = arith.mulf %1749, %1657 : vector<8x32xf32>
    %1761 = arith.mulf %1741, %1751 : vector<8x32xf32>
    %1762 = arith.addf %1760, %1761 : vector<8x32xf32>
    %1763 = math.tanh %1762 : vector<8x32xf32>
    %1764 = arith.mulf %1759, %1763 : vector<8x32xf32>
    %1765 = vector.broadcast %1725 : vector<8x1xf32> to vector<8x32xf32>
    %1766 = arith.mulf %1765, %1764 : vector<8x32xf32>
    %cst_541 = arith.constant dense<0.000000e+00> : vector<8x128xf32>
    %1767 = tpu.matmul %1713, %10, %cst_541 {dimension_numbers = #tpu.dot_dimension_numbers<[1], [0], [0], [1], [0, 0, 1, 1], [], []>} : vector<8x32xf32>, vector<32x128xf32>, vector<8x128xf32> -> vector<8x128xf32>
    %1768 = arith.addf %1731, %1767 : vector<8x128xf32>
    %1769 = vector.extract_strided_slice %1768 {offsets = [0, 0], sizes = [8, 32], strides = [1, 1]} : vector<8x128xf32> to vector<8x32xf32>
    %cst_542 = arith.constant 0.000000e+00 : f32
    %1770 = vector.broadcast %cst_542 : f32 to vector<8x32xf32>
    %1771 = arith.subf %1770, %1769 : vector<8x32xf32>
    %1772 = math.exp %1771 : vector<8x32xf32>
    %cst_543 = arith.constant 1.000000e+00 : f32
    %1773 = vector.broadcast %cst_543 : f32 to vector<8x32xf32>
    %1774 = arith.addf %1773, %1772 : vector<8x32xf32>
    %cst_544 = arith.constant 1.000000e+00 : f32
    %1775 = vector.broadcast %cst_544 : f32 to vector<8x32xf32>
    %1776 = arith.divf %1775, %1774 : vector<8x32xf32>
    %1777 = vector.extract_strided_slice %1768 {offsets = [0, 32], sizes = [8, 32], strides = [1, 1]} : vector<8x128xf32> to vector<8x32xf32>
    %cst_545 = arith.constant 0.000000e+00 : f32
    %1778 = vector.broadcast %cst_545 : f32 to vector<8x32xf32>
    %1779 = arith.subf %1778, %1777 : vector<8x32xf32>
    %1780 = math.exp %1779 : vector<8x32xf32>
    %cst_546 = arith.constant 1.000000e+00 : f32
    %1781 = vector.broadcast %cst_546 : f32 to vector<8x32xf32>
    %1782 = arith.addf %1781, %1780 : vector<8x32xf32>
    %cst_547 = arith.constant 1.000000e+00 : f32
    %1783 = vector.broadcast %cst_547 : f32 to vector<8x32xf32>
    %1784 = arith.divf %1783, %1782 : vector<8x32xf32>
    %1785 = vector.extract_strided_slice %1768 {offsets = [0, 64], sizes = [8, 32], strides = [1, 1]} : vector<8x128xf32> to vector<8x32xf32>
    %1786 = math.tanh %1785 : vector<8x32xf32>
    %1787 = vector.extract_strided_slice %1768 {offsets = [0, 96], sizes = [8, 32], strides = [1, 1]} : vector<8x128xf32> to vector<8x32xf32>
    %cst_548 = arith.constant 0.000000e+00 : f32
    %1788 = vector.broadcast %cst_548 : f32 to vector<8x32xf32>
    %1789 = arith.subf %1788, %1787 : vector<8x32xf32>
    %1790 = math.exp %1789 : vector<8x32xf32>
    %cst_549 = arith.constant 1.000000e+00 : f32
    %1791 = vector.broadcast %cst_549 : f32 to vector<8x32xf32>
    %1792 = arith.addf %1791, %1790 : vector<8x32xf32>
    %cst_550 = arith.constant 1.000000e+00 : f32
    %1793 = vector.broadcast %cst_550 : f32 to vector<8x32xf32>
    %1794 = arith.divf %1793, %1792 : vector<8x32xf32>
    %1795 = arith.mulf %1784, %1706 : vector<8x32xf32>
    %1796 = arith.mulf %1776, %1786 : vector<8x32xf32>
    %1797 = arith.addf %1795, %1796 : vector<8x32xf32>
    %1798 = math.tanh %1797 : vector<8x32xf32>
    %1799 = arith.mulf %1794, %1798 : vector<8x32xf32>
    %1800 = vector.broadcast %1729 : vector<8x1xf32> to vector<8x32xf32>
    %1801 = arith.mulf %1800, %1799 : vector<8x32xf32>
    %c15_551 = arith.constant 15 : index
    %c0_552 = arith.constant 0 : index
    %c0_553 = arith.constant 0 : index
    %1802 = vector.load %arg7[%c15_551, %c0_552, %c0_553] : memref<16x8x32xf32, #tpu.memory_space<vmem>>, vector<1x8x32xf32>
    %1803 = vector.shape_cast %1802 : vector<1x8x32xf32> to vector<8x32xf32>
    %1804 = vector.shape_cast %1766 : vector<8x32xf32> to vector<1x8x32xf32>
    tpu.vector_store %arg7[%c15_551, %c0_552, %c0_553], %1804 {strides = array<i32>} : memref<16x8x32xf32, #tpu.memory_space<vmem>>, vector<1x8x32xf32>,
    %c0_554 = arith.constant 0 : index
    %c0_555 = arith.constant 0 : index
    %c0_556 = arith.constant 0 : index
    %1805 = vector.load %arg8[%c0_554, %c0_555, %c0_556] : memref<16x8x32xf32, #tpu.memory_space<vmem>>, vector<1x8x32xf32>
    %1806 = vector.shape_cast %1805 : vector<1x8x32xf32> to vector<8x32xf32>
    %1807 = vector.shape_cast %1801 : vector<8x32xf32> to vector<1x8x32xf32>
    tpu.vector_store %arg8[%c0_554, %c0_555, %c0_556], %1807 {strides = array<i32>} : memref<16x8x32xf32, #tpu.memory_space<vmem>>, vector<1x8x32xf32>,
    return
  }
  func.func @transform_0(%arg0: i32) -> (i32, i32, i32) {
    %c0_i32 = arith.constant 0 : i32
    %c0_i32_0 = arith.constant 0 : i32
    %c0_i32_1 = arith.constant 0 : i32
    return %arg0, %c0_i32, %c0_i32_0 : i32, i32, i32
  }
  func.func @transform_1(%arg0: i32) -> (i32, i32) {
    %c0_i32 = arith.constant 0 : i32
    %c0_i32_0 = arith.constant 0 : i32
    return %arg0, %c0_i32 : i32, i32
  }
  func.func @transform_2(%arg0: i32) -> (i32, i32) {
    %c0_i32 = arith.constant 0 : i32
    %c0_i32_0 = arith.constant 0 : i32
    %c0_i32_1 = arith.constant 0 : i32
    return %c0_i32, %c0_i32_0 : i32, i32
  }
  func.func @transform_3(%arg0: i32) -> (i32, i32) {
    %c0_i32 = arith.constant 0 : i32
    %c0_i32_0 = arith.constant 0 : i32
    %c0_i32_1 = arith.constant 0 : i32
    return %c0_i32, %c0_i32_0 : i32, i32
  }
  func.func @transform_4(%arg0: i32) -> (i32, i32) {
    %c0_i32 = arith.constant 0 : i32
    %c0_i32_0 = arith.constant 0 : i32
    %c0_i32_1 = arith.constant 0 : i32
    return %c0_i32, %c0_i32_0 : i32, i32
  }
  func.func @transform_5(%arg0: i32) -> (i32, i32) {
    %c0_i32 = arith.constant 0 : i32
    %c0_i32_0 = arith.constant 0 : i32
    %c0_i32_1 = arith.constant 0 : i32
    return %c0_i32, %c0_i32_0 : i32, i32
  }
  func.func @transform_6(%arg0: i32) -> (i32, i32, i32) {
    %c0_i32 = arith.constant 0 : i32
    %c0_i32_0 = arith.constant 0 : i32
    %c0_i32_1 = arith.constant 0 : i32
    return %c0_i32, %arg0, %c0_i32_0 : i32, i32, i32
  }
  func.func @transform_7(%arg0: i32) -> (i32, i32, i32) {
    %c0_i32 = arith.constant 0 : i32
    %c0_i32_0 = arith.constant 0 : i32
    %c0_i32_1 = arith.constant 0 : i32
    return %c0_i32, %arg0, %c0_i32_0 : i32, i32, i32
  }
}

</mosaic_0001>

<llo_original>
// kernel: bilstm_embedding_forward.1
$region0: #{bilstm_embedding_forward.1}
  #allocation0 [shape = 'u32[]', space=smem, size = 0x4, offset = 0x4, fixed_abs, tag = 'smem constant byte address 0x4 - core index']
  #allocation1 [shape = 'u32[72,128]{1,0:T(1,128)}', space=vmem, size = 0x9000, scoped, tag = 'internal scratch']
  #allocation2 [shape = 'f32[128,256]{1,0:T(8,128)}', space=vmem, size = 0x20000, scoped, tag = 'scratch operand']
  %s0 = inlined_call_operand.vmem [shape: bf16[2,128,32], index: 0, kind: input, shape index: {}]
  %s1 = inlined_call_operand.vmem [shape: f32[16,1], index: 1, kind: input, shape index: {}]
  %s2 = inlined_call_operand.vmem [shape: bf16[32,256], index: 2, kind: input, shape index: {}]
  %s3 = inlined_call_operand.vmem [shape: f32[1,256], index: 3, kind: input, shape index: {}]
  %s4 = inlined_call_operand.vmem [shape: f32[32,128], index: 4, kind: input, shape index: {}]
  %s5 = inlined_call_operand.vmem [shape: f32[32,128], index: 5, kind: input, shape index: {}]
  %s6 = inlined_call_operand.vmem [shape: f32[16,16,32], index: 6, kind: output, shape index: {0}]
  %s7 = inlined_call_operand.vmem [shape: f32[16,16,32], index: 7, kind: output, shape index: {1}]
  %8 = xla_tuple %s6, %s7
  %s9 = sld [smem:[#allocation0]]
  $region133: #{bilstm_embedding_forward.1} parent=0
    _
  %s11 = ssub.s32 1, %s9
  %s12 = scalar_select 0, %s11, %s9
  $region1: #{bilstm_embedding_forward.1} parent=0
    #allocation3 [shape = 'u8[131072]{0}', space=vmem, size = 0x20000, scoped, tag = 'output window, operand 0']
    #allocation4 [shape = 'u8[131072]{0}', space=vmem, size = 0x20000, scoped, tag = 'output window, operand 1']
    loop: start=0, step=1, limit=4
    $region2: #{bilstm_embedding_forward.1} parent=1 // loop_pre_header
      _
    $region3: #{bilstm_embedding_forward.1} parent=1 // loop_header
      %s14 = sphi 0, %s18
      %p15 = scmp.ge.s32.totalorder %s14, 4
      %s24 = sphi 0, %s26
      %s27 = sphi 0, %s24
      %s28 = sphi 0, %s27
      %s44 = sphi 0, %s28
      %s50 = sphi 0, %s52
      %s53 = sphi 0, %s50
      %s54 = sphi 0, %s53
      %s70 = sphi 0, %s54
      %s74 = sphi 0, %s74
      %s76 = sphi 0, %s74
      %s77 = sphi 0, %s76
      %s91 = sphi 0, %s77
      %s95 = sphi 0, %s95
      %s97 = sphi 0, %s95
      %s98 = sphi 0, %s97
      %s112 = sphi 0, %s98
      %s116 = sphi 0, %s116
      %s118 = sphi 0, %s116
      %s119 = sphi 0, %s118
      %s133 = sphi 0, %s119
      %s137 = sphi 0, %s137
      %s139 = sphi 0, %s137
      %s140 = sphi 0, %s139
      %s154 = sphi 0, %s140
      %s160 = sphi 0, %s162
      %s163 = sphi 0, %s160
      %s164 = sphi 0, %s163
      %s180 = sphi 0, %s164
      %s186 = sphi 0, %s188
      %s189 = sphi 0, %s186
      %s190 = sphi 0, %s189
      %s206 = sphi 0, %s190
    $region4: #{bilstm_embedding_forward.1} parent=1 // loop_header_branch
      %17 = sbr.rel (%p15) target = $region8
    $region5: #{bilstm_embedding_forward.1} parent=1 // loop_body
      %s19 = ssub.s32 %s14, 1
      %s20 = ssub.s32 %s14, 2
      %s21 = sadd.s32 %s14, 1
      %s22 = ssub.s32 %s14, %s21
      %p23 = scmp.eq.s32.totalorder %s22, 0
      %s25 = sadd.s32 %s24, 1
      %s26 = scalar_select %p23, %s24, %s25
      %p29 = pneg %p23
      %p30 = scmp.eq.s32.totalorder %s14, 1
      %p31 = por %p29, %p30
      %p32 = scmp.ne.s32.totalorder %s24, %s27
      %p33 = scmp.eq.s32.totalorder %s14, 0
      %p34 = por %p32, %p33
      %p35 = scmp.ne.s32.totalorder %s24, %s27
      %p36 = scmp.eq.s32.totalorder %s19, 1
      %p37 = por %p35, %p36
      %p38 = scmp.ne.s32.totalorder %s27, %s28
      %p39 = scmp.eq.s32.totalorder %s19, 0
      %p40 = por %p38, %p39
      %p41 = scmp.ne.s32.totalorder %s27, %s28
      %p42 = scmp.eq.s32.totalorder %s20, 1
      %p43 = por %p41, %p42
      %p45 = scmp.ne.s32.totalorder %s28, %s44
      %p46 = scmp.eq.s32.totalorder %s20, 0
      %p47 = por %p45, %p46
      %s48 = ssub.s32 %s14, %s21
      %p49 = scmp.eq.s32.totalorder %s48, 0
      %s51 = sadd.s32 %s50, 1
      %s52 = scalar_select %p49, %s50, %s51
      %p55 = pneg %p49
      %p56 = scmp.eq.s32.totalorder %s14, 1
      %p57 = por %p55, %p56
      %p58 = scmp.ne.s32.totalorder %s50, %s53
      %p59 = scmp.eq.s32.totalorder %s14, 0
      %p60 = por %p58, %p59
      %p61 = scmp.ne.s32.totalorder %s50, %s53
      %p62 = scmp.eq.s32.totalorder %s19, 1
      %p63 = por %p61, %p62
      %p64 = scmp.ne.s32.totalorder %s53, %s54
      %p65 = scmp.eq.s32.totalorder %s19, 0
      %p66 = por %p64, %p65
      %p67 = scmp.ne.s32.totalorder %s53, %s54
      %p68 = scmp.eq.s32.totalorder %s20, 1
      %p69 = por %p67, %p68
      %p71 = scmp.ne.s32.totalorder %s54, %s70
      %p72 = scmp.eq.s32.totalorder %s20, 0
      %p73 = por %p71, %p72
      %s75 = sadd.s32 %s74, 1
      %p78 = scmp.eq.s32.totalorder %s14, 1
      %p79 = scmp.ne.s32.totalorder %s74, %s76
      %p80 = scmp.eq.s32.totalorder %s14, 0
      %p81 = por %p79, %p80
      %p82 = scmp.ne.s32.totalorder %s74, %s76
      %p83 = scmp.eq.s32.totalorder %s19, 1
      %p84 = por %p82, %p83
      %p85 = scmp.ne.s32.totalorder %s76, %s77
      %p86 = scmp.eq.s32.totalorder %s19, 0
      %p87 = por %p85, %p86
      %p88 = scmp.ne.s32.totalorder %s76, %s77
      %p89 = scmp.eq.s32.totalorder %s20, 1
      %p90 = por %p88, %p89
      %p92 = scmp.ne.s32.totalorder %s77, %s91
      %p93 = scmp.eq.s32.totalorder %s20, 0
      %p94 = por %p92, %p93
      %s96 = sadd.s32 %s95, 1
      %p99 = scmp.eq.s32.totalorder %s14, 1
      %p100 = scmp.ne.s32.totalorder %s95, %s97
      %p101 = scmp.eq.s32.totalorder %s14, 0
      %p102 = por %p100, %p101
      %p103 = scmp.ne.s32.totalorder %s95, %s97
      %p104 = scmp.eq.s32.totalorder %s19, 1
      %p105 = por %p103, %p104
      %p106 = scmp.ne.s32.totalorder %s97, %s98
      %p107 = scmp.eq.s32.totalorder %s19, 0
      %p108 = por %p106, %p107
      %p109 = scmp.ne.s32.totalorder %s97, %s98
      %p110 = scmp.eq.s32.totalorder %s20, 1
      %p111 = por %p109, %p110
      %p113 = scmp.ne.s32.totalorder %s98, %s112
      %p114 = scmp.eq.s32.totalorder %s20, 0
      %p115 = por %p113, %p114
      %s117 = sadd.s32 %s116, 1
      %p120 = scmp.eq.s32.totalorder %s14, 1
      %p121 = scmp.ne.s32.totalorder %s116, %s118
      %p122 = scmp.eq.s32.totalorder %s14, 0
      %p123 = por %p121, %p122
      %p124 = scmp.ne.s32.totalorder %s116, %s118
      %p125 = scmp.eq.s32.totalorder %s19, 1
      %p126 = por %p124, %p125
      %p127 = scmp.ne.s32.totalorder %s118, %s119
      %p128 = scmp.eq.s32.totalorder %s19, 0
      %p129 = por %p127, %p128
      %p130 = scmp.ne.s32.totalorder %s118, %s119
      %p131 = scmp.eq.s32.totalorder %s20, 1
      %p132 = por %p130, %p131
      %p134 = scmp.ne.s32.totalorder %s119, %s133
      %p135 = scmp.eq.s32.totalorder %s20, 0
      %p136 = por %p134, %p135
      %s138 = sadd.s32 %s137, 1
      %p141 = scmp.eq.s32.totalorder %s14, 1
      %p142 = scmp.ne.s32.totalorder %s137, %s139
      %p143 = scmp.eq.s32.totalorder %s14, 0
      %p144 = por %p142, %p143
      %p145 = scmp.ne.s32.totalorder %s137, %s139
      %p146 = scmp.eq.s32.totalorder %s19, 1
      %p147 = por %p145, %p146
      %p148 = scmp.ne.s32.totalorder %s139, %s140
      %p149 = scmp.eq.s32.totalorder %s19, 0
      %p150 = por %p148, %p149
      %p151 = scmp.ne.s32.totalorder %s139, %s140
      %p152 = scmp.eq.s32.totalorder %s20, 1
      %p153 = por %p151, %p152
      %p155 = scmp.ne.s32.totalorder %s140, %s154
      %p156 = scmp.eq.s32.totalorder %s20, 0
      %p157 = por %p155, %p156
      %s158 = ssub.s32 %s14, %s21
      %p159 = scmp.eq.s32.totalorder %s158, 0
      %s161 = sadd.s32 %s160, 1
      %s162 = scalar_select %p159, %s160, %s161
      %p165 = pneg %p159
      %p166 = scmp.eq.s32.totalorder %s14, 1
      %p167 = por %p165, %p166
      %p168 = scmp.ne.s32.totalorder %s160, %s163
      %p169 = scmp.eq.s32.totalorder %s14, 0
      %p170 = por %p168, %p169
      %p171 = scmp.ne.s32.totalorder %s160, %s163
      %p172 = scmp.eq.s32.totalorder %s19, 1
      %p173 = por %p171, %p172
      %p174 = scmp.ne.s32.totalorder %s163, %s164
      %p175 = scmp.eq.s32.totalorder %s19, 0
      %p176 = por %p174, %p175
      %p177 = scmp.ne.s32.totalorder %s163, %s164
      %p178 = scmp.eq.s32.totalorder %s20, 1
      %p179 = por %p177, %p178
      %p181 = scmp.ne.s32.totalorder %s164, %s180
      %p182 = scmp.eq.s32.totalorder %s20, 0
      %p183 = por %p181, %p182
      %s184 = ssub.s32 %s14, %s21
      %p185 = scmp.eq.s32.totalorder %s184, 0
      %s187 = sadd.s32 %s186, 1
      %s188 = scalar_select %p185, %s186, %s187
      %p191 = pneg %p185
      %p192 = scmp.eq.s32.totalorder %s14, 1
      %p193 = por %p191, %p192
      %p194 = scmp.ne.s32.totalorder %s186, %s189
      %p195 = scmp.eq.s32.totalorder %s14, 0
      %p196 = por %p194, %p195
      %p197 = scmp.ne.s32.totalorder %s186, %s189
      %p198 = scmp.eq.s32.totalorder %s19, 1
      %p199 = por %p197, %p198
      %p200 = scmp.ne.s32.totalorder %s189, %s190
      %p201 = scmp.eq.s32.totalorder %s19, 0
      %p202 = por %p200, %p201
      %p203 = scmp.ne.s32.totalorder %s189, %s190
      %p204 = scmp.eq.s32.totalorder %s20, 1
      %p205 = por %p203, %p204
      %p207 = scmp.ne.s32.totalorder %s190, %s206
      %p208 = scmp.eq.s32.totalorder %s20, 0
      %p209 = por %p207, %p208
      %p210 = scmp.le.s32.totalorder 1, %s14
      %p211 = scmp.lt.s32.totalorder %s14, 3
      %p212 = pnand %p210, %p211
      %p213 = pneg %p212
      // Predicated region
      $region9: #{bilstm_embedding_forward.1} parent=5 // pred_check
        _
      $region10: #{bilstm_embedding_forward.1} parent=5 // pred_check_branch
        %215 = sbr.rel (%p212) target = $region12
      $region11: #{bilstm_embedding_forward.1} parent=5 // pred_region
        %s216 = ssub.s32 %s14, 1
        // Predicated region
        $region13: #{bilstm_embedding_forward.1} parent=11 // pred_check
          %p217 = pneg %p87
        $region14: #{bilstm_embedding_forward.1} parent=11 // pred_check_branch
          %219 = sbr.rel (%p217) target = $region16
        $region15: #{bilstm_embedding_forward.1} parent=11 // pred_region
          _
        $region16: #{bilstm_embedding_forward.1} parent=11 // pred_fallthru
          _
        // Predicated region
        $region17: #{bilstm_embedding_forward.1} parent=11 // pred_check
          %p220 = pneg %p108
        $region18: #{bilstm_embedding_forward.1} parent=11 // pred_check_branch
          %222 = sbr.rel (%p220) target = $region20
        $region19: #{bilstm_embedding_forward.1} parent=11 // pred_region
          _
        $region20: #{bilstm_embedding_forward.1} parent=11 // pred_fallthru
          _
        // Predicated region
        $region21: #{bilstm_embedding_forward.1} parent=11 // pred_check
          %p223 = pneg %p129
        $region22: #{bilstm_embedding_forward.1} parent=11 // pred_check_branch
          %225 = sbr.rel (%p223) target = $region24
        $region23: #{bilstm_embedding_forward.1} parent=11 // pred_region
          _
        $region24: #{bilstm_embedding_forward.1} parent=11 // pred_fallthru
          _
        // Predicated region
        $region25: #{bilstm_embedding_forward.1} parent=11 // pred_check
          %p226 = pneg %p150
        $region26: #{bilstm_embedding_forward.1} parent=11 // pred_check_branch
          %228 = sbr.rel (%p226) target = $region28
        $region27: #{bilstm_embedding_forward.1} parent=11 // pred_region
          _
        $region28: #{bilstm_embedding_forward.1} parent=11 // pred_fallthru
          _
      $region12: #{bilstm_embedding_forward.1} parent=5 // pred_fallthru
        _
      %p229 = scmp.lt.s32.totalorder %s14, 2
      // Predicated region
      $region29: #{bilstm_embedding_forward.1} parent=5 // pred_check
        %p230 = pneg %p229
      $region30: #{bilstm_embedding_forward.1} parent=5 // pred_check_branch
        %232 = sbr.rel (%p230) target = $region32
      $region31: #{bilstm_embedding_forward.1} parent=5 // pred_region
        // Predicated region
        $region33: #{bilstm_embedding_forward.1} parent=31 // pred_check
          %p233 = pneg %p34
        $region34: #{bilstm_embedding_forward.1} parent=31 // pred_check_branch
          %235 = sbr.rel (%p233) target = $region36
        $region35: #{bilstm_embedding_forward.1} parent=31 // pred_region
          %p236 = scmp.lt.s32.totalorder %s14, 1
          %s237 = scalar_select %p236, %s14, 1
          %s238 = smul.addr %s237, 16
          %s239 = smul.addr %s238, 4
          %s240 = scalar_lea.vmem %s0, %s239
        $region36: #{bilstm_embedding_forward.1} parent=31 // pred_fallthru
          _
        // Predicated region
        $region37: #{bilstm_embedding_forward.1} parent=31 // pred_check
          %p241 = pneg %p60
        $region38: #{bilstm_embedding_forward.1} parent=31 // pred_check_branch
          %243 = sbr.rel (%p241) target = $region40
        $region39: #{bilstm_embedding_forward.1} parent=31 // pred_region
          %p244 = scmp.lt.s32.totalorder %s14, 1
          %s245 = scalar_select %p244, %s14, 1
          %s246 = smul.addr %s245, 8
          %s247 = scalar_lea.vmem %s1, %s246
        $region40: #{bilstm_embedding_forward.1} parent=31 // pred_fallthru
          _
      $region32: #{bilstm_embedding_forward.1} parent=5 // pred_fallthru
        _
      %p248 = scmp.le.s32.totalorder 1, %s14
      %p249 = scmp.lt.s32.totalorder %s14, 3
      %p250 = pnand %p248, %p249
      %p251 = pneg %p250
      // Predicated region
      $region41: #{bilstm_embedding_forward.1} parent=5 // pred_check
        _
      $region42: #{bilstm_embedding_forward.1} parent=5 // pred_check_branch
        %253 = sbr.rel (%p250) target = $region44
      $region43: #{bilstm_embedding_forward.1} parent=5 // pred_region
        %s254 = ssub.s32 %s14, 1
        %p255 = scmp.lt.s32.totalorder %s19, 1
        %s256 = scalar_select %p255, %s19, 1
        %s257 = smul.addr %s256, 16
        %s258 = smul.addr %s257, 4
        %s259 = scalar_lea.vmem %s0, %s258
        %p260 = pneg %p40
        %p261 = pneg %p37
        %p262 = scmp.lt.s32.totalorder %s19, 1
        %s263 = scalar_select %p262, %s19, 1
        %s264 = smul.addr %s263, 8
        %s265 = scalar_lea.vmem %s1, %s264
        %p266 = pneg %p66
        %p267 = pneg %p63
        %p268 = pneg %p87
        %p269 = pneg %p84
        %p270 = pneg %p108
        %p271 = pneg %p105
        %p272 = pneg %p129
        %p273 = pneg %p126
        %p274 = pneg %p150
        %p275 = pneg %p147
        %p276 = pneg %p176
        %p277 = pneg %p173
        %s278 = sand.u32 %s163, 1
        %s279 = sand.u32 %s163, 1
        %s280 = smul.addr %s279, 128
        %s281 = scalar_lea.vmem [#allocation3], %s280
        %p282 = pneg %p202
        %p283 = pneg %p199
        %s284 = sand.u32 %s189, 1
        %s285 = sand.u32 %s189, 1
        %s286 = smul.addr %s285, 128
        %s287 = scalar_lea.vmem [#allocation4], %s286
        %p288 = scmp.lt.s32.totalorder %s19, 1
        %s289 = scalar_select %p288, %s19, 1
        %s290 = smul.addr %s289, 16
        %s291 = smul.addr %s290, 4
        %s292 = scalar_lea.vmem %s0, %s291
        %p293 = scmp.lt.s32.totalorder %s19, 1
        %s294 = scalar_select %p293, %s19, 1
        %s295 = smul.addr %s294, 8
        %s296 = scalar_lea.vmem %s1, %s295
        %v298 = vld [vmem:[%s292] sm:$0xf]
        %v299 = vld [vmem:[%s292 + $0x4] sm:$0xf]
        %v300 = vld [vmem:[%s292 + $0x8] sm:$0xf]
        %v301 = vld [vmem:[%s292 + $0xc] sm:$0xf]
        %v302 = vld [vmem:[%s292 + $0x10] sm:$0xf]
        %v303 = vld [vmem:[%s292 + $0x14] sm:$0xf]
        %v304 = vld [vmem:[%s292 + $0x18] sm:$0xf]
        %v305 = vld [vmem:[%s292 + $0x1c] sm:$0xf]
        %v306 = vld [vmem:[%s292 + $0x20] sm:$0xf]
        %v307 = vld [vmem:[%s292 + $0x24] sm:$0xf]
        %v308 = vld [vmem:[%s292 + $0x28] sm:$0xf]
        %v309 = vld [vmem:[%s292 + $0x2c] sm:$0xf]
        %v310 = vld [vmem:[%s292 + $0x30] sm:$0xf]
        %v311 = vld [vmem:[%s292 + $0x34] sm:$0xf]
        %v312 = vld [vmem:[%s292 + $0x38] sm:$0xf]
        %v313 = vld [vmem:[%s292 + $0x3c] sm:$0xf]
        %v314 = vld [vmem:[%s2] sm:$0xff]
        %v315 = vld [vmem:[%s2 + $0x8] sm:$0xff]
        %v316 = vld [vmem:[%s2 + $0x10] sm:$0xff]
        %v317 = vld [vmem:[%s2 + $0x18] sm:$0xff]
        %v318 = vld [vmem:[%s3] sm:$0x3]
        %v320 = vperm.slane %v318, 0
        %v321 = vperm.slane %v318, 1
        %v340 = vunpack.c.l.b16 %v298
        %v341 = vunpack.c.l.b16 %v299
        %v342 = vunpack.c.l.b16 %v300
        %v343 = vunpack.c.l.b16 %v301
        %v344 = vunpack.c.l.b16 %v302
        %v345 = vunpack.c.l.b16 %v303
        %v346 = vunpack.c.l.b16 %v304
        %v347 = vunpack.c.l.b16 %v305
        %v348 = vunpack.c.l.b16 %v306
        %v349 = vunpack.c.l.b16 %v307
        %v350 = vunpack.c.l.b16 %v308
        %v351 = vunpack.c.l.b16 %v309
        %v352 = vunpack.c.l.b16 %v310
        %v353 = vunpack.c.l.b16 %v311
        %v354 = vunpack.c.l.b16 %v312
        %v355 = vunpack.c.l.b16 %v313
        %v356 = vpack.c.b16 %v341, %v340
        %v357 = vpack.c.b16 %v343, %v342
        %v358 = vpack.c.b16 %v345, %v344
        %v359 = vpack.c.b16 %v347, %v346
        %v360 = vpack.c.b16 %v349, %v348
        %v361 = vpack.c.b16 %v351, %v350
        %v362 = vpack.c.b16 %v353, %v352
        %v363 = vpack.c.b16 %v355, %v354
        %v368 = vunpack.c.l.b16 %v314
        %v369 = vunpack.c.h.b16 %v314
        %v370 = vunpack.c.l.b16 %v315
        %v371 = vunpack.c.h.b16 %v315
        %v372 = vunpack.c.l.b16 %v316
        %v373 = vunpack.c.h.b16 %v316
        %v374 = vunpack.c.l.b16 %v317
        %v375 = vunpack.c.h.b16 %v317
        %v376 = vpack.c.b16 %v370, %v368
        %v377 = vpack.c.b16 %v371, %v369
        %v378 = vpack.c.b16 %v374, %v372
        %v379 = vpack.c.b16 %v375, %v373
        %vm384 = vcmask 261120
        %v386 = vsel %vm384, %v356, 0
        %v389 = vsel %vm384, %v357, 0
        %v392 = vsel %vm384, %v358, 0
        %v395 = vsel %vm384, %v359, 0
        %v398 = vsel %vm384, %v360, 0
        %v401 = vsel %vm384, %v361, 0
        %v404 = vsel %vm384, %v362, 0
        %v407 = vsel %vm384, %v363, 0
        %409 = vmatpush.bf16.msra.mxu0 0
        %410 = vmatpush.bf16.msra.mxu0 0
        %411 = vmatpush.bf16.msra.mxu0 0
        %412 = vmatpush.bf16.msra.mxu0 0
        %413 = vmatpush.bf16.msra.mxu0 0
        %414 = vmatpush.bf16.msra.mxu0 0
        %415 = vmatpush.bf16.msra.mxu0 %v378
        %416 = vmatpush.bf16.msra.mxu0 %v376
        %417 = vmatmul.bf16.gmra.mxu0 %v386
        %v418 = vpop.f32.mrf.mxu0
        %v419 = vadd.f32 %v320, %v418
        %v420 = vpop.f32.mrf.mxu0
        %v421 = vadd.f32 %v320, %v420
        %422 = vmatmul.bf16.gmra.mxu0 %v389
        %v423 = vpop.f32.mrf.mxu0
        %v424 = vadd.f32 %v320, %v423
        %v425 = vpop.f32.mrf.mxu0
        %v426 = vadd.f32 %v320, %v425
        %427 = vmatmul.bf16.gmra.mxu0 %v392
        %v428 = vpop.f32.mrf.mxu0
        %v429 = vadd.f32 %v320, %v428
        %v430 = vpop.f32.mrf.mxu0
        %v431 = vadd.f32 %v320, %v430
        %432 = vmatmul.bf16.gmra.mxu0 %v395
        %v433 = vpop.f32.mrf.mxu0
        %v434 = vadd.f32 %v320, %v433
        %v435 = vpop.f32.mrf.mxu0
        %v436 = vadd.f32 %v320, %v435
        %437 = vmatmul.bf16.gmra.mxu0 %v398
        %v438 = vpop.f32.mrf.mxu0
        %v439 = vadd.f32 %v320, %v438
        %v440 = vpop.f32.mrf.mxu0
        %v441 = vadd.f32 %v320, %v440
        %442 = vmatmul.bf16.gmra.mxu0 %v401
        %v443 = vpop.f32.mrf.mxu0
        %v444 = vadd.f32 %v320, %v443
        %v445 = vpop.f32.mrf.mxu0
        %v446 = vadd.f32 %v320, %v445
        %447 = vmatmul.bf16.gmra.mxu0 %v404
        %v448 = vpop.f32.mrf.mxu0
        %v449 = vadd.f32 %v320, %v448
        %v450 = vpop.f32.mrf.mxu0
        %v451 = vadd.f32 %v320, %v450
        %452 = vmatmul.bf16.gmra.mxu0 %v407
        %v453 = vpop.f32.mrf.mxu0
        %v454 = vadd.f32 %v320, %v453
        %v455 = vpop.f32.mrf.mxu0
        %v456 = vadd.f32 %v320, %v455
        %457 = vdwg.mxu0
        %458 = vmatpush.bf16.msra.mxu0 0
        %459 = vmatpush.bf16.msra.mxu0 0
        %460 = vmatpush.bf16.msra.mxu0 0
        %461 = vmatpush.bf16.msra.mxu0 0
        %462 = vmatpush.bf16.msra.mxu0 0
        %463 = vmatpush.bf16.msra.mxu0 0
        %464 = vmatpush.bf16.msra.mxu0 %v379
        %465 = vmatpush.bf16.msra.mxu0 %v377
        %466 = vmatmul.bf16.gmra.mxu0 %v386
        %v467 = vpop.f32.mrf.mxu0
        %v468 = vadd.f32 %v321, %v467
        %v469 = vpop.f32.mrf.mxu0
        %v470 = vadd.f32 %v321, %v469
        %471 = vmatmul.bf16.gmra.mxu0 %v389
        %v472 = vpop.f32.mrf.mxu0
        %v473 = vadd.f32 %v321, %v472
        %v474 = vpop.f32.mrf.mxu0
        %v475 = vadd.f32 %v321, %v474
        %476 = vmatmul.bf16.gmra.mxu0 %v392
        %v477 = vpop.f32.mrf.mxu0
        %v478 = vadd.f32 %v321, %v477
        %v479 = vpop.f32.mrf.mxu0
        %v480 = vadd.f32 %v321, %v479
        %481 = vmatmul.bf16.gmra.mxu0 %v395
        %v482 = vpop.f32.mrf.mxu0
        %v483 = vadd.f32 %v321, %v482
        %v484 = vpop.f32.mrf.mxu0
        %v485 = vadd.f32 %v321, %v484
        %486 = vmatmul.bf16.gmra.mxu0 %v398
        %v487 = vpop.f32.mrf.mxu0
        %v488 = vadd.f32 %v321, %v487
        %v489 = vpop.f32.mrf.mxu0
        %v490 = vadd.f32 %v321, %v489
        %491 = vmatmul.bf16.gmra.mxu0 %v401
        %v492 = vpop.f32.mrf.mxu0
        %v493 = vadd.f32 %v321, %v492
        %v494 = vpop.f32.mrf.mxu0
        %v495 = vadd.f32 %v321, %v494
        %496 = vmatmul.bf16.gmra.mxu0 %v404
        %v497 = vpop.f32.mrf.mxu0
        %v498 = vadd.f32 %v321, %v497
        %v499 = vpop.f32.mrf.mxu0
        %v500 = vadd.f32 %v321, %v499
        %501 = vmatmul.bf16.gmra.mxu0 %v407
        %v502 = vpop.f32.mrf.mxu0
        %v503 = vadd.f32 %v321, %v502
        %v504 = vpop.f32.mrf.mxu0
        %v505 = vadd.f32 %v321, %v504
        %506 = vdwg.mxu0
        %507 = vst [vmem:[#allocation2] sm:$0xff] %v419
        %508 = vst [vmem:[#allocation2 + $0x8] sm:$0xff] %v468
        %509 = vst [vmem:[#allocation2 + $0x10] sm:$0xff] %v421
        %510 = vst [vmem:[#allocation2 + $0x18] sm:$0xff] %v470
        %511 = vst [vmem:[#allocation2 + $0x20] sm:$0xff] %v424
        %512 = vst [vmem:[#allocation2 + $0x28] sm:$0xff] %v473
        %513 = vst [vmem:[#allocation2 + $0x30] sm:$0xff] %v426
        %514 = vst [vmem:[#allocation2 + $0x38] sm:$0xff] %v475
        %515 = vst [vmem:[#allocation2 + $0x40] sm:$0xff] %v429
        %516 = vst [vmem:[#allocation2 + $0x48] sm:$0xff] %v478
        %517 = vst [vmem:[#allocation2 + $0x50] sm:$0xff] %v431
        %518 = vst [vmem:[#allocation2 + $0x58] sm:$0xff] %v480
        %519 = vst [vmem:[#allocation2 + $0x60] sm:$0xff] %v434
        %520 = vst [vmem:[#allocation2 + $0x68] sm:$0xff] %v483
        %521 = vst [vmem:[#allocation2 + $0x70] sm:$0xff] %v436
        %522 = vst [vmem:[#allocation2 + $0x78] sm:$0xff] %v485
        %523 = vst [vmem:[#allocation2 + $0x80] sm:$0xff] %v439
        %524 = vst [vmem:[#allocation2 + $0x88] sm:$0xff] %v488
        %525 = vst [vmem:[#allocation2 + $0x90] sm:$0xff] %v441
        %526 = vst [vmem:[#allocation2 + $0x98] sm:$0xff] %v490
        %527 = vst [vmem:[#allocation2 + $0xa0] sm:$0xff] %v444
        %528 = vst [vmem:[#allocation2 + $0xa8] sm:$0xff] %v493
        %529 = vst [vmem:[#allocation2 + $0xb0] sm:$0xff] %v446
        %530 = vst [vmem:[#allocation2 + $0xb8] sm:$0xff] %v495
        %531 = vst [vmem:[#allocation2 + $0xc0] sm:$0xff] %v449
        %532 = vst [vmem:[#allocation2 + $0xc8] sm:$0xff] %v498
        %533 = vst [vmem:[#allocation2 + $0xd0] sm:$0xff] %v451
        %534 = vst [vmem:[#allocation2 + $0xd8] sm:$0xff] %v500
        %535 = vst [vmem:[#allocation2 + $0xe0] sm:$0xff] %v454
        %536 = vst [vmem:[#allocation2 + $0xe8] sm:$0xff] %v503
        %537 = vst [vmem:[#allocation2 + $0xf0] sm:$0xff] %v456
        %538 = vst [vmem:[#allocation2 + $0xf8] sm:$0xff] %v505
        %v539 = vld [vmem:[%s296] sm:$0xff]
        %v540 = vld [vmem:[%s4] sm:$0xff]
        %v541 = vld [vmem:[%s4 + $0x8] sm:$0xff]
        %v542 = vld [vmem:[%s4 + $0x10] sm:$0xff]
        %v543 = vld [vmem:[%s4 + $0x18] sm:$0xff]
        %v544 = vld [vmem:[%s5] sm:$0xff]
        %v545 = vld [vmem:[%s5 + $0x8] sm:$0xff]
        %v546 = vld [vmem:[%s5 + $0x10] sm:$0xff]
        %v547 = vld [vmem:[%s5 + $0x18] sm:$0xff]
        %vm548 = vcmp.gt.f32.partialorder %v539, 0.0
        %v549 = vsel %vm548, 1, 0
        %v550 = vcvt.s32.f32 %v549
        %vm551 = vcmp.gt.f32.partialorder %v539, 15.0
        %v552 = vsel %vm551, 1, 0
        %v553 = vcvt.s32.f32 %v552
        %v554 = vld [vmem:[#allocation2] sm:$0xff]
        %v555 = vld [vmem:[#allocation2 + $0xf8] sm:$0xff]
        %v557 = vsel %vm384, 0.0, 0
        %559 = vmatpush.msra.mxu0 0.0
        %560 = vmatpush.msra.mxu0 0.0
        %561 = vmatpush.msra.mxu0 0.0
        %562 = vmatpush.msra.mxu0 0.0
        %563 = vmatpush.msra.mxu0 0.0
        %564 = vmatpush.msra.mxu0 0.0
        %565 = vmatpush.msra.mxu0 0.0
        %566 = vmatpush.msra.mxu0 0.0
        %567 = vmatpush.msra.mxu0 0.0
        %568 = vmatpush.msra.mxu0 0.0
        %569 = vmatpush.msra.mxu0 0.0
        %570 = vmatpush.msra.mxu0 0.0
        %571 = vmatpush.msra.mxu0 %v543
        %572 = vmatpush.msra.mxu0 %v542
        %573 = vmatpush.msra.mxu0 %v541
        %574 = vmatpush.msra.mxu0 %v540
        %575 = vmatmul.f32.gmra.mxu0 %v557
        %v576 = vpop.f32.mrf.mxu0
        %v577 = vadd.f32 0.0, %v576
        %578 = vdwg.mxu0
        %v579 = vadd.f32 %v554, %v577
        %v580 = vsub.f32 0.0, %v579
        %v581 = vmul.f32 %v580, 1.442695
        %v582 = vpow.pop %v581
        %v583 = vadd.f32 %v582, 1.0
        %v584 = vrcp.pop %v583
        %v585 = vmul.f32 %v583, %v584
        %v586 = vsub.f32 1.0, %v585
        %v587 = vmul.f32 %v584, %v586
        %v588 = vadd.f32 %v584, %v587
        %vm589 = vweird.f32 %v583
        %vm590 = vweird.f32 %v584
        %vm591 = vmor %vm589, %vm590
        %v592 = vsel %vm591, %v584, %v588
        %v593 = vand.u32 2147483647, %v583
        %vm594 = vcmp.eq.f32.partialorder %v593, 8.507059e+37
        %v595 = vand.u32 %v583, 2147483648
        %v596 = vor.u32 1.1754944e-38, %v595
        %v597 = vsel %vm594, %v596, %v592
        %v598 = vmul.f32 1.0, %v597
        %v599 = vtanh.pop %v579
        %v600 = vmul.f32 %v598, 0.0
        %602 = vrot.lane.b32.xlu0 %v599, 64
        %v603 = vpop.permute.xlu0 %602
        %v605 = vmul.f32 %v598, %v603
        %607 = vrot.lane.b32.xlu0 %v605, 32
        %v608 = vpop.permute.xlu0 %607
        %v610 = vadd.f32 %v600, %v608
        %v611 = vtanh.pop %v610
        %613 = vrot.lane.b32.xlu0 %v611, 64
        %v614 = vpop.permute.xlu0 %613
        %v616 = vmul.f32 %v598, %v614
        %618 = vset.pattern.permute.xlu0 0
        %619 = vperm.xlu0 %618, %v550
        %v620 = vpop.permute.xlu0 %619
        %v622 = vmul.f32 %v620, %v610
        %v623 = vsub.f32 1.0, %v550
        %625 = vset.pattern.permute.xlu0 0
        %626 = vperm.xlu0 %625, %v623
        %v627 = vpop.permute.xlu0 %626
        %v629 = vmul.f32 %v627, 0.0
        %v630 = vadd.f32 %v622, %v629
        %v631 = vmul.f32 %v620, %v616
        %v632 = vadd.f32 %v631, %v629
        %633 = vmatpush.msra.mxu0 0.0
        %634 = vmatpush.msra.mxu0 0.0
        %635 = vmatpush.msra.mxu0 0.0
        %636 = vmatpush.msra.mxu0 0.0
        %637 = vmatpush.msra.mxu0 0.0
        %638 = vmatpush.msra.mxu0 0.0
        %639 = vmatpush.msra.mxu0 0.0
        %640 = vmatpush.msra.mxu0 0.0
        %641 = vmatpush.msra.mxu0 0.0
        %642 = vmatpush.msra.mxu0 0.0
        %643 = vmatpush.msra.mxu0 0.0
        %644 = vmatpush.msra.mxu0 0.0
        %645 = vmatpush.msra.mxu0 %v547
        %646 = vmatpush.msra.mxu0 %v546
        %647 = vmatpush.msra.mxu0 %v545
        %648 = vmatpush.msra.mxu0 %v544
        %649 = vmatmul.f32.gmra.mxu0 %v557
        %v650 = vpop.f32.mrf.mxu0
        %v651 = vadd.f32 0.0, %v650
        %652 = vdwg.mxu0
        %v653 = vadd.f32 %v555, %v651
        %v654 = vsub.f32 0.0, %v653
        %v655 = vmul.f32 %v654, 1.442695
        %v656 = vpow.pop %v655
        %v657 = vadd.f32 %v656, 1.0
        %v658 = vrcp.pop %v657
        %v659 = vmul.f32 %v657, %v658
        %v660 = vsub.f32 1.0, %v659
        %v661 = vmul.f32 %v658, %v660
        %v662 = vadd.f32 %v658, %v661
        %vm663 = vweird.f32 %v657
        %vm664 = vweird.f32 %v658
        %vm665 = vmor %vm663, %vm664
        %v666 = vsel %vm665, %v658, %v662
        %v667 = vand.u32 2147483647, %v657
        %vm668 = vcmp.eq.f32.partialorder %v667, 8.507059e+37
        %v669 = vand.u32 %v657, 2147483648
        %v670 = vor.u32 1.1754944e-38, %v669
        %v671 = vsel %vm668, %v670, %v666
        %v672 = vmul.f32 1.0, %v671
        %v673 = vtanh.pop %v653
        %v674 = vmul.f32 %v672, 0.0
        %676 = vrot.lane.b32.xlu0 %v673, 64
        %v677 = vpop.permute.xlu0 %676
        %v679 = vmul.f32 %v672, %v677
        %681 = vrot.lane.b32.xlu0 %v679, 32
        %v682 = vpop.permute.xlu0 %681
        %v684 = vadd.f32 %v674, %v682
        %v685 = vtanh.pop %v684
        %687 = vrot.lane.b32.xlu0 %v685, 64
        %v688 = vpop.permute.xlu0 %687
        %v690 = vmul.f32 %v672, %v688
        %692 = vset.pattern.permute.xlu0 0
        %693 = vperm.xlu0 %692, %v553
        %v694 = vpop.permute.xlu0 %693
        %v696 = vmul.f32 %v694, %v684
        %v697 = vsub.f32 1.0, %v553
        %699 = vset.pattern.permute.xlu0 0
        %700 = vperm.xlu0 %699, %v697
        %v701 = vpop.permute.xlu0 %700
        %v703 = vmul.f32 %v701, 0.0
        %v704 = vadd.f32 %v696, %v703
        %v705 = vmul.f32 %v694, %v690
        %v706 = vadd.f32 %v705, %v703
        %708 = vrot.lane.b32.xlu0 %v631, 32
        %v709 = vpop.permute.xlu0 %708
        %711 = vst.msk [vmem:[%s281] sm:$0xff] %vm384, %v709
        %713 = vrot.lane.b32.xlu0 %v705, 32
        %v714 = vpop.permute.xlu0 %713
        %s716 = scalar_lea.vmem %s287, 120 [#allocation4]
        %717 = vst.msk [vmem:[%s716] sm:$0xff] %vm384, %v714
        %vm718 = vcmp.gt.f32.partialorder %v539, 1.0
        %v719 = vsel %vm718, 1, 0
        %v720 = vcvt.s32.f32 %v719
        %vm721 = vcmp.gt.f32.partialorder %v539, 14.0
        %v722 = vsel %vm721, 1, 0
        %v723 = vcvt.s32.f32 %v722
        %v724 = vld [vmem:[#allocation2 + $0x10] sm:$0xff]
        %v725 = vld [vmem:[#allocation2 + $0xe8] sm:$0xff]
        %727 = vrot.lane.b32.xlu0 %v632, 32
        %v728 = vpop.permute.xlu0 %727
        %v729 = vsel %vm384, %v728, 0
        %731 = vmatpush.msra.mxu0 0.0
        %732 = vmatpush.msra.mxu0 0.0
        %733 = vmatpush.msra.mxu0 0.0
        %734 = vmatpush.msra.mxu0 0.0
        %735 = vmatpush.msra.mxu0 0.0
        %736 = vmatpush.msra.mxu0 0.0
        %737 = vmatpush.msra.mxu0 0.0
        %738 = vmatpush.msra.mxu0 0.0
        %739 = vmatpush.msra.mxu0 0.0
        %740 = vmatpush.msra.mxu0 0.0
        %741 = vmatpush.msra.mxu0 0.0
        %742 = vmatpush.msra.mxu0 0.0
        %743 = vmatpush.msra.mxu0 %v543
        %744 = vmatpush.msra.mxu0 %v542
        %745 = vmatpush.msra.mxu0 %v541
        %746 = vmatpush.msra.mxu0 %v540
        %747 = vmatmul.f32.gmra.mxu0 %v729
        %v748 = vpop.f32.mrf.mxu0
        %v749 = vadd.f32 0.0, %v748
        %750 = vdwg.mxu0
        %v751 = vadd.f32 %v724, %v749
        %v752 = vsub.f32 0.0, %v751
        %v753 = vmul.f32 %v752, 1.442695
        %v754 = vpow.pop %v753
        %v755 = vadd.f32 %v754, 1.0
        %v756 = vrcp.pop %v755
        %v757 = vmul.f32 %v755, %v756
        %v758 = vsub.f32 1.0, %v757
        %v759 = vmul.f32 %v756, %v758
        %v760 = vadd.f32 %v756, %v759
        %vm761 = vweird.f32 %v755
        %vm762 = vweird.f32 %v756
        %vm763 = vmor %vm761, %vm762
        %v764 = vsel %vm763, %v756, %v760
        %v765 = vand.u32 2147483647, %v755
        %vm766 = vcmp.eq.f32.partialorder %v765, 8.507059e+37
        %v767 = vand.u32 %v755, 2147483648
        %v768 = vor.u32 1.1754944e-38, %v767
        %v769 = vsel %vm766, %v768, %v764
        %v770 = vmul.f32 1.0, %v769
        %v771 = vtanh.pop %v751
        %v772 = vmul.f32 %v770, %v630
        %774 = vrot.lane.b32.xlu0 %v771, 64
        %v775 = vpop.permute.xlu0 %774
        %v777 = vmul.f32 %v770, %v775
        %779 = vrot.lane.b32.xlu0 %v777, 32
        %v780 = vpop.permute.xlu0 %779
        %v782 = vadd.f32 %v772, %v780
        %v783 = vtanh.pop %v782
        %785 = vrot.lane.b32.xlu0 %v783, 64
        %v786 = vpop.permute.xlu0 %785
        %v788 = vmul.f32 %v770, %v786
        %790 = vset.pattern.permute.xlu0 0
        %791 = vperm.xlu0 %790, %v720
        %v792 = vpop.permute.xlu0 %791
        %v794 = vmul.f32 %v792, %v782
        %v795 = vsub.f32 1.0, %v720
        %797 = vset.pattern.permute.xlu0 0
        %798 = vperm.xlu0 %797, %v795
        %v799 = vpop.permute.xlu0 %798
        %v801 = vmul.f32 %v799, %v630
        %v802 = vadd.f32 %v794, %v801
        %v803 = vmul.f32 %v792, %v788
        %v804 = vmul.f32 %v799, %v632
        %v805 = vadd.f32 %v803, %v804
        %807 = vrot.lane.b32.xlu0 %v706, 32
        %v808 = vpop.permute.xlu0 %807
        %v809 = vsel %vm384, %v808, 0
        %811 = vmatpush.msra.mxu0 0.0
        %812 = vmatpush.msra.mxu0 0.0
        %813 = vmatpush.msra.mxu0 0.0
        %814 = vmatpush.msra.mxu0 0.0
        %815 = vmatpush.msra.mxu0 0.0
        %816 = vmatpush.msra.mxu0 0.0
        %817 = vmatpush.msra.mxu0 0.0
        %818 = vmatpush.msra.mxu0 0.0
        %819 = vmatpush.msra.mxu0 0.0
        %820 = vmatpush.msra.mxu0 0.0
        %821 = vmatpush.msra.mxu0 0.0
        %822 = vmatpush.msra.mxu0 0.0
        %823 = vmatpush.msra.mxu0 %v547
        %824 = vmatpush.msra.mxu0 %v546
        %825 = vmatpush.msra.mxu0 %v545
        %826 = vmatpush.msra.mxu0 %v544
        %827 = vmatmul.f32.gmra.mxu0 %v809
        %v828 = vpop.f32.mrf.mxu0
        %v829 = vadd.f32 0.0, %v828
        %830 = vdwg.mxu0
        %v831 = vadd.f32 %v725, %v829
        %v832 = vsub.f32 0.0, %v831
        %v833 = vmul.f32 %v832, 1.442695
        %v834 = vpow.pop %v833
        %v835 = vadd.f32 %v834, 1.0
        %v836 = vrcp.pop %v835
        %v837 = vmul.f32 %v835, %v836
        %v838 = vsub.f32 1.0, %v837
        %v839 = vmul.f32 %v836, %v838
        %v840 = vadd.f32 %v836, %v839
        %vm841 = vweird.f32 %v835
        %vm842 = vweird.f32 %v836
        %vm843 = vmor %vm841, %vm842
        %v844 = vsel %vm843, %v836, %v840
        %v845 = vand.u32 2147483647, %v835
        %vm846 = vcmp.eq.f32.partialorder %v845, 8.507059e+37
        %v847 = vand.u32 %v835, 2147483648
        %v848 = vor.u32 1.1754944e-38, %v847
        %v849 = vsel %vm846, %v848, %v844
        %v850 = vmul.f32 1.0, %v849
        %v851 = vtanh.pop %v831
        %v852 = vmul.f32 %v850, %v704
        %854 = vrot.lane.b32.xlu0 %v851, 64
        %v855 = vpop.permute.xlu0 %854
        %v857 = vmul.f32 %v850, %v855
        %859 = vrot.lane.b32.xlu0 %v857, 32
        %v860 = vpop.permute.xlu0 %859
        %v862 = vadd.f32 %v852, %v860
        %v863 = vtanh.pop %v862
        %865 = vrot.lane.b32.xlu0 %v863, 64
        %v866 = vpop.permute.xlu0 %865
        %v868 = vmul.f32 %v850, %v866
        %870 = vset.pattern.permute.xlu0 0
        %871 = vperm.xlu0 %870, %v723
        %v872 = vpop.permute.xlu0 %871
        %v874 = vmul.f32 %v872, %v862
        %v875 = vsub.f32 1.0, %v723
        %877 = vset.pattern.permute.xlu0 0
        %878 = vperm.xlu0 %877, %v875
        %v879 = vpop.permute.xlu0 %878
        %v881 = vmul.f32 %v879, %v704
        %v882 = vadd.f32 %v874, %v881
        %v883 = vmul.f32 %v872, %v868
        %v884 = vmul.f32 %v879, %v706
        %v885 = vadd.f32 %v883, %v884
        %887 = vrot.lane.b32.xlu0 %v803, 32
        %v888 = vpop.permute.xlu0 %887
        %s890 = scalar_lea.vmem %s281, 8 [#allocation3]
        %891 = vst.msk [vmem:[%s890] sm:$0xff] %vm384, %v888
        %893 = vrot.lane.b32.xlu0 %v883, 32
        %v894 = vpop.permute.xlu0 %893
        %s896 = scalar_lea.vmem %s287, 112 [#allocation4]
        %897 = vst.msk [vmem:[%s896] sm:$0xff] %vm384, %v894
        %vm898 = vcmp.gt.f32.partialorder %v539, 2.0
        %v899 = vsel %vm898, 1, 0
        %v900 = vcvt.s32.f32 %v899
        %vm901 = vcmp.gt.f32.partialorder %v539, 13.0
        %v902 = vsel %vm901, 1, 0
        %v903 = vcvt.s32.f32 %v902
        %v904 = vld [vmem:[#allocation2 + $0x20] sm:$0xff]
        %v905 = vld [vmem:[#allocation2 + $0xd8] sm:$0xff]
        %907 = vrot.lane.b32.xlu0 %v805, 32
        %v908 = vpop.permute.xlu0 %907
        %v909 = vsel %vm384, %v908, 0
        %911 = vmatpush.msra.mxu0 0.0
        %912 = vmatpush.msra.mxu0 0.0
        %913 = vmatpush.msra.mxu0 0.0
        %914 = vmatpush.msra.mxu0 0.0
        %915 = vmatpush.msra.mxu0 0.0
        %916 = vmatpush.msra.mxu0 0.0
        %917 = vmatpush.msra.mxu0 0.0
        %918 = vmatpush.msra.mxu0 0.0
        %919 = vmatpush.msra.mxu0 0.0
        %920 = vmatpush.msra.mxu0 0.0
        %921 = vmatpush.msra.mxu0 0.0
        %922 = vmatpush.msra.mxu0 0.0
        %923 = vmatpush.msra.mxu0 %v543
        %924 = vmatpush.msra.mxu0 %v542
        %925 = vmatpush.msra.mxu0 %v541
        %926 = vmatpush.msra.mxu0 %v540
        %927 = vmatmul.f32.gmra.mxu0 %v909
        %v928 = vpop.f32.mrf.mxu0
        %v929 = vadd.f32 0.0, %v928
        %930 = vdwg.mxu0
        %v931 = vadd.f32 %v904, %v929
        %v932 = vsub.f32 0.0, %v931
        %v933 = vmul.f32 %v932, 1.442695
        %v934 = vpow.pop %v933
        %v935 = vadd.f32 %v934, 1.0
        %v936 = vrcp.pop %v935
        %v937 = vmul.f32 %v935, %v936
        %v938 = vsub.f32 1.0, %v937
        %v939 = vmul.f32 %v936, %v938
        %v940 = vadd.f32 %v936, %v939
        %vm941 = vweird.f32 %v935
        %vm942 = vweird.f32 %v936
        %vm943 = vmor %vm941, %vm942
        %v944 = vsel %vm943, %v936, %v940
        %v945 = vand.u32 2147483647, %v935
        %vm946 = vcmp.eq.f32.partialorder %v945, 8.507059e+37
        %v947 = vand.u32 %v935, 2147483648
        %v948 = vor.u32 1.1754944e-38, %v947
        %v949 = vsel %vm946, %v948, %v944
        %v950 = vmul.f32 1.0, %v949
        %v951 = vtanh.pop %v931
        %v952 = vmul.f32 %v950, %v802
        %954 = vrot.lane.b32.xlu0 %v951, 64
        %v955 = vpop.permute.xlu0 %954
        %v957 = vmul.f32 %v950, %v955
        %959 = vrot.lane.b32.xlu0 %v957, 32
        %v960 = vpop.permute.xlu0 %959
        %v962 = vadd.f32 %v952, %v960
        %v963 = vtanh.pop %v962
        %965 = vrot.lane.b32.xlu0 %v963, 64
        %v966 = vpop.permute.xlu0 %965
        %v968 = vmul.f32 %v950, %v966
        %970 = vset.pattern.permute.xlu0 0
        %971 = vperm.xlu0 %970, %v900
        %v972 = vpop.permute.xlu0 %971
        %v974 = vmul.f32 %v972, %v962
        %v975 = vsub.f32 1.0, %v900
        %977 = vset.pattern.permute.xlu0 0
        %978 = vperm.xlu0 %977, %v975
        %v979 = vpop.permute.xlu0 %978
        %v981 = vmul.f32 %v979, %v802
        %v982 = vadd.f32 %v974, %v981
        %v983 = vmul.f32 %v972, %v968
        %v984 = vmul.f32 %v979, %v805
        %v985 = vadd.f32 %v983, %v984
        %987 = vrot.lane.b32.xlu0 %v885, 32
        %v988 = vpop.permute.xlu0 %987
        %v989 = vsel %vm384, %v988, 0
        %991 = vmatpush.msra.mxu0 0.0
        %992 = vmatpush.msra.mxu0 0.0
        %993 = vmatpush.msra.mxu0 0.0
        %994 = vmatpush.msra.mxu0 0.0
        %995 = vmatpush.msra.mxu0 0.0
        %996 = vmatpush.msra.mxu0 0.0
        %997 = vmatpush.msra.mxu0 0.0
        %998 = vmatpush.msra.mxu0 0.0
        %999 = vmatpush.msra.mxu0 0.0
        %1000 = vmatpush.msra.mxu0 0.0
        %1001 = vmatpush.msra.mxu0 0.0
        %1002 = vmatpush.msra.mxu0 0.0
        %1003 = vmatpush.msra.mxu0 %v547
        %1004 = vmatpush.msra.mxu0 %v546
        %1005 = vmatpush.msra.mxu0 %v545
        %1006 = vmatpush.msra.mxu0 %v544
        %1007 = vmatmul.f32.gmra.mxu0 %v989
        %v1008 = vpop.f32.mrf.mxu0
        %v1009 = vadd.f32 0.0, %v1008
        %1010 = vdwg.mxu0
        %v1011 = vadd.f32 %v905, %v1009
        %v1012 = vsub.f32 0.0, %v1011
        %v1013 = vmul.f32 %v1012, 1.442695
        %v1014 = vpow.pop %v1013
        %v1015 = vadd.f32 %v1014, 1.0
        %v1016 = vrcp.pop %v1015
        %v1017 = vmul.f32 %v1015, %v1016
        %v1018 = vsub.f32 1.0, %v1017
        %v1019 = vmul.f32 %v1016, %v1018
        %v1020 = vadd.f32 %v1016, %v1019
        %vm1021 = vweird.f32 %v1015
        %vm1022 = vweird.f32 %v1016
        %vm1023 = vmor %vm1021, %vm1022
        %v1024 = vsel %vm1023, %v1016, %v1020
        %v1025 = vand.u32 2147483647, %v1015
        %vm1026 = vcmp.eq.f32.partialorder %v1025, 8.507059e+37
        %v1027 = vand.u32 %v1015, 2147483648
        %v1028 = vor.u32 1.1754944e-38, %v1027
        %v1029 = vsel %vm1026, %v1028, %v1024
        %v1030 = vmul.f32 1.0, %v1029
        %v1031 = vtanh.pop %v1011
        %v1032 = vmul.f32 %v1030, %v882
        %1034 = vrot.lane.b32.xlu0 %v1031, 64
        %v1035 = vpop.permute.xlu0 %1034
        %v1037 = vmul.f32 %v1030, %v1035
        %1039 = vrot.lane.b32.xlu0 %v1037, 32
        %v1040 = vpop.permute.xlu0 %1039
        %v1042 = vadd.f32 %v1032, %v1040
        %v1043 = vtanh.pop %v1042
        %1045 = vrot.lane.b32.xlu0 %v1043, 64
        %v1046 = vpop.permute.xlu0 %1045
        %v1048 = vmul.f32 %v1030, %v1046
        %1050 = vset.pattern.permute.xlu0 0
        %1051 = vperm.xlu0 %1050, %v903
        %v1052 = vpop.permute.xlu0 %1051
        %v1054 = vmul.f32 %v1052, %v1042
        %v1055 = vsub.f32 1.0, %v903
        %1057 = vset.pattern.permute.xlu0 0
        %1058 = vperm.xlu0 %1057, %v1055
        %v1059 = vpop.permute.xlu0 %1058
        %v1061 = vmul.f32 %v1059, %v882
        %v1062 = vadd.f32 %v1054, %v1061
        %v1063 = vmul.f32 %v1052, %v1048
        %v1064 = vmul.f32 %v1059, %v885
        %v1065 = vadd.f32 %v1063, %v1064
        %1067 = vrot.lane.b32.xlu0 %v983, 32
        %v1068 = vpop.permute.xlu0 %1067
        %s1070 = scalar_lea.vmem %s281, 16 [#allocation3]
        %1071 = vst.msk [vmem:[%s1070] sm:$0xff] %vm384, %v1068
        %1073 = vrot.lane.b32.xlu0 %v1063, 32
        %v1074 = vpop.permute.xlu0 %1073
        %s1076 = scalar_lea.vmem %s287, 104 [#allocation4]
        %1077 = vst.msk [vmem:[%s1076] sm:$0xff] %vm384, %v1074
        %vm1078 = vcmp.gt.f32.partialorder %v539, 3.0
        %v1079 = vsel %vm1078, 1, 0
        %v1080 = vcvt.s32.f32 %v1079
        %vm1081 = vcmp.gt.f32.partialorder %v539, 12.0
        %v1082 = vsel %vm1081, 1, 0
        %v1083 = vcvt.s32.f32 %v1082
        %v1084 = vld [vmem:[#allocation2 + $0x30] sm:$0xff]
        %v1085 = vld [vmem:[#allocation2 + $0xc8] sm:$0xff]
        %1087 = vrot.lane.b32.xlu0 %v985, 32
        %v1088 = vpop.permute.xlu0 %1087
        %v1089 = vsel %vm384, %v1088, 0
        %1091 = vmatpush.msra.mxu0 0.0
        %1092 = vmatpush.msra.mxu0 0.0
        %1093 = vmatpush.msra.mxu0 0.0
        %1094 = vmatpush.msra.mxu0 0.0
        %1095 = vmatpush.msra.mxu0 0.0
        %1096 = vmatpush.msra.mxu0 0.0
        %1097 = vmatpush.msra.mxu0 0.0
        %1098 = vmatpush.msra.mxu0 0.0
        %1099 = vmatpush.msra.mxu0 0.0
        %1100 = vmatpush.msra.mxu0 0.0
        %1101 = vmatpush.msra.mxu0 0.0
        %1102 = vmatpush.msra.mxu0 0.0
        %1103 = vmatpush.msra.mxu0 %v543
        %1104 = vmatpush.msra.mxu0 %v542
        %1105 = vmatpush.msra.mxu0 %v541
        %1106 = vmatpush.msra.mxu0 %v540
        %1107 = vmatmul.f32.gmra.mxu0 %v1089
        %v1108 = vpop.f32.mrf.mxu0
        %v1109 = vadd.f32 0.0, %v1108
        %1110 = vdwg.mxu0
        %v1111 = vadd.f32 %v1084, %v1109
        %v1112 = vsub.f32 0.0, %v1111
        %v1113 = vmul.f32 %v1112, 1.442695
        %v1114 = vpow.pop %v1113
        %v1115 = vadd.f32 %v1114, 1.0
        %v1116 = vrcp.pop %v1115
        %v1117 = vmul.f32 %v1115, %v1116
        %v1118 = vsub.f32 1.0, %v1117
        %v1119 = vmul.f32 %v1116, %v1118
        %v1120 = vadd.f32 %v1116, %v1119
        %vm1121 = vweird.f32 %v1115
        %vm1122 = vweird.f32 %v1116
        %vm1123 = vmor %vm1121, %vm1122
        %v1124 = vsel %vm1123, %v1116, %v1120
        %v1125 = vand.u32 2147483647, %v1115
        %vm1126 = vcmp.eq.f32.partialorder %v1125, 8.507059e+37
        %v1127 = vand.u32 %v1115, 2147483648
        %v1128 = vor.u32 1.1754944e-38, %v1127
        %v1129 = vsel %vm1126, %v1128, %v1124
        %v1130 = vmul.f32 1.0, %v1129
        %v1131 = vtanh.pop %v1111
        %v1132 = vmul.f32 %v1130, %v982
        %1134 = vrot.lane.b32.xlu0 %v1131, 64
        %v1135 = vpop.permute.xlu0 %1134
        %v1137 = vmul.f32 %v1130, %v1135
        %1139 = vrot.lane.b32.xlu0 %v1137, 32
        %v1140 = vpop.permute.xlu0 %1139
        %v1142 = vadd.f32 %v1132, %v1140
        %v1143 = vtanh.pop %v1142
        %1145 = vrot.lane.b32.xlu0 %v1143, 64
        %v1146 = vpop.permute.xlu0 %1145
        %v1148 = vmul.f32 %v1130, %v1146
        %1150 = vset.pattern.permute.xlu0 0
        %1151 = vperm.xlu0 %1150, %v1080
        %v1152 = vpop.permute.xlu0 %1151
        %v1154 = vmul.f32 %v1152, %v1142
        %v1155 = vsub.f32 1.0, %v1080
        %1157 = vset.pattern.permute.xlu0 0
        %1158 = vperm.xlu0 %1157, %v1155
        %v1159 = vpop.permute.xlu0 %1158
        %v1161 = vmul.f32 %v1159, %v982
        %v1162 = vadd.f32 %v1154, %v1161
        %v1163 = vmul.f32 %v1152, %v1148
        %v1164 = vmul.f32 %v1159, %v985
        %v1165 = vadd.f32 %v1163, %v1164
        %1167 = vrot.lane.b32.xlu0 %v1065, 32
        %v1168 = vpop.permute.xlu0 %1167
        %v1169 = vsel %vm384, %v1168, 0
        %1171 = vmatpush.msra.mxu0 0.0
        %1172 = vmatpush.msra.mxu0 0.0
        %1173 = vmatpush.msra.mxu0 0.0
        %1174 = vmatpush.msra.mxu0 0.0
        %1175 = vmatpush.msra.mxu0 0.0
        %1176 = vmatpush.msra.mxu0 0.0
        %1177 = vmatpush.msra.mxu0 0.0
        %1178 = vmatpush.msra.mxu0 0.0
        %1179 = vmatpush.msra.mxu0 0.0
        %1180 = vmatpush.msra.mxu0 0.0
        %1181 = vmatpush.msra.mxu0 0.0
        %1182 = vmatpush.msra.mxu0 0.0
        %1183 = vmatpush.msra.mxu0 %v547
        %1184 = vmatpush.msra.mxu0 %v546
        %1185 = vmatpush.msra.mxu0 %v545
        %1186 = vmatpush.msra.mxu0 %v544
        %1187 = vmatmul.f32.gmra.mxu0 %v1169
        %v1188 = vpop.f32.mrf.mxu0
        %v1189 = vadd.f32 0.0, %v1188
        %1190 = vdwg.mxu0
        %v1191 = vadd.f32 %v1085, %v1189
        %v1192 = vsub.f32 0.0, %v1191
        %v1193 = vmul.f32 %v1192, 1.442695
        %v1194 = vpow.pop %v1193
        %v1195 = vadd.f32 %v1194, 1.0
        %v1196 = vrcp.pop %v1195
        %v1197 = vmul.f32 %v1195, %v1196
        %v1198 = vsub.f32 1.0, %v1197
        %v1199 = vmul.f32 %v1196, %v1198
        %v1200 = vadd.f32 %v1196, %v1199
        %vm1201 = vweird.f32 %v1195
        %vm1202 = vweird.f32 %v1196
        %vm1203 = vmor %vm1201, %vm1202
        %v1204 = vsel %vm1203, %v1196, %v1200
        %v1205 = vand.u32 2147483647, %v1195
        %vm1206 = vcmp.eq.f32.partialorder %v1205, 8.507059e+37
        %v1207 = vand.u32 %v1195, 2147483648
        %v1208 = vor.u32 1.1754944e-38, %v1207
        %v1209 = vsel %vm1206, %v1208, %v1204
        %v1210 = vmul.f32 1.0, %v1209
        %v1211 = vtanh.pop %v1191
        %v1212 = vmul.f32 %v1210, %v1062
        %1214 = vrot.lane.b32.xlu0 %v1211, 64
        %v1215 = vpop.permute.xlu0 %1214
        %v1217 = vmul.f32 %v1210, %v1215
        %1219 = vrot.lane.b32.xlu0 %v1217, 32
        %v1220 = vpop.permute.xlu0 %1219
        %v1222 = vadd.f32 %v1212, %v1220
        %v1223 = vtanh.pop %v1222
        %1225 = vrot.lane.b32.xlu0 %v1223, 64
        %v1226 = vpop.permute.xlu0 %1225
        %v1228 = vmul.f32 %v1210, %v1226
        %1230 = vset.pattern.permute.xlu0 0
        %1231 = vperm.xlu0 %1230, %v1083
        %v1232 = vpop.permute.xlu0 %1231
        %v1234 = vmul.f32 %v1232, %v1222
        %v1235 = vsub.f32 1.0, %v1083
        %1237 = vset.pattern.permute.xlu0 0
        %1238 = vperm.xlu0 %1237, %v1235
        %v1239 = vpop.permute.xlu0 %1238
        %v1241 = vmul.f32 %v1239, %v1062
        %v1242 = vadd.f32 %v1234, %v1241
        %v1243 = vmul.f32 %v1232, %v1228
        %v1244 = vmul.f32 %v1239, %v1065
        %v1245 = vadd.f32 %v1243, %v1244
        %1247 = vrot.lane.b32.xlu0 %v1163, 32
        %v1248 = vpop.permute.xlu0 %1247
        %s1250 = scalar_lea.vmem %s281, 24 [#allocation3]
        %1251 = vst.msk [vmem:[%s1250] sm:$0xff] %vm384, %v1248
        %1253 = vrot.lane.b32.xlu0 %v1243, 32
        %v1254 = vpop.permute.xlu0 %1253
        %s1256 = scalar_lea.vmem %s287, 96 [#allocation4]
        %1257 = vst.msk [vmem:[%s1256] sm:$0xff] %vm384, %v1254
        %vm1258 = vcmp.gt.f32.partialorder %v539, 4.0
        %v1259 = vsel %vm1258, 1, 0
        %v1260 = vcvt.s32.f32 %v1259
        %vm1261 = vcmp.gt.f32.partialorder %v539, 11.0
        %v1262 = vsel %vm1261, 1, 0
        %v1263 = vcvt.s32.f32 %v1262
        %v1264 = vld [vmem:[#allocation2 + $0x40] sm:$0xff]
        %v1265 = vld [vmem:[#allocation2 + $0xb8] sm:$0xff]
        %1267 = vrot.lane.b32.xlu0 %v1165, 32
        %v1268 = vpop.permute.xlu0 %1267
        %v1269 = vsel %vm384, %v1268, 0
        %1271 = vmatpush.msra.mxu0 0.0
        %1272 = vmatpush.msra.mxu0 0.0
        %1273 = vmatpush.msra.mxu0 0.0
        %1274 = vmatpush.msra.mxu0 0.0
        %1275 = vmatpush.msra.mxu0 0.0
        %1276 = vmatpush.msra.mxu0 0.0
        %1277 = vmatpush.msra.mxu0 0.0
        %1278 = vmatpush.msra.mxu0 0.0
        %1279 = vmatpush.msra.mxu0 0.0
        %1280 = vmatpush.msra.mxu0 0.0
        %1281 = vmatpush.msra.mxu0 0.0
        %1282 = vmatpush.msra.mxu0 0.0
        %1283 = vmatpush.msra.mxu0 %v543
        %1284 = vmatpush.msra.mxu0 %v542
        %1285 = vmatpush.msra.mxu0 %v541
        %1286 = vmatpush.msra.mxu0 %v540
        %1287 = vmatmul.f32.gmra.mxu0 %v1269
        %v1288 = vpop.f32.mrf.mxu0
        %v1289 = vadd.f32 0.0, %v1288
        %1290 = vdwg.mxu0
        %v1291 = vadd.f32 %v1264, %v1289
        %v1292 = vsub.f32 0.0, %v1291
        %v1293 = vmul.f32 %v1292, 1.442695
        %v1294 = vpow.pop %v1293
        %v1295 = vadd.f32 %v1294, 1.0
        %v1296 = vrcp.pop %v1295
        %v1297 = vmul.f32 %v1295, %v1296
        %v1298 = vsub.f32 1.0, %v1297
        %v1299 = vmul.f32 %v1296, %v1298
        %v1300 = vadd.f32 %v1296, %v1299
        %vm1301 = vweird.f32 %v1295
        %vm1302 = vweird.f32 %v1296
        %vm1303 = vmor %vm1301, %vm1302
        %v1304 = vsel %vm1303, %v1296, %v1300
        %v1305 = vand.u32 2147483647, %v1295
        %vm1306 = vcmp.eq.f32.partialorder %v1305, 8.507059e+37
        %v1307 = vand.u32 %v1295, 2147483648
        %v1308 = vor.u32 1.1754944e-38, %v1307
        %v1309 = vsel %vm1306, %v1308, %v1304
        %v1310 = vmul.f32 1.0, %v1309
        %v1311 = vtanh.pop %v1291
        %v1312 = vmul.f32 %v1310, %v1162
        %1314 = vrot.lane.b32.xlu0 %v1311, 64
        %v1315 = vpop.permute.xlu0 %1314
        %v1317 = vmul.f32 %v1310, %v1315
        %1319 = vrot.lane.b32.xlu0 %v1317, 32
        %v1320 = vpop.permute.xlu0 %1319
        %v1322 = vadd.f32 %v1312, %v1320
        %v1323 = vtanh.pop %v1322
        %1325 = vrot.lane.b32.xlu0 %v1323, 64
        %v1326 = vpop.permute.xlu0 %1325
        %v1328 = vmul.f32 %v1310, %v1326
        %1330 = vset.pattern.permute.xlu0 0
        %1331 = vperm.xlu0 %1330, %v1260
        %v1332 = vpop.permute.xlu0 %1331
        %v1334 = vmul.f32 %v1332, %v1322
        %v1335 = vsub.f32 1.0, %v1260
        %1337 = vset.pattern.permute.xlu0 0
        %1338 = vperm.xlu0 %1337, %v1335
        %v1339 = vpop.permute.xlu0 %1338
        %v1341 = vmul.f32 %v1339, %v1162
        %v1342 = vadd.f32 %v1334, %v1341
        %v1343 = vmul.f32 %v1332, %v1328
        %v1344 = vmul.f32 %v1339, %v1165
        %v1345 = vadd.f32 %v1343, %v1344
        %1347 = vrot.lane.b32.xlu0 %v1245, 32
        %v1348 = vpop.permute.xlu0 %1347
        %v1349 = vsel %vm384, %v1348, 0
        %1351 = vmatpush.msra.mxu0 0.0
        %1352 = vmatpush.msra.mxu0 0.0
        %1353 = vmatpush.msra.mxu0 0.0
        %1354 = vmatpush.msra.mxu0 0.0
        %1355 = vmatpush.msra.mxu0 0.0
        %1356 = vmatpush.msra.mxu0 0.0
        %1357 = vmatpush.msra.mxu0 0.0
        %1358 = vmatpush.msra.mxu0 0.0
        %1359 = vmatpush.msra.mxu0 0.0
        %1360 = vmatpush.msra.mxu0 0.0
        %1361 = vmatpush.msra.mxu0 0.0
        %1362 = vmatpush.msra.mxu0 0.0
        %1363 = vmatpush.msra.mxu0 %v547
        %1364 = vmatpush.msra.mxu0 %v546
        %1365 = vmatpush.msra.mxu0 %v545
        %1366 = vmatpush.msra.mxu0 %v544
        %1367 = vmatmul.f32.gmra.mxu0 %v1349
        %v1368 = vpop.f32.mrf.mxu0
        %v1369 = vadd.f32 0.0, %v1368
        %1370 = vdwg.mxu0
        %v1371 = vadd.f32 %v1265, %v1369
        %v1372 = vsub.f32 0.0, %v1371
        %v1373 = vmul.f32 %v1372, 1.442695
        %v1374 = vpow.pop %v1373
        %v1375 = vadd.f32 %v1374, 1.0
        %v1376 = vrcp.pop %v1375
        %v1377 = vmul.f32 %v1375, %v1376
        %v1378 = vsub.f32 1.0, %v1377
        %v1379 = vmul.f32 %v1376, %v1378
        %v1380 = vadd.f32 %v1376, %v1379
        %vm1381 = vweird.f32 %v1375
        %vm1382 = vweird.f32 %v1376
        %vm1383 = vmor %vm1381, %vm1382
        %v1384 = vsel %vm1383, %v1376, %v1380
        %v1385 = vand.u32 2147483647, %v1375
        %vm1386 = vcmp.eq.f32.partialorder %v1385, 8.507059e+37
        %v1387 = vand.u32 %v1375, 2147483648
        %v1388 = vor.u32 1.1754944e-38, %v1387
        %v1389 = vsel %vm1386, %v1388, %v1384
        %v1390 = vmul.f32 1.0, %v1389
        %v1391 = vtanh.pop %v1371
        %v1392 = vmul.f32 %v1390, %v1242
        %1394 = vrot.lane.b32.xlu0 %v1391, 64
        %v1395 = vpop.permute.xlu0 %1394
        %v1397 = vmul.f32 %v1390, %v1395
        %1399 = vrot.lane.b32.xlu0 %v1397, 32
        %v1400 = vpop.permute.xlu0 %1399
        %v1402 = vadd.f32 %v1392, %v1400
        %v1403 = vtanh.pop %v1402
        %1405 = vrot.lane.b32.xlu0 %v1403, 64
        %v1406 = vpop.permute.xlu0 %1405
        %v1408 = vmul.f32 %v1390, %v1406
        %1410 = vset.pattern.permute.xlu0 0
        %1411 = vperm.xlu0 %1410, %v1263
        %v1412 = vpop.permute.xlu0 %1411
        %v1414 = vmul.f32 %v1412, %v1402
        %v1415 = vsub.f32 1.0, %v1263
        %1417 = vset.pattern.permute.xlu0 0
        %1418 = vperm.xlu0 %1417, %v1415
        %v1419 = vpop.permute.xlu0 %1418
        %v1421 = vmul.f32 %v1419, %v1242
        %v1422 = vadd.f32 %v1414, %v1421
        %v1423 = vmul.f32 %v1412, %v1408
        %v1424 = vmul.f32 %v1419, %v1245
        %v1425 = vadd.f32 %v1423, %v1424
        %1427 = vrot.lane.b32.xlu0 %v1343, 32
        %v1428 = vpop.permute.xlu0 %1427
        %s1430 = scalar_lea.vmem %s281, 32 [#allocation3]
        %1431 = vst.msk [vmem:[%s1430] sm:$0xff] %vm384, %v1428
        %1433 = vrot.lane.b32.xlu0 %v1423, 32
        %v1434 = vpop.permute.xlu0 %1433
        %s1436 = scalar_lea.vmem %s287, 88 [#allocation4]
        %1437 = vst.msk [vmem:[%s1436] sm:$0xff] %vm384, %v1434
        %vm1438 = vcmp.gt.f32.partialorder %v539, 5.0
        %v1439 = vsel %vm1438, 1, 0
        %v1440 = vcvt.s32.f32 %v1439
        %vm1441 = vcmp.gt.f32.partialorder %v539, 10.0
        %v1442 = vsel %vm1441, 1, 0
        %v1443 = vcvt.s32.f32 %v1442
        %v1444 = vld [vmem:[#allocation2 + $0x50] sm:$0xff]
        %v1445 = vld [vmem:[#allocation2 + $0xa8] sm:$0xff]
        %1447 = vrot.lane.b32.xlu0 %v1345, 32
        %v1448 = vpop.permute.xlu0 %1447
        %v1449 = vsel %vm384, %v1448, 0
        %1451 = vmatpush.msra.mxu0 0.0
        %1452 = vmatpush.msra.mxu0 0.0
        %1453 = vmatpush.msra.mxu0 0.0
        %1454 = vmatpush.msra.mxu0 0.0
        %1455 = vmatpush.msra.mxu0 0.0
        %1456 = vmatpush.msra.mxu0 0.0
        %1457 = vmatpush.msra.mxu0 0.0
        %1458 = vmatpush.msra.mxu0 0.0
        %1459 = vmatpush.msra.mxu0 0.0
        %1460 = vmatpush.msra.mxu0 0.0
        %1461 = vmatpush.msra.mxu0 0.0
        %1462 = vmatpush.msra.mxu0 0.0
        %1463 = vmatpush.msra.mxu0 %v543
        %1464 = vmatpush.msra.mxu0 %v542
        %1465 = vmatpush.msra.mxu0 %v541
        %1466 = vmatpush.msra.mxu0 %v540
        %1467 = vmatmul.f32.gmra.mxu0 %v1449
        %v1468 = vpop.f32.mrf.mxu0
        %v1469 = vadd.f32 0.0, %v1468
        %1470 = vdwg.mxu0
        %v1471 = vadd.f32 %v1444, %v1469
        %v1472 = vsub.f32 0.0, %v1471
        %v1473 = vmul.f32 %v1472, 1.442695
        %v1474 = vpow.pop %v1473
        %v1475 = vadd.f32 %v1474, 1.0
        %v1476 = vrcp.pop %v1475
        %v1477 = vmul.f32 %v1475, %v1476
        %v1478 = vsub.f32 1.0, %v1477
        %v1479 = vmul.f32 %v1476, %v1478
        %v1480 = vadd.f32 %v1476, %v1479
        %vm1481 = vweird.f32 %v1475
        %vm1482 = vweird.f32 %v1476
        %vm1483 = vmor %vm1481, %vm1482
        %v1484 = vsel %vm1483, %v1476, %v1480
        %v1485 = vand.u32 2147483647, %v1475
        %vm1486 = vcmp.eq.f32.partialorder %v1485, 8.507059e+37
        %v1487 = vand.u32 %v1475, 2147483648
        %v1488 = vor.u32 1.1754944e-38, %v1487
        %v1489 = vsel %vm1486, %v1488, %v1484
        %v1490 = vmul.f32 1.0, %v1489
        %v1491 = vtanh.pop %v1471
        %v1492 = vmul.f32 %v1490, %v1342
        %1494 = vrot.lane.b32.xlu0 %v1491, 64
        %v1495 = vpop.permute.xlu0 %1494
        %v1497 = vmul.f32 %v1490, %v1495
        %1499 = vrot.lane.b32.xlu0 %v1497, 32
        %v1500 = vpop.permute.xlu0 %1499
        %v1502 = vadd.f32 %v1492, %v1500
        %v1503 = vtanh.pop %v1502
        %1505 = vrot.lane.b32.xlu0 %v1503, 64
        %v1506 = vpop.permute.xlu0 %1505
        %v1508 = vmul.f32 %v1490, %v1506
        %1510 = vset.pattern.permute.xlu0 0
        %1511 = vperm.xlu0 %1510, %v1440
        %v1512 = vpop.permute.xlu0 %1511
        %v1514 = vmul.f32 %v1512, %v1502
        %v1515 = vsub.f32 1.0, %v1440
        %1517 = vset.pattern.permute.xlu0 0
        %1518 = vperm.xlu0 %1517, %v1515
        %v1519 = vpop.permute.xlu0 %1518
        %v1521 = vmul.f32 %v1519, %v1342
        %v1522 = vadd.f32 %v1514, %v1521
        %v1523 = vmul.f32 %v1512, %v1508
        %v1524 = vmul.f32 %v1519, %v1345
        %v1525 = vadd.f32 %v1523, %v1524
        %1527 = vrot.lane.b32.xlu0 %v1425, 32
        %v1528 = vpop.permute.xlu0 %1527
        %v1529 = vsel %vm384, %v1528, 0
        %1531 = vmatpush.msra.mxu0 0.0
        %1532 = vmatpush.msra.mxu0 0.0
        %1533 = vmatpush.msra.mxu0 0.0
        %1534 = vmatpush.msra.mxu0 0.0
        %1535 = vmatpush.msra.mxu0 0.0
        %1536 = vmatpush.msra.mxu0 0.0
        %1537 = vmatpush.msra.mxu0 0.0
        %1538 = vmatpush.msra.mxu0 0.0
        %1539 = vmatpush.msra.mxu0 0.0
        %1540 = vmatpush.msra.mxu0 0.0
        %1541 = vmatpush.msra.mxu0 0.0
        %1542 = vmatpush.msra.mxu0 0.0
        %1543 = vmatpush.msra.mxu0 %v547
        %1544 = vmatpush.msra.mxu0 %v546
        %1545 = vmatpush.msra.mxu0 %v545
        %1546 = vmatpush.msra.mxu0 %v544
        %1547 = vmatmul.f32.gmra.mxu0 %v1529
        %v1548 = vpop.f32.mrf.mxu0
        %v1549 = vadd.f32 0.0, %v1548
        %1550 = vdwg.mxu0
        %v1551 = vadd.f32 %v1445, %v1549
        %v1552 = vsub.f32 0.0, %v1551
        %v1553 = vmul.f32 %v1552, 1.442695
        %v1554 = vpow.pop %v1553
        %v1555 = vadd.f32 %v1554, 1.0
        %v1556 = vrcp.pop %v1555
        %v1557 = vmul.f32 %v1555, %v1556
        %v1558 = vsub.f32 1.0, %v1557
        %v1559 = vmul.f32 %v1556, %v1558
        %v1560 = vadd.f32 %v1556, %v1559
        %vm1561 = vweird.f32 %v1555
        %vm1562 = vweird.f32 %v1556
        %vm1563 = vmor %vm1561, %vm1562
        %v1564 = vsel %vm1563, %v1556, %v1560
        %v1565 = vand.u32 2147483647, %v1555
        %vm1566 = vcmp.eq.f32.partialorder %v1565, 8.507059e+37
        %v1567 = vand.u32 %v1555, 2147483648
        %v1568 = vor.u32 1.1754944e-38, %v1567
        %v1569 = vsel %vm1566, %v1568, %v1564
        %v1570 = vmul.f32 1.0, %v1569
        %v1571 = vtanh.pop %v1551
        %v1572 = vmul.f32 %v1570, %v1422
        %1574 = vrot.lane.b32.xlu0 %v1571, 64
        %v1575 = vpop.permute.xlu0 %1574
        %v1577 = vmul.f32 %v1570, %v1575
        %1579 = vrot.lane.b32.xlu0 %v1577, 32
        %v1580 = vpop.permute.xlu0 %1579
        %v1582 = vadd.f32 %v1572, %v1580
        %v1583 = vtanh.pop %v1582
        %1585 = vrot.lane.b32.xlu0 %v1583, 64
        %v1586 = vpop.permute.xlu0 %1585
        %v1588 = vmul.f32 %v1570, %v1586
        %1590 = vset.pattern.permute.xlu0 0
        %1591 = vperm.xlu0 %1590, %v1443
        %v1592 = vpop.permute.xlu0 %1591
        %v1594 = vmul.f32 %v1592, %v1582
        %v1595 = vsub.f32 1.0, %v1443
        %1597 = vset.pattern.permute.xlu0 0
        %1598 = vperm.xlu0 %1597, %v1595
        %v1599 = vpop.permute.xlu0 %1598
        %v1601 = vmul.f32 %v1599, %v1422
        %v1602 = vadd.f32 %v1594, %v1601
        %v1603 = vmul.f32 %v1592, %v1588
        %v1604 = vmul.f32 %v1599, %v1425
        %v1605 = vadd.f32 %v1603, %v1604
        %1607 = vrot.lane.b32.xlu0 %v1523, 32
        %v1608 = vpop.permute.xlu0 %1607
        %s1610 = scalar_lea.vmem %s281, 40 [#allocation3]
        %1611 = vst.msk [vmem:[%s1610] sm:$0xff] %vm384, %v1608
        %1613 = vrot.lane.b32.xlu0 %v1603, 32
        %v1614 = vpop.permute.xlu0 %1613
        %s1616 = scalar_lea.vmem %s287, 80 [#allocation4]
        %1617 = vst.msk [vmem:[%s1616] sm:$0xff] %vm384, %v1614
        %vm1618 = vcmp.gt.f32.partialorder %v539, 6.0
        %v1619 = vsel %vm1618, 1, 0
        %v1620 = vcvt.s32.f32 %v1619
        %vm1621 = vcmp.gt.f32.partialorder %v539, 9.0
        %v1622 = vsel %vm1621, 1, 0
        %v1623 = vcvt.s32.f32 %v1622
        %v1624 = vld [vmem:[#allocation2 + $0x60] sm:$0xff]
        %v1625 = vld [vmem:[#allocation2 + $0x98] sm:$0xff]
        %1627 = vrot.lane.b32.xlu0 %v1525, 32
        %v1628 = vpop.permute.xlu0 %1627
        %v1629 = vsel %vm384, %v1628, 0
        %1631 = vmatpush.msra.mxu0 0.0
        %1632 = vmatpush.msra.mxu0 0.0
        %1633 = vmatpush.msra.mxu0 0.0
        %1634 = vmatpush.msra.mxu0 0.0
        %1635 = vmatpush.msra.mxu0 0.0
        %1636 = vmatpush.msra.mxu0 0.0
        %1637 = vmatpush.msra.mxu0 0.0
        %1638 = vmatpush.msra.mxu0 0.0
        %1639 = vmatpush.msra.mxu0 0.0
        %1640 = vmatpush.msra.mxu0 0.0
        %1641 = vmatpush.msra.mxu0 0.0
        %1642 = vmatpush.msra.mxu0 0.0
        %1643 = vmatpush.msra.mxu0 %v543
        %1644 = vmatpush.msra.mxu0 %v542
        %1645 = vmatpush.msra.mxu0 %v541
        %1646 = vmatpush.msra.mxu0 %v540
        %1647 = vmatmul.f32.gmra.mxu0 %v1629
        %v1648 = vpop.f32.mrf.mxu0
        %v1649 = vadd.f32 0.0, %v1648
        %1650 = vdwg.mxu0
        %v1651 = vadd.f32 %v1624, %v1649
        %v1652 = vsub.f32 0.0, %v1651
        %v1653 = vmul.f32 %v1652, 1.442695
        %v1654 = vpow.pop %v1653
        %v1655 = vadd.f32 %v1654, 1.0
        %v1656 = vrcp.pop %v1655
        %v1657 = vmul.f32 %v1655, %v1656
        %v1658 = vsub.f32 1.0, %v1657
        %v1659 = vmul.f32 %v1656, %v1658
        %v1660 = vadd.f32 %v1656, %v1659
        %vm1661 = vweird.f32 %v1655
        %vm1662 = vweird.f32 %v1656
        %vm1663 = vmor %vm1661, %vm1662
        %v1664 = vsel %vm1663, %v1656, %v1660
        %v1665 = vand.u32 2147483647, %v1655
        %vm1666 = vcmp.eq.f32.partialorder %v1665, 8.507059e+37
        %v1667 = vand.u32 %v1655, 2147483648
        %v1668 = vor.u32 1.1754944e-38, %v1667
        %v1669 = vsel %vm1666, %v1668, %v1664
        %v1670 = vmul.f32 1.0, %v1669
        %v1671 = vtanh.pop %v1651
        %v1672 = vmul.f32 %v1670, %v1522
        %1674 = vrot.lane.b32.xlu0 %v1671, 64
        %v1675 = vpop.permute.xlu0 %1674
        %v1677 = vmul.f32 %v1670, %v1675
        %1679 = vrot.lane.b32.xlu0 %v1677, 32
        %v1680 = vpop.permute.xlu0 %1679
        %v1682 = vadd.f32 %v1672, %v1680
        %v1683 = vtanh.pop %v1682
        %1685 = vrot.lane.b32.xlu0 %v1683, 64
        %v1686 = vpop.permute.xlu0 %1685
        %v1688 = vmul.f32 %v1670, %v1686
        %1690 = vset.pattern.permute.xlu0 0
        %1691 = vperm.xlu0 %1690, %v1620
        %v1692 = vpop.permute.xlu0 %1691
        %v1694 = vmul.f32 %v1692, %v1682
        %v1695 = vsub.f32 1.0, %v1620
        %1697 = vset.pattern.permute.xlu0 0
        %1698 = vperm.xlu0 %1697, %v1695
        %v1699 = vpop.permute.xlu0 %1698
        %v1701 = vmul.f32 %v1699, %v1522
        %v1702 = vadd.f32 %v1694, %v1701
        %v1703 = vmul.f32 %v1692, %v1688
        %v1704 = vmul.f32 %v1699, %v1525
        %v1705 = vadd.f32 %v1703, %v1704
        %1707 = vrot.lane.b32.xlu0 %v1605, 32
        %v1708 = vpop.permute.xlu0 %1707
        %v1709 = vsel %vm384, %v1708, 0
        %1711 = vmatpush.msra.mxu0 0.0
        %1712 = vmatpush.msra.mxu0 0.0
        %1713 = vmatpush.msra.mxu0 0.0
        %1714 = vmatpush.msra.mxu0 0.0
        %1715 = vmatpush.msra.mxu0 0.0
        %1716 = vmatpush.msra.mxu0 0.0
        %1717 = vmatpush.msra.mxu0 0.0
        %1718 = vmatpush.msra.mxu0 0.0
        %1719 = vmatpush.msra.mxu0 0.0
        %1720 = vmatpush.msra.mxu0 0.0
        %1721 = vmatpush.msra.mxu0 0.0
        %1722 = vmatpush.msra.mxu0 0.0
        %1723 = vmatpush.msra.mxu0 %v547
        %1724 = vmatpush.msra.mxu0 %v546
        %1725 = vmatpush.msra.mxu0 %v545
        %1726 = vmatpush.msra.mxu0 %v544
        %1727 = vmatmul.f32.gmra.mxu0 %v1709
        %v1728 = vpop.f32.mrf.mxu0
        %v1729 = vadd.f32 0.0, %v1728
        %1730 = vdwg.mxu0
        %v1731 = vadd.f32 %v1625, %v1729
        %v1732 = vsub.f32 0.0, %v1731
        %v1733 = vmul.f32 %v1732, 1.442695
        %v1734 = vpow.pop %v1733
        %v1735 = vadd.f32 %v1734, 1.0
        %v1736 = vrcp.pop %v1735
        %v1737 = vmul.f32 %v1735, %v1736
        %v1738 = vsub.f32 1.0, %v1737
        %v1739 = vmul.f32 %v1736, %v1738
        %v1740 = vadd.f32 %v1736, %v1739
        %vm1741 = vweird.f32 %v1735
        %vm1742 = vweird.f32 %v1736
        %vm1743 = vmor %vm1741, %vm1742
        %v1744 = vsel %vm1743, %v1736, %v1740
        %v1745 = vand.u32 2147483647, %v1735
        %vm1746 = vcmp.eq.f32.partialorder %v1745, 8.507059e+37
        %v1747 = vand.u32 %v1735, 2147483648
        %v1748 = vor.u32 1.1754944e-38, %v1747
        %v1749 = vsel %vm1746, %v1748, %v1744
        %v1750 = vmul.f32 1.0, %v1749
        %v1751 = vtanh.pop %v1731
        %v1752 = vmul.f32 %v1750, %v1602
        %1754 = vrot.lane.b32.xlu0 %v1751, 64
        %v1755 = vpop.permute.xlu0 %1754
        %v1757 = vmul.f32 %v1750, %v1755
        %1759 = vrot.lane.b32.xlu0 %v1757, 32
        %v1760 = vpop.permute.xlu0 %1759
        %v1762 = vadd.f32 %v1752, %v1760
        %v1763 = vtanh.pop %v1762
        %1765 = vrot.lane.b32.xlu0 %v1763, 64
        %v1766 = vpop.permute.xlu0 %1765
        %v1768 = vmul.f32 %v1750, %v1766
        %1770 = vset.pattern.permute.xlu0 0
        %1771 = vperm.xlu0 %1770, %v1623
        %v1772 = vpop.permute.xlu0 %1771
        %v1774 = vmul.f32 %v1772, %v1762
        %v1775 = vsub.f32 1.0, %v1623
        %1777 = vset.pattern.permute.xlu0 0
        %1778 = vperm.xlu0 %1777, %v1775
        %v1779 = vpop.permute.xlu0 %1778
        %v1781 = vmul.f32 %v1779, %v1602
        %v1782 = vadd.f32 %v1774, %v1781
        %v1783 = vmul.f32 %v1772, %v1768
        %v1784 = vmul.f32 %v1779, %v1605
        %v1785 = vadd.f32 %v1783, %v1784
        %1787 = vrot.lane.b32.xlu0 %v1703, 32
        %v1788 = vpop.permute.xlu0 %1787
        %s1790 = scalar_lea.vmem %s281, 48 [#allocation3]
        %1791 = vst.msk [vmem:[%s1790] sm:$0xff] %vm384, %v1788
        %1793 = vrot.lane.b32.xlu0 %v1783, 32
        %v1794 = vpop.permute.xlu0 %1793
        %s1796 = scalar_lea.vmem %s287, 72 [#allocation4]
        %1797 = vst.msk [vmem:[%s1796] sm:$0xff] %vm384, %v1794
        %vm1798 = vcmp.gt.f32.partialorder %v539, 7.0
        %v1799 = vsel %vm1798, 1, 0
        %v1800 = vcvt.s32.f32 %v1799
        %vm1801 = vcmp.gt.f32.partialorder %v539, 8.0
        %v1802 = vsel %vm1801, 1, 0
        %v1803 = vcvt.s32.f32 %v1802
        %v1804 = vld [vmem:[#allocation2 + $0x70] sm:$0xff]
        %v1805 = vld [vmem:[#allocation2 + $0x88] sm:$0xff]
        %1807 = vrot.lane.b32.xlu0 %v1705, 32
        %v1808 = vpop.permute.xlu0 %1807
        %v1809 = vsel %vm384, %v1808, 0
        %1811 = vmatpush.msra.mxu0 0.0
        %1812 = vmatpush.msra.mxu0 0.0
        %1813 = vmatpush.msra.mxu0 0.0
        %1814 = vmatpush.msra.mxu0 0.0
        %1815 = vmatpush.msra.mxu0 0.0
        %1816 = vmatpush.msra.mxu0 0.0
        %1817 = vmatpush.msra.mxu0 0.0
        %1818 = vmatpush.msra.mxu0 0.0
        %1819 = vmatpush.msra.mxu0 0.0
        %1820 = vmatpush.msra.mxu0 0.0
        %1821 = vmatpush.msra.mxu0 0.0
        %1822 = vmatpush.msra.mxu0 0.0
        %1823 = vmatpush.msra.mxu0 %v543
        %1824 = vmatpush.msra.mxu0 %v542
        %1825 = vmatpush.msra.mxu0 %v541
        %1826 = vmatpush.msra.mxu0 %v540
        %1827 = vmatmul.f32.gmra.mxu0 %v1809
        %v1828 = vpop.f32.mrf.mxu0
        %v1829 = vadd.f32 0.0, %v1828
        %1830 = vdwg.mxu0
        %v1831 = vadd.f32 %v1804, %v1829
        %v1832 = vsub.f32 0.0, %v1831
        %v1833 = vmul.f32 %v1832, 1.442695
        %v1834 = vpow.pop %v1833
        %v1835 = vadd.f32 %v1834, 1.0
        %v1836 = vrcp.pop %v1835
        %v1837 = vmul.f32 %v1835, %v1836
        %v1838 = vsub.f32 1.0, %v1837
        %v1839 = vmul.f32 %v1836, %v1838
        %v1840 = vadd.f32 %v1836, %v1839
        %vm1841 = vweird.f32 %v1835
        %vm1842 = vweird.f32 %v1836
        %vm1843 = vmor %vm1841, %vm1842
        %v1844 = vsel %vm1843, %v1836, %v1840
        %v1845 = vand.u32 2147483647, %v1835
        %vm1846 = vcmp.eq.f32.partialorder %v1845, 8.507059e+37
        %v1847 = vand.u32 %v1835, 2147483648
        %v1848 = vor.u32 1.1754944e-38, %v1847
        %v1849 = vsel %vm1846, %v1848, %v1844
        %v1850 = vmul.f32 1.0, %v1849
        %v1851 = vtanh.pop %v1831
        %v1852 = vmul.f32 %v1850, %v1702
        %1854 = vrot.lane.b32.xlu0 %v1851, 64
        %v1855 = vpop.permute.xlu0 %1854
        %v1857 = vmul.f32 %v1850, %v1855
        %1859 = vrot.lane.b32.xlu0 %v1857, 32
        %v1860 = vpop.permute.xlu0 %1859
        %v1862 = vadd.f32 %v1852, %v1860
        %v1863 = vtanh.pop %v1862
        %1865 = vrot.lane.b32.xlu0 %v1863, 64
        %v1866 = vpop.permute.xlu0 %1865
        %v1868 = vmul.f32 %v1850, %v1866
        %1870 = vset.pattern.permute.xlu0 0
        %1871 = vperm.xlu0 %1870, %v1800
        %v1872 = vpop.permute.xlu0 %1871
        %v1874 = vmul.f32 %v1872, %v1862
        %v1875 = vsub.f32 1.0, %v1800
        %1877 = vset.pattern.permute.xlu0 0
        %1878 = vperm.xlu0 %1877, %v1875
        %v1879 = vpop.permute.xlu0 %1878
        %v1881 = vmul.f32 %v1879, %v1702
        %v1882 = vadd.f32 %v1874, %v1881
        %v1883 = vmul.f32 %v1872, %v1868
        %v1884 = vmul.f32 %v1879, %v1705
        %v1885 = vadd.f32 %v1883, %v1884
        %1887 = vrot.lane.b32.xlu0 %v1785, 32
        %v1888 = vpop.permute.xlu0 %1887
        %v1889 = vsel %vm384, %v1888, 0
        %1891 = vmatpush.msra.mxu0 0.0
        %1892 = vmatpush.msra.mxu0 0.0
        %1893 = vmatpush.msra.mxu0 0.0
        %1894 = vmatpush.msra.mxu0 0.0
        %1895 = vmatpush.msra.mxu0 0.0
        %1896 = vmatpush.msra.mxu0 0.0
        %1897 = vmatpush.msra.mxu0 0.0
        %1898 = vmatpush.msra.mxu0 0.0
        %1899 = vmatpush.msra.mxu0 0.0
        %1900 = vmatpush.msra.mxu0 0.0
        %1901 = vmatpush.msra.mxu0 0.0
        %1902 = vmatpush.msra.mxu0 0.0
        %1903 = vmatpush.msra.mxu0 %v547
        %1904 = vmatpush.msra.mxu0 %v546
        %1905 = vmatpush.msra.mxu0 %v545
        %1906 = vmatpush.msra.mxu0 %v544
        %1907 = vmatmul.f32.gmra.mxu0 %v1889
        %v1908 = vpop.f32.mrf.mxu0
        %v1909 = vadd.f32 0.0, %v1908
        %1910 = vdwg.mxu0
        %v1911 = vadd.f32 %v1805, %v1909
        %v1912 = vsub.f32 0.0, %v1911
        %v1913 = vmul.f32 %v1912, 1.442695
        %v1914 = vpow.pop %v1913
        %v1915 = vadd.f32 %v1914, 1.0
        %v1916 = vrcp.pop %v1915
        %v1917 = vmul.f32 %v1915, %v1916
        %v1918 = vsub.f32 1.0, %v1917
        %v1919 = vmul.f32 %v1916, %v1918
        %v1920 = vadd.f32 %v1916, %v1919
        %vm1921 = vweird.f32 %v1915
        %vm1922 = vweird.f32 %v1916
        %vm1923 = vmor %vm1921, %vm1922
        %v1924 = vsel %vm1923, %v1916, %v1920
        %v1925 = vand.u32 2147483647, %v1915
        %vm1926 = vcmp.eq.f32.partialorder %v1925, 8.507059e+37
        %v1927 = vand.u32 %v1915, 2147483648
        %v1928 = vor.u32 1.1754944e-38, %v1927
        %v1929 = vsel %vm1926, %v1928, %v1924
        %v1930 = vmul.f32 1.0, %v1929
        %v1931 = vtanh.pop %v1911
        %v1932 = vmul.f32 %v1930, %v1782
        %1934 = vrot.lane.b32.xlu0 %v1931, 64
        %v1935 = vpop.permute.xlu0 %1934
        %v1937 = vmul.f32 %v1930, %v1935
        %1939 = vrot.lane.b32.xlu0 %v1937, 32
        %v1940 = vpop.permute.xlu0 %1939
        %v1942 = vadd.f32 %v1932, %v1940
        %v1943 = vtanh.pop %v1942
        %1945 = vrot.lane.b32.xlu0 %v1943, 64
        %v1946 = vpop.permute.xlu0 %1945
        %v1948 = vmul.f32 %v1930, %v1946
        %1950 = vset.pattern.permute.xlu0 0
        %1951 = vperm.xlu0 %1950, %v1803
        %v1952 = vpop.permute.xlu0 %1951
        %v1954 = vmul.f32 %v1952, %v1942
        %v1955 = vsub.f32 1.0, %v1803
        %1957 = vset.pattern.permute.xlu0 0
        %1958 = vperm.xlu0 %1957, %v1955
        %v1959 = vpop.permute.xlu0 %1958
        %v1961 = vmul.f32 %v1959, %v1782
        %v1962 = vadd.f32 %v1954, %v1961
        %v1963 = vmul.f32 %v1952, %v1948
        %v1964 = vmul.f32 %v1959, %v1785
        %v1965 = vadd.f32 %v1963, %v1964
        %1967 = vrot.lane.b32.xlu0 %v1883, 32
        %v1968 = vpop.permute.xlu0 %1967
        %s1970 = scalar_lea.vmem %s281, 56 [#allocation3]
        %1971 = vst.msk [vmem:[%s1970] sm:$0xff] %vm384, %v1968
        %1973 = vrot.lane.b32.xlu0 %v1963, 32
        %v1974 = vpop.permute.xlu0 %1973
        %s1976 = scalar_lea.vmem %s287, 64 [#allocation4]
        %1977 = vst.msk [vmem:[%s1976] sm:$0xff] %vm384, %v1974
        %v1978 = vld [vmem:[#allocation2 + $0x80] sm:$0xff]
        %v1979 = vld [vmem:[#allocation2 + $0x78] sm:$0xff]
        %1981 = vrot.lane.b32.xlu0 %v1885, 32
        %v1982 = vpop.permute.xlu0 %1981
        %v1983 = vsel %vm384, %v1982, 0
        %1985 = vmatpush.msra.mxu0 0.0
        %1986 = vmatpush.msra.mxu0 0.0
        %1987 = vmatpush.msra.mxu0 0.0
        %1988 = vmatpush.msra.mxu0 0.0
        %1989 = vmatpush.msra.mxu0 0.0
        %1990 = vmatpush.msra.mxu0 0.0
        %1991 = vmatpush.msra.mxu0 0.0
        %1992 = vmatpush.msra.mxu0 0.0
        %1993 = vmatpush.msra.mxu0 0.0
        %1994 = vmatpush.msra.mxu0 0.0
        %1995 = vmatpush.msra.mxu0 0.0
        %1996 = vmatpush.msra.mxu0 0.0
        %1997 = vmatpush.msra.mxu0 %v543
        %1998 = vmatpush.msra.mxu0 %v542
        %1999 = vmatpush.msra.mxu0 %v541
        %2000 = vmatpush.msra.mxu0 %v540
        %2001 = vmatmul.f32.gmra.mxu0 %v1983
        %v2002 = vpop.f32.mrf.mxu0
        %v2003 = vadd.f32 0.0, %v2002
        %2004 = vdwg.mxu0
        %v2005 = vadd.f32 %v1978, %v2003
        %v2006 = vsub.f32 0.0, %v2005
        %v2007 = vmul.f32 %v2006, 1.442695
        %v2008 = vpow.pop %v2007
        %v2009 = vadd.f32 %v2008, 1.0
        %v2010 = vrcp.pop %v2009
        %v2011 = vmul.f32 %v2009, %v2010
        %v2012 = vsub.f32 1.0, %v2011
        %v2013 = vmul.f32 %v2010, %v2012
        %v2014 = vadd.f32 %v2010, %v2013
        %vm2015 = vweird.f32 %v2009
        %vm2016 = vweird.f32 %v2010
        %vm2017 = vmor %vm2015, %vm2016
        %v2018 = vsel %vm2017, %v2010, %v2014
        %v2019 = vand.u32 2147483647, %v2009
        %vm2020 = vcmp.eq.f32.partialorder %v2019, 8.507059e+37
        %v2021 = vand.u32 %v2009, 2147483648
        %v2022 = vor.u32 1.1754944e-38, %v2021
        %v2023 = vsel %vm2020, %v2022, %v2018
        %v2024 = vmul.f32 1.0, %v2023
        %v2025 = vtanh.pop %v2005
        %v2026 = vmul.f32 %v2024, %v1882
        %2028 = vrot.lane.b32.xlu0 %v2025, 64
        %v2029 = vpop.permute.xlu0 %2028
        %v2031 = vmul.f32 %v2024, %v2029
        %2033 = vrot.lane.b32.xlu0 %v2031, 32
        %v2034 = vpop.permute.xlu0 %2033
        %v2036 = vadd.f32 %v2026, %v2034
        %v2037 = vtanh.pop %v2036
        %2039 = vrot.lane.b32.xlu0 %v2037, 64
        %v2040 = vpop.permute.xlu0 %2039
        %v2042 = vmul.f32 %v2024, %v2040
        %v2043 = vmul.f32 %v1952, %v2036
        %v2044 = vmul.f32 %v1959, %v1882
        %v2045 = vadd.f32 %v2043, %v2044
        %v2046 = vmul.f32 %v1952, %v2042
        %v2047 = vmul.f32 %v1959, %v1885
        %v2048 = vadd.f32 %v2046, %v2047
        %2050 = vrot.lane.b32.xlu0 %v1965, 32
        %v2051 = vpop.permute.xlu0 %2050
        %v2052 = vsel %vm384, %v2051, 0
        %2054 = vmatpush.msra.mxu0 0.0
        %2055 = vmatpush.msra.mxu0 0.0
        %2056 = vmatpush.msra.mxu0 0.0
        %2057 = vmatpush.msra.mxu0 0.0
        %2058 = vmatpush.msra.mxu0 0.0
        %2059 = vmatpush.msra.mxu0 0.0
        %2060 = vmatpush.msra.mxu0 0.0
        %2061 = vmatpush.msra.mxu0 0.0
        %2062 = vmatpush.msra.mxu0 0.0
        %2063 = vmatpush.msra.mxu0 0.0
        %2064 = vmatpush.msra.mxu0 0.0
        %2065 = vmatpush.msra.mxu0 0.0
        %2066 = vmatpush.msra.mxu0 %v547
        %2067 = vmatpush.msra.mxu0 %v546
        %2068 = vmatpush.msra.mxu0 %v545
        %2069 = vmatpush.msra.mxu0 %v544
        %2070 = vmatmul.f32.gmra.mxu0 %v2052
        %v2071 = vpop.f32.mrf.mxu0
        %v2072 = vadd.f32 0.0, %v2071
        %2073 = vdwg.mxu0
        %v2074 = vadd.f32 %v1979, %v2072
        %v2075 = vsub.f32 0.0, %v2074
        %v2076 = vmul.f32 %v2075, 1.442695
        %v2077 = vpow.pop %v2076
        %v2078 = vadd.f32 %v2077, 1.0
        %v2079 = vrcp.pop %v2078
        %v2080 = vmul.f32 %v2078, %v2079
        %v2081 = vsub.f32 1.0, %v2080
        %v2082 = vmul.f32 %v2079, %v2081
        %v2083 = vadd.f32 %v2079, %v2082
        %vm2084 = vweird.f32 %v2078
        %vm2085 = vweird.f32 %v2079
        %vm2086 = vmor %vm2084, %vm2085
        %v2087 = vsel %vm2086, %v2079, %v2083
        %v2088 = vand.u32 2147483647, %v2078
        %vm2089 = vcmp.eq.f32.partialorder %v2088, 8.507059e+37
        %v2090 = vand.u32 %v2078, 2147483648
        %v2091 = vor.u32 1.1754944e-38, %v2090
        %v2092 = vsel %vm2089, %v2091, %v2087
        %v2093 = vmul.f32 1.0, %v2092
        %v2094 = vtanh.pop %v2074
        %v2095 = vmul.f32 %v2093, %v1962
        %2097 = vrot.lane.b32.xlu0 %v2094, 64
        %v2098 = vpop.permute.xlu0 %2097
        %v2100 = vmul.f32 %v2093, %v2098
        %2102 = vrot.lane.b32.xlu0 %v2100, 32
        %v2103 = vpop.permute.xlu0 %2102
        %v2105 = vadd.f32 %v2095, %v2103
        %v2106 = vtanh.pop %v2105
        %2108 = vrot.lane.b32.xlu0 %v2106, 64
        %v2109 = vpop.permute.xlu0 %2108
        %v2111 = vmul.f32 %v2093, %v2109
        %v2112 = vmul.f32 %v1872, %v2105
        %v2113 = vmul.f32 %v1879, %v1962
        %v2114 = vadd.f32 %v2112, %v2113
        %v2115 = vmul.f32 %v1872, %v2111
        %v2116 = vmul.f32 %v1879, %v1965
        %v2117 = vadd.f32 %v2115, %v2116
        %2119 = vrot.lane.b32.xlu0 %v2046, 32
        %v2120 = vpop.permute.xlu0 %2119
        %s2122 = scalar_lea.vmem %s281, 64 [#allocation3]
        %2123 = vst.msk [vmem:[%s2122] sm:$0xff] %vm384, %v2120
        %2125 = vrot.lane.b32.xlu0 %v2115, 32
        %v2126 = vpop.permute.xlu0 %2125
        %s2128 = scalar_lea.vmem %s287, 56 [#allocation4]
        %2129 = vst.msk [vmem:[%s2128] sm:$0xff] %vm384, %v2126
        %v2130 = vld [vmem:[#allocation2 + $0x90] sm:$0xff]
        %v2131 = vld [vmem:[#allocation2 + $0x68] sm:$0xff]
        %2133 = vrot.lane.b32.xlu0 %v2048, 32
        %v2134 = vpop.permute.xlu0 %2133
        %v2135 = vsel %vm384, %v2134, 0
        %2137 = vmatpush.msra.mxu0 0.0
        %2138 = vmatpush.msra.mxu0 0.0
        %2139 = vmatpush.msra.mxu0 0.0
        %2140 = vmatpush.msra.mxu0 0.0
        %2141 = vmatpush.msra.mxu0 0.0
        %2142 = vmatpush.msra.mxu0 0.0
        %2143 = vmatpush.msra.mxu0 0.0
        %2144 = vmatpush.msra.mxu0 0.0
        %2145 = vmatpush.msra.mxu0 0.0
        %2146 = vmatpush.msra.mxu0 0.0
        %2147 = vmatpush.msra.mxu0 0.0
        %2148 = vmatpush.msra.mxu0 0.0
        %2149 = vmatpush.msra.mxu0 %v543
        %2150 = vmatpush.msra.mxu0 %v542
        %2151 = vmatpush.msra.mxu0 %v541
        %2152 = vmatpush.msra.mxu0 %v540
        %2153 = vmatmul.f32.gmra.mxu0 %v2135
        %v2154 = vpop.f32.mrf.mxu0
        %v2155 = vadd.f32 0.0, %v2154
        %2156 = vdwg.mxu0
        %v2157 = vadd.f32 %v2130, %v2155
        %v2158 = vsub.f32 0.0, %v2157
        %v2159 = vmul.f32 %v2158, 1.442695
        %v2160 = vpow.pop %v2159
        %v2161 = vadd.f32 %v2160, 1.0
        %v2162 = vrcp.pop %v2161
        %v2163 = vmul.f32 %v2161, %v2162
        %v2164 = vsub.f32 1.0, %v2163
        %v2165 = vmul.f32 %v2162, %v2164
        %v2166 = vadd.f32 %v2162, %v2165
        %vm2167 = vweird.f32 %v2161
        %vm2168 = vweird.f32 %v2162
        %vm2169 = vmor %vm2167, %vm2168
        %v2170 = vsel %vm2169, %v2162, %v2166
        %v2171 = vand.u32 2147483647, %v2161
        %vm2172 = vcmp.eq.f32.partialorder %v2171, 8.507059e+37
        %v2173 = vand.u32 %v2161, 2147483648
        %v2174 = vor.u32 1.1754944e-38, %v2173
        %v2175 = vsel %vm2172, %v2174, %v2170
        %v2176 = vmul.f32 1.0, %v2175
        %v2177 = vtanh.pop %v2157
        %v2178 = vmul.f32 %v2176, %v2045
        %2180 = vrot.lane.b32.xlu0 %v2177, 64
        %v2181 = vpop.permute.xlu0 %2180
        %v2183 = vmul.f32 %v2176, %v2181
        %2185 = vrot.lane.b32.xlu0 %v2183, 32
        %v2186 = vpop.permute.xlu0 %2185
        %v2188 = vadd.f32 %v2178, %v2186
        %v2189 = vtanh.pop %v2188
        %2191 = vrot.lane.b32.xlu0 %v2189, 64
        %v2192 = vpop.permute.xlu0 %2191
        %v2194 = vmul.f32 %v2176, %v2192
        %v2195 = vmul.f32 %v1772, %v2188
        %v2196 = vmul.f32 %v1779, %v2045
        %v2197 = vadd.f32 %v2195, %v2196
        %v2198 = vmul.f32 %v1772, %v2194
        %v2199 = vmul.f32 %v1779, %v2048
        %v2200 = vadd.f32 %v2198, %v2199
        %2202 = vrot.lane.b32.xlu0 %v2117, 32
        %v2203 = vpop.permute.xlu0 %2202
        %v2204 = vsel %vm384, %v2203, 0
        %2206 = vmatpush.msra.mxu0 0.0
        %2207 = vmatpush.msra.mxu0 0.0
        %2208 = vmatpush.msra.mxu0 0.0
        %2209 = vmatpush.msra.mxu0 0.0
        %2210 = vmatpush.msra.mxu0 0.0
        %2211 = vmatpush.msra.mxu0 0.0
        %2212 = vmatpush.msra.mxu0 0.0
        %2213 = vmatpush.msra.mxu0 0.0
        %2214 = vmatpush.msra.mxu0 0.0
        %2215 = vmatpush.msra.mxu0 0.0
        %2216 = vmatpush.msra.mxu0 0.0
        %2217 = vmatpush.msra.mxu0 0.0
        %2218 = vmatpush.msra.mxu0 %v547
        %2219 = vmatpush.msra.mxu0 %v546
        %2220 = vmatpush.msra.mxu0 %v545
        %2221 = vmatpush.msra.mxu0 %v544
        %2222 = vmatmul.f32.gmra.mxu0 %v2204
        %v2223 = vpop.f32.mrf.mxu0
        %v2224 = vadd.f32 0.0, %v2223
        %2225 = vdwg.mxu0
        %v2226 = vadd.f32 %v2131, %v2224
        %v2227 = vsub.f32 0.0, %v2226
        %v2228 = vmul.f32 %v2227, 1.442695
        %v2229 = vpow.pop %v2228
        %v2230 = vadd.f32 %v2229, 1.0
        %v2231 = vrcp.pop %v2230
        %v2232 = vmul.f32 %v2230, %v2231
        %v2233 = vsub.f32 1.0, %v2232
        %v2234 = vmul.f32 %v2231, %v2233
        %v2235 = vadd.f32 %v2231, %v2234
        %vm2236 = vweird.f32 %v2230
        %vm2237 = vweird.f32 %v2231
        %vm2238 = vmor %vm2236, %vm2237
        %v2239 = vsel %vm2238, %v2231, %v2235
        %v2240 = vand.u32 2147483647, %v2230
        %vm2241 = vcmp.eq.f32.partialorder %v2240, 8.507059e+37
        %v2242 = vand.u32 %v2230, 2147483648
        %v2243 = vor.u32 1.1754944e-38, %v2242
        %v2244 = vsel %vm2241, %v2243, %v2239
        %v2245 = vmul.f32 1.0, %v2244
        %v2246 = vtanh.pop %v2226
        %v2247 = vmul.f32 %v2245, %v2114
        %2249 = vrot.lane.b32.xlu0 %v2246, 64
        %v2250 = vpop.permute.xlu0 %2249
        %v2252 = vmul.f32 %v2245, %v2250
        %2254 = vrot.lane.b32.xlu0 %v2252, 32
        %v2255 = vpop.permute.xlu0 %2254
        %v2257 = vadd.f32 %v2247, %v2255
        %v2258 = vtanh.pop %v2257
        %2260 = vrot.lane.b32.xlu0 %v2258, 64
        %v2261 = vpop.permute.xlu0 %2260
        %v2263 = vmul.f32 %v2245, %v2261
        %v2264 = vmul.f32 %v1692, %v2257
        %v2265 = vmul.f32 %v1699, %v2114
        %v2266 = vadd.f32 %v2264, %v2265
        %v2267 = vmul.f32 %v1692, %v2263
        %v2268 = vmul.f32 %v1699, %v2117
        %v2269 = vadd.f32 %v2267, %v2268
        %2271 = vrot.lane.b32.xlu0 %v2198, 32
        %v2272 = vpop.permute.xlu0 %2271
        %s2274 = scalar_lea.vmem %s281, 72 [#allocation3]
        %2275 = vst.msk [vmem:[%s2274] sm:$0xff] %vm384, %v2272
        %2277 = vrot.lane.b32.xlu0 %v2267, 32
        %v2278 = vpop.permute.xlu0 %2277
        %s2280 = scalar_lea.vmem %s287, 48 [#allocation4]
        %2281 = vst.msk [vmem:[%s2280] sm:$0xff] %vm384, %v2278
        %v2282 = vld [vmem:[#allocation2 + $0xa0] sm:$0xff]
        %v2283 = vld [vmem:[#allocation2 + $0x58] sm:$0xff]
        %2285 = vrot.lane.b32.xlu0 %v2200, 32
        %v2286 = vpop.permute.xlu0 %2285
        %v2287 = vsel %vm384, %v2286, 0
        %2289 = vmatpush.msra.mxu0 0.0
        %2290 = vmatpush.msra.mxu0 0.0
        %2291 = vmatpush.msra.mxu0 0.0
        %2292 = vmatpush.msra.mxu0 0.0
        %2293 = vmatpush.msra.mxu0 0.0
        %2294 = vmatpush.msra.mxu0 0.0
        %2295 = vmatpush.msra.mxu0 0.0
        %2296 = vmatpush.msra.mxu0 0.0
        %2297 = vmatpush.msra.mxu0 0.0
        %2298 = vmatpush.msra.mxu0 0.0
        %2299 = vmatpush.msra.mxu0 0.0
        %2300 = vmatpush.msra.mxu0 0.0
        %2301 = vmatpush.msra.mxu0 %v543
        %2302 = vmatpush.msra.mxu0 %v542
        %2303 = vmatpush.msra.mxu0 %v541
        %2304 = vmatpush.msra.mxu0 %v540
        %2305 = vmatmul.f32.gmra.mxu0 %v2287
        %v2306 = vpop.f32.mrf.mxu0
        %v2307 = vadd.f32 0.0, %v2306
        %2308 = vdwg.mxu0
        %v2309 = vadd.f32 %v2282, %v2307
        %v2310 = vsub.f32 0.0, %v2309
        %v2311 = vmul.f32 %v2310, 1.442695
        %v2312 = vpow.pop %v2311
        %v2313 = vadd.f32 %v2312, 1.0
        %v2314 = vrcp.pop %v2313
        %v2315 = vmul.f32 %v2313, %v2314
        %v2316 = vsub.f32 1.0, %v2315
        %v2317 = vmul.f32 %v2314, %v2316
        %v2318 = vadd.f32 %v2314, %v2317
        %vm2319 = vweird.f32 %v2313
        %vm2320 = vweird.f32 %v2314
        %vm2321 = vmor %vm2319, %vm2320
        %v2322 = vsel %vm2321, %v2314, %v2318
        %v2323 = vand.u32 2147483647, %v2313
        %vm2324 = vcmp.eq.f32.partialorder %v2323, 8.507059e+37
        %v2325 = vand.u32 %v2313, 2147483648
        %v2326 = vor.u32 1.1754944e-38, %v2325
        %v2327 = vsel %vm2324, %v2326, %v2322
        %v2328 = vmul.f32 1.0, %v2327
        %v2329 = vtanh.pop %v2309
        %v2330 = vmul.f32 %v2328, %v2197
        %2332 = vrot.lane.b32.xlu0 %v2329, 64
        %v2333 = vpop.permute.xlu0 %2332
        %v2335 = vmul.f32 %v2328, %v2333
        %2337 = vrot.lane.b32.xlu0 %v2335, 32
        %v2338 = vpop.permute.xlu0 %2337
        %v2340 = vadd.f32 %v2330, %v2338
        %v2341 = vtanh.pop %v2340
        %2343 = vrot.lane.b32.xlu0 %v2341, 64
        %v2344 = vpop.permute.xlu0 %2343
        %v2346 = vmul.f32 %v2328, %v2344
        %v2347 = vmul.f32 %v1592, %v2340
        %v2348 = vmul.f32 %v1599, %v2197
        %v2349 = vadd.f32 %v2347, %v2348
        %v2350 = vmul.f32 %v1592, %v2346
        %v2351 = vmul.f32 %v1599, %v2200
        %v2352 = vadd.f32 %v2350, %v2351
        %2354 = vrot.lane.b32.xlu0 %v2269, 32
        %v2355 = vpop.permute.xlu0 %2354
        %v2356 = vsel %vm384, %v2355, 0
        %2358 = vmatpush.msra.mxu0 0.0
        %2359 = vmatpush.msra.mxu0 0.0
        %2360 = vmatpush.msra.mxu0 0.0
        %2361 = vmatpush.msra.mxu0 0.0
        %2362 = vmatpush.msra.mxu0 0.0
        %2363 = vmatpush.msra.mxu0 0.0
        %2364 = vmatpush.msra.mxu0 0.0
        %2365 = vmatpush.msra.mxu0 0.0
        %2366 = vmatpush.msra.mxu0 0.0
        %2367 = vmatpush.msra.mxu0 0.0
        %2368 = vmatpush.msra.mxu0 0.0
        %2369 = vmatpush.msra.mxu0 0.0
        %2370 = vmatpush.msra.mxu0 %v547
        %2371 = vmatpush.msra.mxu0 %v546
        %2372 = vmatpush.msra.mxu0 %v545
        %2373 = vmatpush.msra.mxu0 %v544
        %2374 = vmatmul.f32.gmra.mxu0 %v2356
        %v2375 = vpop.f32.mrf.mxu0
        %v2376 = vadd.f32 0.0, %v2375
        %2377 = vdwg.mxu0
        %v2378 = vadd.f32 %v2283, %v2376
        %v2379 = vsub.f32 0.0, %v2378
        %v2380 = vmul.f32 %v2379, 1.442695
        %v2381 = vpow.pop %v2380
        %v2382 = vadd.f32 %v2381, 1.0
        %v2383 = vrcp.pop %v2382
        %v2384 = vmul.f32 %v2382, %v2383
        %v2385 = vsub.f32 1.0, %v2384
        %v2386 = vmul.f32 %v2383, %v2385
        %v2387 = vadd.f32 %v2383, %v2386
        %vm2388 = vweird.f32 %v2382
        %vm2389 = vweird.f32 %v2383
        %vm2390 = vmor %vm2388, %vm2389
        %v2391 = vsel %vm2390, %v2383, %v2387
        %v2392 = vand.u32 2147483647, %v2382
        %vm2393 = vcmp.eq.f32.partialorder %v2392, 8.507059e+37
        %v2394 = vand.u32 %v2382, 2147483648
        %v2395 = vor.u32 1.1754944e-38, %v2394
        %v2396 = vsel %vm2393, %v2395, %v2391
        %v2397 = vmul.f32 1.0, %v2396
        %v2398 = vtanh.pop %v2378
        %v2399 = vmul.f32 %v2397, %v2266
        %2401 = vrot.lane.b32.xlu0 %v2398, 64
        %v2402 = vpop.permute.xlu0 %2401
        %v2404 = vmul.f32 %v2397, %v2402
        %2406 = vrot.lane.b32.xlu0 %v2404, 32
        %v2407 = vpop.permute.xlu0 %2406
        %v2409 = vadd.f32 %v2399, %v2407
        %v2410 = vtanh.pop %v2409
        %2412 = vrot.lane.b32.xlu0 %v2410, 64
        %v2413 = vpop.permute.xlu0 %2412
        %v2415 = vmul.f32 %v2397, %v2413
        %v2416 = vmul.f32 %v1512, %v2409
        %v2417 = vmul.f32 %v1519, %v2266
        %v2418 = vadd.f32 %v2416, %v2417
        %v2419 = vmul.f32 %v1512, %v2415
        %v2420 = vmul.f32 %v1519, %v2269
        %v2421 = vadd.f32 %v2419, %v2420
        %2423 = vrot.lane.b32.xlu0 %v2350, 32
        %v2424 = vpop.permute.xlu0 %2423
        %s2426 = scalar_lea.vmem %s281, 80 [#allocation3]
        %2427 = vst.msk [vmem:[%s2426] sm:$0xff] %vm384, %v2424
        %2429 = vrot.lane.b32.xlu0 %v2419, 32
        %v2430 = vpop.permute.xlu0 %2429
        %s2432 = scalar_lea.vmem %s287, 40 [#allocation4]
        %2433 = vst.msk [vmem:[%s2432] sm:$0xff] %vm384, %v2430
        %v2434 = vld [vmem:[#allocation2 + $0xb0] sm:$0xff]
        %v2435 = vld [vmem:[#allocation2 + $0x48] sm:$0xff]
        %2437 = vrot.lane.b32.xlu0 %v2352, 32
        %v2438 = vpop.permute.xlu0 %2437
        %v2439 = vsel %vm384, %v2438, 0
        %2441 = vmatpush.msra.mxu0 0.0
        %2442 = vmatpush.msra.mxu0 0.0
        %2443 = vmatpush.msra.mxu0 0.0
        %2444 = vmatpush.msra.mxu0 0.0
        %2445 = vmatpush.msra.mxu0 0.0
        %2446 = vmatpush.msra.mxu0 0.0
        %2447 = vmatpush.msra.mxu0 0.0
        %2448 = vmatpush.msra.mxu0 0.0
        %2449 = vmatpush.msra.mxu0 0.0
        %2450 = vmatpush.msra.mxu0 0.0
        %2451 = vmatpush.msra.mxu0 0.0
        %2452 = vmatpush.msra.mxu0 0.0
        %2453 = vmatpush.msra.mxu0 %v543
        %2454 = vmatpush.msra.mxu0 %v542
        %2455 = vmatpush.msra.mxu0 %v541
        %2456 = vmatpush.msra.mxu0 %v540
        %2457 = vmatmul.f32.gmra.mxu0 %v2439
        %v2458 = vpop.f32.mrf.mxu0
        %v2459 = vadd.f32 0.0, %v2458
        %2460 = vdwg.mxu0
        %v2461 = vadd.f32 %v2434, %v2459
        %v2462 = vsub.f32 0.0, %v2461
        %v2463 = vmul.f32 %v2462, 1.442695
        %v2464 = vpow.pop %v2463
        %v2465 = vadd.f32 %v2464, 1.0
        %v2466 = vrcp.pop %v2465
        %v2467 = vmul.f32 %v2465, %v2466
        %v2468 = vsub.f32 1.0, %v2467
        %v2469 = vmul.f32 %v2466, %v2468
        %v2470 = vadd.f32 %v2466, %v2469
        %vm2471 = vweird.f32 %v2465
        %vm2472 = vweird.f32 %v2466
        %vm2473 = vmor %vm2471, %vm2472
        %v2474 = vsel %vm2473, %v2466, %v2470
        %v2475 = vand.u32 2147483647, %v2465
        %vm2476 = vcmp.eq.f32.partialorder %v2475, 8.507059e+37
        %v2477 = vand.u32 %v2465, 2147483648
        %v2478 = vor.u32 1.1754944e-38, %v2477
        %v2479 = vsel %vm2476, %v2478, %v2474
        %v2480 = vmul.f32 1.0, %v2479
        %v2481 = vtanh.pop %v2461
        %v2482 = vmul.f32 %v2480, %v2349
        %2484 = vrot.lane.b32.xlu0 %v2481, 64
        %v2485 = vpop.permute.xlu0 %2484
        %v2487 = vmul.f32 %v2480, %v2485
        %2489 = vrot.lane.b32.xlu0 %v2487, 32
        %v2490 = vpop.permute.xlu0 %2489
        %v2492 = vadd.f32 %v2482, %v2490
        %v2493 = vtanh.pop %v2492
        %2495 = vrot.lane.b32.xlu0 %v2493, 64
        %v2496 = vpop.permute.xlu0 %2495
        %v2498 = vmul.f32 %v2480, %v2496
        %v2499 = vmul.f32 %v1412, %v2492
        %v2500 = vmul.f32 %v1419, %v2349
        %v2501 = vadd.f32 %v2499, %v2500
        %v2502 = vmul.f32 %v1412, %v2498
        %v2503 = vmul.f32 %v1419, %v2352
        %v2504 = vadd.f32 %v2502, %v2503
        %2506 = vrot.lane.b32.xlu0 %v2421, 32
        %v2507 = vpop.permute.xlu0 %2506
        %v2508 = vsel %vm384, %v2507, 0
        %2510 = vmatpush.msra.mxu0 0.0
        %2511 = vmatpush.msra.mxu0 0.0
        %2512 = vmatpush.msra.mxu0 0.0
        %2513 = vmatpush.msra.mxu0 0.0
        %2514 = vmatpush.msra.mxu0 0.0
        %2515 = vmatpush.msra.mxu0 0.0
        %2516 = vmatpush.msra.mxu0 0.0
        %2517 = vmatpush.msra.mxu0 0.0
        %2518 = vmatpush.msra.mxu0 0.0
        %2519 = vmatpush.msra.mxu0 0.0
        %2520 = vmatpush.msra.mxu0 0.0
        %2521 = vmatpush.msra.mxu0 0.0
        %2522 = vmatpush.msra.mxu0 %v547
        %2523 = vmatpush.msra.mxu0 %v546
        %2524 = vmatpush.msra.mxu0 %v545
        %2525 = vmatpush.msra.mxu0 %v544
        %2526 = vmatmul.f32.gmra.mxu0 %v2508
        %v2527 = vpop.f32.mrf.mxu0
        %v2528 = vadd.f32 0.0, %v2527
        %2529 = vdwg.mxu0
        %v2530 = vadd.f32 %v2435, %v2528
        %v2531 = vsub.f32 0.0, %v2530
        %v2532 = vmul.f32 %v2531, 1.442695
        %v2533 = vpow.pop %v2532
        %v2534 = vadd.f32 %v2533, 1.0
        %v2535 = vrcp.pop %v2534
        %v2536 = vmul.f32 %v2534, %v2535
        %v2537 = vsub.f32 1.0, %v2536
        %v2538 = vmul.f32 %v2535, %v2537
        %v2539 = vadd.f32 %v2535, %v2538
        %vm2540 = vweird.f32 %v2534
        %vm2541 = vweird.f32 %v2535
        %vm2542 = vmor %vm2540, %vm2541
        %v2543 = vsel %vm2542, %v2535, %v2539
        %v2544 = vand.u32 2147483647, %v2534
        %vm2545 = vcmp.eq.f32.partialorder %v2544, 8.507059e+37
        %v2546 = vand.u32 %v2534, 2147483648
        %v2547 = vor.u32 1.1754944e-38, %v2546
        %v2548 = vsel %vm2545, %v2547, %v2543
        %v2549 = vmul.f32 1.0, %v2548
        %v2550 = vtanh.pop %v2530
        %v2551 = vmul.f32 %v2549, %v2418
        %2553 = vrot.lane.b32.xlu0 %v2550, 64
        %v2554 = vpop.permute.xlu0 %2553
        %v2556 = vmul.f32 %v2549, %v2554
        %2558 = vrot.lane.b32.xlu0 %v2556, 32
        %v2559 = vpop.permute.xlu0 %2558
        %v2561 = vadd.f32 %v2551, %v2559
        %v2562 = vtanh.pop %v2561
        %2564 = vrot.lane.b32.xlu0 %v2562, 64
        %v2565 = vpop.permute.xlu0 %2564
        %v2567 = vmul.f32 %v2549, %v2565
        %v2568 = vmul.f32 %v1332, %v2561
        %v2569 = vmul.f32 %v1339, %v2418
        %v2570 = vadd.f32 %v2568, %v2569
        %v2571 = vmul.f32 %v1332, %v2567
        %v2572 = vmul.f32 %v1339, %v2421
        %v2573 = vadd.f32 %v2571, %v2572
        %2575 = vrot.lane.b32.xlu0 %v2502, 32
        %v2576 = vpop.permute.xlu0 %2575
        %s2578 = scalar_lea.vmem %s281, 88 [#allocation3]
        %2579 = vst.msk [vmem:[%s2578] sm:$0xff] %vm384, %v2576
        %2581 = vrot.lane.b32.xlu0 %v2571, 32
        %v2582 = vpop.permute.xlu0 %2581
        %s2584 = scalar_lea.vmem %s287, 32 [#allocation4]
        %2585 = vst.msk [vmem:[%s2584] sm:$0xff] %vm384, %v2582
        %v2586 = vld [vmem:[#allocation2 + $0xc0] sm:$0xff]
        %v2587 = vld [vmem:[#allocation2 + $0x38] sm:$0xff]
        %2589 = vrot.lane.b32.xlu0 %v2504, 32
        %v2590 = vpop.permute.xlu0 %2589
        %v2591 = vsel %vm384, %v2590, 0
        %2593 = vmatpush.msra.mxu0 0.0
        %2594 = vmatpush.msra.mxu0 0.0
        %2595 = vmatpush.msra.mxu0 0.0
        %2596 = vmatpush.msra.mxu0 0.0
        %2597 = vmatpush.msra.mxu0 0.0
        %2598 = vmatpush.msra.mxu0 0.0
        %2599 = vmatpush.msra.mxu0 0.0
        %2600 = vmatpush.msra.mxu0 0.0
        %2601 = vmatpush.msra.mxu0 0.0
        %2602 = vmatpush.msra.mxu0 0.0
        %2603 = vmatpush.msra.mxu0 0.0
        %2604 = vmatpush.msra.mxu0 0.0
        %2605 = vmatpush.msra.mxu0 %v543
        %2606 = vmatpush.msra.mxu0 %v542
        %2607 = vmatpush.msra.mxu0 %v541
        %2608 = vmatpush.msra.mxu0 %v540
        %2609 = vmatmul.f32.gmra.mxu0 %v2591
        %v2610 = vpop.f32.mrf.mxu0
        %v2611 = vadd.f32 0.0, %v2610
        %2612 = vdwg.mxu0
        %v2613 = vadd.f32 %v2586, %v2611
        %v2614 = vsub.f32 0.0, %v2613
        %v2615 = vmul.f32 %v2614, 1.442695
        %v2616 = vpow.pop %v2615
        %v2617 = vadd.f32 %v2616, 1.0
        %v2618 = vrcp.pop %v2617
        %v2619 = vmul.f32 %v2617, %v2618
        %v2620 = vsub.f32 1.0, %v2619
        %v2621 = vmul.f32 %v2618, %v2620
        %v2622 = vadd.f32 %v2618, %v2621
        %vm2623 = vweird.f32 %v2617
        %vm2624 = vweird.f32 %v2618
        %vm2625 = vmor %vm2623, %vm2624
        %v2626 = vsel %vm2625, %v2618, %v2622
        %v2627 = vand.u32 2147483647, %v2617
        %vm2628 = vcmp.eq.f32.partialorder %v2627, 8.507059e+37
        %v2629 = vand.u32 %v2617, 2147483648
        %v2630 = vor.u32 1.1754944e-38, %v2629
        %v2631 = vsel %vm2628, %v2630, %v2626
        %v2632 = vmul.f32 1.0, %v2631
        %v2633 = vtanh.pop %v2613
        %v2634 = vmul.f32 %v2632, %v2501
        %2636 = vrot.lane.b32.xlu0 %v2633, 64
        %v2637 = vpop.permute.xlu0 %2636
        %v2639 = vmul.f32 %v2632, %v2637
        %2641 = vrot.lane.b32.xlu0 %v2639, 32
        %v2642 = vpop.permute.xlu0 %2641
        %v2644 = vadd.f32 %v2634, %v2642
        %v2645 = vtanh.pop %v2644
        %2647 = vrot.lane.b32.xlu0 %v2645, 64
        %v2648 = vpop.permute.xlu0 %2647
        %v2650 = vmul.f32 %v2632, %v2648
        %v2651 = vmul.f32 %v1232, %v2644
        %v2652 = vmul.f32 %v1239, %v2501
        %v2653 = vadd.f32 %v2651, %v2652
        %v2654 = vmul.f32 %v1232, %v2650
        %v2655 = vmul.f32 %v1239, %v2504
        %v2656 = vadd.f32 %v2654, %v2655
        %2658 = vrot.lane.b32.xlu0 %v2573, 32
        %v2659 = vpop.permute.xlu0 %2658
        %v2660 = vsel %vm384, %v2659, 0
        %2662 = vmatpush.msra.mxu0 0.0
        %2663 = vmatpush.msra.mxu0 0.0
        %2664 = vmatpush.msra.mxu0 0.0
        %2665 = vmatpush.msra.mxu0 0.0
        %2666 = vmatpush.msra.mxu0 0.0
        %2667 = vmatpush.msra.mxu0 0.0
        %2668 = vmatpush.msra.mxu0 0.0
        %2669 = vmatpush.msra.mxu0 0.0
        %2670 = vmatpush.msra.mxu0 0.0
        %2671 = vmatpush.msra.mxu0 0.0
        %2672 = vmatpush.msra.mxu0 0.0
        %2673 = vmatpush.msra.mxu0 0.0
        %2674 = vmatpush.msra.mxu0 %v547
        %2675 = vmatpush.msra.mxu0 %v546
        %2676 = vmatpush.msra.mxu0 %v545
        %2677 = vmatpush.msra.mxu0 %v544
        %2678 = vmatmul.f32.gmra.mxu0 %v2660
        %v2679 = vpop.f32.mrf.mxu0
        %v2680 = vadd.f32 0.0, %v2679
        %2681 = vdwg.mxu0
        %v2682 = vadd.f32 %v2587, %v2680
        %v2683 = vsub.f32 0.0, %v2682
        %v2684 = vmul.f32 %v2683, 1.442695
        %v2685 = vpow.pop %v2684
        %v2686 = vadd.f32 %v2685, 1.0
        %v2687 = vrcp.pop %v2686
        %v2688 = vmul.f32 %v2686, %v2687
        %v2689 = vsub.f32 1.0, %v2688
        %v2690 = vmul.f32 %v2687, %v2689
        %v2691 = vadd.f32 %v2687, %v2690
        %vm2692 = vweird.f32 %v2686
        %vm2693 = vweird.f32 %v2687
        %vm2694 = vmor %vm2692, %vm2693
        %v2695 = vsel %vm2694, %v2687, %v2691
        %v2696 = vand.u32 2147483647, %v2686
        %vm2697 = vcmp.eq.f32.partialorder %v2696, 8.507059e+37
        %v2698 = vand.u32 %v2686, 2147483648
        %v2699 = vor.u32 1.1754944e-38, %v2698
        %v2700 = vsel %vm2697, %v2699, %v2695
        %v2701 = vmul.f32 1.0, %v2700
        %v2702 = vtanh.pop %v2682
        %v2703 = vmul.f32 %v2701, %v2570
        %2705 = vrot.lane.b32.xlu0 %v2702, 64
        %v2706 = vpop.permute.xlu0 %2705
        %v2708 = vmul.f32 %v2701, %v2706
        %2710 = vrot.lane.b32.xlu0 %v2708, 32
        %v2711 = vpop.permute.xlu0 %2710
        %v2713 = vadd.f32 %v2703, %v2711
        %v2714 = vtanh.pop %v2713
        %2716 = vrot.lane.b32.xlu0 %v2714, 64
        %v2717 = vpop.permute.xlu0 %2716
        %v2719 = vmul.f32 %v2701, %v2717
        %v2720 = vmul.f32 %v1152, %v2713
        %v2721 = vmul.f32 %v1159, %v2570
        %v2722 = vadd.f32 %v2720, %v2721
        %v2723 = vmul.f32 %v1152, %v2719
        %v2724 = vmul.f32 %v1159, %v2573
        %v2725 = vadd.f32 %v2723, %v2724
        %2727 = vrot.lane.b32.xlu0 %v2654, 32
        %v2728 = vpop.permute.xlu0 %2727
        %s2730 = scalar_lea.vmem %s281, 96 [#allocation3]
        %2731 = vst.msk [vmem:[%s2730] sm:$0xff] %vm384, %v2728
        %2733 = vrot.lane.b32.xlu0 %v2723, 32
        %v2734 = vpop.permute.xlu0 %2733
        %s2736 = scalar_lea.vmem %s287, 24 [#allocation4]
        %2737 = vst.msk [vmem:[%s2736] sm:$0xff] %vm384, %v2734
        %v2738 = vld [vmem:[#allocation2 + $0xd0] sm:$0xff]
        %v2739 = vld [vmem:[#allocation2 + $0x28] sm:$0xff]
        %2741 = vrot.lane.b32.xlu0 %v2656, 32
        %v2742 = vpop.permute.xlu0 %2741
        %v2743 = vsel %vm384, %v2742, 0
        %2745 = vmatpush.msra.mxu0 0.0
        %2746 = vmatpush.msra.mxu0 0.0
        %2747 = vmatpush.msra.mxu0 0.0
        %2748 = vmatpush.msra.mxu0 0.0
        %2749 = vmatpush.msra.mxu0 0.0
        %2750 = vmatpush.msra.mxu0 0.0
        %2751 = vmatpush.msra.mxu0 0.0
        %2752 = vmatpush.msra.mxu0 0.0
        %2753 = vmatpush.msra.mxu0 0.0
        %2754 = vmatpush.msra.mxu0 0.0
        %2755 = vmatpush.msra.mxu0 0.0
        %2756 = vmatpush.msra.mxu0 0.0
        %2757 = vmatpush.msra.mxu0 %v543
        %2758 = vmatpush.msra.mxu0 %v542
        %2759 = vmatpush.msra.mxu0 %v541
        %2760 = vmatpush.msra.mxu0 %v540
        %2761 = vmatmul.f32.gmra.mxu0 %v2743
        %v2762 = vpop.f32.mrf.mxu0
        %v2763 = vadd.f32 0.0, %v2762
        %2764 = vdwg.mxu0
        %v2765 = vadd.f32 %v2738, %v2763
        %v2766 = vsub.f32 0.0, %v2765
        %v2767 = vmul.f32 %v2766, 1.442695
        %v2768 = vpow.pop %v2767
        %v2769 = vadd.f32 %v2768, 1.0
        %v2770 = vrcp.pop %v2769
        %v2771 = vmul.f32 %v2769, %v2770
        %v2772 = vsub.f32 1.0, %v2771
        %v2773 = vmul.f32 %v2770, %v2772
        %v2774 = vadd.f32 %v2770, %v2773
        %vm2775 = vweird.f32 %v2769
        %vm2776 = vweird.f32 %v2770
        %vm2777 = vmor %vm2775, %vm2776
        %v2778 = vsel %vm2777, %v2770, %v2774
        %v2779 = vand.u32 2147483647, %v2769
        %vm2780 = vcmp.eq.f32.partialorder %v2779, 8.507059e+37
        %v2781 = vand.u32 %v2769, 2147483648
        %v2782 = vor.u32 1.1754944e-38, %v2781
        %v2783 = vsel %vm2780, %v2782, %v2778
        %v2784 = vmul.f32 1.0, %v2783
        %v2785 = vtanh.pop %v2765
        %v2786 = vmul.f32 %v2784, %v2653
        %2788 = vrot.lane.b32.xlu0 %v2785, 64
        %v2789 = vpop.permute.xlu0 %2788
        %v2791 = vmul.f32 %v2784, %v2789
        %2793 = vrot.lane.b32.xlu0 %v2791, 32
        %v2794 = vpop.permute.xlu0 %2793
        %v2796 = vadd.f32 %v2786, %v2794
        %v2797 = vtanh.pop %v2796
        %2799 = vrot.lane.b32.xlu0 %v2797, 64
        %v2800 = vpop.permute.xlu0 %2799
        %v2802 = vmul.f32 %v2784, %v2800
        %v2803 = vmul.f32 %v1052, %v2796
        %v2804 = vmul.f32 %v1059, %v2653
        %v2805 = vadd.f32 %v2803, %v2804
        %v2806 = vmul.f32 %v1052, %v2802
        %v2807 = vmul.f32 %v1059, %v2656
        %v2808 = vadd.f32 %v2806, %v2807
        %2810 = vrot.lane.b32.xlu0 %v2725, 32
        %v2811 = vpop.permute.xlu0 %2810
        %v2812 = vsel %vm384, %v2811, 0
        %2814 = vmatpush.msra.mxu0 0.0
        %2815 = vmatpush.msra.mxu0 0.0
        %2816 = vmatpush.msra.mxu0 0.0
        %2817 = vmatpush.msra.mxu0 0.0
        %2818 = vmatpush.msra.mxu0 0.0
        %2819 = vmatpush.msra.mxu0 0.0
        %2820 = vmatpush.msra.mxu0 0.0
        %2821 = vmatpush.msra.mxu0 0.0
        %2822 = vmatpush.msra.mxu0 0.0
        %2823 = vmatpush.msra.mxu0 0.0
        %2824 = vmatpush.msra.mxu0 0.0
        %2825 = vmatpush.msra.mxu0 0.0
        %2826 = vmatpush.msra.mxu0 %v547
        %2827 = vmatpush.msra.mxu0 %v546
        %2828 = vmatpush.msra.mxu0 %v545
        %2829 = vmatpush.msra.mxu0 %v544
        %2830 = vmatmul.f32.gmra.mxu0 %v2812
        %v2831 = vpop.f32.mrf.mxu0
        %v2832 = vadd.f32 0.0, %v2831
        %2833 = vdwg.mxu0
        %v2834 = vadd.f32 %v2739, %v2832
        %v2835 = vsub.f32 0.0, %v2834
        %v2836 = vmul.f32 %v2835, 1.442695
        %v2837 = vpow.pop %v2836
        %v2838 = vadd.f32 %v2837, 1.0
        %v2839 = vrcp.pop %v2838
        %v2840 = vmul.f32 %v2838, %v2839
        %v2841 = vsub.f32 1.0, %v2840
        %v2842 = vmul.f32 %v2839, %v2841
        %v2843 = vadd.f32 %v2839, %v2842
        %vm2844 = vweird.f32 %v2838
        %vm2845 = vweird.f32 %v2839
        %vm2846 = vmor %vm2844, %vm2845
        %v2847 = vsel %vm2846, %v2839, %v2843
        %v2848 = vand.u32 2147483647, %v2838
        %vm2849 = vcmp.eq.f32.partialorder %v2848, 8.507059e+37
        %v2850 = vand.u32 %v2838, 2147483648
        %v2851 = vor.u32 1.1754944e-38, %v2850
        %v2852 = vsel %vm2849, %v2851, %v2847
        %v2853 = vmul.f32 1.0, %v2852
        %v2854 = vtanh.pop %v2834
        %v2855 = vmul.f32 %v2853, %v2722
        %2857 = vrot.lane.b32.xlu0 %v2854, 64
        %v2858 = vpop.permute.xlu0 %2857
        %v2860 = vmul.f32 %v2853, %v2858
        %2862 = vrot.lane.b32.xlu0 %v2860, 32
        %v2863 = vpop.permute.xlu0 %2862
        %v2865 = vadd.f32 %v2855, %v2863
        %v2866 = vtanh.pop %v2865
        %2868 = vrot.lane.b32.xlu0 %v2866, 64
        %v2869 = vpop.permute.xlu0 %2868
        %v2871 = vmul.f32 %v2853, %v2869
        %v2872 = vmul.f32 %v972, %v2865
        %v2873 = vmul.f32 %v979, %v2722
        %v2874 = vadd.f32 %v2872, %v2873
        %v2875 = vmul.f32 %v972, %v2871
        %v2876 = vmul.f32 %v979, %v2725
        %v2877 = vadd.f32 %v2875, %v2876
        %2879 = vrot.lane.b32.xlu0 %v2806, 32
        %v2880 = vpop.permute.xlu0 %2879
        %s2882 = scalar_lea.vmem %s281, 104 [#allocation3]
        %2883 = vst.msk [vmem:[%s2882] sm:$0xff] %vm384, %v2880
        %2885 = vrot.lane.b32.xlu0 %v2875, 32
        %v2886 = vpop.permute.xlu0 %2885
        %s2888 = scalar_lea.vmem %s287, 16 [#allocation4]
        %2889 = vst.msk [vmem:[%s2888] sm:$0xff] %vm384, %v2886
        %v2890 = vld [vmem:[#allocation2 + $0xe0] sm:$0xff]
        %v2891 = vld [vmem:[#allocation2 + $0x18] sm:$0xff]
        %2893 = vrot.lane.b32.xlu0 %v2808, 32
        %v2894 = vpop.permute.xlu0 %2893
        %v2895 = vsel %vm384, %v2894, 0
        %2897 = vmatpush.msra.mxu0 0.0
        %2898 = vmatpush.msra.mxu0 0.0
        %2899 = vmatpush.msra.mxu0 0.0
        %2900 = vmatpush.msra.mxu0 0.0
        %2901 = vmatpush.msra.mxu0 0.0
        %2902 = vmatpush.msra.mxu0 0.0
        %2903 = vmatpush.msra.mxu0 0.0
        %2904 = vmatpush.msra.mxu0 0.0
        %2905 = vmatpush.msra.mxu0 0.0
        %2906 = vmatpush.msra.mxu0 0.0
        %2907 = vmatpush.msra.mxu0 0.0
        %2908 = vmatpush.msra.mxu0 0.0
        %2909 = vmatpush.msra.mxu0 %v543
        %2910 = vmatpush.msra.mxu0 %v542
        %2911 = vmatpush.msra.mxu0 %v541
        %2912 = vmatpush.msra.mxu0 %v540
        %2913 = vmatmul.f32.gmra.mxu0 %v2895
        %v2914 = vpop.f32.mrf.mxu0
        %v2915 = vadd.f32 0.0, %v2914
        %2916 = vdwg.mxu0
        %v2917 = vadd.f32 %v2890, %v2915
        %v2918 = vsub.f32 0.0, %v2917
        %v2919 = vmul.f32 %v2918, 1.442695
        %v2920 = vpow.pop %v2919
        %v2921 = vadd.f32 %v2920, 1.0
        %v2922 = vrcp.pop %v2921
        %v2923 = vmul.f32 %v2921, %v2922
        %v2924 = vsub.f32 1.0, %v2923
        %v2925 = vmul.f32 %v2922, %v2924
        %v2926 = vadd.f32 %v2922, %v2925
        %vm2927 = vweird.f32 %v2921
        %vm2928 = vweird.f32 %v2922
        %vm2929 = vmor %vm2927, %vm2928
        %v2930 = vsel %vm2929, %v2922, %v2926
        %v2931 = vand.u32 2147483647, %v2921
        %vm2932 = vcmp.eq.f32.partialorder %v2931, 8.507059e+37
        %v2933 = vand.u32 %v2921, 2147483648
        %v2934 = vor.u32 1.1754944e-38, %v2933
        %v2935 = vsel %vm2932, %v2934, %v2930
        %v2936 = vmul.f32 1.0, %v2935
        %v2937 = vtanh.pop %v2917
        %v2938 = vmul.f32 %v2936, %v2805
        %2940 = vrot.lane.b32.xlu0 %v2937, 64
        %v2941 = vpop.permute.xlu0 %2940
        %v2943 = vmul.f32 %v2936, %v2941
        %2945 = vrot.lane.b32.xlu0 %v2943, 32
        %v2946 = vpop.permute.xlu0 %2945
        %v2948 = vadd.f32 %v2938, %v2946
        %v2949 = vtanh.pop %v2948
        %2951 = vrot.lane.b32.xlu0 %v2949, 64
        %v2952 = vpop.permute.xlu0 %2951
        %v2954 = vmul.f32 %v2936, %v2952
        %v2955 = vmul.f32 %v872, %v2948
        %v2956 = vmul.f32 %v879, %v2805
        %v2957 = vadd.f32 %v2955, %v2956
        %v2958 = vmul.f32 %v872, %v2954
        %v2959 = vmul.f32 %v879, %v2808
        %v2960 = vadd.f32 %v2958, %v2959
        %2962 = vrot.lane.b32.xlu0 %v2877, 32
        %v2963 = vpop.permute.xlu0 %2962
        %v2964 = vsel %vm384, %v2963, 0
        %2966 = vmatpush.msra.mxu0 0.0
        %2967 = vmatpush.msra.mxu0 0.0
        %2968 = vmatpush.msra.mxu0 0.0
        %2969 = vmatpush.msra.mxu0 0.0
        %2970 = vmatpush.msra.mxu0 0.0
        %2971 = vmatpush.msra.mxu0 0.0
        %2972 = vmatpush.msra.mxu0 0.0
        %2973 = vmatpush.msra.mxu0 0.0
        %2974 = vmatpush.msra.mxu0 0.0
        %2975 = vmatpush.msra.mxu0 0.0
        %2976 = vmatpush.msra.mxu0 0.0
        %2977 = vmatpush.msra.mxu0 0.0
        %2978 = vmatpush.msra.mxu0 %v547
        %2979 = vmatpush.msra.mxu0 %v546
        %2980 = vmatpush.msra.mxu0 %v545
        %2981 = vmatpush.msra.mxu0 %v544
        %2982 = vmatmul.f32.gmra.mxu0 %v2964
        %v2983 = vpop.f32.mrf.mxu0
        %v2984 = vadd.f32 0.0, %v2983
        %2985 = vdwg.mxu0
        %v2986 = vadd.f32 %v2891, %v2984
        %v2987 = vsub.f32 0.0, %v2986
        %v2988 = vmul.f32 %v2987, 1.442695
        %v2989 = vpow.pop %v2988
        %v2990 = vadd.f32 %v2989, 1.0
        %v2991 = vrcp.pop %v2990
        %v2992 = vmul.f32 %v2990, %v2991
        %v2993 = vsub.f32 1.0, %v2992
        %v2994 = vmul.f32 %v2991, %v2993
        %v2995 = vadd.f32 %v2991, %v2994
        %vm2996 = vweird.f32 %v2990
        %vm2997 = vweird.f32 %v2991
        %vm2998 = vmor %vm2996, %vm2997
        %v2999 = vsel %vm2998, %v2991, %v2995
        %v3000 = vand.u32 2147483647, %v2990
        %vm3001 = vcmp.eq.f32.partialorder %v3000, 8.507059e+37
        %v3002 = vand.u32 %v2990, 2147483648
        %v3003 = vor.u32 1.1754944e-38, %v3002
        %v3004 = vsel %vm3001, %v3003, %v2999
        %v3005 = vmul.f32 1.0, %v3004
        %v3006 = vtanh.pop %v2986
        %v3007 = vmul.f32 %v3005, %v2874
        %3009 = vrot.lane.b32.xlu0 %v3006, 64
        %v3010 = vpop.permute.xlu0 %3009
        %v3012 = vmul.f32 %v3005, %v3010
        %3014 = vrot.lane.b32.xlu0 %v3012, 32
        %v3015 = vpop.permute.xlu0 %3014
        %v3017 = vadd.f32 %v3007, %v3015
        %v3018 = vtanh.pop %v3017
        %3020 = vrot.lane.b32.xlu0 %v3018, 64
        %v3021 = vpop.permute.xlu0 %3020
        %v3023 = vmul.f32 %v3005, %v3021
        %v3024 = vmul.f32 %v792, %v3017
        %v3025 = vmul.f32 %v799, %v2874
        %v3026 = vadd.f32 %v3024, %v3025
        %v3027 = vmul.f32 %v792, %v3023
        %v3028 = vmul.f32 %v799, %v2877
        %v3029 = vadd.f32 %v3027, %v3028
        %3031 = vrot.lane.b32.xlu0 %v2958, 32
        %v3032 = vpop.permute.xlu0 %3031
        %s3034 = scalar_lea.vmem %s281, 112 [#allocation3]
        %3035 = vst.msk [vmem:[%s3034] sm:$0xff] %vm384, %v3032
        %3037 = vrot.lane.b32.xlu0 %v3027, 32
        %v3038 = vpop.permute.xlu0 %3037
        %s3040 = scalar_lea.vmem %s287, 8 [#allocation4]
        %3041 = vst.msk [vmem:[%s3040] sm:$0xff] %vm384, %v3038
        %v3042 = vld [vmem:[#allocation2 + $0xf0] sm:$0xff]
        %v3043 = vld [vmem:[#allocation2 + $0x8] sm:$0xff]
        %3045 = vrot.lane.b32.xlu0 %v2960, 32
        %v3046 = vpop.permute.xlu0 %3045
        %v3047 = vsel %vm384, %v3046, 0
        %3049 = vmatpush.msra.mxu0 0.0
        %3050 = vmatpush.msra.mxu0 0.0
        %3051 = vmatpush.msra.mxu0 0.0
        %3052 = vmatpush.msra.mxu0 0.0
        %3053 = vmatpush.msra.mxu0 0.0
        %3054 = vmatpush.msra.mxu0 0.0
        %3055 = vmatpush.msra.mxu0 0.0
        %3056 = vmatpush.msra.mxu0 0.0
        %3057 = vmatpush.msra.mxu0 0.0
        %3058 = vmatpush.msra.mxu0 0.0
        %3059 = vmatpush.msra.mxu0 0.0
        %3060 = vmatpush.msra.mxu0 0.0
        %3061 = vmatpush.msra.mxu0 %v543
        %3062 = vmatpush.msra.mxu0 %v542
        %3063 = vmatpush.msra.mxu0 %v541
        %3064 = vmatpush.msra.mxu0 %v540
        %3065 = vmatmul.f32.gmra.mxu0 %v3047
        %v3066 = vpop.f32.mrf.mxu0
        %v3067 = vadd.f32 0.0, %v3066
        %3068 = vdwg.mxu0
        %v3069 = vadd.f32 %v3042, %v3067
        %v3070 = vsub.f32 0.0, %v3069
        %v3071 = vmul.f32 %v3070, 1.442695
        %v3072 = vpow.pop %v3071
        %v3073 = vadd.f32 %v3072, 1.0
        %v3074 = vrcp.pop %v3073
        %v3075 = vmul.f32 %v3073, %v3074
        %v3076 = vsub.f32 1.0, %v3075
        %v3077 = vmul.f32 %v3074, %v3076
        %v3078 = vadd.f32 %v3074, %v3077
        %vm3079 = vweird.f32 %v3073
        %vm3080 = vweird.f32 %v3074
        %vm3081 = vmor %vm3079, %vm3080
        %v3082 = vsel %vm3081, %v3074, %v3078
        %v3083 = vand.u32 2147483647, %v3073
        %vm3084 = vcmp.eq.f32.partialorder %v3083, 8.507059e+37
        %v3085 = vand.u32 %v3073, 2147483648
        %v3086 = vor.u32 1.1754944e-38, %v3085
        %v3087 = vsel %vm3084, %v3086, %v3082
        %v3088 = vmul.f32 1.0, %v3087
        %v3089 = vtanh.pop %v3069
        %v3090 = vmul.f32 %v3088, %v2957
        %3092 = vrot.lane.b32.xlu0 %v3089, 64
        %v3093 = vpop.permute.xlu0 %3092
        %v3095 = vmul.f32 %v3088, %v3093
        %3097 = vrot.lane.b32.xlu0 %v3095, 32
        %v3098 = vpop.permute.xlu0 %3097
        %v3100 = vadd.f32 %v3090, %v3098
        %v3101 = vtanh.pop %v3100
        %3103 = vrot.lane.b32.xlu0 %v3101, 64
        %v3104 = vpop.permute.xlu0 %3103
        %v3106 = vmul.f32 %v3088, %v3104
        %v3107 = vmul.f32 %v694, %v3106
        %3109 = vrot.lane.b32.xlu0 %v3029, 32
        %v3110 = vpop.permute.xlu0 %3109
        %v3111 = vsel %vm384, %v3110, 0
        %3113 = vmatpush.msra.mxu0 0.0
        %3114 = vmatpush.msra.mxu0 0.0
        %3115 = vmatpush.msra.mxu0 0.0
        %3116 = vmatpush.msra.mxu0 0.0
        %3117 = vmatpush.msra.mxu0 0.0
        %3118 = vmatpush.msra.mxu0 0.0
        %3119 = vmatpush.msra.mxu0 0.0
        %3120 = vmatpush.msra.mxu0 0.0
        %3121 = vmatpush.msra.mxu0 0.0
        %3122 = vmatpush.msra.mxu0 0.0
        %3123 = vmatpush.msra.mxu0 0.0
        %3124 = vmatpush.msra.mxu0 0.0
        %3125 = vmatpush.msra.mxu0 %v547
        %3126 = vmatpush.msra.mxu0 %v546
        %3127 = vmatpush.msra.mxu0 %v545
        %3128 = vmatpush.msra.mxu0 %v544
        %3129 = vmatmul.f32.gmra.mxu0 %v3111
        %v3130 = vpop.f32.mrf.mxu0
        %v3131 = vadd.f32 0.0, %v3130
        %3132 = vdwg.mxu0
        %v3133 = vadd.f32 %v3043, %v3131
        %v3134 = vsub.f32 0.0, %v3133
        %v3135 = vmul.f32 %v3134, 1.442695
        %v3136 = vpow.pop %v3135
        %v3137 = vadd.f32 %v3136, 1.0
        %v3138 = vrcp.pop %v3137
        %v3139 = vmul.f32 %v3137, %v3138
        %v3140 = vsub.f32 1.0, %v3139
        %v3141 = vmul.f32 %v3138, %v3140
        %v3142 = vadd.f32 %v3138, %v3141
        %vm3143 = vweird.f32 %v3137
        %vm3144 = vweird.f32 %v3138
        %vm3145 = vmor %vm3143, %vm3144
        %v3146 = vsel %vm3145, %v3138, %v3142
        %v3147 = vand.u32 2147483647, %v3137
        %vm3148 = vcmp.eq.f32.partialorder %v3147, 8.507059e+37
        %v3149 = vand.u32 %v3137, 2147483648
        %v3150 = vor.u32 1.1754944e-38, %v3149
        %v3151 = vsel %vm3148, %v3150, %v3146
        %v3152 = vmul.f32 1.0, %v3151
        %v3153 = vtanh.pop %v3133
        %v3154 = vmul.f32 %v3152, %v3026
        %3156 = vrot.lane.b32.xlu0 %v3153, 64
        %v3157 = vpop.permute.xlu0 %3156
        %v3159 = vmul.f32 %v3152, %v3157
        %3161 = vrot.lane.b32.xlu0 %v3159, 32
        %v3162 = vpop.permute.xlu0 %3161
        %v3164 = vadd.f32 %v3154, %v3162
        %v3165 = vtanh.pop %v3164
        %3167 = vrot.lane.b32.xlu0 %v3165, 64
        %v3168 = vpop.permute.xlu0 %3167
        %v3170 = vmul.f32 %v3152, %v3168
        %v3171 = vmul.f32 %v620, %v3170
        %3173 = vrot.lane.b32.xlu0 %v3107, 32
        %v3174 = vpop.permute.xlu0 %3173
        %s3176 = scalar_lea.vmem %s281, 120 [#allocation3]
        %3177 = vst.msk [vmem:[%s3176] sm:$0xff] %vm384, %v3174
        %3179 = vrot.lane.b32.xlu0 %v3171, 32
        %v3180 = vpop.permute.xlu0 %3179
        %3182 = vst.msk [vmem:[%s287] sm:$0xff] %vm384, %v3180
        %s3183 = sand.u32 %s163, 1
        %s3184 = sand.u32 %s163, 1
        %s3185 = smul.addr %s3184, 128
        %s3186 = scalar_lea.vmem [#allocation3], %s3185
        %s3187 = sand.u32 %s189, 1
        %s3188 = sand.u32 %s189, 1
        %s3189 = smul.addr %s3188, 128
        %s3190 = scalar_lea.vmem [#allocation4], %s3189
        // Predicated region
        $region45: #{bilstm_embedding_forward.1} parent=43 // pred_check
          %p3191 = pneg %p173
        $region46: #{bilstm_embedding_forward.1} parent=43 // pred_check_branch
          %3193 = sbr.rel (%p3191) target = $region48
        $region47: #{bilstm_embedding_forward.1} parent=43 // pred_region
          %s3194 = smul.addr %s19, 8
          %s3195 = scalar_lea.vmem %s6, %s3194
          // Predicated region
          $region49: #{bilstm_embedding_forward.1} parent=47 // pred_check
            _
          $region50: #{bilstm_embedding_forward.1} parent=47 // pred_check_branch
            %3197 = sbr.rel (0) target = $region52
          $region51: #{bilstm_embedding_forward.1} parent=47 // pred_region
            // Predicated region
            $region53: #{bilstm_embedding_forward.1} parent=51 // pred_check
              _
            $region54: #{bilstm_embedding_forward.1} parent=51 // pred_check_branch
              %3199 = sbr.rel (0) target = $region56
            $region55: #{bilstm_embedding_forward.1} parent=51 // pred_region
              // Predicated region
              $region68: #{bilstm_embedding_forward.1} parent=55 // pred_check
                _
              $region69: #{bilstm_embedding_forward.1} parent=55 // pred_check_branch
                %3245 = sbr.rel (0) target = $region71
              $region70: #{bilstm_embedding_forward.1} parent=55 // pred_region
                loop: start=0, step=1, limit=1
                $region72: #{bilstm_embedding_forward.1} parent=70 // loop_pre_header
                  _
                $region73: #{bilstm_embedding_forward.1} parent=70 // loop_header
                  %s3247 = sphi 0, %s3251
                  %p3248 = scmp.ge.s32.totalorder %s3247, 1
                  %s3252 = sphi %s3186, %s3186
                  %s3253 = sphi %s3195, %s3195
                $region74: #{bilstm_embedding_forward.1} parent=70 // loop_header_branch
                  %3250 = sbr.rel (%p3248) target = $region78
                $region75: #{bilstm_embedding_forward.1} parent=70 // loop_body
                  %v3254 = vld [vmem:[%s3252] sm:$0xff]
                  %3255 = vst [vmem:[%s3253] sm:$0xff] %v3254
                  %v3256 = vld [vmem:[%s3252 + $0x8] sm:$0xff]
                  %3257 = vst [vmem:[%s3253 + $0x10] sm:$0xff] %v3256
                  %v3258 = vld [vmem:[%s3252 + $0x10] sm:$0xff]
                  %3259 = vst [vmem:[%s3253 + $0x20] sm:$0xff] %v3258
                  %v3260 = vld [vmem:[%s3252 + $0x18] sm:$0xff]
                  %3261 = vst [vmem:[%s3253 + $0x30] sm:$0xff] %v3260
                  %v3262 = vld [vmem:[%s3252 + $0x20] sm:$0xff]
                  %3263 = vst [vmem:[%s3253 + $0x40] sm:$0xff] %v3262
                  %v3264 = vld [vmem:[%s3252 + $0x28] sm:$0xff]
                  %3265 = vst [vmem:[%s3253 + $0x50] sm:$0xff] %v3264
                  %v3266 = vld [vmem:[%s3252 + $0x30] sm:$0xff]
                  %3267 = vst [vmem:[%s3253 + $0x60] sm:$0xff] %v3266
                  %v3268 = vld [vmem:[%s3252 + $0x38] sm:$0xff]
                  %3269 = vst [vmem:[%s3253 + $0x70] sm:$0xff] %v3268
                  %v3270 = vld [vmem:[%s3252 + $0x40] sm:$0xff]
                  %3271 = vst [vmem:[%s3253 + $0x80] sm:$0xff] %v3270
                  %v3272 = vld [vmem:[%s3252 + $0x48] sm:$0xff]
                  %3273 = vst [vmem:[%s3253 + $0x90] sm:$0xff] %v3272
                  %v3274 = vld [vmem:[%s3252 + $0x50] sm:$0xff]
                  %3275 = vst [vmem:[%s3253 + $0xa0] sm:$0xff] %v3274
                  %v3276 = vld [vmem:[%s3252 + $0x58] sm:$0xff]
                  %3277 = vst [vmem:[%s3253 + $0xb0] sm:$0xff] %v3276
                  %v3278 = vld [vmem:[%s3252 + $0x60] sm:$0xff]
                  %3279 = vst [vmem:[%s3253 + $0xc0] sm:$0xff] %v3278
                  %v3280 = vld [vmem:[%s3252 + $0x68] sm:$0xff]
                  %3281 = vst [vmem:[%s3253 + $0xd0] sm:$0xff] %v3280
                  %v3282 = vld [vmem:[%s3252 + $0x70] sm:$0xff]
                  %3283 = vst [vmem:[%s3253 + $0xe0] sm:$0xff] %v3282
                  %v3284 = vld [vmem:[%s3252 + $0x78] sm:$0xff]
                  %3285 = vst [vmem:[%s3253 + $0xf0] sm:$0xff] %v3284
                $region76: #{bilstm_embedding_forward.1} parent=70 // loop_footer
                  %s3251 = sadd.s32 1, %s3247
                $region77: #{bilstm_embedding_forward.1} parent=70 // loop_footer_branch
                  %3246 = sbr.rel target = $region73
                $region78: #{bilstm_embedding_forward.1} parent=70 // loop_exit
                  _
              $region71: #{bilstm_embedding_forward.1} parent=55 // pred_fallthru
                _
              // Predicated region
              $region79: #{bilstm_embedding_forward.1} parent=55 // pred_check
                _
              $region80: #{bilstm_embedding_forward.1} parent=55 // pred_check_branch
                %3287 = sbr.rel target = $region82
              $region81: #{bilstm_embedding_forward.1} parent=55 // pred_region
                _
              $region82: #{bilstm_embedding_forward.1} parent=55 // pred_fallthru
                _
            $region56: #{bilstm_embedding_forward.1} parent=51 // pred_fallthru
              _
            // Predicated region
            $region57: #{bilstm_embedding_forward.1} parent=51 // pred_check
              _
            $region58: #{bilstm_embedding_forward.1} parent=51 // pred_check_branch
              %3201 = sbr.rel target = $region60
            $region59: #{bilstm_embedding_forward.1} parent=51 // pred_region
              %s3203 = ssub.s32 256, 1
              loop: start=0, step=1, limit=1
              $region61: #{bilstm_embedding_forward.1} parent=59 // loop_pre_header
                _
              $region62: #{bilstm_embedding_forward.1} parent=59 // loop_header
                %s3205 = sphi 0, %s3209
                %p3206 = scmp.ge.s32.totalorder %s3205, 1
                %s3210 = sphi %s3186, %s3186
                %s3211 = sphi %s3195, %s3195
              $region63: #{bilstm_embedding_forward.1} parent=59 // loop_header_branch
                %3208 = sbr.rel (%p3206) target = $region67
              $region64: #{bilstm_embedding_forward.1} parent=59 // loop_body
                %v3212 = vld [vmem:[%s3210] sm:%s3203]
                %3213 = vst [vmem:[%s3211] sm:%s3203] %v3212
                %v3214 = vld [vmem:[%s3210 + $0x8] sm:%s3203]
                %3215 = vst [vmem:[%s3211 + $0x10] sm:%s3203] %v3214
                %v3216 = vld [vmem:[%s3210 + $0x10] sm:%s3203]
                %3217 = vst [vmem:[%s3211 + $0x20] sm:%s3203] %v3216
                %v3218 = vld [vmem:[%s3210 + $0x18] sm:%s3203]
                %3219 = vst [vmem:[%s3211 + $0x30] sm:%s3203] %v3218
                %v3220 = vld [vmem:[%s3210 + $0x20] sm:%s3203]
                %3221 = vst [vmem:[%s3211 + $0x40] sm:%s3203] %v3220
                %v3222 = vld [vmem:[%s3210 + $0x28] sm:%s3203]
                %3223 = vst [vmem:[%s3211 + $0x50] sm:%s3203] %v3222
                %v3224 = vld [vmem:[%s3210 + $0x30] sm:%s3203]
                %3225 = vst [vmem:[%s3211 + $0x60] sm:%s3203] %v3224
                %v3226 = vld [vmem:[%s3210 + $0x38] sm:%s3203]
                %3227 = vst [vmem:[%s3211 + $0x70] sm:%s3203] %v3226
                %v3228 = vld [vmem:[%s3210 + $0x40] sm:%s3203]
                %3229 = vst [vmem:[%s3211 + $0x80] sm:%s3203] %v3228
                %v3230 = vld [vmem:[%s3210 + $0x48] sm:%s3203]
                %3231 = vst [vmem:[%s3211 + $0x90] sm:%s3203] %v3230
                %v3232 = vld [vmem:[%s3210 + $0x50] sm:%s3203]
                %3233 = vst [vmem:[%s3211 + $0xa0] sm:%s3203] %v3232
                %v3234 = vld [vmem:[%s3210 + $0x58] sm:%s3203]
                %3235 = vst [vmem:[%s3211 + $0xb0] sm:%s3203] %v3234
                %v3236 = vld [vmem:[%s3210 + $0x60] sm:%s3203]
                %3237 = vst [vmem:[%s3211 + $0xc0] sm:%s3203] %v3236
                %v3238 = vld [vmem:[%s3210 + $0x68] sm:%s3203]
                %3239 = vst [vmem:[%s3211 + $0xd0] sm:%s3203] %v3238
                %v3240 = vld [vmem:[%s3210 + $0x70] sm:%s3203]
                %3241 = vst [vmem:[%s3211 + $0xe0] sm:%s3203] %v3240
                %v3242 = vld [vmem:[%s3210 + $0x78] sm:%s3203]
                %3243 = vst [vmem:[%s3211 + $0xf0] sm:%s3203] %v3242
              $region65: #{bilstm_embedding_forward.1} parent=59 // loop_footer
                %s3209 = sadd.s32 1, %s3205
              $region66: #{bilstm_embedding_forward.1} parent=59 // loop_footer_branch
                %3204 = sbr.rel target = $region62
              $region67: #{bilstm_embedding_forward.1} parent=59 // loop_exit
                _
            $region60: #{bilstm_embedding_forward.1} parent=51 // pred_fallthru
              _
          $region52: #{bilstm_embedding_forward.1} parent=47 // pred_fallthru
            _
          %3288 = vnop
        $region48: #{bilstm_embedding_forward.1} parent=43 // pred_fallthru
          _
        // Predicated region
        $region83: #{bilstm_embedding_forward.1} parent=43 // pred_check
          %p3289 = pneg %p199
        $region84: #{bilstm_embedding_forward.1} parent=43 // pred_check_branch
          %3291 = sbr.rel (%p3289) target = $region86
        $region85: #{bilstm_embedding_forward.1} parent=43 // pred_region
          %s3292 = smul.addr %s19, 8
          %s3293 = scalar_lea.vmem %s7, %s3292
          // Predicated region
          $region87: #{bilstm_embedding_forward.1} parent=85 // pred_check
            _
          $region88: #{bilstm_embedding_forward.1} parent=85 // pred_check_branch
            %3295 = sbr.rel (0) target = $region90
          $region89: #{bilstm_embedding_forward.1} parent=85 // pred_region
            // Predicated region
            $region91: #{bilstm_embedding_forward.1} parent=89 // pred_check
              _
            $region92: #{bilstm_embedding_forward.1} parent=89 // pred_check_branch
              %3297 = sbr.rel (0) target = $region94
            $region93: #{bilstm_embedding_forward.1} parent=89 // pred_region
              // Predicated region
              $region106: #{bilstm_embedding_forward.1} parent=93 // pred_check
                _
              $region107: #{bilstm_embedding_forward.1} parent=93 // pred_check_branch
                %3343 = sbr.rel (0) target = $region109
              $region108: #{bilstm_embedding_forward.1} parent=93 // pred_region
                loop: start=0, step=1, limit=1
                $region110: #{bilstm_embedding_forward.1} parent=108 // loop_pre_header
                  _
                $region111: #{bilstm_embedding_forward.1} parent=108 // loop_header
                  %s3345 = sphi 0, %s3349
                  %p3346 = scmp.ge.s32.totalorder %s3345, 1
                  %s3350 = sphi %s3190, %s3190
                  %s3351 = sphi %s3293, %s3293
                $region112: #{bilstm_embedding_forward.1} parent=108 // loop_header_branch
                  %3348 = sbr.rel (%p3346) target = $region116
                $region113: #{bilstm_embedding_forward.1} parent=108 // loop_body
                  %v3352 = vld [vmem:[%s3350] sm:$0xff]
                  %3353 = vst [vmem:[%s3351] sm:$0xff] %v3352
                  %v3354 = vld [vmem:[%s3350 + $0x8] sm:$0xff]
                  %3355 = vst [vmem:[%s3351 + $0x10] sm:$0xff] %v3354
                  %v3356 = vld [vmem:[%s3350 + $0x10] sm:$0xff]
                  %3357 = vst [vmem:[%s3351 + $0x20] sm:$0xff] %v3356
                  %v3358 = vld [vmem:[%s3350 + $0x18] sm:$0xff]
                  %3359 = vst [vmem:[%s3351 + $0x30] sm:$0xff] %v3358
                  %v3360 = vld [vmem:[%s3350 + $0x20] sm:$0xff]
                  %3361 = vst [vmem:[%s3351 + $0x40] sm:$0xff] %v3360
                  %v3362 = vld [vmem:[%s3350 + $0x28] sm:$0xff]
                  %3363 = vst [vmem:[%s3351 + $0x50] sm:$0xff] %v3362
                  %v3364 = vld [vmem:[%s3350 + $0x30] sm:$0xff]
                  %3365 = vst [vmem:[%s3351 + $0x60] sm:$0xff] %v3364
                  %v3366 = vld [vmem:[%s3350 + $0x38] sm:$0xff]
                  %3367 = vst [vmem:[%s3351 + $0x70] sm:$0xff] %v3366
                  %v3368 = vld [vmem:[%s3350 + $0x40] sm:$0xff]
                  %3369 = vst [vmem:[%s3351 + $0x80] sm:$0xff] %v3368
                  %v3370 = vld [vmem:[%s3350 + $0x48] sm:$0xff]
                  %3371 = vst [vmem:[%s3351 + $0x90] sm:$0xff] %v3370
                  %v3372 = vld [vmem:[%s3350 + $0x50] sm:$0xff]
                  %3373 = vst [vmem:[%s3351 + $0xa0] sm:$0xff] %v3372
                  %v3374 = vld [vmem:[%s3350 + $0x58] sm:$0xff]
                  %3375 = vst [vmem:[%s3351 + $0xb0] sm:$0xff] %v3374
                  %v3376 = vld [vmem:[%s3350 + $0x60] sm:$0xff]
                  %3377 = vst [vmem:[%s3351 + $0xc0] sm:$0xff] %v3376
                  %v3378 = vld [vmem:[%s3350 + $0x68] sm:$0xff]
                  %3379 = vst [vmem:[%s3351 + $0xd0] sm:$0xff] %v3378
                  %v3380 = vld [vmem:[%s3350 + $0x70] sm:$0xff]
                  %3381 = vst [vmem:[%s3351 + $0xe0] sm:$0xff] %v3380
                  %v3382 = vld [vmem:[%s3350 + $0x78] sm:$0xff]
                  %3383 = vst [vmem:[%s3351 + $0xf0] sm:$0xff] %v3382
                $region114: #{bilstm_embedding_forward.1} parent=108 // loop_footer
                  %s3349 = sadd.s32 1, %s3345
                $region115: #{bilstm_embedding_forward.1} parent=108 // loop_footer_branch
                  %3344 = sbr.rel target = $region111
                $region116: #{bilstm_embedding_forward.1} parent=108 // loop_exit
                  _
              $region109: #{bilstm_embedding_forward.1} parent=93 // pred_fallthru
                _
              // Predicated region
              $region117: #{bilstm_embedding_forward.1} parent=93 // pred_check
                _
              $region118: #{bilstm_embedding_forward.1} parent=93 // pred_check_branch
                %3385 = sbr.rel target = $region120
              $region119: #{bilstm_embedding_forward.1} parent=93 // pred_region
                _
              $region120: #{bilstm_embedding_forward.1} parent=93 // pred_fallthru
                _
            $region94: #{bilstm_embedding_forward.1} parent=89 // pred_fallthru
              _
            // Predicated region
            $region95: #{bilstm_embedding_forward.1} parent=89 // pred_check
              _
            $region96: #{bilstm_embedding_forward.1} parent=89 // pred_check_branch
              %3299 = sbr.rel target = $region98
            $region97: #{bilstm_embedding_forward.1} parent=89 // pred_region
              %s3301 = ssub.s32 256, 1
              loop: start=0, step=1, limit=1
              $region99: #{bilstm_embedding_forward.1} parent=97 // loop_pre_header
                _
              $region100: #{bilstm_embedding_forward.1} parent=97 // loop_header
                %s3303 = sphi 0, %s3307
                %p3304 = scmp.ge.s32.totalorder %s3303, 1
                %s3308 = sphi %s3190, %s3190
                %s3309 = sphi %s3293, %s3293
              $region101: #{bilstm_embedding_forward.1} parent=97 // loop_header_branch
                %3306 = sbr.rel (%p3304) target = $region105
              $region102: #{bilstm_embedding_forward.1} parent=97 // loop_body
                %v3310 = vld [vmem:[%s3308] sm:%s3301]
                %3311 = vst [vmem:[%s3309] sm:%s3301] %v3310
                %v3312 = vld [vmem:[%s3308 + $0x8] sm:%s3301]
                %3313 = vst [vmem:[%s3309 + $0x10] sm:%s3301] %v3312
                %v3314 = vld [vmem:[%s3308 + $0x10] sm:%s3301]
                %3315 = vst [vmem:[%s3309 + $0x20] sm:%s3301] %v3314
                %v3316 = vld [vmem:[%s3308 + $0x18] sm:%s3301]
                %3317 = vst [vmem:[%s3309 + $0x30] sm:%s3301] %v3316
                %v3318 = vld [vmem:[%s3308 + $0x20] sm:%s3301]
                %3319 = vst [vmem:[%s3309 + $0x40] sm:%s3301] %v3318
                %v3320 = vld [vmem:[%s3308 + $0x28] sm:%s3301]
                %3321 = vst [vmem:[%s3309 + $0x50] sm:%s3301] %v3320
                %v3322 = vld [vmem:[%s3308 + $0x30] sm:%s3301]
                %3323 = vst [vmem:[%s3309 + $0x60] sm:%s3301] %v3322
                %v3324 = vld [vmem:[%s3308 + $0x38] sm:%s3301]
                %3325 = vst [vmem:[%s3309 + $0x70] sm:%s3301] %v3324
                %v3326 = vld [vmem:[%s3308 + $0x40] sm:%s3301]
                %3327 = vst [vmem:[%s3309 + $0x80] sm:%s3301] %v3326
                %v3328 = vld [vmem:[%s3308 + $0x48] sm:%s3301]
                %3329 = vst [vmem:[%s3309 + $0x90] sm:%s3301] %v3328
                %v3330 = vld [vmem:[%s3308 + $0x50] sm:%s3301]
                %3331 = vst [vmem:[%s3309 + $0xa0] sm:%s3301] %v3330
                %v3332 = vld [vmem:[%s3308 + $0x58] sm:%s3301]
                %3333 = vst [vmem:[%s3309 + $0xb0] sm:%s3301] %v3332
                %v3334 = vld [vmem:[%s3308 + $0x60] sm:%s3301]
                %3335 = vst [vmem:[%s3309 + $0xc0] sm:%s3301] %v3334
                %v3336 = vld [vmem:[%s3308 + $0x68] sm:%s3301]
                %3337 = vst [vmem:[%s3309 + $0xd0] sm:%s3301] %v3336
                %v3338 = vld [vmem:[%s3308 + $0x70] sm:%s3301]
                %3339 = vst [vmem:[%s3309 + $0xe0] sm:%s3301] %v3338
                %v3340 = vld [vmem:[%s3308 + $0x78] sm:%s3301]
                %3341 = vst [vmem:[%s3309 + $0xf0] sm:%s3301] %v3340
              $region103: #{bilstm_embedding_forward.1} parent=97 // loop_footer
                %s3307 = sadd.s32 1, %s3303
              $region104: #{bilstm_embedding_forward.1} parent=97 // loop_footer_branch
                %3302 = sbr.rel target = $region100
              $region105: #{bilstm_embedding_forward.1} parent=97 // loop_exit
                _
            $region98: #{bilstm_embedding_forward.1} parent=89 // pred_fallthru
              _
          $region90: #{bilstm_embedding_forward.1} parent=85 // pred_fallthru
            _
          %3386 = vnop
        $region86: #{bilstm_embedding_forward.1} parent=43 // pred_fallthru
          _
      $region44: #{bilstm_embedding_forward.1} parent=5 // pred_fallthru
        _
      %p3387 = scmp.le.s32.totalorder 2, %s14
      // Predicated region
      $region121: #{bilstm_embedding_forward.1} parent=5 // pred_check
        %p3388 = pneg %p3387
      $region122: #{bilstm_embedding_forward.1} parent=5 // pred_check_branch
        %3390 = sbr.rel (%p3388) target = $region124
      $region123: #{bilstm_embedding_forward.1} parent=5 // pred_region
        %s3391 = ssub.s32 %s14, 2
        // Predicated region
        $region125: #{bilstm_embedding_forward.1} parent=123 // pred_check
          %p3392 = pneg %p179
        $region126: #{bilstm_embedding_forward.1} parent=123 // pred_check_branch
          %3394 = sbr.rel (%p3392) target = $region128
        $region127: #{bilstm_embedding_forward.1} parent=123 // pred_region
          %s3395 = sand.u32 %s164, 1
          %s3396 = sand.u32 %s164, 1
          %s3397 = smul.addr %s3396, 128
          %s3398 = scalar_lea.vmem [#allocation3], %s3397
        $region128: #{bilstm_embedding_forward.1} parent=123 // pred_fallthru
          _
        // Predicated region
        $region129: #{bilstm_embedding_forward.1} parent=123 // pred_check
          %p3399 = pneg %p205
        $region130: #{bilstm_embedding_forward.1} parent=123 // pred_check_branch
          %3401 = sbr.rel (%p3399) target = $region132
        $region131: #{bilstm_embedding_forward.1} parent=123 // pred_region
          %s3402 = sand.u32 %s190, 1
          %s3403 = sand.u32 %s190, 1
          %s3404 = smul.addr %s3403, 128
          %s3405 = scalar_lea.vmem [#allocation4], %s3404
        $region132: #{bilstm_embedding_forward.1} parent=123 // pred_fallthru
          _
      $region124: #{bilstm_embedding_forward.1} parent=5 // pred_fallthru
        _
    $region6: #{bilstm_embedding_forward.1} parent=1 // loop_footer
      %s18 = sadd.s32 1, %s14
    $region7: #{bilstm_embedding_forward.1} parent=1 // loop_footer_branch
      %13 = sbr.rel target = $region3
    $region8: #{bilstm_embedding_forward.1} parent=1 // loop_exit
      _

</llo_original>
